<compile_context>
chip_gen: v6e
topology: v6e:2x2x1
jax: 0.10.0
libtpu: 0.0.40
codegen_flags: <defaults>
</compile_context>

<pallas_src>
import functools
from collections import OrderedDict

import jax
import jax.numpy as jnp
from jax.experimental import pallas as pl
from jax.experimental.pallas import tpu as pltpu


# ----------------------------------------------------------------------------
# Small helpers (traced inside kernels)
# ----------------------------------------------------------------------------

def _layernorm(x, g, b, eps):
    mu = jnp.mean(x, axis=-1, keepdims=True)
    xc = x - mu
    var = jnp.mean(xc * xc, axis=-1, keepdims=True)
    return xc * jax.lax.rsqrt(var + eps) * g + b


# ----------------------------------------------------------------------------
# Pallas kernels
# ----------------------------------------------------------------------------

def _matmul_kernel(x_ref, w_ref, o_ref):
    # Bias-less linear (used for the patch-embed "conv as matmul").
    o_ref[...] = jnp.dot(x_ref[...], w_ref[...],
                         preferred_element_type=jnp.float32).astype(o_ref.dtype)


def pallas_matmul(x, w):
    M, K = x.shape
    N = w.shape[1]
    return pl.pallas_call(
        _matmul_kernel,
        out_shape=jax.ShapeDtypeStruct((M, N), jnp.float32),
        grid=(1,),
        in_specs=[
            pl.BlockSpec((M, K), lambda i: (0, 0)),
            pl.BlockSpec((K, N), lambda i: (0, 0)),
        ],
        out_specs=pl.BlockSpec((M, N), lambda i: (0, 0)),
    )(x.astype(jnp.float32), w.astype(jnp.float32))


def _tower_kernel(x_ref, pad_ref,
                  preg_ref, preb_ref, fing_ref, finb_ref,
                  ln1g_ref, ln1b_ref, wqkv_ref, bqkv_ref, wo_ref, bo_ref,
                  ln2g_ref, ln2b_ref, wfc1_ref, bfc1_ref, wfc2_ref, bfc2_ref,
                  o_ref, x_sc,
                  *, B, S, H, eps, causal, apply_pre_ln, apply_final_ln):
    """One fused pre-LN CLIP encoder layer per grid step; activation lives in VMEM scratch."""
    l = pl.program_id(0)
    D = x_ref.shape[1]
    Dh = D // H

    @pl.when(l == 0)
    def _init():
        x0 = x_ref[...].astype(jnp.float32)
        if apply_pre_ln:                      # vision pre-layernorm
            x0 = _layernorm(x0, preg_ref[...], preb_ref[...], eps)
        x_sc[...] = x0

    x = x_sc[...]                              # (B*S, D) f32, VMEM-resident

    # ---- attention block (pre-LN, packed QKV, in-kernel head split) ----
    h1 = _layernorm(x, ln1g_ref[0], ln1b_ref[0], eps)
    qkv = jnp.dot(h1, wqkv_ref[0], preferred_element_type=jnp.float32) + bqkv_ref[0]
    scale = Dh ** -0.5
    q = qkv[:, 0:D] * scale
    k = qkv[:, D:2 * D]
    v = qkv[:, 2 * D:3 * D]

    row = jax.lax.broadcasted_iota(jnp.int32, (S, S), 0)
    col = jax.lax.broadcasted_iota(jnp.int32, (S, S), 1)
    if causal:
        base_bias = jnp.where(col > row, -1e9, 0.0).astype(jnp.float32)
    else:
        base_bias = jnp.zeros((S, S), jnp.float32)
    pad = pad_ref[...]                         # (B, S) additive key bias (0 / -1e9)

    wo = wo_ref[0]                             # (D, D)
    outs = []
    for b in range(B):                         # tiny static loops: B*H = 8
        r0 = b * S
        bias_b = base_bias + pad[b:b + 1, :]   # (S, S)
        acc_b = jnp.zeros((S, D), jnp.float32)
        for h in range(H):
            c0 = h * Dh
            qbh = q[r0:r0 + S, c0:c0 + Dh]
            kbh = k[r0:r0 + S, c0:c0 + Dh]
            vbh = v[r0:r0 + S, c0:c0 + Dh]
            s = jax.lax.dot_general(qbh, kbh, (((1,), (1,)), ((), ())),
                                    preferred_element_type=jnp.float32)
            s = s + bias_b
            s = s - jnp.max(s, axis=-1, keepdims=True)
            p = jnp.exp(s)
            p = p * pl.reciprocal(jnp.sum(p, axis=-1, keepdims=True), approx=True)
            obh = jnp.dot(p, vbh, preferred_element_type=jnp.float32)      # (S, Dh)
            # fold the output projection into the head loop: concat_h(o_h) @ Wo
            acc_b = acc_b + jnp.dot(obh, wo[c0:c0 + Dh, :],
                                    preferred_element_type=jnp.float32)    # (S, D)
        outs.append(acc_b)
    attn = jnp.concatenate(outs, axis=0) + bo_ref[0]                       # (B*S, D)
    x = x + attn

    # ---- MLP block (pre-LN, quick_gelu) ----
    h2 = _layernorm(x, ln2g_ref[0], ln2b_ref[0], eps)
    h2 = jnp.dot(h2, wfc1_ref[0], preferred_element_type=jnp.float32) + bfc1_ref[0]
    h2 = h2 * jax.nn.sigmoid(1.702 * h2)       # quick_gelu
    h2 = jnp.dot(h2, wfc2_ref[0], preferred_element_type=jnp.float32) + bfc2_ref[0]
    x = x + h2

    x_sc[...] = x

    @pl.when(l == pl.num_programs(0) - 1)
    def _fin():
        y = x
        if apply_final_ln:                     # text final layernorm
            y = _layernorm(y, fing_ref[...], finb_ref[...], eps)
        o_ref[...] = y.astype(o_ref.dtype)


def pallas_tower(x2d, pad_bias, lp, pre_g, pre_b, fin_g, fin_b, *,
                 B, S, H, causal, apply_pre_ln, apply_final_ln, eps=1e-5):
    """Run a full stack of encoder layers as a single pallas_call (grid over layers)."""
    BS, D = x2d.shape
    L = lp["wqkv"].shape[0]
    M = lp["w_fc1"].shape[2]

    kern = functools.partial(
        _tower_kernel, B=B, S=S, H=H, eps=eps, causal=causal,
        apply_pre_ln=apply_pre_ln, apply_final_ln=apply_final_ln)

    def fixed(shape):
        return pl.BlockSpec(shape, lambda l: (0,) * len(shape))

    def vec(dim):          # per-layer (L, 1, dim) vectors
        return pl.BlockSpec((1, 1, dim), lambda l: (l, 0, 0))

    def mat(r, c):         # per-layer (L, r, c) matrices
        return pl.BlockSpec((1, r, c), lambda l: (l, 0, 0))

    grid_spec = pltpu.PrefetchScalarGridSpec(
        num_scalar_prefetch=0,
        grid=(L,),
        in_specs=[
            fixed((BS, D)),                 # x
            fixed((B, S)),                  # additive pad bias
            fixed((1, D)), fixed((1, D)),   # pre-LN gamma/beta (vision)
            fixed((1, D)), fixed((1, D)),   # final-LN gamma/beta (text)
            vec(D), vec(D),                 # ln1 gamma/beta
            mat(D, 3 * D), vec(3 * D),      # packed QKV weight / bias
            mat(D, D), vec(D),              # out-proj weight / bias
            vec(D), vec(D),                 # ln2 gamma/beta
            mat(D, M), vec(M),              # fc1 weight / bias
            mat(M, D), vec(D),              # fc2 weight / bias
        ],
        out_specs=pl.BlockSpec((BS, D), lambda l: (0, 0)),
        scratch_shapes=[pltpu.VMEM((BS, D), jnp.float32)],
    )
    return pl.pallas_call(
        kern,
        out_shape=jax.ShapeDtypeStruct((BS, D), jnp.float32),
        grid_spec=grid_spec,
        compiler_params=pltpu.CompilerParams(dimension_semantics=("arbitrary",)),
    )(x2d.astype(jnp.float32), pad_bias.astype(jnp.float32),
      pre_g.reshape(1, D).astype(jnp.float32), pre_b.reshape(1, D).astype(jnp.float32),
      fin_g.reshape(1, D).astype(jnp.float32), fin_b.reshape(1, D).astype(jnp.float32),
      lp["ln1_g"], lp["ln1_b"], lp["wqkv"], lp["bqkv"], lp["wo"], lp["bo"],
      lp["ln2_g"], lp["ln2_b"], lp["w_fc1"], lp["b_fc1"], lp["w_fc2"], lp["b_fc2"])


def _clip_head_kernel(t_ref, i_ref, pg_ref, pb_ref, tp_ref, vp_ref, s_ref,
                      te_ref, ie_ref, lpt_ref, lpi_ref, *, eps):
    t = t_ref[...].astype(jnp.float32)                      # text pooled (already final-LN'ed)
    im = i_ref[...].astype(jnp.float32)                     # vision CLS pooled (pre post-LN)
    im = _layernorm(im, pg_ref[...], pb_ref[...], eps)      # vision post-layernorm
    te = jnp.dot(t, tp_ref[...], preferred_element_type=jnp.float32)
    ie = jnp.dot(im, vp_ref[...], preferred_element_type=jnp.float32)
    tn = te * jax.lax.rsqrt(jnp.sum(te * te, axis=-1, keepdims=True))
    imn = ie * jax.lax.rsqrt(jnp.sum(ie * ie, axis=-1, keepdims=True))
    scale = s_ref[0, 0]
    lpt = jax.lax.dot_general(tn, imn, (((1,), (1,)), ((), ())),
                              preferred_element_type=jnp.float32) * scale
    lpi = jax.lax.dot_general(imn, tn, (((1,), (1,)), ((), ())),
                              preferred_element_type=jnp.float32) * scale
    te_ref[...] = tn
    ie_ref[...] = imn
    lpt_ref[...] = lpt
    lpi_ref[...] = lpi


def pallas_clip_head(text_pooled, image_pooled, post_g, post_b,
                     text_proj, visual_proj, logit_scale, eps=1e-5):
    Bt, Dt = text_pooled.shape
    Bi, Dv = image_pooled.shape
    P = text_proj.shape[1]
    kern = functools.partial(_clip_head_kernel, eps=eps)
    return pl.pallas_call(
        kern,
        out_shape=(
            jax.ShapeDtypeStruct((Bt, P), jnp.float32),   # text_embeds (normalized)
            jax.ShapeDtypeStruct((Bi, P), jnp.float32),   # image_embeds (normalized)
            jax.ShapeDtypeStruct((Bt, Bi), jnp.float32),  # logits_per_text
            jax.ShapeDtypeStruct((Bi, Bt), jnp.float32),  # logits_per_image
        ),
        grid=(1,),
        in_specs=[
            pl.BlockSpec((Bt, Dt), lambda i: (0, 0)),
            pl.BlockSpec((Bi, Dv), lambda i: (0, 0)),
            pl.BlockSpec((1, Dv), lambda i: (0, 0)),
            pl.BlockSpec((1, Dv), lambda i: (0, 0)),
            pl.BlockSpec((Dt, P), lambda i: (0, 0)),
            pl.BlockSpec((Dv, P), lambda i: (0, 0)),
            pl.BlockSpec((1, 1), lambda i: (0, 0)),
        ],
        out_specs=(
            pl.BlockSpec((Bt, P), lambda i: (0, 0)),
            pl.BlockSpec((Bi, P), lambda i: (0, 0)),
            pl.BlockSpec((Bt, Bi), lambda i: (0, 0)),
            pl.BlockSpec((Bi, Bt), lambda i: (0, 0)),
        ),
    )(text_pooled.astype(jnp.float32), image_pooled.astype(jnp.float32),
      post_g.reshape(1, Dv).astype(jnp.float32), post_b.reshape(1, Dv).astype(jnp.float32),
      text_proj.astype(jnp.float32), visual_proj.astype(jnp.float32), logit_scale)


# ----------------------------------------------------------------------------
# Model (tiny glue in plain JAX, everything hot in Pallas)
# ----------------------------------------------------------------------------

def text_model(input_ids, attention_mask, tp):
    B, S = input_ids.shape
    D = tp["token_emb"].shape[1]
    H = tp["num_heads"]
    # Embedding gather + positional add (tiny XLA glue).
    x = tp["token_emb"][input_ids] + tp["pos_emb"][None, :S]
    pad_bias = jnp.where(attention_mask == 0, -1e9, 0.0).astype(jnp.float32)   # (B, S)
    dummy = jnp.zeros((D,), jnp.float32)
    y = pallas_tower(x.reshape(B * S, D), pad_bias, tp["layers"],
                     pre_g=dummy, pre_b=dummy,
                     fin_g=tp["lnf_g"], fin_b=tp["lnf_b"],
                     B=B, S=S, H=H, causal=True,
                     apply_pre_ln=False, apply_final_ln=True)
    y = y.reshape(B, S, D)
    # HF CLIP: pooled text state at argmax(input_ids) per sequence (EOS position).
    pooled = y[jnp.arange(B), jnp.argmax(input_ids, axis=-1)]
    return pooled


def vision_model(pixel_values, vp):
    # pixel_values are NCHW, identical to the PyTorch Conv2d input layout.
    B, C, Himg, Wimg = pixel_values.shape
    ps = vp["patch_size"]
    gh, gw = Himg // ps, Wimg // ps
    D = vp["patch_w"].shape[1]
    H = vp["num_heads"]

    # im2col: non-overlapping (C, ph, pw) patches; the Pallas matmul IS the conv.
    patches = (pixel_values
               .reshape(B, C, gh, ps, gw, ps)
               .transpose(0, 2, 4, 1, 3, 5)
               .reshape(B * gh * gw, C * ps * ps))
    patch_embeds = pallas_matmul(patches, vp["patch_w"]).reshape(B, gh * gw, D)

    cls = jnp.broadcast_to(vp["class_emb"][None, None, :], (B, 1, D))
    x = jnp.concatenate([cls, patch_embeds], axis=1) + vp["pos_emb"][None]   # (B, S0, D)
    S0 = x.shape[1]

    # Pad sequence to a multiple of 8 sublanes; padded rows are masked out of attention.
    S = ((S0 + 7) // 8) * 8
    pad_n = S - S0
    x = jnp.pad(x, ((0, 0), (0, pad_n), (0, 0)))
    pad_bias = jnp.concatenate(
        [jnp.zeros((B, S0), jnp.float32), jnp.full((B, pad_n), -1e9, jnp.float32)], axis=1)

    dummy = jnp.zeros((D,), jnp.float32)
    y = pallas_tower(x.reshape(B * S, D), pad_bias, vp["layers"],
                     pre_g=vp["pre_ln_g"], pre_b=vp["pre_ln_b"],
                     fin_g=dummy, fin_b=dummy,
                     B=B, S=S, H=H, causal=False,
                     apply_pre_ln=True, apply_final_ln=False)
    y = y.reshape(B, S, D)
    pooled = y[:, 0]          # CLS token (post-LN applied in the head kernel)
    return pooled


def clip_forward(input_ids, attention_mask, pixel_values, params):
    text_pooled = text_model(input_ids, attention_mask, params["text"])
    image_pooled = vision_model(pixel_values, params["vision"])
    scale = jnp.exp(params["logit_scale"]).reshape(1, 1).astype(jnp.float32)
    te, ie, lpt, lpi = pallas_clip_head(
        text_pooled, image_pooled,
        params["vision"]["post_ln_g"], params["vision"]["post_ln_b"],
        params["text_proj"], params["visual_proj"], scale)
    # Same tensor outputs the PyTorch ModelWrapper keeps from CLIPOutput.
    return OrderedDict(
        logits_per_image=lpi,
        logits_per_text=lpt,
        text_embeds=te,
        image_embeds=ie,
    )


# ----------------------------------------------------------------------------
# Deterministic synthetic parameters (stacked per-layer for the fused towers)
# ----------------------------------------------------------------------------

def init_params(key, *, vocab=64, max_text_len=8, d_text=32, d_vision=32,
                n_heads=4, n_layers=2, mlp_ratio=4, img_c=3, img_size=16,
                patch_size=8, proj_dim=16):
    keys = iter(jax.random.split(key, 64))

    def nrm(shape, std=0.02):
        return jax.random.normal(next(keys), shape, jnp.float32) * std

    def make_layers(d):
        m = d * mlp_ratio
        return dict(
            ln1_g=jnp.ones((n_layers, 1, d), jnp.float32),
            ln1_b=jnp.zeros((n_layers, 1, d), jnp.float32),
            wqkv=nrm((n_layers, d, 3 * d)),           # packed [Q | K | V]
            bqkv=jnp.zeros((n_layers, 1, 3 * d), jnp.float32),
            wo=nrm((n_layers, d, d)),
            bo=jnp.zeros((n_layers, 1, d), jnp.float32),
            ln2_g=jnp.ones((n_layers, 1, d), jnp.float32),
            ln2_b=jnp.zeros((n_layers, 1, d), jnp.float32),
            w_fc1=nrm((n_layers, d, m)),
            b_fc1=jnp.zeros((n_layers, 1, m), jnp.float32),
            w_fc2=nrm((n_layers, m, d)),
            b_fc2=jnp.zeros((n_layers, 1, d), jnp.float32),
        )

    n_patches = (img_size // patch_size) ** 2
    params = dict(
        text=dict(
            num_heads=n_heads,
            token_emb=nrm((vocab, d_text)),
            pos_emb=nrm((max_text_len, d_text)),
            layers=make_layers(d_text),
            lnf_g=jnp.ones((d_text,), jnp.float32),
            lnf_b=jnp.zeros((d_text,), jnp.float32),
        ),
        vision=dict(
            num_heads=n_heads,
            patch_size=patch_size,
            patch_w=nrm((img_c * patch_size * patch_size, d_vision)),  # conv as matmul
            class_emb=nrm((d_vision,)),
            pos_emb=nrm((n_patches + 1, d_vision)),
            pre_ln_g=jnp.ones((d_vision,), jnp.float32),
            pre_ln_b=jnp.zeros((d_vision,), jnp.float32),
            layers=make_layers(d_vision),
            post_ln_g=jnp.ones((d_vision,), jnp.float32),
            post_ln_b=jnp.zeros((d_vision,), jnp.float32),
        ),
        text_proj=nrm((d_text, proj_dim)),
        visual_proj=nrm((d_vision, proj_dim)),
        logit_scale=jnp.array(2.6592, jnp.float32),   # ln(1/0.07), CLIP init
    )
    return params


# ----------------------------------------------------------------------------

if __name__ == "__main__":
    key = jax.random.PRNGKey(0)
    kp, kids, kpix = jax.random.split(key, 3)

    params = init_params(kp)

    B, S = 2, 8
    input_ids = jax.random.randint(kids, (B, S), 0, 64, dtype=jnp.int32)
    attention_mask = jnp.ones((B, S), jnp.int32).at[1, 6:].set(0)
    pixel_values = jax.random.normal(kpix, (B, 3, 16, 16), jnp.float32)  # NCHW

    fwd = jax.jit(functools.partial(clip_forward, params=params))
    out = fwd(input_ids, attention_mask, pixel_values)
    jax.block_until_ready(out)

    assert out["logits_per_image"].shape == (B, B)
    assert out["logits_per_text"].shape == (B, B)
    assert out["text_embeds"].shape == (B, 16)
    assert out["image_embeds"].shape == (B, 16)
    assert bool(jnp.isfinite(out["logits_per_image"]).all())
    assert bool(jnp.isfinite(out["logits_per_text"]).all())
    print("KERNEL_OK")
</pallas_src>

<mosaic_0001>
module attributes {stable_mosaic.version = 11 : i64} {
  func.func @_matmul_kernel(%arg0: i32, %arg1: memref<8x192xf32, #tpu.memory_space<vmem>>, %arg2: memref<192x32xf32, #tpu.memory_space<vmem>>, %arg3: memref<8x32xf32, #tpu.memory_space<vmem>>) attributes {dimension_semantics = [#tpu.dimension_semantics<arbitrary>], iteration_bounds = array<i64: 1>, scalar_prefetch = 0 : i64, scratch_operands = 0 : i64, tpu.core_type = #tpu.core_type<tc>, window_params = [{pipeline_mode = #tpu.pipeline_mode<synchronous>, transform_indices = @transform_0, window_bounds = array<i64: 8, 192>}, {pipeline_mode = #tpu.pipeline_mode<synchronous>, transform_indices = @transform_1, window_bounds = array<i64: 192, 32>}, {pipeline_mode = #tpu.pipeline_mode<synchronous>, transform_indices = @transform_2, window_bounds = array<i64: 8, 32>}]} {
    %c0 = arith.constant 0 : index
    %c0_0 = arith.constant 0 : index
    %0 = vector.load %arg1[%c0, %c0_0] : memref<8x192xf32, #tpu.memory_space<vmem>>, vector<8x192xf32>
    %c0_1 = arith.constant 0 : index
    %c0_2 = arith.constant 0 : index
    %1 = vector.load %arg2[%c0_1, %c0_2] : memref<192x32xf32, #tpu.memory_space<vmem>>, vector<192x32xf32>
    %cst = arith.constant dense<0.000000e+00> : vector<8x32xf32>
    %2 = tpu.matmul %0, %1, %cst {dimension_numbers = #tpu.dot_dimension_numbers<[1], [0], [0], [1], [0, 0, 1, 1], [], []>} : vector<8x192xf32>, vector<192x32xf32>, vector<8x32xf32> -> vector<8x32xf32>
    %c0_3 = arith.constant 0 : index
    %c0_4 = arith.constant 0 : index
    %3 = vector.load %arg3[%c0_3, %c0_4] : memref<8x32xf32, #tpu.memory_space<vmem>>, vector<8x32xf32>
    tpu.vector_store %arg3[%c0_3, %c0_4], %2 {strides = array<i32>} : memref<8x32xf32, #tpu.memory_space<vmem>>, vector<8x32xf32>,
    return
  }
  func.func @transform_0(%arg0: i32) -> (i32, i32) {
    %c0_i32 = arith.constant 0 : i32
    %c0_i32_0 = arith.constant 0 : i32
    %c0_i32_1 = arith.constant 0 : i32
    return %c0_i32, %c0_i32_0 : i32, i32
  }
  func.func @transform_1(%arg0: i32) -> (i32, i32) {
    %c0_i32 = arith.constant 0 : i32
    %c0_i32_0 = arith.constant 0 : i32
    %c0_i32_1 = arith.constant 0 : i32
    return %c0_i32, %c0_i32_0 : i32, i32
  }
  func.func @transform_2(%arg0: i32) -> (i32, i32) {
    %c0_i32 = arith.constant 0 : i32
    %c0_i32_0 = arith.constant 0 : i32
    %c0_i32_1 = arith.constant 0 : i32
    return %c0_i32, %c0_i32_0 : i32, i32
  }
}

module attributes {stable_mosaic.version = 11 : i64} {
  func.func @_tower_kernel(%arg0: i32, %arg1: memref<16x32xf32, #tpu.memory_space<vmem>>, %arg2: memref<2x8xf32, #tpu.memory_space<vmem>>, %arg3: memref<1x32xf32, #tpu.memory_space<vmem>>, %arg4: memref<1x32xf32, #tpu.memory_space<vmem>>, %arg5: memref<1x32xf32, #tpu.memory_space<vmem>>, %arg6: memref<1x32xf32, #tpu.memory_space<vmem>>, %arg7: memref<1x1x32xf32, #tpu.memory_space<vmem>>, %arg8: memref<1x1x32xf32, #tpu.memory_space<vmem>>, %arg9: memref<1x32x96xf32, #tpu.memory_space<vmem>>, %arg10: memref<1x1x96xf32, #tpu.memory_space<vmem>>, %arg11: memref<1x32x32xf32, #tpu.memory_space<vmem>>, %arg12: memref<1x1x32xf32, #tpu.memory_space<vmem>>, %arg13: memref<1x1x32xf32, #tpu.memory_space<vmem>>, %arg14: memref<1x1x32xf32, #tpu.memory_space<vmem>>, %arg15: memref<1x32x128xf32, #tpu.memory_space<vmem>>, %arg16: memref<1x1x128xf32, #tpu.memory_space<vmem>>, %arg17: memref<1x128x32xf32, #tpu.memory_space<vmem>>, %arg18: memref<1x1x32xf32, #tpu.memory_space<vmem>>, %arg19: memref<16x32xf32, #tpu.memory_space<vmem>>, %arg20: memref<16x32xf32, #tpu.memory_space<vmem>>) attributes {dimension_semantics = [#tpu.dimension_semantics<arbitrary>], iteration_bounds = array<i64: 2>, scalar_prefetch = 0 : i64, scratch_operands = 1 : i64, tpu.core_type = #tpu.core_type<tc>, window_params = [{pipeline_mode = #tpu.pipeline_mode<synchronous>, transform_indices = @transform_0, window_bounds = array<i64: 16, 32>}, {pipeline_mode = #tpu.pipeline_mode<synchronous>, transform_indices = @transform_1, window_bounds = array<i64: 2, 8>}, {pipeline_mode = #tpu.pipeline_mode<synchronous>, transform_indices = @transform_2, window_bounds = array<i64: 1, 32>}, {pipeline_mode = #tpu.pipeline_mode<synchronous>, transform_indices = @transform_3, window_bounds = array<i64: 1, 32>}, {pipeline_mode = #tpu.pipeline_mode<synchronous>, transform_indices = @transform_4, window_bounds = array<i64: 1, 32>}, {pipeline_mode = #tpu.pipeline_mode<synchronous>, transform_indices = @transform_5, window_bounds = array<i64: 1, 32>}, {transform_indices = @transform_6, window_bounds = array<i64: 1, 1, 32>}, {transform_indices = @transform_7, window_bounds = array<i64: 1, 1, 32>}, {transform_indices = @transform_8, window_bounds = array<i64: 1, 32, 96>}, {transform_indices = @transform_9, window_bounds = array<i64: 1, 1, 96>}, {transform_indices = @transform_10, window_bounds = array<i64: 1, 32, 32>}, {transform_indices = @transform_11, window_bounds = array<i64: 1, 1, 32>}, {transform_indices = @transform_12, window_bounds = array<i64: 1, 1, 32>}, {transform_indices = @transform_13, window_bounds = array<i64: 1, 1, 32>}, {transform_indices = @transform_14, window_bounds = array<i64: 1, 32, 128>}, {transform_indices = @transform_15, window_bounds = array<i64: 1, 1, 128>}, {transform_indices = @transform_16, window_bounds = array<i64: 1, 128, 32>}, {transform_indices = @transform_17, window_bounds = array<i64: 1, 1, 32>}, {pipeline_mode = #tpu.pipeline_mode<synchronous>, transform_indices = @transform_18, window_bounds = array<i64: 16, 32>}]} {
    %c0_i32 = arith.constant 0 : i32
    %0 = arith.cmpi eq, %arg0, %c0_i32 : i32
    %1 = arith.extui %0 : i1 to i32
    %c0_i32_0 = arith.constant 0 : i32
    %2 = arith.cmpi ne, %1, %c0_i32_0 : i32
    scf.if %2 {
      %c0_101 = arith.constant 0 : index
      %c0_102 = arith.constant 0 : index
      %261 = vector.load %arg1[%c0_101, %c0_102] : memref<16x32xf32, #tpu.memory_space<vmem>>, vector<16x32xf32>
      %c0_103 = arith.constant 0 : index
      %c0_104 = arith.constant 0 : index
      %262 = vector.load %arg3[%c0_103, %c0_104] : memref<1x32xf32, #tpu.memory_space<vmem>>, vector<1x32xf32>
      %c0_105 = arith.constant 0 : index
      %c0_106 = arith.constant 0 : index
      %263 = vector.load %arg4[%c0_105, %c0_106] : memref<1x32xf32, #tpu.memory_space<vmem>>, vector<1x32xf32>
      %cst_107 = arith.constant dense<0.000000e+00> : vector<16xf32>
      %264 = vector.multi_reduction <add>, %261, %cst_107 [1] : vector<16x32xf32> to vector<16xf32>
      %265 = vector.shape_cast %264 : vector<16xf32> to vector<16x1xf32>
      %cst_108 = arith.constant 3.200000e+01 : f32
      %266 = vector.broadcast %cst_108 : f32 to vector<16x1xf32>
      %267 = arith.divf %265, %266 : vector<16x1xf32>
      %268 = vector.broadcast %267 : vector<16x1xf32> to vector<16x32xf32>
      %269 = arith.subf %261, %268 : vector<16x32xf32>
      %270 = arith.mulf %269, %269 : vector<16x32xf32>
      %cst_109 = arith.constant dense<0.000000e+00> : vector<16xf32>
      %271 = vector.multi_reduction <add>, %270, %cst_109 [1] : vector<16x32xf32> to vector<16xf32>
      %272 = vector.shape_cast %271 : vector<16xf32> to vector<16x1xf32>
      %cst_110 = arith.constant 3.200000e+01 : f32
      %273 = vector.broadcast %cst_110 : f32 to vector<16x1xf32>
      %274 = arith.divf %272, %273 : vector<16x1xf32>
      %cst_111 = arith.constant 9.99999974E-6 : f32
      %275 = vector.broadcast %cst_111 : f32 to vector<16x1xf32>
      %276 = arith.addf %274, %275 : vector<16x1xf32>
      %277 = math.rsqrt %276 : vector<16x1xf32>
      %278 = vector.broadcast %277 : vector<16x1xf32> to vector<16x32xf32>
      %279 = arith.mulf %269, %278 : vector<16x32xf32>
      %280 = vector.broadcast %262 : vector<1x32xf32> to vector<16x32xf32>
      %281 = arith.mulf %279, %280 : vector<16x32xf32>
      %282 = vector.broadcast %263 : vector<1x32xf32> to vector<16x32xf32>
      %283 = arith.addf %281, %282 : vector<16x32xf32>
      %c0_112 = arith.constant 0 : index
      %c0_113 = arith.constant 0 : index
      %284 = vector.load %arg20[%c0_112, %c0_113] : memref<16x32xf32, #tpu.memory_space<vmem>>, vector<16x32xf32>
      tpu.vector_store %arg20[%c0_112, %c0_113], %283 {strides = array<i32>} : memref<16x32xf32, #tpu.memory_space<vmem>>, vector<16x32xf32>,
    } else {
    }
    %c0 = arith.constant 0 : index
    %c0_1 = arith.constant 0 : index
    %3 = vector.load %arg20[%c0, %c0_1] : memref<16x32xf32, #tpu.memory_space<vmem>>, vector<16x32xf32>
    %c0_2 = arith.constant 0 : index
    %c0_3 = arith.constant 0 : index
    %c0_4 = arith.constant 0 : index
    %4 = vector.load %arg7[%c0_2, %c0_3, %c0_4] : memref<1x1x32xf32, #tpu.memory_space<vmem>>, vector<1x1x32xf32>
    %5 = vector.shape_cast %4 : vector<1x1x32xf32> to vector<1x32xf32>
    %c0_5 = arith.constant 0 : index
    %c0_6 = arith.constant 0 : index
    %c0_7 = arith.constant 0 : index
    %6 = vector.load %arg8[%c0_5, %c0_6, %c0_7] : memref<1x1x32xf32, #tpu.memory_space<vmem>>, vector<1x1x32xf32>
    %7 = vector.shape_cast %6 : vector<1x1x32xf32> to vector<1x32xf32>
    %cst = arith.constant dense<0.000000e+00> : vector<16xf32>
    %8 = vector.multi_reduction <add>, %3, %cst [1] : vector<16x32xf32> to vector<16xf32>
    %9 = vector.shape_cast %8 : vector<16xf32> to vector<16x1xf32>
    %cst_8 = arith.constant 3.200000e+01 : f32
    %10 = vector.broadcast %cst_8 : f32 to vector<16x1xf32>
    %11 = arith.divf %9, %10 : vector<16x1xf32>
    %12 = vector.broadcast %11 : vector<16x1xf32> to vector<16x32xf32>
    %13 = arith.subf %3, %12 : vector<16x32xf32>
    %14 = arith.mulf %13, %13 : vector<16x32xf32>
    %cst_9 = arith.constant dense<0.000000e+00> : vector<16xf32>
    %15 = vector.multi_reduction <add>, %14, %cst_9 [1] : vector<16x32xf32> to vector<16xf32>
    %16 = vector.shape_cast %15 : vector<16xf32> to vector<16x1xf32>
    %cst_10 = arith.constant 3.200000e+01 : f32
    %17 = vector.broadcast %cst_10 : f32 to vector<16x1xf32>
    %18 = arith.divf %16, %17 : vector<16x1xf32>
    %cst_11 = arith.constant 9.99999974E-6 : f32
    %19 = vector.broadcast %cst_11 : f32 to vector<16x1xf32>
    %20 = arith.addf %18, %19 : vector<16x1xf32>
    %21 = math.rsqrt %20 : vector<16x1xf32>
    %22 = vector.broadcast %21 : vector<16x1xf32> to vector<16x32xf32>
    %23 = arith.mulf %13, %22 : vector<16x32xf32>
    %24 = vector.broadcast %5 : vector<1x32xf32> to vector<16x32xf32>
    %25 = arith.mulf %23, %24 : vector<16x32xf32>
    %26 = vector.broadcast %7 : vector<1x32xf32> to vector<16x32xf32>
    %27 = arith.addf %25, %26 : vector<16x32xf32>
    %c0_12 = arith.constant 0 : index
    %c0_13 = arith.constant 0 : index
    %c0_14 = arith.constant 0 : index
    %28 = vector.load %arg9[%c0_12, %c0_13, %c0_14] : memref<1x32x96xf32, #tpu.memory_space<vmem>>, vector<1x32x96xf32>
    %29 = vector.shape_cast %28 : vector<1x32x96xf32> to vector<32x96xf32>
    %cst_15 = arith.constant dense<0.000000e+00> : vector<16x96xf32>
    %30 = tpu.matmul %27, %29, %cst_15 {dimension_numbers = #tpu.dot_dimension_numbers<[1], [0], [0], [1], [0, 0, 1, 1], [], []>} : vector<16x32xf32>, vector<32x96xf32>, vector<16x96xf32> -> vector<16x96xf32>
    %c0_16 = arith.constant 0 : index
    %c0_17 = arith.constant 0 : index
    %c0_18 = arith.constant 0 : index
    %31 = vector.load %arg10[%c0_16, %c0_17, %c0_18] : memref<1x1x96xf32, #tpu.memory_space<vmem>>, vector<1x1x96xf32>
    %32 = vector.shape_cast %31 : vector<1x1x96xf32> to vector<1x96xf32>
    %33 = vector.broadcast %32 : vector<1x96xf32> to vector<16x96xf32>
    %34 = arith.addf %30, %33 : vector<16x96xf32>
    %35 = vector.extract_strided_slice %34 {offsets = [0, 0], sizes = [16, 32], strides = [1, 1]} : vector<16x96xf32> to vector<16x32xf32>
    %cst_19 = arith.constant 0.353553385 : f32
    %36 = vector.broadcast %cst_19 : f32 to vector<16x32xf32>
    %37 = arith.mulf %35, %36 : vector<16x32xf32>
    %38 = vector.extract_strided_slice %34 {offsets = [0, 32], sizes = [16, 32], strides = [1, 1]} : vector<16x96xf32> to vector<16x32xf32>
    %39 = vector.extract_strided_slice %34 {offsets = [0, 64], sizes = [16, 32], strides = [1, 1]} : vector<16x96xf32> to vector<16x32xf32>
    %cst_20 = arith.constant 0.000000e+00 : f32
    %40 = vector.broadcast %cst_20 : f32 to vector<8x8xf32>
    %c0_21 = arith.constant 0 : index
    %c0_22 = arith.constant 0 : index
    %41 = vector.load %arg2[%c0_21, %c0_22] : memref<2x8xf32, #tpu.memory_space<vmem>>, vector<2x8xf32>
    %c0_23 = arith.constant 0 : index
    %c0_24 = arith.constant 0 : index
    %c0_25 = arith.constant 0 : index
    %42 = vector.load %arg11[%c0_23, %c0_24, %c0_25] : memref<1x32x32xf32, #tpu.memory_space<vmem>>, vector<1x32x32xf32>
    %43 = vector.shape_cast %42 : vector<1x32x32xf32> to vector<32x32xf32>
    %44 = vector.extract_strided_slice %41 {offsets = [0, 0], sizes = [1, 8], strides = [1, 1]} : vector<2x8xf32> to vector<1x8xf32>
    %45 = vector.broadcast %44 : vector<1x8xf32> to vector<8x8xf32>
    %46 = arith.addf %40, %45 : vector<8x8xf32>
    %cst_26 = arith.constant 0.000000e+00 : f32
    %47 = vector.broadcast %cst_26 : f32 to vector<8x32xf32>
    %48 = vector.extract_strided_slice %37 {offsets = [0, 0], sizes = [8, 8], strides = [1, 1]} : vector<16x32xf32> to vector<8x8xf32>
    %49 = vector.extract_strided_slice %38 {offsets = [0, 0], sizes = [8, 8], strides = [1, 1]} : vector<16x32xf32> to vector<8x8xf32>
    %50 = vector.extract_strided_slice %39 {offsets = [0, 0], sizes = [8, 8], strides = [1, 1]} : vector<16x32xf32> to vector<8x8xf32>
    %cst_27 = arith.constant dense<0.000000e+00> : vector<8x8xf32>
    %51 = tpu.matmul %48, %49, %cst_27 {dimension_numbers = #tpu.dot_dimension_numbers<[1], [1], [0], [0], [0, 0, 1, 0], [], []>} : vector<8x8xf32>, vector<8x8xf32>, vector<8x8xf32> -> vector<8x8xf32>
    %52 = arith.addf %51, %46 : vector<8x8xf32>
    %cst_28 = arith.constant dense<0xFF800000> : vector<8xf32>
    %53 = vector.multi_reduction <maximumf>, %52, %cst_28 [1] : vector<8x8xf32> to vector<8xf32>
    %54 = vector.shape_cast %53 : vector<8xf32> to vector<8x1xf32>
    %55 = vector.broadcast %54 : vector<8x1xf32> to vector<8x8xf32>
    %56 = arith.subf %52, %55 : vector<8x8xf32>
    %57 = math.exp %56 : vector<8x8xf32>
    %cst_29 = arith.constant dense<0.000000e+00> : vector<8xf32>
    %58 = vector.multi_reduction <add>, %57, %cst_29 [1] : vector<8x8xf32> to vector<8xf32>
    %59 = vector.shape_cast %58 : vector<8xf32> to vector<8x1xf32>
    %60 = tpu.reciprocal %59 {approx = true} : vector<8x1xf32> -> vector<8x1xf32>
    %61 = vector.broadcast %60 : vector<8x1xf32> to vector<8x8xf32>
    %62 = arith.mulf %57, %61 : vector<8x8xf32>
    %cst_30 = arith.constant dense<0.000000e+00> : vector<8x8xf32>
    %63 = tpu.matmul %62, %50, %cst_30 {dimension_numbers = #tpu.dot_dimension_numbers<[1], [0], [0], [1], [0, 0, 1, 1], [], []>} : vector<8x8xf32>, vector<8x8xf32>, vector<8x8xf32> -> vector<8x8xf32>
    %64 = vector.extract_strided_slice %43 {offsets = [0, 0], sizes = [8, 32], strides = [1, 1]} : vector<32x32xf32> to vector<8x32xf32>
    %cst_31 = arith.constant dense<0.000000e+00> : vector<8x32xf32>
    %65 = tpu.matmul %63, %64, %cst_31 {dimension_numbers = #tpu.dot_dimension_numbers<[1], [0], [0], [1], [0, 0, 1, 1], [], []>} : vector<8x8xf32>, vector<8x32xf32>, vector<8x32xf32> -> vector<8x32xf32>
    %66 = arith.addf %47, %65 : vector<8x32xf32>
    %67 = vector.extract_strided_slice %37 {offsets = [0, 8], sizes = [8, 8], strides = [1, 1]} : vector<16x32xf32> to vector<8x8xf32>
    %68 = vector.extract_strided_slice %38 {offsets = [0, 8], sizes = [8, 8], strides = [1, 1]} : vector<16x32xf32> to vector<8x8xf32>
    %69 = vector.extract_strided_slice %39 {offsets = [0, 8], sizes = [8, 8], strides = [1, 1]} : vector<16x32xf32> to vector<8x8xf32>
    %cst_32 = arith.constant dense<0.000000e+00> : vector<8x8xf32>
    %70 = tpu.matmul %67, %68, %cst_32 {dimension_numbers = #tpu.dot_dimension_numbers<[1], [1], [0], [0], [0, 0, 1, 0], [], []>} : vector<8x8xf32>, vector<8x8xf32>, vector<8x8xf32> -> vector<8x8xf32>
    %71 = arith.addf %70, %46 : vector<8x8xf32>
    %cst_33 = arith.constant dense<0xFF800000> : vector<8xf32>
    %72 = vector.multi_reduction <maximumf>, %71, %cst_33 [1] : vector<8x8xf32> to vector<8xf32>
    %73 = vector.shape_cast %72 : vector<8xf32> to vector<8x1xf32>
    %74 = vector.broadcast %73 : vector<8x1xf32> to vector<8x8xf32>
    %75 = arith.subf %71, %74 : vector<8x8xf32>
    %76 = math.exp %75 : vector<8x8xf32>
    %cst_34 = arith.constant dense<0.000000e+00> : vector<8xf32>
    %77 = vector.multi_reduction <add>, %76, %cst_34 [1] : vector<8x8xf32> to vector<8xf32>
    %78 = vector.shape_cast %77 : vector<8xf32> to vector<8x1xf32>
    %79 = tpu.reciprocal %78 {approx = true} : vector<8x1xf32> -> vector<8x1xf32>
    %80 = vector.broadcast %79 : vector<8x1xf32> to vector<8x8xf32>
    %81 = arith.mulf %76, %80 : vector<8x8xf32>
    %cst_35 = arith.constant dense<0.000000e+00> : vector<8x8xf32>
    %82 = tpu.matmul %81, %69, %cst_35 {dimension_numbers = #tpu.dot_dimension_numbers<[1], [0], [0], [1], [0, 0, 1, 1], [], []>} : vector<8x8xf32>, vector<8x8xf32>, vector<8x8xf32> -> vector<8x8xf32>
    %83 = vector.extract_strided_slice %43 {offsets = [8, 0], sizes = [8, 32], strides = [1, 1]} : vector<32x32xf32> to vector<8x32xf32>
    %cst_36 = arith.constant dense<0.000000e+00> : vector<8x32xf32>
    %84 = tpu.matmul %82, %83, %cst_36 {dimension_numbers = #tpu.dot_dimension_numbers<[1], [0], [0], [1], [0, 0, 1, 1], [], []>} : vector<8x8xf32>, vector<8x32xf32>, vector<8x32xf32> -> vector<8x32xf32>
    %85 = arith.addf %66, %84 : vector<8x32xf32>
    %86 = vector.extract_strided_slice %37 {offsets = [0, 16], sizes = [8, 8], strides = [1, 1]} : vector<16x32xf32> to vector<8x8xf32>
    %87 = vector.extract_strided_slice %38 {offsets = [0, 16], sizes = [8, 8], strides = [1, 1]} : vector<16x32xf32> to vector<8x8xf32>
    %88 = vector.extract_strided_slice %39 {offsets = [0, 16], sizes = [8, 8], strides = [1, 1]} : vector<16x32xf32> to vector<8x8xf32>
    %cst_37 = arith.constant dense<0.000000e+00> : vector<8x8xf32>
    %89 = tpu.matmul %86, %87, %cst_37 {dimension_numbers = #tpu.dot_dimension_numbers<[1], [1], [0], [0], [0, 0, 1, 0], [], []>} : vector<8x8xf32>, vector<8x8xf32>, vector<8x8xf32> -> vector<8x8xf32>
    %90 = arith.addf %89, %46 : vector<8x8xf32>
    %cst_38 = arith.constant dense<0xFF800000> : vector<8xf32>
    %91 = vector.multi_reduction <maximumf>, %90, %cst_38 [1] : vector<8x8xf32> to vector<8xf32>
    %92 = vector.shape_cast %91 : vector<8xf32> to vector<8x1xf32>
    %93 = vector.broadcast %92 : vector<8x1xf32> to vector<8x8xf32>
    %94 = arith.subf %90, %93 : vector<8x8xf32>
    %95 = math.exp %94 : vector<8x8xf32>
    %cst_39 = arith.constant dense<0.000000e+00> : vector<8xf32>
    %96 = vector.multi_reduction <add>, %95, %cst_39 [1] : vector<8x8xf32> to vector<8xf32>
    %97 = vector.shape_cast %96 : vector<8xf32> to vector<8x1xf32>
    %98 = tpu.reciprocal %97 {approx = true} : vector<8x1xf32> -> vector<8x1xf32>
    %99 = vector.broadcast %98 : vector<8x1xf32> to vector<8x8xf32>
    %100 = arith.mulf %95, %99 : vector<8x8xf32>
    %cst_40 = arith.constant dense<0.000000e+00> : vector<8x8xf32>
    %101 = tpu.matmul %100, %88, %cst_40 {dimension_numbers = #tpu.dot_dimension_numbers<[1], [0], [0], [1], [0, 0, 1, 1], [], []>} : vector<8x8xf32>, vector<8x8xf32>, vector<8x8xf32> -> vector<8x8xf32>
    %102 = vector.extract_strided_slice %43 {offsets = [16, 0], sizes = [8, 32], strides = [1, 1]} : vector<32x32xf32> to vector<8x32xf32>
    %cst_41 = arith.constant dense<0.000000e+00> : vector<8x32xf32>
    %103 = tpu.matmul %101, %102, %cst_41 {dimension_numbers = #tpu.dot_dimension_numbers<[1], [0], [0], [1], [0, 0, 1, 1], [], []>} : vector<8x8xf32>, vector<8x32xf32>, vector<8x32xf32> -> vector<8x32xf32>
    %104 = arith.addf %85, %103 : vector<8x32xf32>
    %105 = vector.extract_strided_slice %37 {offsets = [0, 24], sizes = [8, 8], strides = [1, 1]} : vector<16x32xf32> to vector<8x8xf32>
    %106 = vector.extract_strided_slice %38 {offsets = [0, 24], sizes = [8, 8], strides = [1, 1]} : vector<16x32xf32> to vector<8x8xf32>
    %107 = vector.extract_strided_slice %39 {offsets = [0, 24], sizes = [8, 8], strides = [1, 1]} : vector<16x32xf32> to vector<8x8xf32>
    %cst_42 = arith.constant dense<0.000000e+00> : vector<8x8xf32>
    %108 = tpu.matmul %105, %106, %cst_42 {dimension_numbers = #tpu.dot_dimension_numbers<[1], [1], [0], [0], [0, 0, 1, 0], [], []>} : vector<8x8xf32>, vector<8x8xf32>, vector<8x8xf32> -> vector<8x8xf32>
    %109 = arith.addf %108, %46 : vector<8x8xf32>
    %cst_43 = arith.constant dense<0xFF800000> : vector<8xf32>
    %110 = vector.multi_reduction <maximumf>, %109, %cst_43 [1] : vector<8x8xf32> to vector<8xf32>
    %111 = vector.shape_cast %110 : vector<8xf32> to vector<8x1xf32>
    %112 = vector.broadcast %111 : vector<8x1xf32> to vector<8x8xf32>
    %113 = arith.subf %109, %112 : vector<8x8xf32>
    %114 = math.exp %113 : vector<8x8xf32>
    %cst_44 = arith.constant dense<0.000000e+00> : vector<8xf32>
    %115 = vector.multi_reduction <add>, %114, %cst_44 [1] : vector<8x8xf32> to vector<8xf32>
    %116 = vector.shape_cast %115 : vector<8xf32> to vector<8x1xf32>
    %117 = tpu.reciprocal %116 {approx = true} : vector<8x1xf32> -> vector<8x1xf32>
    %118 = vector.broadcast %117 : vector<8x1xf32> to vector<8x8xf32>
    %119 = arith.mulf %114, %118 : vector<8x8xf32>
    %cst_45 = arith.constant dense<0.000000e+00> : vector<8x8xf32>
    %120 = tpu.matmul %119, %107, %cst_45 {dimension_numbers = #tpu.dot_dimension_numbers<[1], [0], [0], [1], [0, 0, 1, 1], [], []>} : vector<8x8xf32>, vector<8x8xf32>, vector<8x8xf32> -> vector<8x8xf32>
    %121 = vector.extract_strided_slice %43 {offsets = [24, 0], sizes = [8, 32], strides = [1, 1]} : vector<32x32xf32> to vector<8x32xf32>
    %cst_46 = arith.constant dense<0.000000e+00> : vector<8x32xf32>
    %122 = tpu.matmul %120, %121, %cst_46 {dimension_numbers = #tpu.dot_dimension_numbers<[1], [0], [0], [1], [0, 0, 1, 1], [], []>} : vector<8x8xf32>, vector<8x32xf32>, vector<8x32xf32> -> vector<8x32xf32>
    %123 = arith.addf %104, %122 : vector<8x32xf32>
    %124 = vector.extract_strided_slice %41 {offsets = [1, 0], sizes = [1, 8], strides = [1, 1]} : vector<2x8xf32> to vector<1x8xf32>
    %125 = vector.broadcast %124 : vector<1x8xf32> to vector<8x8xf32>
    %126 = arith.addf %40, %125 : vector<8x8xf32>
    %cst_47 = arith.constant 0.000000e+00 : f32
    %127 = vector.broadcast %cst_47 : f32 to vector<8x32xf32>
    %128 = vector.extract_strided_slice %37 {offsets = [8, 0], sizes = [8, 8], strides = [1, 1]} : vector<16x32xf32> to vector<8x8xf32>
    %129 = vector.extract_strided_slice %38 {offsets = [8, 0], sizes = [8, 8], strides = [1, 1]} : vector<16x32xf32> to vector<8x8xf32>
    %130 = vector.extract_strided_slice %39 {offsets = [8, 0], sizes = [8, 8], strides = [1, 1]} : vector<16x32xf32> to vector<8x8xf32>
    %cst_48 = arith.constant dense<0.000000e+00> : vector<8x8xf32>
    %131 = tpu.matmul %128, %129, %cst_48 {dimension_numbers = #tpu.dot_dimension_numbers<[1], [1], [0], [0], [0, 0, 1, 0], [], []>} : vector<8x8xf32>, vector<8x8xf32>, vector<8x8xf32> -> vector<8x8xf32>
    %132 = arith.addf %131, %126 : vector<8x8xf32>
    %cst_49 = arith.constant dense<0xFF800000> : vector<8xf32>
    %133 = vector.multi_reduction <maximumf>, %132, %cst_49 [1] : vector<8x8xf32> to vector<8xf32>
    %134 = vector.shape_cast %133 : vector<8xf32> to vector<8x1xf32>
    %135 = vector.broadcast %134 : vector<8x1xf32> to vector<8x8xf32>
    %136 = arith.subf %132, %135 : vector<8x8xf32>
    %137 = math.exp %136 : vector<8x8xf32>
    %cst_50 = arith.constant dense<0.000000e+00> : vector<8xf32>
    %138 = vector.multi_reduction <add>, %137, %cst_50 [1] : vector<8x8xf32> to vector<8xf32>
    %139 = vector.shape_cast %138 : vector<8xf32> to vector<8x1xf32>
    %140 = tpu.reciprocal %139 {approx = true} : vector<8x1xf32> -> vector<8x1xf32>
    %141 = vector.broadcast %140 : vector<8x1xf32> to vector<8x8xf32>
    %142 = arith.mulf %137, %141 : vector<8x8xf32>
    %cst_51 = arith.constant dense<0.000000e+00> : vector<8x8xf32>
    %143 = tpu.matmul %142, %130, %cst_51 {dimension_numbers = #tpu.dot_dimension_numbers<[1], [0], [0], [1], [0, 0, 1, 1], [], []>} : vector<8x8xf32>, vector<8x8xf32>, vector<8x8xf32> -> vector<8x8xf32>
    %144 = vector.extract_strided_slice %43 {offsets = [0, 0], sizes = [8, 32], strides = [1, 1]} : vector<32x32xf32> to vector<8x32xf32>
    %cst_52 = arith.constant dense<0.000000e+00> : vector<8x32xf32>
    %145 = tpu.matmul %143, %144, %cst_52 {dimension_numbers = #tpu.dot_dimension_numbers<[1], [0], [0], [1], [0, 0, 1, 1], [], []>} : vector<8x8xf32>, vector<8x32xf32>, vector<8x32xf32> -> vector<8x32xf32>
    %146 = arith.addf %127, %145 : vector<8x32xf32>
    %147 = vector.extract_strided_slice %37 {offsets = [8, 8], sizes = [8, 8], strides = [1, 1]} : vector<16x32xf32> to vector<8x8xf32>
    %148 = vector.extract_strided_slice %38 {offsets = [8, 8], sizes = [8, 8], strides = [1, 1]} : vector<16x32xf32> to vector<8x8xf32>
    %149 = vector.extract_strided_slice %39 {offsets = [8, 8], sizes = [8, 8], strides = [1, 1]} : vector<16x32xf32> to vector<8x8xf32>
    %cst_53 = arith.constant dense<0.000000e+00> : vector<8x8xf32>
    %150 = tpu.matmul %147, %148, %cst_53 {dimension_numbers = #tpu.dot_dimension_numbers<[1], [1], [0], [0], [0, 0, 1, 0], [], []>} : vector<8x8xf32>, vector<8x8xf32>, vector<8x8xf32> -> vector<8x8xf32>
    %151 = arith.addf %150, %126 : vector<8x8xf32>
    %cst_54 = arith.constant dense<0xFF800000> : vector<8xf32>
    %152 = vector.multi_reduction <maximumf>, %151, %cst_54 [1] : vector<8x8xf32> to vector<8xf32>
    %153 = vector.shape_cast %152 : vector<8xf32> to vector<8x1xf32>
    %154 = vector.broadcast %153 : vector<8x1xf32> to vector<8x8xf32>
    %155 = arith.subf %151, %154 : vector<8x8xf32>
    %156 = math.exp %155 : vector<8x8xf32>
    %cst_55 = arith.constant dense<0.000000e+00> : vector<8xf32>
    %157 = vector.multi_reduction <add>, %156, %cst_55 [1] : vector<8x8xf32> to vector<8xf32>
    %158 = vector.shape_cast %157 : vector<8xf32> to vector<8x1xf32>
    %159 = tpu.reciprocal %158 {approx = true} : vector<8x1xf32> -> vector<8x1xf32>
    %160 = vector.broadcast %159 : vector<8x1xf32> to vector<8x8xf32>
    %161 = arith.mulf %156, %160 : vector<8x8xf32>
    %cst_56 = arith.constant dense<0.000000e+00> : vector<8x8xf32>
    %162 = tpu.matmul %161, %149, %cst_56 {dimension_numbers = #tpu.dot_dimension_numbers<[1], [0], [0], [1], [0, 0, 1, 1], [], []>} : vector<8x8xf32>, vector<8x8xf32>, vector<8x8xf32> -> vector<8x8xf32>
    %163 = vector.extract_strided_slice %43 {offsets = [8, 0], sizes = [8, 32], strides = [1, 1]} : vector<32x32xf32> to vector<8x32xf32>
    %cst_57 = arith.constant dense<0.000000e+00> : vector<8x32xf32>
    %164 = tpu.matmul %162, %163, %cst_57 {dimension_numbers = #tpu.dot_dimension_numbers<[1], [0], [0], [1], [0, 0, 1, 1], [], []>} : vector<8x8xf32>, vector<8x32xf32>, vector<8x32xf32> -> vector<8x32xf32>
    %165 = arith.addf %146, %164 : vector<8x32xf32>
    %166 = vector.extract_strided_slice %37 {offsets = [8, 16], sizes = [8, 8], strides = [1, 1]} : vector<16x32xf32> to vector<8x8xf32>
    %167 = vector.extract_strided_slice %38 {offsets = [8, 16], sizes = [8, 8], strides = [1, 1]} : vector<16x32xf32> to vector<8x8xf32>
    %168 = vector.extract_strided_slice %39 {offsets = [8, 16], sizes = [8, 8], strides = [1, 1]} : vector<16x32xf32> to vector<8x8xf32>
    %cst_58 = arith.constant dense<0.000000e+00> : vector<8x8xf32>
    %169 = tpu.matmul %166, %167, %cst_58 {dimension_numbers = #tpu.dot_dimension_numbers<[1], [1], [0], [0], [0, 0, 1, 0], [], []>} : vector<8x8xf32>, vector<8x8xf32>, vector<8x8xf32> -> vector<8x8xf32>
    %170 = arith.addf %169, %126 : vector<8x8xf32>
    %cst_59 = arith.constant dense<0xFF800000> : vector<8xf32>
    %171 = vector.multi_reduction <maximumf>, %170, %cst_59 [1] : vector<8x8xf32> to vector<8xf32>
    %172 = vector.shape_cast %171 : vector<8xf32> to vector<8x1xf32>
    %173 = vector.broadcast %172 : vector<8x1xf32> to vector<8x8xf32>
    %174 = arith.subf %170, %173 : vector<8x8xf32>
    %175 = math.exp %174 : vector<8x8xf32>
    %cst_60 = arith.constant dense<0.000000e+00> : vector<8xf32>
    %176 = vector.multi_reduction <add>, %175, %cst_60 [1] : vector<8x8xf32> to vector<8xf32>
    %177 = vector.shape_cast %176 : vector<8xf32> to vector<8x1xf32>
    %178 = tpu.reciprocal %177 {approx = true} : vector<8x1xf32> -> vector<8x1xf32>
    %179 = vector.broadcast %178 : vector<8x1xf32> to vector<8x8xf32>
    %180 = arith.mulf %175, %179 : vector<8x8xf32>
    %cst_61 = arith.constant dense<0.000000e+00> : vector<8x8xf32>
    %181 = tpu.matmul %180, %168, %cst_61 {dimension_numbers = #tpu.dot_dimension_numbers<[1], [0], [0], [1], [0, 0, 1, 1], [], []>} : vector<8x8xf32>, vector<8x8xf32>, vector<8x8xf32> -> vector<8x8xf32>
    %182 = vector.extract_strided_slice %43 {offsets = [16, 0], sizes = [8, 32], strides = [1, 1]} : vector<32x32xf32> to vector<8x32xf32>
    %cst_62 = arith.constant dense<0.000000e+00> : vector<8x32xf32>
    %183 = tpu.matmul %181, %182, %cst_62 {dimension_numbers = #tpu.dot_dimension_numbers<[1], [0], [0], [1], [0, 0, 1, 1], [], []>} : vector<8x8xf32>, vector<8x32xf32>, vector<8x32xf32> -> vector<8x32xf32>
    %184 = arith.addf %165, %183 : vector<8x32xf32>
    %185 = vector.extract_strided_slice %37 {offsets = [8, 24], sizes = [8, 8], strides = [1, 1]} : vector<16x32xf32> to vector<8x8xf32>
    %186 = vector.extract_strided_slice %38 {offsets = [8, 24], sizes = [8, 8], strides = [1, 1]} : vector<16x32xf32> to vector<8x8xf32>
    %187 = vector.extract_strided_slice %39 {offsets = [8, 24], sizes = [8, 8], strides = [1, 1]} : vector<16x32xf32> to vector<8x8xf32>
    %cst_63 = arith.constant dense<0.000000e+00> : vector<8x8xf32>
    %188 = tpu.matmul %185, %186, %cst_63 {dimension_numbers = #tpu.dot_dimension_numbers<[1], [1], [0], [0], [0, 0, 1, 0], [], []>} : vector<8x8xf32>, vector<8x8xf32>, vector<8x8xf32> -> vector<8x8xf32>
    %189 = arith.addf %188, %126 : vector<8x8xf32>
    %cst_64 = arith.constant dense<0xFF800000> : vector<8xf32>
    %190 = vector.multi_reduction <maximumf>, %189, %cst_64 [1] : vector<8x8xf32> to vector<8xf32>
    %191 = vector.shape_cast %190 : vector<8xf32> to vector<8x1xf32>
    %192 = vector.broadcast %191 : vector<8x1xf32> to vector<8x8xf32>
    %193 = arith.subf %189, %192 : vector<8x8xf32>
    %194 = math.exp %193 : vector<8x8xf32>
    %cst_65 = arith.constant dense<0.000000e+00> : vector<8xf32>
    %195 = vector.multi_reduction <add>, %194, %cst_65 [1] : vector<8x8xf32> to vector<8xf32>
    %196 = vector.shape_cast %195 : vector<8xf32> to vector<8x1xf32>
    %197 = tpu.reciprocal %196 {approx = true} : vector<8x1xf32> -> vector<8x1xf32>
    %198 = vector.broadcast %197 : vector<8x1xf32> to vector<8x8xf32>
    %199 = arith.mulf %194, %198 : vector<8x8xf32>
    %cst_66 = arith.constant dense<0.000000e+00> : vector<8x8xf32>
    %200 = tpu.matmul %199, %187, %cst_66 {dimension_numbers = #tpu.dot_dimension_numbers<[1], [0], [0], [1], [0, 0, 1, 1], [], []>} : vector<8x8xf32>, vector<8x8xf32>, vector<8x8xf32> -> vector<8x8xf32>
    %201 = vector.extract_strided_slice %43 {offsets = [24, 0], sizes = [8, 32], strides = [1, 1]} : vector<32x32xf32> to vector<8x32xf32>
    %cst_67 = arith.constant dense<0.000000e+00> : vector<8x32xf32>
    %202 = tpu.matmul %200, %201, %cst_67 {dimension_numbers = #tpu.dot_dimension_numbers<[1], [0], [0], [1], [0, 0, 1, 1], [], []>} : vector<8x8xf32>, vector<8x32xf32>, vector<8x32xf32> -> vector<8x32xf32>
    %203 = arith.addf %184, %202 : vector<8x32xf32>
    %204 = tpu.concatenate %123, %203 in 0 : vector<8x32xf32>, vector<8x32xf32> -> vector<16x32xf32>
    %c0_68 = arith.constant 0 : index
    %c0_69 = arith.constant 0 : index
    %c0_70 = arith.constant 0 : index
    %205 = vector.load %arg12[%c0_68, %c0_69, %c0_70] : memref<1x1x32xf32, #tpu.memory_space<vmem>>, vector<1x1x32xf32>
    %206 = vector.shape_cast %205 : vector<1x1x32xf32> to vector<1x32xf32>
    %207 = vector.broadcast %206 : vector<1x32xf32> to vector<16x32xf32>
    %208 = arith.addf %204, %207 : vector<16x32xf32>
    %209 = arith.addf %3, %208 : vector<16x32xf32>
    %c0_71 = arith.constant 0 : index
    %c0_72 = arith.constant 0 : index
    %c0_73 = arith.constant 0 : index
    %210 = vector.load %arg13[%c0_71, %c0_72, %c0_73] : memref<1x1x32xf32, #tpu.memory_space<vmem>>, vector<1x1x32xf32>
    %211 = vector.shape_cast %210 : vector<1x1x32xf32> to vector<1x32xf32>
    %c0_74 = arith.constant 0 : index
    %c0_75 = arith.constant 0 : index
    %c0_76 = arith.constant 0 : index
    %212 = vector.load %arg14[%c0_74, %c0_75, %c0_76] : memref<1x1x32xf32, #tpu.memory_space<vmem>>, vector<1x1x32xf32>
    %213 = vector.shape_cast %212 : vector<1x1x32xf32> to vector<1x32xf32>
    %cst_77 = arith.constant dense<0.000000e+00> : vector<16xf32>
    %214 = vector.multi_reduction <add>, %209, %cst_77 [1] : vector<16x32xf32> to vector<16xf32>
    %215 = vector.shape_cast %214 : vector<16xf32> to vector<16x1xf32>
    %cst_78 = arith.constant 3.200000e+01 : f32
    %216 = vector.broadcast %cst_78 : f32 to vector<16x1xf32>
    %217 = arith.divf %215, %216 : vector<16x1xf32>
    %218 = vector.broadcast %217 : vector<16x1xf32> to vector<16x32xf32>
    %219 = arith.subf %209, %218 : vector<16x32xf32>
    %220 = arith.mulf %219, %219 : vector<16x32xf32>
    %cst_79 = arith.constant dense<0.000000e+00> : vector<16xf32>
    %221 = vector.multi_reduction <add>, %220, %cst_79 [1] : vector<16x32xf32> to vector<16xf32>
    %222 = vector.shape_cast %221 : vector<16xf32> to vector<16x1xf32>
    %cst_80 = arith.constant 3.200000e+01 : f32
    %223 = vector.broadcast %cst_80 : f32 to vector<16x1xf32>
    %224 = arith.divf %222, %223 : vector<16x1xf32>
    %cst_81 = arith.constant 9.99999974E-6 : f32
    %225 = vector.broadcast %cst_81 : f32 to vector<16x1xf32>
    %226 = arith.addf %224, %225 : vector<16x1xf32>
    %227 = math.rsqrt %226 : vector<16x1xf32>
    %228 = vector.broadcast %227 : vector<16x1xf32> to vector<16x32xf32>
    %229 = arith.mulf %219, %228 : vector<16x32xf32>
    %230 = vector.broadcast %211 : vector<1x32xf32> to vector<16x32xf32>
    %231 = arith.mulf %229, %230 : vector<16x32xf32>
    %232 = vector.broadcast %213 : vector<1x32xf32> to vector<16x32xf32>
    %233 = arith.addf %231, %232 : vector<16x32xf32>
    %c0_82 = arith.constant 0 : index
    %c0_83 = arith.constant 0 : index
    %c0_84 = arith.constant 0 : index
    %234 = vector.load %arg15[%c0_82, %c0_83, %c0_84] : memref<1x32x128xf32, #tpu.memory_space<vmem>>, vector<1x32x128xf32>
    %235 = vector.shape_cast %234 : vector<1x32x128xf32> to vector<32x128xf32>
    %cst_85 = arith.constant dense<0.000000e+00> : vector<16x128xf32>
    %236 = tpu.matmul %233, %235, %cst_85 {dimension_numbers = #tpu.dot_dimension_numbers<[1], [0], [0], [1], [0, 0, 1, 1], [], []>} : vector<16x32xf32>, vector<32x128xf32>, vector<16x128xf32> -> vector<16x128xf32>
    %c0_86 = arith.constant 0 : index
    %c0_87 = arith.constant 0 : index
    %c0_88 = arith.constant 0 : index
    %237 = vector.load %arg16[%c0_86, %c0_87, %c0_88] : memref<1x1x128xf32, #tpu.memory_space<vmem>>, vector<1x1x128xf32>
    %238 = vector.shape_cast %237 : vector<1x1x128xf32> to vector<1x128xf32>
    %239 = vector.broadcast %238 : vector<1x128xf32> to vector<16x128xf32>
    %240 = arith.addf %236, %239 : vector<16x128xf32>
    %cst_89 = arith.constant 1.702000e+00 : f32
    %241 = vector.broadcast %cst_89 : f32 to vector<16x128xf32>
    %242 = arith.mulf %241, %240 : vector<16x128xf32>
    %243 = arith.negf %242 : vector<16x128xf32>
    %244 = math.exp %243 : vector<16x128xf32>
    %cst_90 = arith.constant 1.000000e+00 : f32
    %245 = vector.broadcast %cst_90 : f32 to vector<16x128xf32>
    %246 = arith.addf %245, %244 : vector<16x128xf32>
    %247 = arith.divf %245, %246 : vector<16x128xf32>
    %248 = arith.mulf %240, %247 : vector<16x128xf32>
    %c0_91 = arith.constant 0 : index
    %c0_92 = arith.constant 0 : index
    %c0_93 = arith.constant 0 : index
    %249 = vector.load %arg17[%c0_91, %c0_92, %c0_93] : memref<1x128x32xf32, #tpu.memory_space<vmem>>, vector<1x128x32xf32>
    %250 = vector.shape_cast %249 : vector<1x128x32xf32> to vector<128x32xf32>
    %cst_94 = arith.constant dense<0.000000e+00> : vector<16x32xf32>
    %251 = tpu.matmul %248, %250, %cst_94 {dimension_numbers = #tpu.dot_dimension_numbers<[1], [0], [0], [1], [0, 0, 1, 1], [], []>} : vector<16x128xf32>, vector<128x32xf32>, vector<16x32xf32> -> vector<16x32xf32>
    %c0_95 = arith.constant 0 : index
    %c0_96 = arith.constant 0 : index
    %c0_97 = arith.constant 0 : index
    %252 = vector.load %arg18[%c0_95, %c0_96, %c0_97] : memref<1x1x32xf32, #tpu.memory_space<vmem>>, vector<1x1x32xf32>
    %253 = vector.shape_cast %252 : vector<1x1x32xf32> to vector<1x32xf32>
    %254 = vector.broadcast %253 : vector<1x32xf32> to vector<16x32xf32>
    %255 = arith.addf %251, %254 : vector<16x32xf32>
    %256 = arith.addf %209, %255 : vector<16x32xf32>
    %c0_98 = arith.constant 0 : index
    %c0_99 = arith.constant 0 : index
    %257 = vector.load %arg20[%c0_98, %c0_99] : memref<16x32xf32, #tpu.memory_space<vmem>>, vector<16x32xf32>
    tpu.vector_store %arg20[%c0_98, %c0_99], %256 {strides = array<i32>} : memref<16x32xf32, #tpu.memory_space<vmem>>, vector<16x32xf32>,
    %c1_i32 = arith.constant 1 : i32
    %258 = arith.cmpi eq, %arg0, %c1_i32 : i32
    %259 = arith.extui %258 : i1 to i32
    %c0_i32_100 = arith.constant 0 : i32
    %260 = arith.cmpi ne, %259, %c0_i32_100 : i32
    scf.if %260 {
      %c0_101 = arith.constant 0 : index
      %c0_102 = arith.constant 0 : index
      %261 = vector.load %arg19[%c0_101, %c0_102] : memref<16x32xf32, #tpu.memory_space<vmem>>, vector<16x32xf32>
      tpu.vector_store %arg19[%c0_101, %c0_102], %256 {strides = array<i32>} : memref<16x32xf32, #tpu.memory_space<vmem>>, vector<16x32xf32>,
    } else {
    }
    return
  }
  func.func @transform_0(%arg0: i32) -> (i32, i32) {
    %c0_i32 = arith.constant 0 : i32
    %c0_i32_0 = arith.constant 0 : i32
    %c0_i32_1 = arith.constant 0 : i32
    return %c0_i32, %c0_i32_0 : i32, i32
  }
  func.func @transform_1(%arg0: i32) -> (i32, i32) {
    %c0_i32 = arith.constant 0 : i32
    %c0_i32_0 = arith.constant 0 : i32
    %c0_i32_1 = arith.constant 0 : i32
    return %c0_i32, %c0_i32_0 : i32, i32
  }
  func.func @transform_2(%arg0: i32) -> (i32, i32) {
    %c0_i32 = arith.constant 0 : i32
    %c0_i32_0 = arith.constant 0 : i32
    %c0_i32_1 = arith.constant 0 : i32
    return %c0_i32, %c0_i32_0 : i32, i32
  }
  func.func @transform_3(%arg0: i32) -> (i32, i32) {
    %c0_i32 = arith.constant 0 : i32
    %c0_i32_0 = arith.constant 0 : i32
    %c0_i32_1 = arith.constant 0 : i32
    return %c0_i32, %c0_i32_0 : i32, i32
  }
  func.func @transform_4(%arg0: i32) -> (i32, i32) {
    %c0_i32 = arith.constant 0 : i32
    %c0_i32_0 = arith.constant 0 : i32
    %c0_i32_1 = arith.constant 0 : i32
    return %c0_i32, %c0_i32_0 : i32, i32
  }
  func.func @transform_5(%arg0: i32) -> (i32, i32) {
    %c0_i32 = arith.constant 0 : i32
    %c0_i32_0 = arith.constant 0 : i32
    %c0_i32_1 = arith.constant 0 : i32
    return %c0_i32, %c0_i32_0 : i32, i32
  }
  func.func @transform_6(%arg0: i32) -> (i32, i32, i32) {
    %c0_i32 = arith.constant 0 : i32
    %c0_i32_0 = arith.constant 0 : i32
    %c0_i32_1 = arith.constant 0 : i32
    return %arg0, %c0_i32, %c0_i32_0 : i32, i32, i32
  }
  func.func @transform_7(%arg0: i32) -> (i32, i32, i32) {
    %c0_i32 = arith.constant 0 : i32
    %c0_i32_0 = arith.constant 0 : i32
    %c0_i32_1 = arith.constant 0 : i32
    return %arg0, %c0_i32, %c0_i32_0 : i32, i32, i32
  }
  func.func @transform_8(%arg0: i32) -> (i32, i32, i32) {
    %c0_i32 = arith.constant 0 : i32
    %c0_i32_0 = arith.constant 0 : i32
    %c0_i32_1 = arith.constant 0 : i32
    return %arg0, %c0_i32, %c0_i32_0 : i32, i32, i32
  }
  func.func @transform_9(%arg0: i32) -> (i32, i32, i32) {
    %c0_i32 = arith.constant 0 : i32
    %c0_i32_0 = arith.constant 0 : i32
    %c0_i32_1 = arith.constant 0 : i32
    return %arg0, %c0_i32, %c0_i32_0 : i32, i32, i32
  }
  func.func @transform_10(%arg0: i32) -> (i32, i32, i32) {
    %c0_i32 = arith.constant 0 : i32
    %c0_i32_0 = arith.constant 0 : i32
    %c0_i32_1 = arith.constant 0 : i32
    return %arg0, %c0_i32, %c0_i32_0 : i32, i32, i32
  }
  func.func @transform_11(%arg0: i32) -> (i32, i32, i32) {
    %c0_i32 = arith.constant 0 : i32
    %c0_i32_0 = arith.constant 0 : i32
    %c0_i32_1 = arith.constant 0 : i32
    return %arg0, %c0_i32, %c0_i32_0 : i32, i32, i32
  }
  func.func @transform_12(%arg0: i32) -> (i32, i32, i32) {
    %c0_i32 = arith.constant 0 : i32
    %c0_i32_0 = arith.constant 0 : i32
    %c0_i32_1 = arith.constant 0 : i32
    return %arg0, %c0_i32, %c0_i32_0 : i32, i32, i32
  }
  func.func @transform_13(%arg0: i32) -> (i32, i32, i32) {
    %c0_i32 = arith.constant 0 : i32
    %c0_i32_0 = arith.constant 0 : i32
    %c0_i32_1 = arith.constant 0 : i32
    return %arg0, %c0_i32, %c0_i32_0 : i32, i32, i32
  }
  func.func @transform_14(%arg0: i32) -> (i32, i32, i32) {
    %c0_i32 = arith.constant 0 : i32
    %c0_i32_0 = arith.constant 0 : i32
    %c0_i32_1 = arith.constant 0 : i32
    return %arg0, %c0_i32, %c0_i32_0 : i32, i32, i32
  }
  func.func @transform_15(%arg0: i32) -> (i32, i32, i32) {
    %c0_i32 = arith.constant 0 : i32
    %c0_i32_0 = arith.constant 0 : i32
    %c0_i32_1 = arith.constant 0 : i32
    return %arg0, %c0_i32, %c0_i32_0 : i32, i32, i32
  }
  func.func @transform_16(%arg0: i32) -> (i32, i32, i32) {
    %c0_i32 = arith.constant 0 : i32
    %c0_i32_0 = arith.constant 0 : i32
    %c0_i32_1 = arith.constant 0 : i32
    return %arg0, %c0_i32, %c0_i32_0 : i32, i32, i32
  }
  func.func @transform_17(%arg0: i32) -> (i32, i32, i32) {
    %c0_i32 = arith.constant 0 : i32
    %c0_i32_0 = arith.constant 0 : i32
    %c0_i32_1 = arith.constant 0 : i32
    return %arg0, %c0_i32, %c0_i32_0 : i32, i32, i32
  }
  func.func @transform_18(%arg0: i32) -> (i32, i32) {
    %c0_i32 = arith.constant 0 : i32
    %c0_i32_0 = arith.constant 0 : i32
    %c0_i32_1 = arith.constant 0 : i32
    return %c0_i32, %c0_i32_0 : i32, i32
  }
}

module attributes {stable_mosaic.version = 11 : i64} {
  func.func @_tower_kernel(%arg0: i32, %arg1: memref<16x32xf32, #tpu.memory_space<vmem>>, %arg2: memref<2x8xf32, #tpu.memory_space<vmem>>, %arg3: memref<1x32xf32, #tpu.memory_space<vmem>>, %arg4: memref<1x32xf32, #tpu.memory_space<vmem>>, %arg5: memref<1x32xf32, #tpu.memory_space<vmem>>, %arg6: memref<1x32xf32, #tpu.memory_space<vmem>>, %arg7: memref<1x1x32xf32, #tpu.memory_space<vmem>>, %arg8: memref<1x1x32xf32, #tpu.memory_space<vmem>>, %arg9: memref<1x32x96xf32, #tpu.memory_space<vmem>>, %arg10: memref<1x1x96xf32, #tpu.memory_space<vmem>>, %arg11: memref<1x32x32xf32, #tpu.memory_space<vmem>>, %arg12: memref<1x1x32xf32, #tpu.memory_space<vmem>>, %arg13: memref<1x1x32xf32, #tpu.memory_space<vmem>>, %arg14: memref<1x1x32xf32, #tpu.memory_space<vmem>>, %arg15: memref<1x32x128xf32, #tpu.memory_space<vmem>>, %arg16: memref<1x1x128xf32, #tpu.memory_space<vmem>>, %arg17: memref<1x128x32xf32, #tpu.memory_space<vmem>>, %arg18: memref<1x1x32xf32, #tpu.memory_space<vmem>>, %arg19: memref<16x32xf32, #tpu.memory_space<vmem>>, %arg20: memref<16x32xf32, #tpu.memory_space<vmem>>) attributes {dimension_semantics = [#tpu.dimension_semantics<arbitrary>], iteration_bounds = array<i64: 2>, scalar_prefetch = 0 : i64, scratch_operands = 1 : i64, tpu.core_type = #tpu.core_type<tc>, window_params = [{pipeline_mode = #tpu.pipeline_mode<synchronous>, transform_indices = @transform_0, window_bounds = array<i64: 16, 32>}, {pipeline_mode = #tpu.pipeline_mode<synchronous>, transform_indices = @transform_1, window_bounds = array<i64: 2, 8>}, {pipeline_mode = #tpu.pipeline_mode<synchronous>, transform_indices = @transform_2, window_bounds = array<i64: 1, 32>}, {pipeline_mode = #tpu.pipeline_mode<synchronous>, transform_indices = @transform_3, window_bounds = array<i64: 1, 32>}, {pipeline_mode = #tpu.pipeline_mode<synchronous>, transform_indices = @transform_4, window_bounds = array<i64: 1, 32>}, {pipeline_mode = #tpu.pipeline_mode<synchronous>, transform_indices = @transform_5, window_bounds = array<i64: 1, 32>}, {transform_indices = @transform_6, window_bounds = array<i64: 1, 1, 32>}, {transform_indices = @transform_7, window_bounds = array<i64: 1, 1, 32>}, {transform_indices = @transform_8, window_bounds = array<i64: 1, 32, 96>}, {transform_indices = @transform_9, window_bounds = array<i64: 1, 1, 96>}, {transform_indices = @transform_10, window_bounds = array<i64: 1, 32, 32>}, {transform_indices = @transform_11, window_bounds = array<i64: 1, 1, 32>}, {transform_indices = @transform_12, window_bounds = array<i64: 1, 1, 32>}, {transform_indices = @transform_13, window_bounds = array<i64: 1, 1, 32>}, {transform_indices = @transform_14, window_bounds = array<i64: 1, 32, 128>}, {transform_indices = @transform_15, window_bounds = array<i64: 1, 1, 128>}, {transform_indices = @transform_16, window_bounds = array<i64: 1, 128, 32>}, {transform_indices = @transform_17, window_bounds = array<i64: 1, 1, 32>}, {pipeline_mode = #tpu.pipeline_mode<synchronous>, transform_indices = @transform_18, window_bounds = array<i64: 16, 32>}]} {
    %c0_i32 = arith.constant 0 : i32
    %0 = arith.cmpi eq, %arg0, %c0_i32 : i32
    %1 = arith.extui %0 : i1 to i32
    %c0_i32_0 = arith.constant 0 : i32
    %2 = arith.cmpi ne, %1, %c0_i32_0 : i32
    scf.if %2 {
      %c0_102 = arith.constant 0 : index
      %c0_103 = arith.constant 0 : index
      %266 = vector.load %arg1[%c0_102, %c0_103] : memref<16x32xf32, #tpu.memory_space<vmem>>, vector<16x32xf32>
      %c0_104 = arith.constant 0 : index
      %c0_105 = arith.constant 0 : index
      %267 = vector.load %arg20[%c0_104, %c0_105] : memref<16x32xf32, #tpu.memory_space<vmem>>, vector<16x32xf32>
      tpu.vector_store %arg20[%c0_104, %c0_105], %266 {strides = array<i32>} : memref<16x32xf32, #tpu.memory_space<vmem>>, vector<16x32xf32>,
    } else {
    }
    %c0 = arith.constant 0 : index
    %c0_1 = arith.constant 0 : index
    %3 = vector.load %arg20[%c0, %c0_1] : memref<16x32xf32, #tpu.memory_space<vmem>>, vector<16x32xf32>
    %c0_2 = arith.constant 0 : index
    %c0_3 = arith.constant 0 : index
    %c0_4 = arith.constant 0 : index
    %4 = vector.load %arg7[%c0_2, %c0_3, %c0_4] : memref<1x1x32xf32, #tpu.memory_space<vmem>>, vector<1x1x32xf32>
    %5 = vector.shape_cast %4 : vector<1x1x32xf32> to vector<1x32xf32>
    %c0_5 = arith.constant 0 : index
    %c0_6 = arith.constant 0 : index
    %c0_7 = arith.constant 0 : index
    %6 = vector.load %arg8[%c0_5, %c0_6, %c0_7] : memref<1x1x32xf32, #tpu.memory_space<vmem>>, vector<1x1x32xf32>
    %7 = vector.shape_cast %6 : vector<1x1x32xf32> to vector<1x32xf32>
    %cst = arith.constant dense<0.000000e+00> : vector<16xf32>
    %8 = vector.multi_reduction <add>, %3, %cst [1] : vector<16x32xf32> to vector<16xf32>
    %9 = vector.shape_cast %8 : vector<16xf32> to vector<16x1xf32>
    %cst_8 = arith.constant 3.200000e+01 : f32
    %10 = vector.broadcast %cst_8 : f32 to vector<16x1xf32>
    %11 = arith.divf %9, %10 : vector<16x1xf32>
    %12 = vector.broadcast %11 : vector<16x1xf32> to vector<16x32xf32>
    %13 = arith.subf %3, %12 : vector<16x32xf32>
    %14 = arith.mulf %13, %13 : vector<16x32xf32>
    %cst_9 = arith.constant dense<0.000000e+00> : vector<16xf32>
    %15 = vector.multi_reduction <add>, %14, %cst_9 [1] : vector<16x32xf32> to vector<16xf32>
    %16 = vector.shape_cast %15 : vector<16xf32> to vector<16x1xf32>
    %cst_10 = arith.constant 3.200000e+01 : f32
    %17 = vector.broadcast %cst_10 : f32 to vector<16x1xf32>
    %18 = arith.divf %16, %17 : vector<16x1xf32>
    %cst_11 = arith.constant 9.99999974E-6 : f32
    %19 = vector.broadcast %cst_11 : f32 to vector<16x1xf32>
    %20 = arith.addf %18, %19 : vector<16x1xf32>
    %21 = math.rsqrt %20 : vector<16x1xf32>
    %22 = vector.broadcast %21 : vector<16x1xf32> to vector<16x32xf32>
    %23 = arith.mulf %13, %22 : vector<16x32xf32>
    %24 = vector.broadcast %5 : vector<1x32xf32> to vector<16x32xf32>
    %25 = arith.mulf %23, %24 : vector<16x32xf32>
    %26 = vector.broadcast %7 : vector<1x32xf32> to vector<16x32xf32>
    %27 = arith.addf %25, %26 : vector<16x32xf32>
    %c0_12 = arith.constant 0 : index
    %c0_13 = arith.constant 0 : index
    %c0_14 = arith.constant 0 : index
    %28 = vector.load %arg9[%c0_12, %c0_13, %c0_14] : memref<1x32x96xf32, #tpu.memory_space<vmem>>, vector<1x32x96xf32>
    %29 = vector.shape_cast %28 : vector<1x32x96xf32> to vector<32x96xf32>
    %cst_15 = arith.constant dense<0.000000e+00> : vector<16x96xf32>
    %30 = tpu.matmul %27, %29, %cst_15 {dimension_numbers = #tpu.dot_dimension_numbers<[1], [0], [0], [1], [0, 0, 1, 1], [], []>} : vector<16x32xf32>, vector<32x96xf32>, vector<16x96xf32> -> vector<16x96xf32>
    %c0_16 = arith.constant 0 : index
    %c0_17 = arith.constant 0 : index
    %c0_18 = arith.constant 0 : index
    %31 = vector.load %arg10[%c0_16, %c0_17, %c0_18] : memref<1x1x96xf32, #tpu.memory_space<vmem>>, vector<1x1x96xf32>
    %32 = vector.shape_cast %31 : vector<1x1x96xf32> to vector<1x96xf32>
    %33 = vector.broadcast %32 : vector<1x96xf32> to vector<16x96xf32>
    %34 = arith.addf %30, %33 : vector<16x96xf32>
    %35 = vector.extract_strided_slice %34 {offsets = [0, 0], sizes = [16, 32], strides = [1, 1]} : vector<16x96xf32> to vector<16x32xf32>
    %cst_19 = arith.constant 0.353553385 : f32
    %36 = vector.broadcast %cst_19 : f32 to vector<16x32xf32>
    %37 = arith.mulf %35, %36 : vector<16x32xf32>
    %38 = vector.extract_strided_slice %34 {offsets = [0, 32], sizes = [16, 32], strides = [1, 1]} : vector<16x96xf32> to vector<16x32xf32>
    %39 = vector.extract_strided_slice %34 {offsets = [0, 64], sizes = [16, 32], strides = [1, 1]} : vector<16x96xf32> to vector<16x32xf32>
    %40 = tpu.iota {dimensions = array<i32: 0>} : vector<8x8xi32>
    %41 = tpu.iota {dimensions = array<i32: 1>} : vector<8x8xi32>
    %42 = arith.cmpi sgt, %41, %40 : vector<8x8xi32>
    %cst_20 = arith.constant -1.000000e+09 : f32
    %cst_21 = arith.constant 0.000000e+00 : f32
    %43 = vector.broadcast %cst_20 : f32 to vector<8x8xf32>
    %44 = vector.broadcast %cst_21 : f32 to vector<8x8xf32>
    %45 = arith.select %42, %43, %44 : vector<8x8xi1>, vector<8x8xf32>
    %c0_22 = arith.constant 0 : index
    %c0_23 = arith.constant 0 : index
    %46 = vector.load %arg2[%c0_22, %c0_23] : memref<2x8xf32, #tpu.memory_space<vmem>>, vector<2x8xf32>
    %c0_24 = arith.constant 0 : index
    %c0_25 = arith.constant 0 : index
    %c0_26 = arith.constant 0 : index
    %47 = vector.load %arg11[%c0_24, %c0_25, %c0_26] : memref<1x32x32xf32, #tpu.memory_space<vmem>>, vector<1x32x32xf32>
    %48 = vector.shape_cast %47 : vector<1x32x32xf32> to vector<32x32xf32>
    %49 = vector.extract_strided_slice %46 {offsets = [0, 0], sizes = [1, 8], strides = [1, 1]} : vector<2x8xf32> to vector<1x8xf32>
    %50 = vector.broadcast %49 : vector<1x8xf32> to vector<8x8xf32>
    %51 = arith.addf %45, %50 : vector<8x8xf32>
    %cst_27 = arith.constant 0.000000e+00 : f32
    %52 = vector.broadcast %cst_27 : f32 to vector<8x32xf32>
    %53 = vector.extract_strided_slice %37 {offsets = [0, 0], sizes = [8, 8], strides = [1, 1]} : vector<16x32xf32> to vector<8x8xf32>
    %54 = vector.extract_strided_slice %38 {offsets = [0, 0], sizes = [8, 8], strides = [1, 1]} : vector<16x32xf32> to vector<8x8xf32>
    %55 = vector.extract_strided_slice %39 {offsets = [0, 0], sizes = [8, 8], strides = [1, 1]} : vector<16x32xf32> to vector<8x8xf32>
    %cst_28 = arith.constant dense<0.000000e+00> : vector<8x8xf32>
    %56 = tpu.matmul %53, %54, %cst_28 {dimension_numbers = #tpu.dot_dimension_numbers<[1], [1], [0], [0], [0, 0, 1, 0], [], []>} : vector<8x8xf32>, vector<8x8xf32>, vector<8x8xf32> -> vector<8x8xf32>
    %57 = arith.addf %56, %51 : vector<8x8xf32>
    %cst_29 = arith.constant dense<0xFF800000> : vector<8xf32>
    %58 = vector.multi_reduction <maximumf>, %57, %cst_29 [1] : vector<8x8xf32> to vector<8xf32>
    %59 = vector.shape_cast %58 : vector<8xf32> to vector<8x1xf32>
    %60 = vector.broadcast %59 : vector<8x1xf32> to vector<8x8xf32>
    %61 = arith.subf %57, %60 : vector<8x8xf32>
    %62 = math.exp %61 : vector<8x8xf32>
    %cst_30 = arith.constant dense<0.000000e+00> : vector<8xf32>
    %63 = vector.multi_reduction <add>, %62, %cst_30 [1] : vector<8x8xf32> to vector<8xf32>
    %64 = vector.shape_cast %63 : vector<8xf32> to vector<8x1xf32>
    %65 = tpu.reciprocal %64 {approx = true} : vector<8x1xf32> -> vector<8x1xf32>
    %66 = vector.broadcast %65 : vector<8x1xf32> to vector<8x8xf32>
    %67 = arith.mulf %62, %66 : vector<8x8xf32>
    %cst_31 = arith.constant dense<0.000000e+00> : vector<8x8xf32>
    %68 = tpu.matmul %67, %55, %cst_31 {dimension_numbers = #tpu.dot_dimension_numbers<[1], [0], [0], [1], [0, 0, 1, 1], [], []>} : vector<8x8xf32>, vector<8x8xf32>, vector<8x8xf32> -> vector<8x8xf32>
    %69 = vector.extract_strided_slice %48 {offsets = [0, 0], sizes = [8, 32], strides = [1, 1]} : vector<32x32xf32> to vector<8x32xf32>
    %cst_32 = arith.constant dense<0.000000e+00> : vector<8x32xf32>
    %70 = tpu.matmul %68, %69, %cst_32 {dimension_numbers = #tpu.dot_dimension_numbers<[1], [0], [0], [1], [0, 0, 1, 1], [], []>} : vector<8x8xf32>, vector<8x32xf32>, vector<8x32xf32> -> vector<8x32xf32>
    %71 = arith.addf %52, %70 : vector<8x32xf32>
    %72 = vector.extract_strided_slice %37 {offsets = [0, 8], sizes = [8, 8], strides = [1, 1]} : vector<16x32xf32> to vector<8x8xf32>
    %73 = vector.extract_strided_slice %38 {offsets = [0, 8], sizes = [8, 8], strides = [1, 1]} : vector<16x32xf32> to vector<8x8xf32>
    %74 = vector.extract_strided_slice %39 {offsets = [0, 8], sizes = [8, 8], strides = [1, 1]} : vector<16x32xf32> to vector<8x8xf32>
    %cst_33 = arith.constant dense<0.000000e+00> : vector<8x8xf32>
    %75 = tpu.matmul %72, %73, %cst_33 {dimension_numbers = #tpu.dot_dimension_numbers<[1], [1], [0], [0], [0, 0, 1, 0], [], []>} : vector<8x8xf32>, vector<8x8xf32>, vector<8x8xf32> -> vector<8x8xf32>
    %76 = arith.addf %75, %51 : vector<8x8xf32>
    %cst_34 = arith.constant dense<0xFF800000> : vector<8xf32>
    %77 = vector.multi_reduction <maximumf>, %76, %cst_34 [1] : vector<8x8xf32> to vector<8xf32>
    %78 = vector.shape_cast %77 : vector<8xf32> to vector<8x1xf32>
    %79 = vector.broadcast %78 : vector<8x1xf32> to vector<8x8xf32>
    %80 = arith.subf %76, %79 : vector<8x8xf32>
    %81 = math.exp %80 : vector<8x8xf32>
    %cst_35 = arith.constant dense<0.000000e+00> : vector<8xf32>
    %82 = vector.multi_reduction <add>, %81, %cst_35 [1] : vector<8x8xf32> to vector<8xf32>
    %83 = vector.shape_cast %82 : vector<8xf32> to vector<8x1xf32>
    %84 = tpu.reciprocal %83 {approx = true} : vector<8x1xf32> -> vector<8x1xf32>
    %85 = vector.broadcast %84 : vector<8x1xf32> to vector<8x8xf32>
    %86 = arith.mulf %81, %85 : vector<8x8xf32>
    %cst_36 = arith.constant dense<0.000000e+00> : vector<8x8xf32>
    %87 = tpu.matmul %86, %74, %cst_36 {dimension_numbers = #tpu.dot_dimension_numbers<[1], [0], [0], [1], [0, 0, 1, 1], [], []>} : vector<8x8xf32>, vector<8x8xf32>, vector<8x8xf32> -> vector<8x8xf32>
    %88 = vector.extract_strided_slice %48 {offsets = [8, 0], sizes = [8, 32], strides = [1, 1]} : vector<32x32xf32> to vector<8x32xf32>
    %cst_37 = arith.constant dense<0.000000e+00> : vector<8x32xf32>
    %89 = tpu.matmul %87, %88, %cst_37 {dimension_numbers = #tpu.dot_dimension_numbers<[1], [0], [0], [1], [0, 0, 1, 1], [], []>} : vector<8x8xf32>, vector<8x32xf32>, vector<8x32xf32> -> vector<8x32xf32>
    %90 = arith.addf %71, %89 : vector<8x32xf32>
    %91 = vector.extract_strided_slice %37 {offsets = [0, 16], sizes = [8, 8], strides = [1, 1]} : vector<16x32xf32> to vector<8x8xf32>
    %92 = vector.extract_strided_slice %38 {offsets = [0, 16], sizes = [8, 8], strides = [1, 1]} : vector<16x32xf32> to vector<8x8xf32>
    %93 = vector.extract_strided_slice %39 {offsets = [0, 16], sizes = [8, 8], strides = [1, 1]} : vector<16x32xf32> to vector<8x8xf32>
    %cst_38 = arith.constant dense<0.000000e+00> : vector<8x8xf32>
    %94 = tpu.matmul %91, %92, %cst_38 {dimension_numbers = #tpu.dot_dimension_numbers<[1], [1], [0], [0], [0, 0, 1, 0], [], []>} : vector<8x8xf32>, vector<8x8xf32>, vector<8x8xf32> -> vector<8x8xf32>
    %95 = arith.addf %94, %51 : vector<8x8xf32>
    %cst_39 = arith.constant dense<0xFF800000> : vector<8xf32>
    %96 = vector.multi_reduction <maximumf>, %95, %cst_39 [1] : vector<8x8xf32> to vector<8xf32>
    %97 = vector.shape_cast %96 : vector<8xf32> to vector<8x1xf32>
    %98 = vector.broadcast %97 : vector<8x1xf32> to vector<8x8xf32>
    %99 = arith.subf %95, %98 : vector<8x8xf32>
    %100 = math.exp %99 : vector<8x8xf32>
    %cst_40 = arith.constant dense<0.000000e+00> : vector<8xf32>
    %101 = vector.multi_reduction <add>, %100, %cst_40 [1] : vector<8x8xf32> to vector<8xf32>
    %102 = vector.shape_cast %101 : vector<8xf32> to vector<8x1xf32>
    %103 = tpu.reciprocal %102 {approx = true} : vector<8x1xf32> -> vector<8x1xf32>
    %104 = vector.broadcast %103 : vector<8x1xf32> to vector<8x8xf32>
    %105 = arith.mulf %100, %104 : vector<8x8xf32>
    %cst_41 = arith.constant dense<0.000000e+00> : vector<8x8xf32>
    %106 = tpu.matmul %105, %93, %cst_41 {dimension_numbers = #tpu.dot_dimension_numbers<[1], [0], [0], [1], [0, 0, 1, 1], [], []>} : vector<8x8xf32>, vector<8x8xf32>, vector<8x8xf32> -> vector<8x8xf32>
    %107 = vector.extract_strided_slice %48 {offsets = [16, 0], sizes = [8, 32], strides = [1, 1]} : vector<32x32xf32> to vector<8x32xf32>
    %cst_42 = arith.constant dense<0.000000e+00> : vector<8x32xf32>
    %108 = tpu.matmul %106, %107, %cst_42 {dimension_numbers = #tpu.dot_dimension_numbers<[1], [0], [0], [1], [0, 0, 1, 1], [], []>} : vector<8x8xf32>, vector<8x32xf32>, vector<8x32xf32> -> vector<8x32xf32>
    %109 = arith.addf %90, %108 : vector<8x32xf32>
    %110 = vector.extract_strided_slice %37 {offsets = [0, 24], sizes = [8, 8], strides = [1, 1]} : vector<16x32xf32> to vector<8x8xf32>
    %111 = vector.extract_strided_slice %38 {offsets = [0, 24], sizes = [8, 8], strides = [1, 1]} : vector<16x32xf32> to vector<8x8xf32>
    %112 = vector.extract_strided_slice %39 {offsets = [0, 24], sizes = [8, 8], strides = [1, 1]} : vector<16x32xf32> to vector<8x8xf32>
    %cst_43 = arith.constant dense<0.000000e+00> : vector<8x8xf32>
    %113 = tpu.matmul %110, %111, %cst_43 {dimension_numbers = #tpu.dot_dimension_numbers<[1], [1], [0], [0], [0, 0, 1, 0], [], []>} : vector<8x8xf32>, vector<8x8xf32>, vector<8x8xf32> -> vector<8x8xf32>
    %114 = arith.addf %113, %51 : vector<8x8xf32>
    %cst_44 = arith.constant dense<0xFF800000> : vector<8xf32>
    %115 = vector.multi_reduction <maximumf>, %114, %cst_44 [1] : vector<8x8xf32> to vector<8xf32>
    %116 = vector.shape_cast %115 : vector<8xf32> to vector<8x1xf32>
    %117 = vector.broadcast %116 : vector<8x1xf32> to vector<8x8xf32>
    %118 = arith.subf %114, %117 : vector<8x8xf32>
    %119 = math.exp %118 : vector<8x8xf32>
    %cst_45 = arith.constant dense<0.000000e+00> : vector<8xf32>
    %120 = vector.multi_reduction <add>, %119, %cst_45 [1] : vector<8x8xf32> to vector<8xf32>
    %121 = vector.shape_cast %120 : vector<8xf32> to vector<8x1xf32>
    %122 = tpu.reciprocal %121 {approx = true} : vector<8x1xf32> -> vector<8x1xf32>
    %123 = vector.broadcast %122 : vector<8x1xf32> to vector<8x8xf32>
    %124 = arith.mulf %119, %123 : vector<8x8xf32>
    %cst_46 = arith.constant dense<0.000000e+00> : vector<8x8xf32>
    %125 = tpu.matmul %124, %112, %cst_46 {dimension_numbers = #tpu.dot_dimension_numbers<[1], [0], [0], [1], [0, 0, 1, 1], [], []>} : vector<8x8xf32>, vector<8x8xf32>, vector<8x8xf32> -> vector<8x8xf32>
    %126 = vector.extract_strided_slice %48 {offsets = [24, 0], sizes = [8, 32], strides = [1, 1]} : vector<32x32xf32> to vector<8x32xf32>
    %cst_47 = arith.constant dense<0.000000e+00> : vector<8x32xf32>
    %127 = tpu.matmul %125, %126, %cst_47 {dimension_numbers = #tpu.dot_dimension_numbers<[1], [0], [0], [1], [0, 0, 1, 1], [], []>} : vector<8x8xf32>, vector<8x32xf32>, vector<8x32xf32> -> vector<8x32xf32>
    %128 = arith.addf %109, %127 : vector<8x32xf32>
    %129 = vector.extract_strided_slice %46 {offsets = [1, 0], sizes = [1, 8], strides = [1, 1]} : vector<2x8xf32> to vector<1x8xf32>
    %130 = vector.broadcast %129 : vector<1x8xf32> to vector<8x8xf32>
    %131 = arith.addf %45, %130 : vector<8x8xf32>
    %cst_48 = arith.constant 0.000000e+00 : f32
    %132 = vector.broadcast %cst_48 : f32 to vector<8x32xf32>
    %133 = vector.extract_strided_slice %37 {offsets = [8, 0], sizes = [8, 8], strides = [1, 1]} : vector<16x32xf32> to vector<8x8xf32>
    %134 = vector.extract_strided_slice %38 {offsets = [8, 0], sizes = [8, 8], strides = [1, 1]} : vector<16x32xf32> to vector<8x8xf32>
    %135 = vector.extract_strided_slice %39 {offsets = [8, 0], sizes = [8, 8], strides = [1, 1]} : vector<16x32xf32> to vector<8x8xf32>
    %cst_49 = arith.constant dense<0.000000e+00> : vector<8x8xf32>
    %136 = tpu.matmul %133, %134, %cst_49 {dimension_numbers = #tpu.dot_dimension_numbers<[1], [1], [0], [0], [0, 0, 1, 0], [], []>} : vector<8x8xf32>, vector<8x8xf32>, vector<8x8xf32> -> vector<8x8xf32>
    %137 = arith.addf %136, %131 : vector<8x8xf32>
    %cst_50 = arith.constant dense<0xFF800000> : vector<8xf32>
    %138 = vector.multi_reduction <maximumf>, %137, %cst_50 [1] : vector<8x8xf32> to vector<8xf32>
    %139 = vector.shape_cast %138 : vector<8xf32> to vector<8x1xf32>
    %140 = vector.broadcast %139 : vector<8x1xf32> to vector<8x8xf32>
    %141 = arith.subf %137, %140 : vector<8x8xf32>
    %142 = math.exp %141 : vector<8x8xf32>
    %cst_51 = arith.constant dense<0.000000e+00> : vector<8xf32>
    %143 = vector.multi_reduction <add>, %142, %cst_51 [1] : vector<8x8xf32> to vector<8xf32>
    %144 = vector.shape_cast %143 : vector<8xf32> to vector<8x1xf32>
    %145 = tpu.reciprocal %144 {approx = true} : vector<8x1xf32> -> vector<8x1xf32>
    %146 = vector.broadcast %145 : vector<8x1xf32> to vector<8x8xf32>
    %147 = arith.mulf %142, %146 : vector<8x8xf32>
    %cst_52 = arith.constant dense<0.000000e+00> : vector<8x8xf32>
    %148 = tpu.matmul %147, %135, %cst_52 {dimension_numbers = #tpu.dot_dimension_numbers<[1], [0], [0], [1], [0, 0, 1, 1], [], []>} : vector<8x8xf32>, vector<8x8xf32>, vector<8x8xf32> -> vector<8x8xf32>
    %149 = vector.extract_strided_slice %48 {offsets = [0, 0], sizes = [8, 32], strides = [1, 1]} : vector<32x32xf32> to vector<8x32xf32>
    %cst_53 = arith.constant dense<0.000000e+00> : vector<8x32xf32>
    %150 = tpu.matmul %148, %149, %cst_53 {dimension_numbers = #tpu.dot_dimension_numbers<[1], [0], [0], [1], [0, 0, 1, 1], [], []>} : vector<8x8xf32>, vector<8x32xf32>, vector<8x32xf32> -> vector<8x32xf32>
    %151 = arith.addf %132, %150 : vector<8x32xf32>
    %152 = vector.extract_strided_slice %37 {offsets = [8, 8], sizes = [8, 8], strides = [1, 1]} : vector<16x32xf32> to vector<8x8xf32>
    %153 = vector.extract_strided_slice %38 {offsets = [8, 8], sizes = [8, 8], strides = [1, 1]} : vector<16x32xf32> to vector<8x8xf32>
    %154 = vector.extract_strided_slice %39 {offsets = [8, 8], sizes = [8, 8], strides = [1, 1]} : vector<16x32xf32> to vector<8x8xf32>
    %cst_54 = arith.constant dense<0.000000e+00> : vector<8x8xf32>
    %155 = tpu.matmul %152, %153, %cst_54 {dimension_numbers = #tpu.dot_dimension_numbers<[1], [1], [0], [0], [0, 0, 1, 0], [], []>} : vector<8x8xf32>, vector<8x8xf32>, vector<8x8xf32> -> vector<8x8xf32>
    %156 = arith.addf %155, %131 : vector<8x8xf32>
    %cst_55 = arith.constant dense<0xFF800000> : vector<8xf32>
    %157 = vector.multi_reduction <maximumf>, %156, %cst_55 [1] : vector<8x8xf32> to vector<8xf32>
    %158 = vector.shape_cast %157 : vector<8xf32> to vector<8x1xf32>
    %159 = vector.broadcast %158 : vector<8x1xf32> to vector<8x8xf32>
    %160 = arith.subf %156, %159 : vector<8x8xf32>
    %161 = math.exp %160 : vector<8x8xf32>
    %cst_56 = arith.constant dense<0.000000e+00> : vector<8xf32>
    %162 = vector.multi_reduction <add>, %161, %cst_56 [1] : vector<8x8xf32> to vector<8xf32>
    %163 = vector.shape_cast %162 : vector<8xf32> to vector<8x1xf32>
    %164 = tpu.reciprocal %163 {approx = true} : vector<8x1xf32> -> vector<8x1xf32>
    %165 = vector.broadcast %164 : vector<8x1xf32> to vector<8x8xf32>
    %166 = arith.mulf %161, %165 : vector<8x8xf32>
    %cst_57 = arith.constant dense<0.000000e+00> : vector<8x8xf32>
    %167 = tpu.matmul %166, %154, %cst_57 {dimension_numbers = #tpu.dot_dimension_numbers<[1], [0], [0], [1], [0, 0, 1, 1], [], []>} : vector<8x8xf32>, vector<8x8xf32>, vector<8x8xf32> -> vector<8x8xf32>
    %168 = vector.extract_strided_slice %48 {offsets = [8, 0], sizes = [8, 32], strides = [1, 1]} : vector<32x32xf32> to vector<8x32xf32>
    %cst_58 = arith.constant dense<0.000000e+00> : vector<8x32xf32>
    %169 = tpu.matmul %167, %168, %cst_58 {dimension_numbers = #tpu.dot_dimension_numbers<[1], [0], [0], [1], [0, 0, 1, 1], [], []>} : vector<8x8xf32>, vector<8x32xf32>, vector<8x32xf32> -> vector<8x32xf32>
    %170 = arith.addf %151, %169 : vector<8x32xf32>
    %171 = vector.extract_strided_slice %37 {offsets = [8, 16], sizes = [8, 8], strides = [1, 1]} : vector<16x32xf32> to vector<8x8xf32>
    %172 = vector.extract_strided_slice %38 {offsets = [8, 16], sizes = [8, 8], strides = [1, 1]} : vector<16x32xf32> to vector<8x8xf32>
    %173 = vector.extract_strided_slice %39 {offsets = [8, 16], sizes = [8, 8], strides = [1, 1]} : vector<16x32xf32> to vector<8x8xf32>
    %cst_59 = arith.constant dense<0.000000e+00> : vector<8x8xf32>
    %174 = tpu.matmul %171, %172, %cst_59 {dimension_numbers = #tpu.dot_dimension_numbers<[1], [1], [0], [0], [0, 0, 1, 0], [], []>} : vector<8x8xf32>, vector<8x8xf32>, vector<8x8xf32> -> vector<8x8xf32>
    %175 = arith.addf %174, %131 : vector<8x8xf32>
    %cst_60 = arith.constant dense<0xFF800000> : vector<8xf32>
    %176 = vector.multi_reduction <maximumf>, %175, %cst_60 [1] : vector<8x8xf32> to vector<8xf32>
    %177 = vector.shape_cast %176 : vector<8xf32> to vector<8x1xf32>
    %178 = vector.broadcast %177 : vector<8x1xf32> to vector<8x8xf32>
    %179 = arith.subf %175, %178 : vector<8x8xf32>
    %180 = math.exp %179 : vector<8x8xf32>
    %cst_61 = arith.constant dense<0.000000e+00> : vector<8xf32>
    %181 = vector.multi_reduction <add>, %180, %cst_61 [1] : vector<8x8xf32> to vector<8xf32>
    %182 = vector.shape_cast %181 : vector<8xf32> to vector<8x1xf32>
    %183 = tpu.reciprocal %182 {approx = true} : vector<8x1xf32> -> vector<8x1xf32>
    %184 = vector.broadcast %183 : vector<8x1xf32> to vector<8x8xf32>
    %185 = arith.mulf %180, %184 : vector<8x8xf32>
    %cst_62 = arith.constant dense<0.000000e+00> : vector<8x8xf32>
    %186 = tpu.matmul %185, %173, %cst_62 {dimension_numbers = #tpu.dot_dimension_numbers<[1], [0], [0], [1], [0, 0, 1, 1], [], []>} : vector<8x8xf32>, vector<8x8xf32>, vector<8x8xf32> -> vector<8x8xf32>
    %187 = vector.extract_strided_slice %48 {offsets = [16, 0], sizes = [8, 32], strides = [1, 1]} : vector<32x32xf32> to vector<8x32xf32>
    %cst_63 = arith.constant dense<0.000000e+00> : vector<8x32xf32>
    %188 = tpu.matmul %186, %187, %cst_63 {dimension_numbers = #tpu.dot_dimension_numbers<[1], [0], [0], [1], [0, 0, 1, 1], [], []>} : vector<8x8xf32>, vector<8x32xf32>, vector<8x32xf32> -> vector<8x32xf32>
    %189 = arith.addf %170, %188 : vector<8x32xf32>
    %190 = vector.extract_strided_slice %37 {offsets = [8, 24], sizes = [8, 8], strides = [1, 1]} : vector<16x32xf32> to vector<8x8xf32>
    %191 = vector.extract_strided_slice %38 {offsets = [8, 24], sizes = [8, 8], strides = [1, 1]} : vector<16x32xf32> to vector<8x8xf32>
    %192 = vector.extract_strided_slice %39 {offsets = [8, 24], sizes = [8, 8], strides = [1, 1]} : vector<16x32xf32> to vector<8x8xf32>
    %cst_64 = arith.constant dense<0.000000e+00> : vector<8x8xf32>
    %193 = tpu.matmul %190, %191, %cst_64 {dimension_numbers = #tpu.dot_dimension_numbers<[1], [1], [0], [0], [0, 0, 1, 0], [], []>} : vector<8x8xf32>, vector<8x8xf32>, vector<8x8xf32> -> vector<8x8xf32>
    %194 = arith.addf %193, %131 : vector<8x8xf32>
    %cst_65 = arith.constant dense<0xFF800000> : vector<8xf32>
    %195 = vector.multi_reduction <maximumf>, %194, %cst_65 [1] : vector<8x8xf32> to vector<8xf32>
    %196 = vector.shape_cast %195 : vector<8xf32> to vector<8x1xf32>
    %197 = vector.broadcast %196 : vector<8x1xf32> to vector<8x8xf32>
    %198 = arith.subf %194, %197 : vector<8x8xf32>
    %199 = math.exp %198 : vector<8x8xf32>
    %cst_66 = arith.constant dense<0.000000e+00> : vector<8xf32>
    %200 = vector.multi_reduction <add>, %199, %cst_66 [1] : vector<8x8xf32> to vector<8xf32>
    %201 = vector.shape_cast %200 : vector<8xf32> to vector<8x1xf32>
    %202 = tpu.reciprocal %201 {approx = true} : vector<8x1xf32> -> vector<8x1xf32>
    %203 = vector.broadcast %202 : vector<8x1xf32> to vector<8x8xf32>
    %204 = arith.mulf %199, %203 : vector<8x8xf32>
    %cst_67 = arith.constant dense<0.000000e+00> : vector<8x8xf32>
    %205 = tpu.matmul %204, %192, %cst_67 {dimension_numbers = #tpu.dot_dimension_numbers<[1], [0], [0], [1], [0, 0, 1, 1], [], []>} : vector<8x8xf32>, vector<8x8xf32>, vector<8x8xf32> -> vector<8x8xf32>
    %206 = vector.extract_strided_slice %48 {offsets = [24, 0], sizes = [8, 32], strides = [1, 1]} : vector<32x32xf32> to vector<8x32xf32>
    %cst_68 = arith.constant dense<0.000000e+00> : vector<8x32xf32>
    %207 = tpu.matmul %205, %206, %cst_68 {dimension_numbers = #tpu.dot_dimension_numbers<[1], [0], [0], [1], [0, 0, 1, 1], [], []>} : vector<8x8xf32>, vector<8x32xf32>, vector<8x32xf32> -> vector<8x32xf32>
    %208 = arith.addf %189, %207 : vector<8x32xf32>
    %209 = tpu.concatenate %128, %208 in 0 : vector<8x32xf32>, vector<8x32xf32> -> vector<16x32xf32>
    %c0_69 = arith.constant 0 : index
    %c0_70 = arith.constant 0 : index
    %c0_71 = arith.constant 0 : index
    %210 = vector.load %arg12[%c0_69, %c0_70, %c0_71] : memref<1x1x32xf32, #tpu.memory_space<vmem>>, vector<1x1x32xf32>
    %211 = vector.shape_cast %210 : vector<1x1x32xf32> to vector<1x32xf32>
    %212 = vector.broadcast %211 : vector<1x32xf32> to vector<16x32xf32>
    %213 = arith.addf %209, %212 : vector<16x32xf32>
    %214 = arith.addf %3, %213 : vector<16x32xf32>
    %c0_72 = arith.constant 0 : index
    %c0_73 = arith.constant 0 : index
    %c0_74 = arith.constant 0 : index
    %215 = vector.load %arg13[%c0_72, %c0_73, %c0_74] : memref<1x1x32xf32, #tpu.memory_space<vmem>>, vector<1x1x32xf32>
    %216 = vector.shape_cast %215 : vector<1x1x32xf32> to vector<1x32xf32>
    %c0_75 = arith.constant 0 : index
    %c0_76 = arith.constant 0 : index
    %c0_77 = arith.constant 0 : index
    %217 = vector.load %arg14[%c0_75, %c0_76, %c0_77] : memref<1x1x32xf32, #tpu.memory_space<vmem>>, vector<1x1x32xf32>
    %218 = vector.shape_cast %217 : vector<1x1x32xf32> to vector<1x32xf32>
    %cst_78 = arith.constant dense<0.000000e+00> : vector<16xf32>
    %219 = vector.multi_reduction <add>, %214, %cst_78 [1] : vector<16x32xf32> to vector<16xf32>
    %220 = vector.shape_cast %219 : vector<16xf32> to vector<16x1xf32>
    %cst_79 = arith.constant 3.200000e+01 : f32
    %221 = vector.broadcast %cst_79 : f32 to vector<16x1xf32>
    %222 = arith.divf %220, %221 : vector<16x1xf32>
    %223 = vector.broadcast %222 : vector<16x1xf32> to vector<16x32xf32>
    %224 = arith.subf %214, %223 : vector<16x32xf32>
    %225 = arith.mulf %224, %224 : vector<16x32xf32>
    %cst_80 = arith.constant dense<0.000000e+00> : vector<16xf32>
    %226 = vector.multi_reduction <add>, %225, %cst_80 [1] : vector<16x32xf32> to vector<16xf32>
    %227 = vector.shape_cast %226 : vector<16xf32> to vector<16x1xf32>
    %cst_81 = arith.constant 3.200000e+01 : f32
    %228 = vector.broadcast %cst_81 : f32 to vector<16x1xf32>
    %229 = arith.divf %227, %228 : vector<16x1xf32>
    %cst_82 = arith.constant 9.99999974E-6 : f32
    %230 = vector.broadcast %cst_82 : f32 to vector<16x1xf32>
    %231 = arith.addf %229, %230 : vector<16x1xf32>
    %232 = math.rsqrt %231 : vector<16x1xf32>
    %233 = vector.broadcast %232 : vector<16x1xf32> to vector<16x32xf32>
    %234 = arith.mulf %224, %233 : vector<16x32xf32>
    %235 = vector.broadcast %216 : vector<1x32xf32> to vector<16x32xf32>
    %236 = arith.mulf %234, %235 : vector<16x32xf32>
    %237 = vector.broadcast %218 : vector<1x32xf32> to vector<16x32xf32>
    %238 = arith.addf %236, %237 : vector<16x32xf32>
    %c0_83 = arith.constant 0 : index
    %c0_84 = arith.constant 0 : index
    %c0_85 = arith.constant 0 : index
    %239 = vector.load %arg15[%c0_83, %c0_84, %c0_85] : memref<1x32x128xf32, #tpu.memory_space<vmem>>, vector<1x32x128xf32>
    %240 = vector.shape_cast %239 : vector<1x32x128xf32> to vector<32x128xf32>
    %cst_86 = arith.constant dense<0.000000e+00> : vector<16x128xf32>
    %241 = tpu.matmul %238, %240, %cst_86 {dimension_numbers = #tpu.dot_dimension_numbers<[1], [0], [0], [1], [0, 0, 1, 1], [], []>} : vector<16x32xf32>, vector<32x128xf32>, vector<16x128xf32> -> vector<16x128xf32>
    %c0_87 = arith.constant 0 : index
    %c0_88 = arith.constant 0 : index
    %c0_89 = arith.constant 0 : index
    %242 = vector.load %arg16[%c0_87, %c0_88, %c0_89] : memref<1x1x128xf32, #tpu.memory_space<vmem>>, vector<1x1x128xf32>
    %243 = vector.shape_cast %242 : vector<1x1x128xf32> to vector<1x128xf32>
    %244 = vector.broadcast %243 : vector<1x128xf32> to vector<16x128xf32>
    %245 = arith.addf %241, %244 : vector<16x128xf32>
    %cst_90 = arith.constant 1.702000e+00 : f32
    %246 = vector.broadcast %cst_90 : f32 to vector<16x128xf32>
    %247 = arith.mulf %246, %245 : vector<16x128xf32>
    %248 = arith.negf %247 : vector<16x128xf32>
    %249 = math.exp %248 : vector<16x128xf32>
    %cst_91 = arith.constant 1.000000e+00 : f32
    %250 = vector.broadcast %cst_91 : f32 to vector<16x128xf32>
    %251 = arith.addf %250, %249 : vector<16x128xf32>
    %252 = arith.divf %250, %251 : vector<16x128xf32>
    %253 = arith.mulf %245, %252 : vector<16x128xf32>
    %c0_92 = arith.constant 0 : index
    %c0_93 = arith.constant 0 : index
    %c0_94 = arith.constant 0 : index
    %254 = vector.load %arg17[%c0_92, %c0_93, %c0_94] : memref<1x128x32xf32, #tpu.memory_space<vmem>>, vector<1x128x32xf32>
    %255 = vector.shape_cast %254 : vector<1x128x32xf32> to vector<128x32xf32>
    %cst_95 = arith.constant dense<0.000000e+00> : vector<16x32xf32>
    %256 = tpu.matmul %253, %255, %cst_95 {dimension_numbers = #tpu.dot_dimension_numbers<[1], [0], [0], [1], [0, 0, 1, 1], [], []>} : vector<16x128xf32>, vector<128x32xf32>, vector<16x32xf32> -> vector<16x32xf32>
    %c0_96 = arith.constant 0 : index
    %c0_97 = arith.constant 0 : index
    %c0_98 = arith.constant 0 : index
    %257 = vector.load %arg18[%c0_96, %c0_97, %c0_98] : memref<1x1x32xf32, #tpu.memory_space<vmem>>, vector<1x1x32xf32>
    %258 = vector.shape_cast %257 : vector<1x1x32xf32> to vector<1x32xf32>
    %259 = vector.broadcast %258 : vector<1x32xf32> to vector<16x32xf32>
    %260 = arith.addf %256, %259 : vector<16x32xf32>
    %261 = arith.addf %214, %260 : vector<16x32xf32>
    %c0_99 = arith.constant 0 : index
    %c0_100 = arith.constant 0 : index
    %262 = vector.load %arg20[%c0_99, %c0_100] : memref<16x32xf32, #tpu.memory_space<vmem>>, vector<16x32xf32>
    tpu.vector_store %arg20[%c0_99, %c0_100], %261 {strides = array<i32>} : memref<16x32xf32, #tpu.memory_space<vmem>>, vector<16x32xf32>,
    %c1_i32 = arith.constant 1 : i32
    %263 = arith.cmpi eq, %arg0, %c1_i32 : i32
    %264 = arith.extui %263 : i1 to i32
    %c0_i32_101 = arith.constant 0 : i32
    %265 = arith.cmpi ne, %264, %c0_i32_101 : i32
    scf.if %265 {
      %c0_102 = arith.constant 0 : index
      %c0_103 = arith.constant 0 : index
      %266 = vector.load %arg5[%c0_102, %c0_103] : memref<1x32xf32, #tpu.memory_space<vmem>>, vector<1x32xf32>
      %c0_104 = arith.constant 0 : index
      %c0_105 = arith.constant 0 : index
      %267 = vector.load %arg6[%c0_104, %c0_105] : memref<1x32xf32, #tpu.memory_space<vmem>>, vector<1x32xf32>
      %cst_106 = arith.constant dense<0.000000e+00> : vector<16xf32>
      %268 = vector.multi_reduction <add>, %261, %cst_106 [1] : vector<16x32xf32> to vector<16xf32>
      %269 = vector.shape_cast %268 : vector<16xf32> to vector<16x1xf32>
      %cst_107 = arith.constant 3.200000e+01 : f32
      %270 = vector.broadcast %cst_107 : f32 to vector<16x1xf32>
      %271 = arith.divf %269, %270 : vector<16x1xf32>
      %272 = vector.broadcast %271 : vector<16x1xf32> to vector<16x32xf32>
      %273 = arith.subf %261, %272 : vector<16x32xf32>
      %274 = arith.mulf %273, %273 : vector<16x32xf32>
      %cst_108 = arith.constant dense<0.000000e+00> : vector<16xf32>
      %275 = vector.multi_reduction <add>, %274, %cst_108 [1] : vector<16x32xf32> to vector<16xf32>
      %276 = vector.shape_cast %275 : vector<16xf32> to vector<16x1xf32>
      %cst_109 = arith.constant 3.200000e+01 : f32
      %277 = vector.broadcast %cst_109 : f32 to vector<16x1xf32>
      %278 = arith.divf %276, %277 : vector<16x1xf32>
      %cst_110 = arith.constant 9.99999974E-6 : f32
      %279 = vector.broadcast %cst_110 : f32 to vector<16x1xf32>
      %280 = arith.addf %278, %279 : vector<16x1xf32>
      %281 = math.rsqrt %280 : vector<16x1xf32>
      %282 = vector.broadcast %281 : vector<16x1xf32> to vector<16x32xf32>
      %283 = arith.mulf %273, %282 : vector<16x32xf32>
      %284 = vector.broadcast %266 : vector<1x32xf32> to vector<16x32xf32>
      %285 = arith.mulf %283, %284 : vector<16x32xf32>
      %286 = vector.broadcast %267 : vector<1x32xf32> to vector<16x32xf32>
      %287 = arith.addf %285, %286 : vector<16x32xf32>
      %c0_111 = arith.constant 0 : index
      %c0_112 = arith.constant 0 : index
      %288 = vector.load %arg19[%c0_111, %c0_112] : memref<16x32xf32, #tpu.memory_space<vmem>>, vector<16x32xf32>
      tpu.vector_store %arg19[%c0_111, %c0_112], %287 {strides = array<i32>} : memref<16x32xf32, #tpu.memory_space<vmem>>, vector<16x32xf32>,
    } else {
    }
    return
  }
  func.func @transform_0(%arg0: i32) -> (i32, i32) {
    %c0_i32 = arith.constant 0 : i32
    %c0_i32_0 = arith.constant 0 : i32
    %c0_i32_1 = arith.constant 0 : i32
    return %c0_i32, %c0_i32_0 : i32, i32
  }
  func.func @transform_1(%arg0: i32) -> (i32, i32) {
    %c0_i32 = arith.constant 0 : i32
    %c0_i32_0 = arith.constant 0 : i32
    %c0_i32_1 = arith.constant 0 : i32
    return %c0_i32, %c0_i32_0 : i32, i32
  }
  func.func @transform_2(%arg0: i32) -> (i32, i32) {
    %c0_i32 = arith.constant 0 : i32
    %c0_i32_0 = arith.constant 0 : i32
    %c0_i32_1 = arith.constant 0 : i32
    return %c0_i32, %c0_i32_0 : i32, i32
  }
  func.func @transform_3(%arg0: i32) -> (i32, i32) {
    %c0_i32 = arith.constant 0 : i32
    %c0_i32_0 = arith.constant 0 : i32
    %c0_i32_1 = arith.constant 0 : i32
    return %c0_i32, %c0_i32_0 : i32, i32
  }
  func.func @transform_4(%arg0: i32) -> (i32, i32) {
    %c0_i32 = arith.constant 0 : i32
    %c0_i32_0 = arith.constant 0 : i32
    %c0_i32_1 = arith.constant 0 : i32
    return %c0_i32, %c0_i32_0 : i32, i32
  }
  func.func @transform_5(%arg0: i32) -> (i32, i32) {
    %c0_i32 = arith.constant 0 : i32
    %c0_i32_0 = arith.constant 0 : i32
    %c0_i32_1 = arith.constant 0 : i32
    return %c0_i32, %c0_i32_0 : i32, i32
  }
  func.func @transform_6(%arg0: i32) -> (i32, i32, i32) {
    %c0_i32 = arith.constant 0 : i32
    %c0_i32_0 = arith.constant 0 : i32
    %c0_i32_1 = arith.constant 0 : i32
    return %arg0, %c0_i32, %c0_i32_0 : i32, i32, i32
  }
  func.func @transform_7(%arg0: i32) -> (i32, i32, i32) {
    %c0_i32 = arith.constant 0 : i32
    %c0_i32_0 = arith.constant 0 : i32
    %c0_i32_1 = arith.constant 0 : i32
    return %arg0, %c0_i32, %c0_i32_0 : i32, i32, i32
  }
  func.func @transform_8(%arg0: i32) -> (i32, i32, i32) {
    %c0_i32 = arith.constant 0 : i32
    %c0_i32_0 = arith.constant 0 : i32
    %c0_i32_1 = arith.constant 0 : i32
    return %arg0, %c0_i32, %c0_i32_0 : i32, i32, i32
  }
  func.func @transform_9(%arg0: i32) -> (i32, i32, i32) {
    %c0_i32 = arith.constant 0 : i32
    %c0_i32_0 = arith.constant 0 : i32
    %c0_i32_1 = arith.constant 0 : i32
    return %arg0, %c0_i32, %c0_i32_0 : i32, i32, i32
  }
  func.func @transform_10(%arg0: i32) -> (i32, i32, i32) {
    %c0_i32 = arith.constant 0 : i32
    %c0_i32_0 = arith.constant 0 : i32
    %c0_i32_1 = arith.constant 0 : i32
    return %arg0, %c0_i32, %c0_i32_0 : i32, i32, i32
  }
  func.func @transform_11(%arg0: i32) -> (i32, i32, i32) {
    %c0_i32 = arith.constant 0 : i32
    %c0_i32_0 = arith.constant 0 : i32
    %c0_i32_1 = arith.constant 0 : i32
    return %arg0, %c0_i32, %c0_i32_0 : i32, i32, i32
  }
  func.func @transform_12(%arg0: i32) -> (i32, i32, i32) {
    %c0_i32 = arith.constant 0 : i32
    %c0_i32_0 = arith.constant 0 : i32
    %c0_i32_1 = arith.constant 0 : i32
    return %arg0, %c0_i32, %c0_i32_0 : i32, i32, i32
  }
  func.func @transform_13(%arg0: i32) -> (i32, i32, i32) {
    %c0_i32 = arith.constant 0 : i32
    %c0_i32_0 = arith.constant 0 : i32
    %c0_i32_1 = arith.constant 0 : i32
    return %arg0, %c0_i32, %c0_i32_0 : i32, i32, i32
  }
  func.func @transform_14(%arg0: i32) -> (i32, i32, i32) {
    %c0_i32 = arith.constant 0 : i32
    %c0_i32_0 = arith.constant 0 : i32
    %c0_i32_1 = arith.constant 0 : i32
    return %arg0, %c0_i32, %c0_i32_0 : i32, i32, i32
  }
  func.func @transform_15(%arg0: i32) -> (i32, i32, i32) {
    %c0_i32 = arith.constant 0 : i32
    %c0_i32_0 = arith.constant 0 : i32
    %c0_i32_1 = arith.constant 0 : i32
    return %arg0, %c0_i32, %c0_i32_0 : i32, i32, i32
  }
  func.func @transform_16(%arg0: i32) -> (i32, i32, i32) {
    %c0_i32 = arith.constant 0 : i32
    %c0_i32_0 = arith.constant 0 : i32
    %c0_i32_1 = arith.constant 0 : i32
    return %arg0, %c0_i32, %c0_i32_0 : i32, i32, i32
  }
  func.func @transform_17(%arg0: i32) -> (i32, i32, i32) {
    %c0_i32 = arith.constant 0 : i32
    %c0_i32_0 = arith.constant 0 : i32
    %c0_i32_1 = arith.constant 0 : i32
    return %arg0, %c0_i32, %c0_i32_0 : i32, i32, i32
  }
  func.func @transform_18(%arg0: i32) -> (i32, i32) {
    %c0_i32 = arith.constant 0 : i32
    %c0_i32_0 = arith.constant 0 : i32
    %c0_i32_1 = arith.constant 0 : i32
    return %c0_i32, %c0_i32_0 : i32, i32
  }
}

module attributes {stable_mosaic.version = 11 : i64} {
  func.func @_clip_head_kernel(%arg0: i32, %arg1: memref<2x32xf32, #tpu.memory_space<vmem>>, %arg2: memref<2x32xf32, #tpu.memory_space<vmem>>, %arg3: memref<1x32xf32, #tpu.memory_space<vmem>>, %arg4: memref<1x32xf32, #tpu.memory_space<vmem>>, %arg5: memref<32x16xf32, #tpu.memory_space<vmem>>, %arg6: memref<32x16xf32, #tpu.memory_space<vmem>>, %arg7: memref<1x1xf32, #tpu.memory_space<vmem>>, %arg8: memref<2x16xf32, #tpu.memory_space<vmem>>, %arg9: memref<2x16xf32, #tpu.memory_space<vmem>>, %arg10: memref<2x2xf32, #tpu.memory_space<vmem>>, %arg11: memref<2x2xf32, #tpu.memory_space<vmem>>) attributes {dimension_semantics = [#tpu.dimension_semantics<arbitrary>], iteration_bounds = array<i64: 1>, scalar_prefetch = 0 : i64, scratch_operands = 0 : i64, tpu.core_type = #tpu.core_type<tc>, window_params = [{pipeline_mode = #tpu.pipeline_mode<synchronous>, transform_indices = @transform_0, window_bounds = array<i64: 2, 32>}, {pipeline_mode = #tpu.pipeline_mode<synchronous>, transform_indices = @transform_1, window_bounds = array<i64: 2, 32>}, {pipeline_mode = #tpu.pipeline_mode<synchronous>, transform_indices = @transform_2, window_bounds = array<i64: 1, 32>}, {pipeline_mode = #tpu.pipeline_mode<synchronous>, transform_indices = @transform_3, window_bounds = array<i64: 1, 32>}, {pipeline_mode = #tpu.pipeline_mode<synchronous>, transform_indices = @transform_4, window_bounds = array<i64: 32, 16>}, {pipeline_mode = #tpu.pipeline_mode<synchronous>, transform_indices = @transform_5, window_bounds = array<i64: 32, 16>}, {pipeline_mode = #tpu.pipeline_mode<synchronous>, transform_indices = @transform_6, window_bounds = array<i64: 1, 1>}, {pipeline_mode = #tpu.pipeline_mode<synchronous>, transform_indices = @transform_7, window_bounds = array<i64: 2, 16>}, {pipeline_mode = #tpu.pipeline_mode<synchronous>, transform_indices = @transform_8, window_bounds = array<i64: 2, 16>}, {pipeline_mode = #tpu.pipeline_mode<synchronous>, transform_indices = @transform_9, window_bounds = array<i64: 2, 2>}, {pipeline_mode = #tpu.pipeline_mode<synchronous>, transform_indices = @transform_10, window_bounds = array<i64: 2, 2>}]} {
    %c0 = arith.constant 0 : index
    %c0_0 = arith.constant 0 : index
    %0 = vector.load %arg1[%c0, %c0_0] : memref<2x32xf32, #tpu.memory_space<vmem>>, vector<2x32xf32>
    %c0_1 = arith.constant 0 : index
    %c0_2 = arith.constant 0 : index
    %1 = vector.load %arg2[%c0_1, %c0_2] : memref<2x32xf32, #tpu.memory_space<vmem>>, vector<2x32xf32>
    %c0_3 = arith.constant 0 : index
    %c0_4 = arith.constant 0 : index
    %2 = vector.load %arg3[%c0_3, %c0_4] : memref<1x32xf32, #tpu.memory_space<vmem>>, vector<1x32xf32>
    %c0_5 = arith.constant 0 : index
    %c0_6 = arith.constant 0 : index
    %3 = vector.load %arg4[%c0_5, %c0_6] : memref<1x32xf32, #tpu.memory_space<vmem>>, vector<1x32xf32>
    %cst = arith.constant dense<0.000000e+00> : vector<2xf32>
    %4 = vector.multi_reduction <add>, %1, %cst [1] : vector<2x32xf32> to vector<2xf32>
    %5 = vector.shape_cast %4 : vector<2xf32> to vector<2x1xf32>
    %cst_7 = arith.constant 3.200000e+01 : f32
    %6 = vector.broadcast %cst_7 : f32 to vector<2x1xf32>
    %7 = arith.divf %5, %6 : vector<2x1xf32>
    %8 = vector.broadcast %7 : vector<2x1xf32> to vector<2x32xf32>
    %9 = arith.subf %1, %8 : vector<2x32xf32>
    %10 = arith.mulf %9, %9 : vector<2x32xf32>
    %cst_8 = arith.constant dense<0.000000e+00> : vector<2xf32>
    %11 = vector.multi_reduction <add>, %10, %cst_8 [1] : vector<2x32xf32> to vector<2xf32>
    %12 = vector.shape_cast %11 : vector<2xf32> to vector<2x1xf32>
    %cst_9 = arith.constant 3.200000e+01 : f32
    %13 = vector.broadcast %cst_9 : f32 to vector<2x1xf32>
    %14 = arith.divf %12, %13 : vector<2x1xf32>
    %cst_10 = arith.constant 9.99999974E-6 : f32
    %15 = vector.broadcast %cst_10 : f32 to vector<2x1xf32>
    %16 = arith.addf %14, %15 : vector<2x1xf32>
    %17 = math.rsqrt %16 : vector<2x1xf32>
    %18 = vector.broadcast %17 : vector<2x1xf32> to vector<2x32xf32>
    %19 = arith.mulf %9, %18 : vector<2x32xf32>
    %20 = vector.broadcast %2 : vector<1x32xf32> to vector<2x32xf32>
    %21 = arith.mulf %19, %20 : vector<2x32xf32>
    %22 = vector.broadcast %3 : vector<1x32xf32> to vector<2x32xf32>
    %23 = arith.addf %21, %22 : vector<2x32xf32>
    %c0_11 = arith.constant 0 : index
    %c0_12 = arith.constant 0 : index
    %24 = vector.load %arg5[%c0_11, %c0_12] : memref<32x16xf32, #tpu.memory_space<vmem>>, vector<32x16xf32>
    %cst_13 = arith.constant dense<0.000000e+00> : vector<2x16xf32>
    %25 = tpu.matmul %0, %24, %cst_13 {dimension_numbers = #tpu.dot_dimension_numbers<[1], [0], [0], [1], [0, 0, 1, 1], [], []>} : vector<2x32xf32>, vector<32x16xf32>, vector<2x16xf32> -> vector<2x16xf32>
    %c0_14 = arith.constant 0 : index
    %c0_15 = arith.constant 0 : index
    %26 = vector.load %arg6[%c0_14, %c0_15] : memref<32x16xf32, #tpu.memory_space<vmem>>, vector<32x16xf32>
    %cst_16 = arith.constant dense<0.000000e+00> : vector<2x16xf32>
    %27 = tpu.matmul %23, %26, %cst_16 {dimension_numbers = #tpu.dot_dimension_numbers<[1], [0], [0], [1], [0, 0, 1, 1], [], []>} : vector<2x32xf32>, vector<32x16xf32>, vector<2x16xf32> -> vector<2x16xf32>
    %28 = arith.mulf %25, %25 : vector<2x16xf32>
    %cst_17 = arith.constant dense<0.000000e+00> : vector<2xf32>
    %29 = vector.multi_reduction <add>, %28, %cst_17 [1] : vector<2x16xf32> to vector<2xf32>
    %30 = vector.shape_cast %29 : vector<2xf32> to vector<2x1xf32>
    %31 = math.rsqrt %30 : vector<2x1xf32>
    %32 = vector.broadcast %31 : vector<2x1xf32> to vector<2x16xf32>
    %33 = arith.mulf %25, %32 : vector<2x16xf32>
    %34 = arith.mulf %27, %27 : vector<2x16xf32>
    %cst_18 = arith.constant dense<0.000000e+00> : vector<2xf32>
    %35 = vector.multi_reduction <add>, %34, %cst_18 [1] : vector<2x16xf32> to vector<2xf32>
    %36 = vector.shape_cast %35 : vector<2xf32> to vector<2x1xf32>
    %37 = math.rsqrt %36 : vector<2x1xf32>
    %38 = vector.broadcast %37 : vector<2x1xf32> to vector<2x16xf32>
    %39 = arith.mulf %27, %38 : vector<2x16xf32>
    %c0_19 = arith.constant 0 : index
    %c0_20 = arith.constant 0 : index
    %40 = vector.load %arg7[%c0_19, %c0_20] : memref<1x1xf32, #tpu.memory_space<vmem>>, vector<1x1xf32>
    %41 = vector.extract %40[0, 0] : f32 from vector<1x1xf32>
    %cst_21 = arith.constant dense<0.000000e+00> : vector<2x2xf32>
    %42 = tpu.matmul %33, %39, %cst_21 {dimension_numbers = #tpu.dot_dimension_numbers<[1], [1], [0], [0], [0, 0, 1, 0], [], []>} : vector<2x16xf32>, vector<2x16xf32>, vector<2x2xf32> -> vector<2x2xf32>
    %43 = vector.broadcast %41 : f32 to vector<2x2xf32>
    %44 = arith.mulf %42, %43 : vector<2x2xf32>
    %cst_22 = arith.constant dense<0.000000e+00> : vector<2x2xf32>
    %45 = tpu.matmul %39, %33, %cst_22 {dimension_numbers = #tpu.dot_dimension_numbers<[1], [1], [0], [0], [0, 0, 1, 0], [], []>} : vector<2x16xf32>, vector<2x16xf32>, vector<2x2xf32> -> vector<2x2xf32>
    %46 = vector.broadcast %41 : f32 to vector<2x2xf32>
    %47 = arith.mulf %45, %46 : vector<2x2xf32>
    %c0_23 = arith.constant 0 : index
    %c0_24 = arith.constant 0 : index
    %48 = vector.load %arg8[%c0_23, %c0_24] : memref<2x16xf32, #tpu.memory_space<vmem>>, vector<2x16xf32>
    tpu.vector_store %arg8[%c0_23, %c0_24], %33 {strides = array<i32>} : memref<2x16xf32, #tpu.memory_space<vmem>>, vector<2x16xf32>,
    %c0_25 = arith.constant 0 : index
    %c0_26 = arith.constant 0 : index
    %49 = vector.load %arg9[%c0_25, %c0_26] : memref<2x16xf32, #tpu.memory_space<vmem>>, vector<2x16xf32>
    tpu.vector_store %arg9[%c0_25, %c0_26], %39 {strides = array<i32>} : memref<2x16xf32, #tpu.memory_space<vmem>>, vector<2x16xf32>,
    %c0_27 = arith.constant 0 : index
    %c0_28 = arith.constant 0 : index
    %50 = vector.load %arg10[%c0_27, %c0_28] : memref<2x2xf32, #tpu.memory_space<vmem>>, vector<2x2xf32>
    tpu.vector_store %arg10[%c0_27, %c0_28], %44 {strides = array<i32>} : memref<2x2xf32, #tpu.memory_space<vmem>>, vector<2x2xf32>,
    %c0_29 = arith.constant 0 : index
    %c0_30 = arith.constant 0 : index
    %51 = vector.load %arg11[%c0_29, %c0_30] : memref<2x2xf32, #tpu.memory_space<vmem>>, vector<2x2xf32>
    tpu.vector_store %arg11[%c0_29, %c0_30], %47 {strides = array<i32>} : memref<2x2xf32, #tpu.memory_space<vmem>>, vector<2x2xf32>,
    return
  }
  func.func @transform_0(%arg0: i32) -> (i32, i32) {
    %c0_i32 = arith.constant 0 : i32
    %c0_i32_0 = arith.constant 0 : i32
    %c0_i32_1 = arith.constant 0 : i32
    return %c0_i32, %c0_i32_0 : i32, i32
  }
  func.func @transform_1(%arg0: i32) -> (i32, i32) {
    %c0_i32 = arith.constant 0 : i32
    %c0_i32_0 = arith.constant 0 : i32
    %c0_i32_1 = arith.constant 0 : i32
    return %c0_i32, %c0_i32_0 : i32, i32
  }
  func.func @transform_2(%arg0: i32) -> (i32, i32) {
    %c0_i32 = arith.constant 0 : i32
    %c0_i32_0 = arith.constant 0 : i32
    %c0_i32_1 = arith.constant 0 : i32
    return %c0_i32, %c0_i32_0 : i32, i32
  }
  func.func @transform_3(%arg0: i32) -> (i32, i32) {
    %c0_i32 = arith.constant 0 : i32
    %c0_i32_0 = arith.constant 0 : i32
    %c0_i32_1 = arith.constant 0 : i32
    return %c0_i32, %c0_i32_0 : i32, i32
  }
  func.func @transform_4(%arg0: i32) -> (i32, i32) {
    %c0_i32 = arith.constant 0 : i32
    %c0_i32_0 = arith.constant 0 : i32
    %c0_i32_1 = arith.constant 0 : i32
    return %c0_i32, %c0_i32_0 : i32, i32
  }
  func.func @transform_5(%arg0: i32) -> (i32, i32) {
    %c0_i32 = arith.constant 0 : i32
    %c0_i32_0 = arith.constant 0 : i32
    %c0_i32_1 = arith.constant 0 : i32
    return %c0_i32, %c0_i32_0 : i32, i32
  }
  func.func @transform_6(%arg0: i32) -> (i32, i32) {
    %c0_i32 = arith.constant 0 : i32
    %c0_i32_0 = arith.constant 0 : i32
    %c0_i32_1 = arith.constant 0 : i32
    return %c0_i32, %c0_i32_0 : i32, i32
  }
  func.func @transform_7(%arg0: i32) -> (i32, i32) {
    %c0_i32 = arith.constant 0 : i32
    %c0_i32_0 = arith.constant 0 : i32
    %c0_i32_1 = arith.constant 0 : i32
    return %c0_i32, %c0_i32_0 : i32, i32
  }
  func.func @transform_8(%arg0: i32) -> (i32, i32) {
    %c0_i32 = arith.constant 0 : i32
    %c0_i32_0 = arith.constant 0 : i32
    %c0_i32_1 = arith.constant 0 : i32
    return %c0_i32, %c0_i32_0 : i32, i32
  }
  func.func @transform_9(%arg0: i32) -> (i32, i32) {
    %c0_i32 = arith.constant 0 : i32
    %c0_i32_0 = arith.constant 0 : i32
    %c0_i32_1 = arith.constant 0 : i32
    return %c0_i32, %c0_i32_0 : i32, i32
  }
  func.func @transform_10(%arg0: i32) -> (i32, i32) {
    %c0_i32 = arith.constant 0 : i32
    %c0_i32_0 = arith.constant 0 : i32
    %c0_i32_1 = arith.constant 0 : i32
    return %c0_i32, %c0_i32_0 : i32, i32
  }
}

</mosaic_0001>

<llo_original>
// kernel: clip_forward.5
$region0: #{clip_forward.5}
  #allocation0 [shape = 'u32[]', space=smem, size = 0x4, offset = 0x4, fixed_abs, tag = 'smem constant byte address 0x4 - core index']
  #allocation1 [shape = 'u32[144,128]{1,0:T(1,128)}', space=vmem, size = 0x12000, scoped, tag = 'internal scratch']
  %s0 = inlined_call_operand.vmem [shape: f32[8,192], index: 0, kind: input, shape index: {}]
  %s1 = inlined_call_operand.vmem [shape: f32[192,32], index: 1, kind: input, shape index: {}]
  %s2 = inlined_call_operand.vmem [shape: f32[8,32], index: 2, kind: output, shape index: {}]
  %s3 = sld [smem:[#allocation0]]
  $region18: #{clip_forward.5} parent=0
    _
  %s5 = ssub.s32 1, %s3
  %s6 = scalar_select 0, %s5, %s3
  // Predicated region
  $region2: #{clip_forward.5} parent=0 // pred_check
    _
  $region3: #{clip_forward.5} parent=0 // pred_check_branch
    %8 = sbr.rel (0) target = $region5
  $region4: #{clip_forward.5} parent=0 // pred_region
    _
  $region5: #{clip_forward.5} parent=0 // pred_fallthru
    _
  // Predicated region
  $region6: #{clip_forward.5} parent=0 // pred_check
    _
  $region7: #{clip_forward.5} parent=0 // pred_check_branch
    %10 = sbr.rel (0) target = $region9
  $region8: #{clip_forward.5} parent=0 // pred_region
    _
  $region9: #{clip_forward.5} parent=0 // pred_fallthru
    _
  %v11 = vld [vmem:[%s0] sm:$0xff]
  %v12 = vld [vmem:[%s0 + $0x8] sm:$0xff]
  %v13 = vld [vmem:[%s1] sm:$0xff]
  %v14 = vld [vmem:[%s1 + $0x8] sm:$0xff]
  %v15 = vld [vmem:[%s1 + $0x10] sm:$0xff]
  %v16 = vld [vmem:[%s1 + $0x18] sm:$0xff]
  %v17 = vld [vmem:[%s1 + $0x20] sm:$0xff]
  %v18 = vld [vmem:[%s1 + $0x28] sm:$0xff]
  %v19 = vld [vmem:[%s1 + $0x30] sm:$0xff]
  %v20 = vld [vmem:[%s1 + $0x38] sm:$0xff]
  %v21 = vld [vmem:[%s1 + $0x40] sm:$0xff]
  %v22 = vld [vmem:[%s1 + $0x48] sm:$0xff]
  %v23 = vld [vmem:[%s1 + $0x50] sm:$0xff]
  %v24 = vld [vmem:[%s1 + $0x58] sm:$0xff]
  %v25 = vld [vmem:[%s1 + $0x60] sm:$0xff]
  %v26 = vld [vmem:[%s1 + $0x68] sm:$0xff]
  %v27 = vld [vmem:[%s1 + $0x70] sm:$0xff]
  %v28 = vld [vmem:[%s1 + $0x78] sm:$0xff]
  %v29 = vld [vmem:[%s1 + $0x80] sm:$0xff]
  %v30 = vld [vmem:[%s1 + $0x88] sm:$0xff]
  %v31 = vld [vmem:[%s1 + $0x90] sm:$0xff]
  %v32 = vld [vmem:[%s1 + $0x98] sm:$0xff]
  %v33 = vld [vmem:[%s1 + $0xa0] sm:$0xff]
  %v34 = vld [vmem:[%s1 + $0xa8] sm:$0xff]
  %v35 = vld [vmem:[%s1 + $0xb0] sm:$0xff]
  %v36 = vld [vmem:[%s1 + $0xb8] sm:$0xff]
  %vm37 = vcmask 523264
  %v39 = vsel %vm37, %v12, 0
  %41 = vmatprep.subr.mxu0 0.0
  %42 = vmatpush1.msra.mxu0 %v28
  %43 = vmatprep.subr.mxu0 0.0
  %44 = vmatpush1.msra.mxu0 %v27
  %45 = vmatprep.subr.mxu0 0.0
  %46 = vmatpush1.msra.mxu0 %v26
  %47 = vmatprep.subr.mxu0 0.0
  %48 = vmatpush1.msra.mxu0 %v25
  %49 = vmatprep.subr.mxu0 0.0
  %50 = vmatpush1.msra.mxu0 %v24
  %51 = vmatprep.subr.mxu0 0.0
  %52 = vmatpush1.msra.mxu0 %v23
  %53 = vmatprep.subr.mxu0 0.0
  %54 = vmatpush1.msra.mxu0 %v22
  %55 = vmatprep.subr.mxu0 0.0
  %56 = vmatpush1.msra.mxu0 %v21
  %57 = vmatprep.subr.mxu0 0.0
  %58 = vmatpush1.msra.mxu0 %v20
  %59 = vmatprep.subr.mxu0 0.0
  %60 = vmatpush1.msra.mxu0 %v19
  %61 = vmatprep.subr.mxu0 0.0
  %62 = vmatpush1.msra.mxu0 %v18
  %63 = vmatprep.subr.mxu0 0.0
  %64 = vmatpush1.msra.mxu0 %v17
  %65 = vmatprep.subr.mxu0 0.0
  %66 = vmatpush1.msra.mxu0 %v16
  %67 = vmatprep.subr.mxu0 0.0
  %68 = vmatpush1.msra.mxu0 %v15
  %69 = vmatprep.subr.mxu0 0.0
  %70 = vmatpush1.msra.mxu0 %v14
  %71 = vmatprep.subr.mxu0 0.0
  %72 = vmatpush1.msra.mxu0 %v13
  %73 = vmatprep.subr.mxu0 0.0
  %74 = vmatpush2.msra.mxu0 0.0
  %75 = vmatprep.subr.mxu0 0.0
  %76 = vmatpush2.msra.mxu0 0.0
  %77 = vmatprep.subr.mxu0 0.0
  %78 = vmatpush2.msra.mxu0 0.0
  %79 = vmatprep.subr.mxu0 0.0
  %80 = vmatpush2.msra.mxu0 0.0
  %81 = vmatprep.subr.mxu0 0.0
  %82 = vmatpush2.msra.mxu0 0.0
  %83 = vmatprep.subr.mxu0 0.0
  %84 = vmatpush2.msra.mxu0 0.0
  %85 = vmatprep.subr.mxu0 0.0
  %86 = vmatpush2.msra.mxu0 0.0
  %87 = vmatprep.subr.mxu0 0.0
  %88 = vmatpush2.msra.mxu0 0.0
  %89 = vmatprep.subr.mxu0 0.0
  %90 = vmatpush2.msra.mxu0 %v36
  %91 = vmatprep.subr.mxu0 0.0
  %92 = vmatpush2.msra.mxu0 %v35
  %93 = vmatprep.subr.mxu0 0.0
  %94 = vmatpush2.msra.mxu0 %v34
  %95 = vmatprep.subr.mxu0 0.0
  %96 = vmatpush2.msra.mxu0 %v33
  %97 = vmatprep.subr.mxu0 0.0
  %98 = vmatpush2.msra.mxu0 %v32
  %99 = vmatprep.subr.mxu0 0.0
  %100 = vmatpush2.msra.mxu0 %v31
  %101 = vmatprep.subr.mxu0 0.0
  %102 = vmatpush2.msra.mxu0 %v30
  %103 = vmatprep.subr.mxu0 0.0
  %104 = vmatpush2.msra.mxu0 %v29
  %105 = vmatprep.mubr.f32.mxu0 %v39
  %106 = vmatmul.mubr.f32.gmra.mxu0 %v11
  %v107 = vpop.f32.mrf.mxu0
  %v108 = vadd.f32 0.0, %v107
  %v109 = vpop.f32.mrf.mxu0
  %110 = vdwg.mxu0
  %vm111 = vcmask 261120
  %112 = vst.msk [vmem:[%s2] sm:$0xff] %vm111, %v108
  // Predicated region
  $region10: #{clip_forward.5} parent=0 // pred_check
    _
  $region11: #{clip_forward.5} parent=0 // pred_check_branch
    %114 = sbr.rel (0) target = $region13
  $region12: #{clip_forward.5} parent=0 // pred_region
    _
  $region13: #{clip_forward.5} parent=0 // pred_fallthru
    _
  // Predicated region
  $region14: #{clip_forward.5} parent=0 // pred_check
    _
  $region15: #{clip_forward.5} parent=0 // pred_check_branch
    %116 = sbr.rel (0) target = $region17
  $region16: #{clip_forward.5} parent=0 // pred_region
    _
  $region17: #{clip_forward.5} parent=0 // pred_fallthru
    _

// kernel: clip_forward.7
$region0: #{clip_forward.7}
  #allocation0 [shape = 'u32[]', space=smem, size = 0x4, offset = 0x4, fixed_abs, tag = 'smem constant byte address 0x4 - core index']
  #allocation1 [shape = 'u32[144,128]{1,0:T(1,128)}', space=vmem, size = 0x12000, scoped, tag = 'internal scratch']
  #allocation2 [shape = 'f32[1,1]{1,0:T(1,128)S(1)}', space=vmem, size = 0x200, scoped, tag = 'scoped memory for clip_forward.7']
  %s0 = inlined_call_operand.vmem [shape: f32[2,32], index: 0, kind: input, shape index: {}]
  %s1 = inlined_call_operand.vmem [shape: f32[2,32], index: 1, kind: input, shape index: {}]
  %s2 = inlined_call_operand.vmem [shape: f32[1,32], index: 2, kind: input, shape index: {}]
  %s3 = inlined_call_operand.vmem [shape: f32[1,32], index: 3, kind: input, shape index: {}]
  %s4 = inlined_call_operand.vmem [shape: f32[32,16], index: 4, kind: input, shape index: {}]
  %s5 = inlined_call_operand.vmem [shape: f32[32,16], index: 5, kind: input, shape index: {}]
  %s6 = inlined_call_operand.<no memory space> [shape: f32[1,1], index: 6, kind: input, shape index: {}]
  %s7 = inlined_call_operand.hbm [shape: f32[2,16], index: 7, kind: output, shape index: {0}]
  %s8 = inlined_call_operand.hbm [shape: f32[2,16], index: 8, kind: output, shape index: {1}]
  %s9 = inlined_call_operand.hbm [shape: f32[2,2], index: 9, kind: output, shape index: {2}]
  %s10 = inlined_call_operand.hbm [shape: f32[2,2], index: 10, kind: output, shape index: {3}]
  %11 = xla_tuple %s7, %s8, %s9, %s10
  %s12 = sld [smem:[#allocation0]]
  $region62: #{clip_forward.7} parent=0
    _
  %s14 = ssub.s32 1, %s12
  %s15 = scalar_select 0, %s14, %s12
  %v16 = vstv %s6
  %17 = vst [vmem:[#allocation2] sm:$0x1] %v16
  $region1: #{clip_forward.7} parent=0
    #allocation3 [shape = 'u8[1024]{0}', space=vmem, size = 0x400, scoped, tag = 'output window, operand 0, single buffered']
    #allocation4 [shape = 's32[1]{0}', space=sflag, size = 0x4, scoped, tag = 'scoped memory for clip_forward.7']
    #allocation5 [shape = 'u8[1024]{0}', space=vmem, size = 0x400, scoped, tag = 'output window, operand 1, single buffered']
    #allocation6 [shape = 's32[1]{0}', space=sflag, size = 0x4, scoped, tag = 'scoped memory for clip_forward.7']
    #allocation7 [shape = 'u8[1024]{0}', space=vmem, size = 0x400, scoped, tag = 'output window, operand 2, single buffered']
    #allocation8 [shape = 'u8[1024]{0}', space=vmem, size = 0x400, scoped, tag = 'output window, operand 3, single buffered']
    #allocation9 [shape = 's32[1]{0}', space=sflag, size = 0x4, scoped, tag = 'scoped memory for clip_forward.7']
    %18 = vsyncpa [#allocation4], 0
    %19 = vsyncpa [#allocation6], 0
    %20 = vsyncpa [#allocation9], 0
    // Predicated region
    $region2: #{clip_forward.7} parent=1 // pred_check
      _
    $region3: #{clip_forward.7} parent=1 // pred_check_branch
      %22 = sbr.rel (0) target = $region5
    $region4: #{clip_forward.7} parent=1 // pred_region
      _
    $region5: #{clip_forward.7} parent=1 // pred_fallthru
      _
    // Predicated region
    $region6: #{clip_forward.7} parent=1 // pred_check
      _
    $region7: #{clip_forward.7} parent=1 // pred_check_branch
      %24 = sbr.rel (0) target = $region9
    $region8: #{clip_forward.7} parent=1 // pred_region
      _
    $region9: #{clip_forward.7} parent=1 // pred_fallthru
      _
    // Predicated region
    $region10: #{clip_forward.7} parent=1 // pred_check
      _
    $region11: #{clip_forward.7} parent=1 // pred_check_branch
      %26 = sbr.rel (0) target = $region13
    $region12: #{clip_forward.7} parent=1 // pred_region
      _
    $region13: #{clip_forward.7} parent=1 // pred_fallthru
      _
    // Predicated region
    $region14: #{clip_forward.7} parent=1 // pred_check
      _
    $region15: #{clip_forward.7} parent=1 // pred_check_branch
      %28 = sbr.rel (0) target = $region17
    $region16: #{clip_forward.7} parent=1 // pred_region
      _
    $region17: #{clip_forward.7} parent=1 // pred_fallthru
      _
    // Predicated region
    $region18: #{clip_forward.7} parent=1 // pred_check
      _
    $region19: #{clip_forward.7} parent=1 // pred_check_branch
      %30 = sbr.rel (0) target = $region21
    $region20: #{clip_forward.7} parent=1 // pred_region
      _
    $region21: #{clip_forward.7} parent=1 // pred_fallthru
      _
    // Predicated region
    $region22: #{clip_forward.7} parent=1 // pred_check
      _
    $region23: #{clip_forward.7} parent=1 // pred_check_branch
      %32 = sbr.rel (0) target = $region25
    $region24: #{clip_forward.7} parent=1 // pred_region
      _
    $region25: #{clip_forward.7} parent=1 // pred_fallthru
      _
    // Predicated region
    $region26: #{clip_forward.7} parent=1 // pred_check
      _
    $region27: #{clip_forward.7} parent=1 // pred_check_branch
      %34 = sbr.rel (0) target = $region29
    $region28: #{clip_forward.7} parent=1 // pred_region
      _
    $region29: #{clip_forward.7} parent=1 // pred_fallthru
      _
    %v35 = vld [vmem:[%s0] sm:$0x3]
    %v36 = vld [vmem:[%s1] sm:$0x3]
    %v37 = vld [vmem:[%s2] sm:$0x1]
    %v38 = vld [vmem:[%s3] sm:$0x1]
    %vm39 = vcmask 254976
    %v40 = vsel %vm39, %v36, 0.0
    %41 = vadd.xlane.f32.xlu0 %v40
    %v42 = vpop.xlane.xlu0 %41
    %v43 = vrcp.pop 32.0
    %v44 = vmul.f32 %v42, %v43
    %v45 = vsub.f32 %v36, %v44
    %v46 = vmul.f32 %v45, %v45
    %v47 = vsel %vm39, %v46, 0.0
    %48 = vadd.xlane.f32.xlu0 %v47
    %v49 = vpop.xlane.xlu0 %48
    %v50 = vmul.f32 %v49, %v43
    %v51 = vadd.f32 %v50, 1e-05
    %v52 = vrsqrt.pop %v51
    %v53 = vmul.f32 %v45, %v52
    %v55 = vlaneseq
    %v56 = vshrl.u32 %v55, 7
    %v57 = vsub.s32 0, %v56
    %v58 = vrot.slane %v37, %v57
    %v60 = vmul.f32 %v53, %v58
    %v62 = vlaneseq
    %v63 = vshrl.u32 %v62, 7
    %v64 = vsub.s32 0, %v63
    %v65 = vrot.slane %v38, %v64
    %v67 = vadd.f32 %v60, %v65
    %v68 = vld [vmem:[%s4] sm:$0xff]
    %v69 = vld [vmem:[%s4 + $0x8] sm:$0xff]
    %v70 = vld [vmem:[%s4 + $0x10] sm:$0xff]
    %v71 = vld [vmem:[%s4 + $0x18] sm:$0xff]
    %vm72 = vcmask 261120
    %v74 = vsel %vm72, %v35, 0
    %76 = vmatprep.subr.mxu0 0.0
    %77 = vmatpush1.msra.mxu0 0.0
    %78 = vmatprep.subr.mxu0 0.0
    %79 = vmatpush1.msra.mxu0 0.0
    %80 = vmatprep.subr.mxu0 0.0
    %81 = vmatpush1.msra.mxu0 0.0
    %82 = vmatprep.subr.mxu0 0.0
    %83 = vmatpush1.msra.mxu0 0.0
    %84 = vmatprep.subr.mxu0 0.0
    %85 = vmatpush1.msra.mxu0 0.0
    %86 = vmatprep.subr.mxu0 0.0
    %87 = vmatpush1.msra.mxu0 0.0
    %88 = vmatprep.subr.mxu0 0.0
    %89 = vmatpush1.msra.mxu0 0.0
    %90 = vmatprep.subr.mxu0 0.0
    %91 = vmatpush1.msra.mxu0 0.0
    %92 = vmatprep.subr.mxu0 0.0
    %93 = vmatpush1.msra.mxu0 0.0
    %94 = vmatprep.subr.mxu0 0.0
    %95 = vmatpush1.msra.mxu0 0.0
    %96 = vmatprep.subr.mxu0 0.0
    %97 = vmatpush1.msra.mxu0 0.0
    %98 = vmatprep.subr.mxu0 0.0
    %99 = vmatpush1.msra.mxu0 0.0
    %100 = vmatprep.subr.mxu0 0.0
    %101 = vmatpush1.msra.mxu0 %v71
    %102 = vmatprep.subr.mxu0 0.0
    %103 = vmatpush1.msra.mxu0 %v70
    %104 = vmatprep.subr.mxu0 0.0
    %105 = vmatpush1.msra.mxu0 %v69
    %106 = vmatprep.subr.mxu0 0.0
    %107 = vmatpush1.msra.mxu0 %v68
    %108 = vmatprep.subr.mxu0 0.0
    %109 = vmatpush2.msra.mxu0 0.0
    %110 = vmatprep.subr.mxu0 0.0
    %111 = vmatpush2.msra.mxu0 0.0
    %112 = vmatprep.subr.mxu0 0.0
    %113 = vmatpush2.msra.mxu0 0.0
    %114 = vmatprep.subr.mxu0 0.0
    %115 = vmatpush2.msra.mxu0 0.0
    %116 = vmatprep.subr.mxu0 0.0
    %117 = vmatpush2.msra.mxu0 0.0
    %118 = vmatprep.subr.mxu0 0.0
    %119 = vmatpush2.msra.mxu0 0.0
    %120 = vmatprep.subr.mxu0 0.0
    %121 = vmatpush2.msra.mxu0 0.0
    %122 = vmatprep.subr.mxu0 0.0
    %123 = vmatpush2.msra.mxu0 0.0
    %124 = vmatprep.subr.mxu0 0.0
    %125 = vmatpush2.msra.mxu0 0.0
    %126 = vmatprep.subr.mxu0 0.0
    %127 = vmatpush2.msra.mxu0 0.0
    %128 = vmatprep.subr.mxu0 0.0
    %129 = vmatpush2.msra.mxu0 0.0
    %130 = vmatprep.subr.mxu0 0.0
    %131 = vmatpush2.msra.mxu0 0.0
    %132 = vmatprep.subr.mxu0 0.0
    %133 = vmatpush2.msra.mxu0 0.0
    %134 = vmatprep.subr.mxu0 0.0
    %135 = vmatpush2.msra.mxu0 0.0
    %136 = vmatprep.subr.mxu0 0.0
    %137 = vmatpush2.msra.mxu0 0.0
    %138 = vmatprep.subr.mxu0 0.0
    %139 = vmatpush2.msra.mxu0 0.0
    %140 = vmatprep.mubr.f32.mxu0 0.0
    %141 = vmatmul.mubr.f32.gmra.mxu0 %v74
    %v142 = vpop.f32.mrf.mxu0
    %v143 = vadd.f32 0.0, %v142
    %v144 = vpop.f32.mrf.mxu0
    %145 = vdwg.mxu0
    %v146 = vld [vmem:[%s5] sm:$0xff]
    %v147 = vld [vmem:[%s5 + $0x8] sm:$0xff]
    %v148 = vld [vmem:[%s5 + $0x10] sm:$0xff]
    %v149 = vld [vmem:[%s5 + $0x18] sm:$0xff]
    %v151 = vsel %vm72, %v67, 0
    %153 = vmatprep.subr.mxu0 0.0
    %154 = vmatpush1.msra.mxu0 0.0
    %155 = vmatprep.subr.mxu0 0.0
    %156 = vmatpush1.msra.mxu0 0.0
    %157 = vmatprep.subr.mxu0 0.0
    %158 = vmatpush1.msra.mxu0 0.0
    %159 = vmatprep.subr.mxu0 0.0
    %160 = vmatpush1.msra.mxu0 0.0
    %161 = vmatprep.subr.mxu0 0.0
    %162 = vmatpush1.msra.mxu0 0.0
    %163 = vmatprep.subr.mxu0 0.0
    %164 = vmatpush1.msra.mxu0 0.0
    %165 = vmatprep.subr.mxu0 0.0
    %166 = vmatpush1.msra.mxu0 0.0
    %167 = vmatprep.subr.mxu0 0.0
    %168 = vmatpush1.msra.mxu0 0.0
    %169 = vmatprep.subr.mxu0 0.0
    %170 = vmatpush1.msra.mxu0 0.0
    %171 = vmatprep.subr.mxu0 0.0
    %172 = vmatpush1.msra.mxu0 0.0
    %173 = vmatprep.subr.mxu0 0.0
    %174 = vmatpush1.msra.mxu0 0.0
    %175 = vmatprep.subr.mxu0 0.0
    %176 = vmatpush1.msra.mxu0 0.0
    %177 = vmatprep.subr.mxu0 0.0
    %178 = vmatpush1.msra.mxu0 %v149
    %179 = vmatprep.subr.mxu0 0.0
    %180 = vmatpush1.msra.mxu0 %v148
    %181 = vmatprep.subr.mxu0 0.0
    %182 = vmatpush1.msra.mxu0 %v147
    %183 = vmatprep.subr.mxu0 0.0
    %184 = vmatpush1.msra.mxu0 %v146
    %185 = vmatprep.subr.mxu0 0.0
    %186 = vmatpush2.msra.mxu0 0.0
    %187 = vmatprep.subr.mxu0 0.0
    %188 = vmatpush2.msra.mxu0 0.0
    %189 = vmatprep.subr.mxu0 0.0
    %190 = vmatpush2.msra.mxu0 0.0
    %191 = vmatprep.subr.mxu0 0.0
    %192 = vmatpush2.msra.mxu0 0.0
    %193 = vmatprep.subr.mxu0 0.0
    %194 = vmatpush2.msra.mxu0 0.0
    %195 = vmatprep.subr.mxu0 0.0
    %196 = vmatpush2.msra.mxu0 0.0
    %197 = vmatprep.subr.mxu0 0.0
    %198 = vmatpush2.msra.mxu0 0.0
    %199 = vmatprep.subr.mxu0 0.0
    %200 = vmatpush2.msra.mxu0 0.0
    %201 = vmatprep.subr.mxu0 0.0
    %202 = vmatpush2.msra.mxu0 0.0
    %203 = vmatprep.subr.mxu0 0.0
    %204 = vmatpush2.msra.mxu0 0.0
    %205 = vmatprep.subr.mxu0 0.0
    %206 = vmatpush2.msra.mxu0 0.0
    %207 = vmatprep.subr.mxu0 0.0
    %208 = vmatpush2.msra.mxu0 0.0
    %209 = vmatprep.subr.mxu0 0.0
    %210 = vmatpush2.msra.mxu0 0.0
    %211 = vmatprep.subr.mxu0 0.0
    %212 = vmatpush2.msra.mxu0 0.0
    %213 = vmatprep.subr.mxu0 0.0
    %214 = vmatpush2.msra.mxu0 0.0
    %215 = vmatprep.subr.mxu0 0.0
    %216 = vmatpush2.msra.mxu0 0.0
    %217 = vmatprep.mubr.f32.mxu0 0.0
    %218 = vmatmul.mubr.f32.gmra.mxu0 %v151
    %v219 = vpop.f32.mrf.mxu0
    %v220 = vadd.f32 0.0, %v219
    %v221 = vpop.f32.mrf.mxu0
    %222 = vdwg.mxu0
    %v223 = vmul.f32 %v143, %v143
    %vm224 = vcmask 123904
    %v225 = vsel %vm224, %v223, 0.0
    %226 = vadd.xlane.f32.xlu0 %v225
    %v227 = vpop.xlane.xlu0 %226
    %v228 = vrsqrt.pop %v227
    %v229 = vmul.f32 %v143, %v228
    %v230 = vmul.f32 %v220, %v220
    %v231 = vsel %vm224, %v230, 0.0
    %232 = vadd.xlane.f32.xlu0 %v231
    %v233 = vpop.xlane.xlu0 %232
    %v234 = vrsqrt.pop %v233
    %v235 = vmul.f32 %v220, %v234
    %v236 = vld [vmem:[#allocation2] sm:$0x1]
    %s237 = vtos %v236
    %vm238 = vcmask 130048
    %v240 = vsel %vm238, %v229, 0
    %v243 = vsel %vm238, %v235, 0
    %245 = vmatprep.subr.mxu0 0.0
    %246 = vmatpush1.xpose.msra.mxu0 0.0
    %247 = vmatprep.subr.mxu0 0.0
    %248 = vmatpush1.xpose.msra.mxu0 0.0
    %249 = vmatprep.subr.mxu0 0.0
    %250 = vmatpush1.xpose.msra.mxu0 0.0
    %251 = vmatprep.subr.mxu0 0.0
    %252 = vmatpush1.xpose.msra.mxu0 0.0
    %253 = vmatprep.subr.mxu0 0.0
    %254 = vmatpush1.xpose.msra.mxu0 0.0
    %255 = vmatprep.subr.mxu0 0.0
    %256 = vmatpush1.xpose.msra.mxu0 0.0
    %257 = vmatprep.subr.mxu0 0.0
    %258 = vmatpush1.xpose.msra.mxu0 0.0
    %259 = vmatprep.subr.mxu0 0.0
    %260 = vmatpush1.xpose.msra.mxu0 0.0
    %261 = vmatprep.subr.mxu0 0.0
    %262 = vmatpush1.xpose.msra.mxu0 0.0
    %263 = vmatprep.subr.mxu0 0.0
    %264 = vmatpush1.xpose.msra.mxu0 0.0
    %265 = vmatprep.subr.mxu0 0.0
    %266 = vmatpush1.xpose.msra.mxu0 0.0
    %267 = vmatprep.subr.mxu0 0.0
    %268 = vmatpush1.xpose.msra.mxu0 0.0
    %269 = vmatprep.subr.mxu0 0.0
    %270 = vmatpush1.xpose.msra.mxu0 0.0
    %271 = vmatprep.subr.mxu0 0.0
    %272 = vmatpush1.xpose.msra.mxu0 0.0
    %273 = vmatprep.subr.mxu0 0.0
    %274 = vmatpush1.xpose.msra.mxu0 0.0
    %275 = vmatprep.subr.mxu0 0.0
    %276 = vmatpush1.xpose.msra.mxu0 %v243
    %277 = vmatprep.subr.mxu0 0.0
    %278 = vmatpush2.xpose.msra.mxu0 0.0
    %279 = vmatprep.subr.mxu0 0.0
    %280 = vmatpush2.xpose.msra.mxu0 0.0
    %281 = vmatprep.subr.mxu0 0.0
    %282 = vmatpush2.xpose.msra.mxu0 0.0
    %283 = vmatprep.subr.mxu0 0.0
    %284 = vmatpush2.xpose.msra.mxu0 0.0
    %285 = vmatprep.subr.mxu0 0.0
    %286 = vmatpush2.xpose.msra.mxu0 0.0
    %287 = vmatprep.subr.mxu0 0.0
    %288 = vmatpush2.xpose.msra.mxu0 0.0
    %289 = vmatprep.subr.mxu0 0.0
    %290 = vmatpush2.xpose.msra.mxu0 0.0
    %291 = vmatprep.subr.mxu0 0.0
    %292 = vmatpush2.xpose.msra.mxu0 0.0
    %293 = vmatprep.subr.mxu0 0.0
    %294 = vmatpush2.xpose.msra.mxu0 0.0
    %295 = vmatprep.subr.mxu0 0.0
    %296 = vmatpush2.xpose.msra.mxu0 0.0
    %297 = vmatprep.subr.mxu0 0.0
    %298 = vmatpush2.xpose.msra.mxu0 0.0
    %299 = vmatprep.subr.mxu0 0.0
    %300 = vmatpush2.xpose.msra.mxu0 0.0
    %301 = vmatprep.subr.mxu0 0.0
    %302 = vmatpush2.xpose.msra.mxu0 0.0
    %303 = vmatprep.subr.mxu0 0.0
    %304 = vmatpush2.xpose.msra.mxu0 0.0
    %305 = vmatprep.subr.mxu0 0.0
    %306 = vmatpush2.xpose.msra.mxu0 0.0
    %307 = vmatprep.subr.mxu0 0.0
    %308 = vmatpush2.xpose.msra.mxu0 0.0
    %309 = vmatprep.mubr.f32.mxu0 0.0
    %310 = vmatmul.mubr.f32.gmra.mxu0 %v240
    %v311 = vpop.f32.mrf.mxu0
    %v312 = vadd.f32 0.0, %v311
    %v313 = vpop.f32.mrf.mxu0
    %314 = vdwg.mxu0
    %v315 = vstv %s237
    %v316 = vmul.f32 %v312, %v315
    %317 = vmatprep.subr.mxu0 0.0
    %318 = vmatpush1.xpose.msra.mxu0 0.0
    %319 = vmatprep.subr.mxu0 0.0
    %320 = vmatpush1.xpose.msra.mxu0 0.0
    %321 = vmatprep.subr.mxu0 0.0
    %322 = vmatpush1.xpose.msra.mxu0 0.0
    %323 = vmatprep.subr.mxu0 0.0
    %324 = vmatpush1.xpose.msra.mxu0 0.0
    %325 = vmatprep.subr.mxu0 0.0
    %326 = vmatpush1.xpose.msra.mxu0 0.0
    %327 = vmatprep.subr.mxu0 0.0
    %328 = vmatpush1.xpose.msra.mxu0 0.0
    %329 = vmatprep.subr.mxu0 0.0
    %330 = vmatpush1.xpose.msra.mxu0 0.0
    %331 = vmatprep.subr.mxu0 0.0
    %332 = vmatpush1.xpose.msra.mxu0 0.0
    %333 = vmatprep.subr.mxu0 0.0
    %334 = vmatpush1.xpose.msra.mxu0 0.0
    %335 = vmatprep.subr.mxu0 0.0
    %336 = vmatpush1.xpose.msra.mxu0 0.0
    %337 = vmatprep.subr.mxu0 0.0
    %338 = vmatpush1.xpose.msra.mxu0 0.0
    %339 = vmatprep.subr.mxu0 0.0
    %340 = vmatpush1.xpose.msra.mxu0 0.0
    %341 = vmatprep.subr.mxu0 0.0
    %342 = vmatpush1.xpose.msra.mxu0 0.0
    %343 = vmatprep.subr.mxu0 0.0
    %344 = vmatpush1.xpose.msra.mxu0 0.0
    %345 = vmatprep.subr.mxu0 0.0
    %346 = vmatpush1.xpose.msra.mxu0 0.0
    %347 = vmatprep.subr.mxu0 0.0
    %348 = vmatpush1.xpose.msra.mxu0 %v240
    %349 = vmatprep.subr.mxu0 0.0
    %350 = vmatpush2.xpose.msra.mxu0 0.0
    %351 = vmatprep.subr.mxu0 0.0
    %352 = vmatpush2.xpose.msra.mxu0 0.0
    %353 = vmatprep.subr.mxu0 0.0
    %354 = vmatpush2.xpose.msra.mxu0 0.0
    %355 = vmatprep.subr.mxu0 0.0
    %356 = vmatpush2.xpose.msra.mxu0 0.0
    %357 = vmatprep.subr.mxu0 0.0
    %358 = vmatpush2.xpose.msra.mxu0 0.0
    %359 = vmatprep.subr.mxu0 0.0
    %360 = vmatpush2.xpose.msra.mxu0 0.0
    %361 = vmatprep.subr.mxu0 0.0
    %362 = vmatpush2.xpose.msra.mxu0 0.0
    %363 = vmatprep.subr.mxu0 0.0
    %364 = vmatpush2.xpose.msra.mxu0 0.0
    %365 = vmatprep.subr.mxu0 0.0
    %366 = vmatpush2.xpose.msra.mxu0 0.0
    %367 = vmatprep.subr.mxu0 0.0
    %368 = vmatpush2.xpose.msra.mxu0 0.0
    %369 = vmatprep.subr.mxu0 0.0
    %370 = vmatpush2.xpose.msra.mxu0 0.0
    %371 = vmatprep.subr.mxu0 0.0
    %372 = vmatpush2.xpose.msra.mxu0 0.0
    %373 = vmatprep.subr.mxu0 0.0
    %374 = vmatpush2.xpose.msra.mxu0 0.0
    %375 = vmatprep.subr.mxu0 0.0
    %376 = vmatpush2.xpose.msra.mxu0 0.0
    %377 = vmatprep.subr.mxu0 0.0
    %378 = vmatpush2.xpose.msra.mxu0 0.0
    %379 = vmatprep.subr.mxu0 0.0
    %380 = vmatpush2.xpose.msra.mxu0 0.0
    %381 = vmatprep.mubr.f32.mxu0 0.0
    %382 = vmatmul.mubr.f32.gmra.mxu0 %v243
    %v383 = vpop.f32.mrf.mxu0
    %v384 = vadd.f32 0.0, %v383
    %v385 = vpop.f32.mrf.mxu0
    %386 = vdwg.mxu0
    %v387 = vmul.f32 %v384, %v315
    %388 = vst.msk [vmem:[#allocation3] sm:$0x3] %vm224, %v229
    %389 = vst.msk [vmem:[#allocation5] sm:$0x3] %vm224, %v235
    %vm390 = vcmask 9216
    %391 = vst.msk [vmem:[#allocation7] sm:$0x3] %vm390, %v316
    %392 = vst.msk [vmem:[#allocation8] sm:$0x3] %vm390, %v387
    // Predicated region
    $region30: #{clip_forward.7} parent=1 // pred_check
      _
    $region31: #{clip_forward.7} parent=1 // pred_check_branch
      %394 = sbr.rel (0) target = $region33
    $region32: #{clip_forward.7} parent=1 // pred_region
      %s396 = ssub.s32 32, 32
      %397 = vsyncadd [#allocation4], %s396
      %s399 = sshll.u32 [#allocation3], 4
      %s400 = int_to_ptr.vmem [resolvable:$true] %s399
      %402 = dma.vmem_to_hbm [thread:$0]  %s400, 32, %s7, [#allocation4]
    $region33: #{clip_forward.7} parent=1 // pred_fallthru
      _
    // Predicated region
    $region34: #{clip_forward.7} parent=1 // pred_check
      _
    $region35: #{clip_forward.7} parent=1 // pred_check_branch
      %404 = sbr.rel (0) target = $region37
    $region36: #{clip_forward.7} parent=1 // pred_region
      %s406 = ssub.s32 32, 32
      %407 = vsyncadd [#allocation6], %s406
      %s409 = sshll.u32 [#allocation5], 4
      %s410 = int_to_ptr.vmem [resolvable:$true] %s409
      %412 = dma.vmem_to_hbm [thread:$0]  %s410, 32, %s8, [#allocation6]
    $region37: #{clip_forward.7} parent=1 // pred_fallthru
      _
    // Predicated region
    $region38: #{clip_forward.7} parent=1 // pred_check
      _
    $region39: #{clip_forward.7} parent=1 // pred_check_branch
      %414 = sbr.rel (0) target = $region41
    $region40: #{clip_forward.7} parent=1 // pred_region
      %s416 = ssub.s32 32, 32
      %417 = vsyncadd [#allocation6], %s416
      %s419 = sshll.u32 [#allocation7], 4
      %s420 = int_to_ptr.vmem [resolvable:$true] %s419
      %422 = dma.vmem_to_hbm [thread:$0]  %s420, 32, %s9, [#allocation6]
    $region41: #{clip_forward.7} parent=1 // pred_fallthru
      _
    // Predicated region
    $region42: #{clip_forward.7} parent=1 // pred_check
      _
    $region43: #{clip_forward.7} parent=1 // pred_check_branch
      %424 = sbr.rel (0) target = $region45
    $region44: #{clip_forward.7} parent=1 // pred_region
      %s426 = ssub.s32 32, 32
      %427 = vsyncadd [#allocation9], %s426
      %s429 = sshll.u32 [#allocation8], 4
      %s430 = int_to_ptr.vmem [resolvable:$true] %s429
      %432 = dma.vmem_to_hbm [thread:$0]  %s430, 32, %s10, [#allocation9]
    $region45: #{clip_forward.7} parent=1 // pred_fallthru
      _
    // Predicated region
    $region46: #{clip_forward.7} parent=1 // pred_check
      _
    $region47: #{clip_forward.7} parent=1 // pred_check_branch
      %434 = sbr.rel (0) target = $region49
    $region48: #{clip_forward.7} parent=1 // pred_region
      %435 = dma.done [#allocation4], 32
    $region49: #{clip_forward.7} parent=1 // pred_fallthru
      _
    // Predicated region
    $region50: #{clip_forward.7} parent=1 // pred_check
      _
    $region51: #{clip_forward.7} parent=1 // pred_check_branch
      %437 = sbr.rel (0) target = $region53
    $region52: #{clip_forward.7} parent=1 // pred_region
      %438 = dma.done [#allocation6], 32
    $region53: #{clip_forward.7} parent=1 // pred_fallthru
      _
    // Predicated region
    $region54: #{clip_forward.7} parent=1 // pred_check
      _
    $region55: #{clip_forward.7} parent=1 // pred_check_branch
      %440 = sbr.rel (0) target = $region57
    $region56: #{clip_forward.7} parent=1 // pred_region
      %441 = dma.done [#allocation6], 32
    $region57: #{clip_forward.7} parent=1 // pred_fallthru
      _
    // Predicated region
    $region58: #{clip_forward.7} parent=1 // pred_check
      _
    $region59: #{clip_forward.7} parent=1 // pred_check_branch
      %443 = sbr.rel (0) target = $region61
    $region60: #{clip_forward.7} parent=1 // pred_region
      %444 = dma.done [#allocation9], 32
    $region61: #{clip_forward.7} parent=1 // pred_fallthru
      _
    %445 = vsyncpa [#allocation4], 1
    %446 = vsyncpa [#allocation6], 1
    %447 = vsyncpa [#allocation9], 1

// kernel: clip_forward.6
$region0: #{clip_forward.6}
  #allocation0 [shape = 'u32[]', space=smem, size = 0x4, offset = 0x4, fixed_abs, tag = 'smem constant byte address 0x4 - core index']
  #allocation1 [shape = 'u32[144,128]{1,0:T(1,128)}', space=vmem, size = 0x12000, scoped, tag = 'internal scratch']
  #allocation2 [shape = 'f32[16,32]{1,0:T(8,128)}', space=vmem, size = 0x2000, scoped, tag = 'scratch operand']
  %s0 = inlined_call_operand.vmem [shape: f32[16,32], index: 0, kind: input, shape index: {}]
  %s1 = inlined_call_operand.vmem [shape: f32[2,8], index: 1, kind: input, shape index: {}]
  %s2 = inlined_call_operand.vmem [shape: f32[1,32], index: 2, kind: input, shape index: {}]
  %s3 = inlined_call_operand.vmem [shape: f32[1,32], index: 3, kind: input, shape index: {}, may-alias: {3,4,5}]
  %s4 = inlined_call_operand.vmem [shape: f32[1,32], index: 4, kind: input, shape index: {}, may-alias: {3,4,5}]
  %s5 = inlined_call_operand.vmem [shape: f32[1,32], index: 5, kind: input, shape index: {}, may-alias: {3,4,5}]
  %s6 = inlined_call_operand.vmem [shape: f32[2,1,32], index: 6, kind: input, shape index: {}, may-alias: {6,12}]
  %s7 = inlined_call_operand.vmem [shape: f32[2,1,32], index: 7, kind: input, shape index: {}, may-alias: {7,11,13,17}]
  %s8 = inlined_call_operand.vmem [shape: f32[2,32,96], index: 8, kind: input, shape index: {}]
  %s9 = inlined_call_operand.vmem [shape: f32[2,1,96], index: 9, kind: input, shape index: {}]
  %s10 = inlined_call_operand.vmem [shape: f32[2,32,32], index: 10, kind: input, shape index: {}]
  %s11 = inlined_call_operand.vmem [shape: f32[2,1,32], index: 11, kind: input, shape index: {}, may-alias: {7,11,13,17}]
  %s12 = inlined_call_operand.vmem [shape: f32[2,1,32], index: 12, kind: input, shape index: {}, may-alias: {6,12}]
  %s13 = inlined_call_operand.vmem [shape: f32[2,1,32], index: 13, kind: input, shape index: {}, may-alias: {7,11,13,17}]
  %s14 = inlined_call_operand.vmem [shape: f32[2,32,128], index: 14, kind: input, shape index: {}]
  %s15 = inlined_call_operand.vmem [shape: f32[2,1,128], index: 15, kind: input, shape index: {}]
  %s16 = inlined_call_operand.vmem [shape: f32[2,128,32], index: 16, kind: input, shape index: {}]
  %s17 = inlined_call_operand.vmem [shape: f32[2,1,32], index: 17, kind: input, shape index: {}, may-alias: {7,11,13,17}]
  %s18 = inlined_call_operand.vmem [shape: f32[16,32], index: 18, kind: output, shape index: {}]
  %s19 = sld [smem:[#allocation0]]
  $region113: #{clip_forward.6} parent=0
    _
  %s21 = ssub.s32 1, %s19
  %s22 = scalar_select 0, %s21, %s19
  loop: start=0, step=1, limit=4
  $region2: #{clip_forward.6} parent=0 // loop_pre_header
    _
  $region3: #{clip_forward.6} parent=0 // loop_header
    %s24 = sphi 0, %s28
    %p25 = scmp.ge.s32.totalorder %s24, 4
    %s32 = sphi 0, %s32
    %s34 = sphi 0, %s32
    %s35 = sphi 0, %s34
    %s49 = sphi 0, %s35
    %s53 = sphi 0, %s53
    %s55 = sphi 0, %s53
    %s56 = sphi 0, %s55
    %s70 = sphi 0, %s56
    %s74 = sphi 0, %s74
    %s76 = sphi 0, %s74
    %s77 = sphi 0, %s76
    %s91 = sphi 0, %s77
    %s95 = sphi 0, %s95
    %s97 = sphi 0, %s95
    %s98 = sphi 0, %s97
    %s112 = sphi 0, %s98
    %s116 = sphi 0, %s116
    %s118 = sphi 0, %s116
    %s119 = sphi 0, %s118
    %s133 = sphi 0, %s119
    %s137 = sphi 0, %s137
    %s139 = sphi 0, %s137
    %s140 = sphi 0, %s139
    %s154 = sphi 0, %s140
    %s160 = sphi 0, %s162
    %s163 = sphi 0, %s160
    %s164 = sphi 0, %s163
    %s180 = sphi 0, %s164
    %s186 = sphi 0, %s188
    %s189 = sphi 0, %s186
    %s190 = sphi 0, %s189
    %s206 = sphi 0, %s190
    %s212 = sphi 0, %s214
    %s215 = sphi 0, %s212
    %s216 = sphi 0, %s215
    %s232 = sphi 0, %s216
    %s238 = sphi 0, %s240
    %s241 = sphi 0, %s238
    %s242 = sphi 0, %s241
    %s258 = sphi 0, %s242
    %s264 = sphi 0, %s266
    %s267 = sphi 0, %s264
    %s268 = sphi 0, %s267
    %s284 = sphi 0, %s268
    %s290 = sphi 0, %s292
    %s293 = sphi 0, %s290
    %s294 = sphi 0, %s293
    %s310 = sphi 0, %s294
    %s316 = sphi 0, %s318
    %s319 = sphi 0, %s316
    %s320 = sphi 0, %s319
    %s336 = sphi 0, %s320
    %s342 = sphi 0, %s344
    %s345 = sphi 0, %s342
    %s346 = sphi 0, %s345
    %s362 = sphi 0, %s346
    %s368 = sphi 0, %s370
    %s371 = sphi 0, %s368
    %s372 = sphi 0, %s371
    %s388 = sphi 0, %s372
    %s394 = sphi 0, %s396
    %s397 = sphi 0, %s394
    %s398 = sphi 0, %s397
    %s414 = sphi 0, %s398
    %s420 = sphi 0, %s422
    %s423 = sphi 0, %s420
    %s424 = sphi 0, %s423
    %s440 = sphi 0, %s424
    %s446 = sphi 0, %s448
    %s449 = sphi 0, %s446
    %s450 = sphi 0, %s449
    %s466 = sphi 0, %s450
    %s470 = sphi 0, %s470
    %s472 = sphi 0, %s470
    %s473 = sphi 0, %s472
    %s487 = sphi 0, %s473
  $region4: #{clip_forward.6} parent=0 // loop_header_branch
    %27 = sbr.rel (%p25) target = $region8
  $region5: #{clip_forward.6} parent=0 // loop_body
    %s29 = ssub.s32 %s24, 1
    %s30 = ssub.s32 %s24, 2
    %s31 = sadd.s32 %s24, 1
    %s33 = sadd.s32 %s32, 1
    %p36 = scmp.eq.s32.totalorder %s24, 1
    %p37 = scmp.ne.s32.totalorder %s32, %s34
    %p38 = scmp.eq.s32.totalorder %s24, 0
    %p39 = por %p37, %p38
    %p40 = scmp.ne.s32.totalorder %s32, %s34
    %p41 = scmp.eq.s32.totalorder %s29, 1
    %p42 = por %p40, %p41
    %p43 = scmp.ne.s32.totalorder %s34, %s35
    %p44 = scmp.eq.s32.totalorder %s29, 0
    %p45 = por %p43, %p44
    %p46 = scmp.ne.s32.totalorder %s34, %s35
    %p47 = scmp.eq.s32.totalorder %s30, 1
    %p48 = por %p46, %p47
    %p50 = scmp.ne.s32.totalorder %s35, %s49
    %p51 = scmp.eq.s32.totalorder %s30, 0
    %p52 = por %p50, %p51
    %s54 = sadd.s32 %s53, 1
    %p57 = scmp.eq.s32.totalorder %s24, 1
    %p58 = scmp.ne.s32.totalorder %s53, %s55
    %p59 = scmp.eq.s32.totalorder %s24, 0
    %p60 = por %p58, %p59
    %p61 = scmp.ne.s32.totalorder %s53, %s55
    %p62 = scmp.eq.s32.totalorder %s29, 1
    %p63 = por %p61, %p62
    %p64 = scmp.ne.s32.totalorder %s55, %s56
    %p65 = scmp.eq.s32.totalorder %s29, 0
    %p66 = por %p64, %p65
    %p67 = scmp.ne.s32.totalorder %s55, %s56
    %p68 = scmp.eq.s32.totalorder %s30, 1
    %p69 = por %p67, %p68
    %p71 = scmp.ne.s32.totalorder %s56, %s70
    %p72 = scmp.eq.s32.totalorder %s30, 0
    %p73 = por %p71, %p72
    %s75 = sadd.s32 %s74, 1
    %p78 = scmp.eq.s32.totalorder %s24, 1
    %p79 = scmp.ne.s32.totalorder %s74, %s76
    %p80 = scmp.eq.s32.totalorder %s24, 0
    %p81 = por %p79, %p80
    %p82 = scmp.ne.s32.totalorder %s74, %s76
    %p83 = scmp.eq.s32.totalorder %s29, 1
    %p84 = por %p82, %p83
    %p85 = scmp.ne.s32.totalorder %s76, %s77
    %p86 = scmp.eq.s32.totalorder %s29, 0
    %p87 = por %p85, %p86
    %p88 = scmp.ne.s32.totalorder %s76, %s77
    %p89 = scmp.eq.s32.totalorder %s30, 1
    %p90 = por %p88, %p89
    %p92 = scmp.ne.s32.totalorder %s77, %s91
    %p93 = scmp.eq.s32.totalorder %s30, 0
    %p94 = por %p92, %p93
    %s96 = sadd.s32 %s95, 1
    %p99 = scmp.eq.s32.totalorder %s24, 1
    %p100 = scmp.ne.s32.totalorder %s95, %s97
    %p101 = scmp.eq.s32.totalorder %s24, 0
    %p102 = por %p100, %p101
    %p103 = scmp.ne.s32.totalorder %s95, %s97
    %p104 = scmp.eq.s32.totalorder %s29, 1
    %p105 = por %p103, %p104
    %p106 = scmp.ne.s32.totalorder %s97, %s98
    %p107 = scmp.eq.s32.totalorder %s29, 0
    %p108 = por %p106, %p107
    %p109 = scmp.ne.s32.totalorder %s97, %s98
    %p110 = scmp.eq.s32.totalorder %s30, 1
    %p111 = por %p109, %p110
    %p113 = scmp.ne.s32.totalorder %s98, %s112
    %p114 = scmp.eq.s32.totalorder %s30, 0
    %p115 = por %p113, %p114
    %s117 = sadd.s32 %s116, 1
    %p120 = scmp.eq.s32.totalorder %s24, 1
    %p121 = scmp.ne.s32.totalorder %s116, %s118
    %p122 = scmp.eq.s32.totalorder %s24, 0
    %p123 = por %p121, %p122
    %p124 = scmp.ne.s32.totalorder %s116, %s118
    %p125 = scmp.eq.s32.totalorder %s29, 1
    %p126 = por %p124, %p125
    %p127 = scmp.ne.s32.totalorder %s118, %s119
    %p128 = scmp.eq.s32.totalorder %s29, 0
    %p129 = por %p127, %p128
    %p130 = scmp.ne.s32.totalorder %s118, %s119
    %p131 = scmp.eq.s32.totalorder %s30, 1
    %p132 = por %p130, %p131
    %p134 = scmp.ne.s32.totalorder %s119, %s133
    %p135 = scmp.eq.s32.totalorder %s30, 0
    %p136 = por %p134, %p135
    %s138 = sadd.s32 %s137, 1
    %p141 = scmp.eq.s32.totalorder %s24, 1
    %p142 = scmp.ne.s32.totalorder %s137, %s139
    %p143 = scmp.eq.s32.totalorder %s24, 0
    %p144 = por %p142, %p143
    %p145 = scmp.ne.s32.totalorder %s137, %s139
    %p146 = scmp.eq.s32.totalorder %s29, 1
    %p147 = por %p145, %p146
    %p148 = scmp.ne.s32.totalorder %s139, %s140
    %p149 = scmp.eq.s32.totalorder %s29, 0
    %p150 = por %p148, %p149
    %p151 = scmp.ne.s32.totalorder %s139, %s140
    %p152 = scmp.eq.s32.totalorder %s30, 1
    %p153 = por %p151, %p152
    %p155 = scmp.ne.s32.totalorder %s140, %s154
    %p156 = scmp.eq.s32.totalorder %s30, 0
    %p157 = por %p155, %p156
    %s158 = ssub.s32 %s24, %s31
    %p159 = scmp.eq.s32.totalorder %s158, 0
    %s161 = sadd.s32 %s160, 1
    %s162 = scalar_select %p159, %s160, %s161
    %p165 = pneg %p159
    %p166 = scmp.eq.s32.totalorder %s24, 1
    %p167 = por %p165, %p166
    %p168 = scmp.ne.s32.totalorder %s160, %s163
    %p169 = scmp.eq.s32.totalorder %s24, 0
    %p170 = por %p168, %p169
    %p171 = scmp.ne.s32.totalorder %s160, %s163
    %p172 = scmp.eq.s32.totalorder %s29, 1
    %p173 = por %p171, %p172
    %p174 = scmp.ne.s32.totalorder %s163, %s164
    %p175 = scmp.eq.s32.totalorder %s29, 0
    %p176 = por %p174, %p175
    %p177 = scmp.ne.s32.totalorder %s163, %s164
    %p178 = scmp.eq.s32.totalorder %s30, 1
    %p179 = por %p177, %p178
    %p181 = scmp.ne.s32.totalorder %s164, %s180
    %p182 = scmp.eq.s32.totalorder %s30, 0
    %p183 = por %p181, %p182
    %s184 = ssub.s32 %s24, %s31
    %p185 = scmp.eq.s32.totalorder %s184, 0
    %s187 = sadd.s32 %s186, 1
    %s188 = scalar_select %p185, %s186, %s187
    %p191 = pneg %p185
    %p192 = scmp.eq.s32.totalorder %s24, 1
    %p193 = por %p191, %p192
    %p194 = scmp.ne.s32.totalorder %s186, %s189
    %p195 = scmp.eq.s32.totalorder %s24, 0
    %p196 = por %p194, %p195
    %p197 = scmp.ne.s32.totalorder %s186, %s189
    %p198 = scmp.eq.s32.totalorder %s29, 1
    %p199 = por %p197, %p198
    %p200 = scmp.ne.s32.totalorder %s189, %s190
    %p201 = scmp.eq.s32.totalorder %s29, 0
    %p202 = por %p200, %p201
    %p203 = scmp.ne.s32.totalorder %s189, %s190
    %p204 = scmp.eq.s32.totalorder %s30, 1
    %p205 = por %p203, %p204
    %p207 = scmp.ne.s32.totalorder %s190, %s206
    %p208 = scmp.eq.s32.totalorder %s30, 0
    %p209 = por %p207, %p208
    %s210 = ssub.s32 %s24, %s31
    %p211 = scmp.eq.s32.totalorder %s210, 0
    %s213 = sadd.s32 %s212, 1
    %s214 = scalar_select %p211, %s212, %s213
    %p217 = pneg %p211
    %p218 = scmp.eq.s32.totalorder %s24, 1
    %p219 = por %p217, %p218
    %p220 = scmp.ne.s32.totalorder %s212, %s215
    %p221 = scmp.eq.s32.totalorder %s24, 0
    %p222 = por %p220, %p221
    %p223 = scmp.ne.s32.totalorder %s212, %s215
    %p224 = scmp.eq.s32.totalorder %s29, 1
    %p225 = por %p223, %p224
    %p226 = scmp.ne.s32.totalorder %s215, %s216
    %p227 = scmp.eq.s32.totalorder %s29, 0
    %p228 = por %p226, %p227
    %p229 = scmp.ne.s32.totalorder %s215, %s216
    %p230 = scmp.eq.s32.totalorder %s30, 1
    %p231 = por %p229, %p230
    %p233 = scmp.ne.s32.totalorder %s216, %s232
    %p234 = scmp.eq.s32.totalorder %s30, 0
    %p235 = por %p233, %p234
    %s236 = ssub.s32 %s24, %s31
    %p237 = scmp.eq.s32.totalorder %s236, 0
    %s239 = sadd.s32 %s238, 1
    %s240 = scalar_select %p237, %s238, %s239
    %p243 = pneg %p237
    %p244 = scmp.eq.s32.totalorder %s24, 1
    %p245 = por %p243, %p244
    %p246 = scmp.ne.s32.totalorder %s238, %s241
    %p247 = scmp.eq.s32.totalorder %s24, 0
    %p248 = por %p246, %p247
    %p249 = scmp.ne.s32.totalorder %s238, %s241
    %p250 = scmp.eq.s32.totalorder %s29, 1
    %p251 = por %p249, %p250
    %p252 = scmp.ne.s32.totalorder %s241, %s242
    %p253 = scmp.eq.s32.totalorder %s29, 0
    %p254 = por %p252, %p253
    %p255 = scmp.ne.s32.totalorder %s241, %s242
    %p256 = scmp.eq.s32.totalorder %s30, 1
    %p257 = por %p255, %p256
    %p259 = scmp.ne.s32.totalorder %s242, %s258
    %p260 = scmp.eq.s32.totalorder %s30, 0
    %p261 = por %p259, %p260
    %s262 = ssub.s32 %s24, %s31
    %p263 = scmp.eq.s32.totalorder %s262, 0
    %s265 = sadd.s32 %s264, 1
    %s266 = scalar_select %p263, %s264, %s265
    %p269 = pneg %p263
    %p270 = scmp.eq.s32.totalorder %s24, 1
    %p271 = por %p269, %p270
    %p272 = scmp.ne.s32.totalorder %s264, %s267
    %p273 = scmp.eq.s32.totalorder %s24, 0
    %p274 = por %p272, %p273
    %p275 = scmp.ne.s32.totalorder %s264, %s267
    %p276 = scmp.eq.s32.totalorder %s29, 1
    %p277 = por %p275, %p276
    %p278 = scmp.ne.s32.totalorder %s267, %s268
    %p279 = scmp.eq.s32.totalorder %s29, 0
    %p280 = por %p278, %p279
    %p281 = scmp.ne.s32.totalorder %s267, %s268
    %p282 = scmp.eq.s32.totalorder %s30, 1
    %p283 = por %p281, %p282
    %p285 = scmp.ne.s32.totalorder %s268, %s284
    %p286 = scmp.eq.s32.totalorder %s30, 0
    %p287 = por %p285, %p286
    %s288 = ssub.s32 %s24, %s31
    %p289 = scmp.eq.s32.totalorder %s288, 0
    %s291 = sadd.s32 %s290, 1
    %s292 = scalar_select %p289, %s290, %s291
    %p295 = pneg %p289
    %p296 = scmp.eq.s32.totalorder %s24, 1
    %p297 = por %p295, %p296
    %p298 = scmp.ne.s32.totalorder %s290, %s293
    %p299 = scmp.eq.s32.totalorder %s24, 0
    %p300 = por %p298, %p299
    %p301 = scmp.ne.s32.totalorder %s290, %s293
    %p302 = scmp.eq.s32.totalorder %s29, 1
    %p303 = por %p301, %p302
    %p304 = scmp.ne.s32.totalorder %s293, %s294
    %p305 = scmp.eq.s32.totalorder %s29, 0
    %p306 = por %p304, %p305
    %p307 = scmp.ne.s32.totalorder %s293, %s294
    %p308 = scmp.eq.s32.totalorder %s30, 1
    %p309 = por %p307, %p308
    %p311 = scmp.ne.s32.totalorder %s294, %s310
    %p312 = scmp.eq.s32.totalorder %s30, 0
    %p313 = por %p311, %p312
    %s314 = ssub.s32 %s24, %s31
    %p315 = scmp.eq.s32.totalorder %s314, 0
    %s317 = sadd.s32 %s316, 1
    %s318 = scalar_select %p315, %s316, %s317
    %p321 = pneg %p315
    %p322 = scmp.eq.s32.totalorder %s24, 1
    %p323 = por %p321, %p322
    %p324 = scmp.ne.s32.totalorder %s316, %s319
    %p325 = scmp.eq.s32.totalorder %s24, 0
    %p326 = por %p324, %p325
    %p327 = scmp.ne.s32.totalorder %s316, %s319
    %p328 = scmp.eq.s32.totalorder %s29, 1
    %p329 = por %p327, %p328
    %p330 = scmp.ne.s32.totalorder %s319, %s320
    %p331 = scmp.eq.s32.totalorder %s29, 0
    %p332 = por %p330, %p331
    %p333 = scmp.ne.s32.totalorder %s319, %s320
    %p334 = scmp.eq.s32.totalorder %s30, 1
    %p335 = por %p333, %p334
    %p337 = scmp.ne.s32.totalorder %s320, %s336
    %p338 = scmp.eq.s32.totalorder %s30, 0
    %p339 = por %p337, %p338
    %s340 = ssub.s32 %s24, %s31
    %p341 = scmp.eq.s32.totalorder %s340, 0
    %s343 = sadd.s32 %s342, 1
    %s344 = scalar_select %p341, %s342, %s343
    %p347 = pneg %p341
    %p348 = scmp.eq.s32.totalorder %s24, 1
    %p349 = por %p347, %p348
    %p350 = scmp.ne.s32.totalorder %s342, %s345
    %p351 = scmp.eq.s32.totalorder %s24, 0
    %p352 = por %p350, %p351
    %p353 = scmp.ne.s32.totalorder %s342, %s345
    %p354 = scmp.eq.s32.totalorder %s29, 1
    %p355 = por %p353, %p354
    %p356 = scmp.ne.s32.totalorder %s345, %s346
    %p357 = scmp.eq.s32.totalorder %s29, 0
    %p358 = por %p356, %p357
    %p359 = scmp.ne.s32.totalorder %s345, %s346
    %p360 = scmp.eq.s32.totalorder %s30, 1
    %p361 = por %p359, %p360
    %p363 = scmp.ne.s32.totalorder %s346, %s362
    %p364 = scmp.eq.s32.totalorder %s30, 0
    %p365 = por %p363, %p364
    %s366 = ssub.s32 %s24, %s31
    %p367 = scmp.eq.s32.totalorder %s366, 0
    %s369 = sadd.s32 %s368, 1
    %s370 = scalar_select %p367, %s368, %s369
    %p373 = pneg %p367
    %p374 = scmp.eq.s32.totalorder %s24, 1
    %p375 = por %p373, %p374
    %p376 = scmp.ne.s32.totalorder %s368, %s371
    %p377 = scmp.eq.s32.totalorder %s24, 0
    %p378 = por %p376, %p377
    %p379 = scmp.ne.s32.totalorder %s368, %s371
    %p380 = scmp.eq.s32.totalorder %s29, 1
    %p381 = por %p379, %p380
    %p382 = scmp.ne.s32.totalorder %s371, %s372
    %p383 = scmp.eq.s32.totalorder %s29, 0
    %p384 = por %p382, %p383
    %p385 = scmp.ne.s32.totalorder %s371, %s372
    %p386 = scmp.eq.s32.totalorder %s30, 1
    %p387 = por %p385, %p386
    %p389 = scmp.ne.s32.totalorder %s372, %s388
    %p390 = scmp.eq.s32.totalorder %s30, 0
    %p391 = por %p389, %p390
    %s392 = ssub.s32 %s24, %s31
    %p393 = scmp.eq.s32.totalorder %s392, 0
    %s395 = sadd.s32 %s394, 1
    %s396 = scalar_select %p393, %s394, %s395
    %p399 = pneg %p393
    %p400 = scmp.eq.s32.totalorder %s24, 1
    %p401 = por %p399, %p400
    %p402 = scmp.ne.s32.totalorder %s394, %s397
    %p403 = scmp.eq.s32.totalorder %s24, 0
    %p404 = por %p402, %p403
    %p405 = scmp.ne.s32.totalorder %s394, %s397
    %p406 = scmp.eq.s32.totalorder %s29, 1
    %p407 = por %p405, %p406
    %p408 = scmp.ne.s32.totalorder %s397, %s398
    %p409 = scmp.eq.s32.totalorder %s29, 0
    %p410 = por %p408, %p409
    %p411 = scmp.ne.s32.totalorder %s397, %s398
    %p412 = scmp.eq.s32.totalorder %s30, 1
    %p413 = por %p411, %p412
    %p415 = scmp.ne.s32.totalorder %s398, %s414
    %p416 = scmp.eq.s32.totalorder %s30, 0
    %p417 = por %p415, %p416
    %s418 = ssub.s32 %s24, %s31
    %p419 = scmp.eq.s32.totalorder %s418, 0
    %s421 = sadd.s32 %s420, 1
    %s422 = scalar_select %p419, %s420, %s421
    %p425 = pneg %p419
    %p426 = scmp.eq.s32.totalorder %s24, 1
    %p427 = por %p425, %p426
    %p428 = scmp.ne.s32.totalorder %s420, %s423
    %p429 = scmp.eq.s32.totalorder %s24, 0
    %p430 = por %p428, %p429
    %p431 = scmp.ne.s32.totalorder %s420, %s423
    %p432 = scmp.eq.s32.totalorder %s29, 1
    %p433 = por %p431, %p432
    %p434 = scmp.ne.s32.totalorder %s423, %s424
    %p435 = scmp.eq.s32.totalorder %s29, 0
    %p436 = por %p434, %p435
    %p437 = scmp.ne.s32.totalorder %s423, %s424
    %p438 = scmp.eq.s32.totalorder %s30, 1
    %p439 = por %p437, %p438
    %p441 = scmp.ne.s32.totalorder %s424, %s440
    %p442 = scmp.eq.s32.totalorder %s30, 0
    %p443 = por %p441, %p442
    %s444 = ssub.s32 %s24, %s31
    %p445 = scmp.eq.s32.totalorder %s444, 0
    %s447 = sadd.s32 %s446, 1
    %s448 = scalar_select %p445, %s446, %s447
    %p451 = pneg %p445
    %p452 = scmp.eq.s32.totalorder %s24, 1
    %p453 = por %p451, %p452
    %p454 = scmp.ne.s32.totalorder %s446, %s449
    %p455 = scmp.eq.s32.totalorder %s24, 0
    %p456 = por %p454, %p455
    %p457 = scmp.ne.s32.totalorder %s446, %s449
    %p458 = scmp.eq.s32.totalorder %s29, 1
    %p459 = por %p457, %p458
    %p460 = scmp.ne.s32.totalorder %s449, %s450
    %p461 = scmp.eq.s32.totalorder %s29, 0
    %p462 = por %p460, %p461
    %p463 = scmp.ne.s32.totalorder %s449, %s450
    %p464 = scmp.eq.s32.totalorder %s30, 1
    %p465 = por %p463, %p464
    %p467 = scmp.ne.s32.totalorder %s450, %s466
    %p468 = scmp.eq.s32.totalorder %s30, 0
    %p469 = por %p467, %p468
    %s471 = sadd.s32 %s470, 1
    %p474 = scmp.eq.s32.totalorder %s24, 1
    %p475 = scmp.ne.s32.totalorder %s470, %s472
    %p476 = scmp.eq.s32.totalorder %s24, 0
    %p477 = por %p475, %p476
    %p478 = scmp.ne.s32.totalorder %s470, %s472
    %p479 = scmp.eq.s32.totalorder %s29, 1
    %p480 = por %p478, %p479
    %p481 = scmp.ne.s32.totalorder %s472, %s473
    %p482 = scmp.eq.s32.totalorder %s29, 0
    %p483 = por %p481, %p482
    %p484 = scmp.ne.s32.totalorder %s472, %s473
    %p485 = scmp.eq.s32.totalorder %s30, 1
    %p486 = por %p484, %p485
    %p488 = scmp.ne.s32.totalorder %s473, %s487
    %p489 = scmp.eq.s32.totalorder %s30, 0
    %p490 = por %p488, %p489
    %p491 = scmp.le.s32.totalorder 1, %s24
    %p492 = scmp.lt.s32.totalorder %s24, 3
    %p493 = pnand %p491, %p492
    %p494 = pneg %p493
    // Predicated region
    $region9: #{clip_forward.6} parent=5 // pred_check
      _
    $region10: #{clip_forward.6} parent=5 // pred_check_branch
      %496 = sbr.rel (%p493) target = $region12
    $region11: #{clip_forward.6} parent=5 // pred_region
      %s497 = ssub.s32 %s24, 1
      // Predicated region
      $region13: #{clip_forward.6} parent=11 // pred_check
        %p498 = pneg %p45
      $region14: #{clip_forward.6} parent=11 // pred_check_branch
        %500 = sbr.rel (%p498) target = $region16
      $region15: #{clip_forward.6} parent=11 // pred_region
        _
      $region16: #{clip_forward.6} parent=11 // pred_fallthru
        _
      // Predicated region
      $region17: #{clip_forward.6} parent=11 // pred_check
        %p501 = pneg %p66
      $region18: #{clip_forward.6} parent=11 // pred_check_branch
        %503 = sbr.rel (%p501) target = $region20
      $region19: #{clip_forward.6} parent=11 // pred_region
        _
      $region20: #{clip_forward.6} parent=11 // pred_fallthru
        _
      // Predicated region
      $region21: #{clip_forward.6} parent=11 // pred_check
        %p504 = pneg %p87
      $region22: #{clip_forward.6} parent=11 // pred_check_branch
        %506 = sbr.rel (%p504) target = $region24
      $region23: #{clip_forward.6} parent=11 // pred_region
        _
      $region24: #{clip_forward.6} parent=11 // pred_fallthru
        _
      // Predicated region
      $region25: #{clip_forward.6} parent=11 // pred_check
        %p507 = pneg %p108
      $region26: #{clip_forward.6} parent=11 // pred_check_branch
        %509 = sbr.rel (%p507) target = $region28
      $region27: #{clip_forward.6} parent=11 // pred_region
        _
      $region28: #{clip_forward.6} parent=11 // pred_fallthru
        _
      // Predicated region
      $region29: #{clip_forward.6} parent=11 // pred_check
        %p510 = pneg %p129
      $region30: #{clip_forward.6} parent=11 // pred_check_branch
        %512 = sbr.rel (%p510) target = $region32
      $region31: #{clip_forward.6} parent=11 // pred_region
        _
      $region32: #{clip_forward.6} parent=11 // pred_fallthru
        _
      // Predicated region
      $region33: #{clip_forward.6} parent=11 // pred_check
        %p513 = pneg %p150
      $region34: #{clip_forward.6} parent=11 // pred_check_branch
        %515 = sbr.rel (%p513) target = $region36
      $region35: #{clip_forward.6} parent=11 // pred_region
        _
      $region36: #{clip_forward.6} parent=11 // pred_fallthru
        _
    $region12: #{clip_forward.6} parent=5 // pred_fallthru
      _
    %p516 = scmp.lt.s32.totalorder %s24, 2
    // Predicated region
    $region37: #{clip_forward.6} parent=5 // pred_check
      %p517 = pneg %p516
    $region38: #{clip_forward.6} parent=5 // pred_check_branch
      %519 = sbr.rel (%p517) target = $region40
    $region39: #{clip_forward.6} parent=5 // pred_region
      // Predicated region
      $region41: #{clip_forward.6} parent=39 // pred_check
        %p520 = pneg %p170
      $region42: #{clip_forward.6} parent=39 // pred_check_branch
        %522 = sbr.rel (%p520) target = $region44
      $region43: #{clip_forward.6} parent=39 // pred_region
        %p523 = scmp.lt.s32.totalorder %s24, 1
        %s524 = scalar_select %p523, %s24, 1
        %s525 = scalar_lea.vmem %s6, %s524
      $region44: #{clip_forward.6} parent=39 // pred_fallthru
        _
      // Predicated region
      $region45: #{clip_forward.6} parent=39 // pred_check
        %p526 = pneg %p196
      $region46: #{clip_forward.6} parent=39 // pred_check_branch
        %528 = sbr.rel (%p526) target = $region48
      $region47: #{clip_forward.6} parent=39 // pred_region
        %p529 = scmp.lt.s32.totalorder %s24, 1
        %s530 = scalar_select %p529, %s24, 1
        %s531 = scalar_lea.vmem %s7, %s530
      $region48: #{clip_forward.6} parent=39 // pred_fallthru
        _
      // Predicated region
      $region49: #{clip_forward.6} parent=39 // pred_check
        %p532 = pneg %p222
      $region50: #{clip_forward.6} parent=39 // pred_check_branch
        %534 = sbr.rel (%p532) target = $region52
      $region51: #{clip_forward.6} parent=39 // pred_region
        %p535 = scmp.lt.s32.totalorder %s24, 1
        %s536 = scalar_select %p535, %s24, 1
        %s537 = smul.addr %s536, 4
        %s538 = smul.addr %s537, 8
        %s539 = scalar_lea.vmem %s8, %s538
      $region52: #{clip_forward.6} parent=39 // pred_fallthru
        _
      // Predicated region
      $region53: #{clip_forward.6} parent=39 // pred_check
        %p540 = pneg %p248
      $region54: #{clip_forward.6} parent=39 // pred_check_branch
        %542 = sbr.rel (%p540) target = $region56
      $region55: #{clip_forward.6} parent=39 // pred_region
        %p543 = scmp.lt.s32.totalorder %s24, 1
        %s544 = scalar_select %p543, %s24, 1
        %s545 = scalar_lea.vmem %s9, %s544
      $region56: #{clip_forward.6} parent=39 // pred_fallthru
        _
      // Predicated region
      $region57: #{clip_forward.6} parent=39 // pred_check
        %p546 = pneg %p274
      $region58: #{clip_forward.6} parent=39 // pred_check_branch
        %548 = sbr.rel (%p546) target = $region60
      $region59: #{clip_forward.6} parent=39 // pred_region
        %p549 = scmp.lt.s32.totalorder %s24, 1
        %s550 = scalar_select %p549, %s24, 1
        %s551 = smul.addr %s550, 4
        %s552 = smul.addr %s551, 8
        %s553 = scalar_lea.vmem %s10, %s552
      $region60: #{clip_forward.6} parent=39 // pred_fallthru
        _
      // Predicated region
      $region61: #{clip_forward.6} parent=39 // pred_check
        %p554 = pneg %p300
      $region62: #{clip_forward.6} parent=39 // pred_check_branch
        %556 = sbr.rel (%p554) target = $region64
      $region63: #{clip_forward.6} parent=39 // pred_region
        %p557 = scmp.lt.s32.totalorder %s24, 1
        %s558 = scalar_select %p557, %s24, 1
        %s559 = scalar_lea.vmem %s11, %s558
      $region64: #{clip_forward.6} parent=39 // pred_fallthru
        _
      // Predicated region
      $region65: #{clip_forward.6} parent=39 // pred_check
        %p560 = pneg %p326
      $region66: #{clip_forward.6} parent=39 // pred_check_branch
        %562 = sbr.rel (%p560) target = $region68
      $region67: #{clip_forward.6} parent=39 // pred_region
        %p563 = scmp.lt.s32.totalorder %s24, 1
        %s564 = scalar_select %p563, %s24, 1
        %s565 = scalar_lea.vmem %s12, %s564
      $region68: #{clip_forward.6} parent=39 // pred_fallthru
        _
      // Predicated region
      $region69: #{clip_forward.6} parent=39 // pred_check
        %p566 = pneg %p352
      $region70: #{clip_forward.6} parent=39 // pred_check_branch
        %568 = sbr.rel (%p566) target = $region72
      $region71: #{clip_forward.6} parent=39 // pred_region
        %p569 = scmp.lt.s32.totalorder %s24, 1
        %s570 = scalar_select %p569, %s24, 1
        %s571 = scalar_lea.vmem %s13, %s570
      $region72: #{clip_forward.6} parent=39 // pred_fallthru
        _
      // Predicated region
      $region73: #{clip_forward.6} parent=39 // pred_check
        %p572 = pneg %p378
      $region74: #{clip_forward.6} parent=39 // pred_check_branch
        %574 = sbr.rel (%p572) target = $region76
      $region75: #{clip_forward.6} parent=39 // pred_region
        %p575 = scmp.lt.s32.totalorder %s24, 1
        %s576 = scalar_select %p575, %s24, 1
        %s577 = smul.addr %s576, 4
        %s578 = smul.addr %s577, 8
        %s579 = scalar_lea.vmem %s14, %s578
      $region76: #{clip_forward.6} parent=39 // pred_fallthru
        _
      // Predicated region
      $region77: #{clip_forward.6} parent=39 // pred_check
        %p580 = pneg %p404
      $region78: #{clip_forward.6} parent=39 // pred_check_branch
        %582 = sbr.rel (%p580) target = $region80
      $region79: #{clip_forward.6} parent=39 // pred_region
        %p583 = scmp.lt.s32.totalorder %s24, 1
        %s584 = scalar_select %p583, %s24, 1
        %s585 = scalar_lea.vmem %s15, %s584
      $region80: #{clip_forward.6} parent=39 // pred_fallthru
        _
      // Predicated region
      $region81: #{clip_forward.6} parent=39 // pred_check
        %p586 = pneg %p430
      $region82: #{clip_forward.6} parent=39 // pred_check_branch
        %588 = sbr.rel (%p586) target = $region84
      $region83: #{clip_forward.6} parent=39 // pred_region
        %p589 = scmp.lt.s32.totalorder %s24, 1
        %s590 = scalar_select %p589, %s24, 1
        %s591 = smul.addr %s590, 16
        %s592 = smul.addr %s591, 8
        %s593 = scalar_lea.vmem %s16, %s592
      $region84: #{clip_forward.6} parent=39 // pred_fallthru
        _
      // Predicated region
      $region85: #{clip_forward.6} parent=39 // pred_check
        %p594 = pneg %p456
      $region86: #{clip_forward.6} parent=39 // pred_check_branch
        %596 = sbr.rel (%p594) target = $region88
      $region87: #{clip_forward.6} parent=39 // pred_region
        %p597 = scmp.lt.s32.totalorder %s24, 1
        %s598 = scalar_select %p597, %s24, 1
        %s599 = scalar_lea.vmem %s17, %s598
      $region88: #{clip_forward.6} parent=39 // pred_fallthru
        _
    $region40: #{clip_forward.6} parent=5 // pred_fallthru
      _
    %p600 = scmp.le.s32.totalorder 1, %s24
    %p601 = scmp.lt.s32.totalorder %s24, 3
    %p602 = pnand %p600, %p601
    %p603 = pneg %p602
    // Predicated region
    $region89: #{clip_forward.6} parent=5 // pred_check
      _
    $region90: #{clip_forward.6} parent=5 // pred_check_branch
      %605 = sbr.rel (%p602) target = $region92
    $region91: #{clip_forward.6} parent=5 // pred_region
      %s606 = ssub.s32 %s24, 1
      %p607 = pneg %p45
      %p608 = pneg %p42
      %p609 = pneg %p66
      %p610 = pneg %p63
      %p611 = pneg %p87
      %p612 = pneg %p84
      %p613 = pneg %p108
      %p614 = pneg %p105
      %p615 = pneg %p129
      %p616 = pneg %p126
      %p617 = pneg %p150
      %p618 = pneg %p147
      %p619 = scmp.lt.s32.totalorder %s29, 1
      %s620 = scalar_select %p619, %s29, 1
      %s621 = scalar_lea.vmem %s6, %s620
      %p622 = pneg %p176
      %p623 = pneg %p173
      %p624 = scmp.lt.s32.totalorder %s29, 1
      %s625 = scalar_select %p624, %s29, 1
      %s626 = scalar_lea.vmem %s7, %s625
      %p627 = pneg %p202
      %p628 = pneg %p199
      %p629 = scmp.lt.s32.totalorder %s29, 1
      %s630 = scalar_select %p629, %s29, 1
      %s631 = smul.addr %s630, 4
      %s632 = smul.addr %s631, 8
      %s633 = scalar_lea.vmem %s8, %s632
      %p634 = pneg %p228
      %p635 = pneg %p225
      %p636 = scmp.lt.s32.totalorder %s29, 1
      %s637 = scalar_select %p636, %s29, 1
      %s638 = scalar_lea.vmem %s9, %s637
      %p639 = pneg %p254
      %p640 = pneg %p251
      %p641 = scmp.lt.s32.totalorder %s29, 1
      %s642 = scalar_select %p641, %s29, 1
      %s643 = smul.addr %s642, 4
      %s644 = smul.addr %s643, 8
      %s645 = scalar_lea.vmem %s10, %s644
      %p646 = pneg %p280
      %p647 = pneg %p277
      %p648 = scmp.lt.s32.totalorder %s29, 1
      %s649 = scalar_select %p648, %s29, 1
      %s650 = scalar_lea.vmem %s11, %s649
      %p651 = pneg %p306
      %p652 = pneg %p303
      %p653 = scmp.lt.s32.totalorder %s29, 1
      %s654 = scalar_select %p653, %s29, 1
      %s655 = scalar_lea.vmem %s12, %s654
      %p656 = pneg %p332
      %p657 = pneg %p329
      %p658 = scmp.lt.s32.totalorder %s29, 1
      %s659 = scalar_select %p658, %s29, 1
      %s660 = scalar_lea.vmem %s13, %s659
      %p661 = pneg %p358
      %p662 = pneg %p355
      %p663 = scmp.lt.s32.totalorder %s29, 1
      %s664 = scalar_select %p663, %s29, 1
      %s665 = smul.addr %s664, 4
      %s666 = smul.addr %s665, 8
      %s667 = scalar_lea.vmem %s14, %s666
      %p668 = pneg %p384
      %p669 = pneg %p381
      %p670 = scmp.lt.s32.totalorder %s29, 1
      %s671 = scalar_select %p670, %s29, 1
      %s672 = scalar_lea.vmem %s15, %s671
      %p673 = pneg %p410
      %p674 = pneg %p407
      %p675 = scmp.lt.s32.totalorder %s29, 1
      %s676 = scalar_select %p675, %s29, 1
      %s677 = smul.addr %s676, 16
      %s678 = smul.addr %s677, 8
      %s679 = scalar_lea.vmem %s16, %s678
      %p680 = pneg %p436
      %p681 = pneg %p433
      %p682 = scmp.lt.s32.totalorder %s29, 1
      %s683 = scalar_select %p682, %s29, 1
      %s684 = scalar_lea.vmem %s17, %s683
      %p685 = pneg %p462
      %p686 = pneg %p459
      %p687 = pneg %p483
      %p688 = pneg %p480
      %p689 = scmp.lt.s32.totalorder %s29, 1
      %s690 = scalar_select %p689, %s29, 1
      %s691 = scalar_lea.vmem %s6, %s690
      %p692 = scmp.lt.s32.totalorder %s29, 1
      %s693 = scalar_select %p692, %s29, 1
      %s694 = scalar_lea.vmem %s7, %s693
      %p695 = scmp.lt.s32.totalorder %s29, 1
      %s696 = scalar_select %p695, %s29, 1
      %s697 = smul.addr %s696, 4
      %s698 = smul.addr %s697, 8
      %s699 = scalar_lea.vmem %s8, %s698
      %p700 = scmp.lt.s32.totalorder %s29, 1
      %s701 = scalar_select %p700, %s29, 1
      %s702 = scalar_lea.vmem %s9, %s701
      %p703 = scmp.lt.s32.totalorder %s29, 1
      %s704 = scalar_select %p703, %s29, 1
      %s705 = smul.addr %s704, 4
      %s706 = smul.addr %s705, 8
      %s707 = scalar_lea.vmem %s10, %s706
      %p708 = scmp.lt.s32.totalorder %s29, 1
      %s709 = scalar_select %p708, %s29, 1
      %s710 = scalar_lea.vmem %s11, %s709
      %p711 = scmp.lt.s32.totalorder %s29, 1
      %s712 = scalar_select %p711, %s29, 1
      %s713 = scalar_lea.vmem %s12, %s712
      %p714 = scmp.lt.s32.totalorder %s29, 1
      %s715 = scalar_select %p714, %s29, 1
      %s716 = scalar_lea.vmem %s13, %s715
      %p717 = scmp.lt.s32.totalorder %s29, 1
      %s718 = scalar_select %p717, %s29, 1
      %s719 = smul.addr %s718, 4
      %s720 = smul.addr %s719, 8
      %s721 = scalar_lea.vmem %s14, %s720
      %p722 = scmp.lt.s32.totalorder %s29, 1
      %s723 = scalar_select %p722, %s29, 1
      %s724 = scalar_lea.vmem %s15, %s723
      %p725 = scmp.lt.s32.totalorder %s29, 1
      %s726 = scalar_select %p725, %s29, 1
      %s727 = smul.addr %s726, 16
      %s728 = smul.addr %s727, 8
      %s729 = scalar_lea.vmem %s16, %s728
      %p730 = scmp.lt.s32.totalorder %s29, 1
      %s731 = scalar_select %p730, %s29, 1
      %s732 = scalar_lea.vmem %s17, %s731
      %p733 = scmp.eq.s32.totalorder %s29, 0
      // Predicated region
      $region93: #{clip_forward.6} parent=91 // pred_check
        %p734 = pneg %p733
      $region94: #{clip_forward.6} parent=91 // pred_check_branch
        %736 = sbr.rel (%p734) target = $region96
      $region95: #{clip_forward.6} parent=91 // pred_region
        %v737 = vld [vmem:[%s0] sm:$0xff]
        %v738 = vld [vmem:[%s0 + $0x8] sm:$0xff]
        %v739 = vld [vmem:[%s2] sm:$0x1]
        %v740 = vld [vmem:[%s3] sm:$0x1]
        %vm741 = vcmask 261120
        %v742 = vsel %vm741, %v737, 0.0
        %743 = vadd.xlane.f32.xlu0 %v742
        %v744 = vpop.xlane.xlu0 %743
        %v745 = vsel %vm741, %v738, 0.0
        %746 = vadd.xlane.f32.xlu0 %v745
        %v747 = vpop.xlane.xlu0 %746
        %v748 = vrcp.pop 32.0
        %v749 = vmul.f32 %v744, %v748
        %v750 = vmul.f32 %v747, %v748
        %v751 = vsub.f32 %v737, %v749
        %v752 = vsub.f32 %v738, %v750
        %v753 = vmul.f32 %v751, %v751
        %v754 = vmul.f32 %v752, %v752
        %v755 = vsel %vm741, %v753, 0.0
        %756 = vadd.xlane.f32.xlu0 %v755
        %v757 = vpop.xlane.xlu0 %756
        %v758 = vsel %vm741, %v754, 0.0
        %759 = vadd.xlane.f32.xlu0 %v758
        %v760 = vpop.xlane.xlu0 %759
        %v761 = vmul.f32 %v757, %v748
        %v762 = vmul.f32 %v760, %v748
        %v763 = vadd.f32 %v761, 1e-05
        %v764 = vadd.f32 %v762, 1e-05
        %v765 = vrsqrt.pop %v763
        %v766 = vrsqrt.pop %v764
        %v767 = vmul.f32 %v751, %v765
        %v768 = vmul.f32 %v752, %v766
        %v770 = vlaneseq
        %v771 = vshrl.u32 %v770, 7
        %v772 = vsub.s32 0, %v771
        %v773 = vrot.slane %v739, %v772
        %v775 = vmul.f32 %v767, %v773
        %v776 = vmul.f32 %v768, %v773
        %v778 = vlaneseq
        %v779 = vshrl.u32 %v778, 7
        %v780 = vsub.s32 0, %v779
        %v781 = vrot.slane %v740, %v780
        %v783 = vadd.f32 %v775, %v781
        %v784 = vadd.f32 %v776, %v781
        %785 = vst.msk [vmem:[#allocation2] sm:$0xff] %vm741, %v783
        %786 = vst.msk [vmem:[#allocation2 + $0x8] sm:$0xff] %vm741, %v784
      $region96: #{clip_forward.6} parent=91 // pred_fallthru
        _
      %v787 = vld [vmem:[#allocation2] sm:$0xff]
      %v788 = vld [vmem:[#allocation2 + $0x8] sm:$0xff]
      %v789 = vld [vmem:[%s691] sm:$0x1]
      %v790 = vld [vmem:[%s694] sm:$0x1]
      %vm791 = vcmask 261120
      %v792 = vsel %vm791, %v787, 0.0
      %793 = vadd.xlane.f32.xlu0 %v792
      %v794 = vpop.xlane.xlu0 %793
      %v795 = vsel %vm791, %v788, 0.0
      %796 = vadd.xlane.f32.xlu0 %v795
      %v797 = vpop.xlane.xlu0 %796
      %v798 = vrcp.pop 32.0
      %v799 = vmul.f32 %v794, %v798
      %v800 = vmul.f32 %v797, %v798
      %v801 = vsub.f32 %v787, %v799
      %v802 = vsub.f32 %v788, %v800
      %v803 = vmul.f32 %v801, %v801
      %v804 = vmul.f32 %v802, %v802
      %v805 = vsel %vm791, %v803, 0.0
      %806 = vadd.xlane.f32.xlu0 %v805
      %v807 = vpop.xlane.xlu0 %806
      %v808 = vsel %vm791, %v804, 0.0
      %809 = vadd.xlane.f32.xlu0 %v808
      %v810 = vpop.xlane.xlu0 %809
      %v811 = vmul.f32 %v807, %v798
      %v812 = vmul.f32 %v810, %v798
      %v813 = vadd.f32 %v811, 1e-05
      %v814 = vadd.f32 %v812, 1e-05
      %v815 = vrsqrt.pop %v813
      %v816 = vrsqrt.pop %v814
      %v817 = vmul.f32 %v801, %v815
      %v818 = vmul.f32 %v802, %v816
      %v820 = vlaneseq
      %v821 = vshrl.u32 %v820, 7
      %v822 = vsub.s32 0, %v821
      %v823 = vrot.slane %v789, %v822
      %v825 = vmul.f32 %v817, %v823
      %v826 = vmul.f32 %v818, %v823
      %v828 = vlaneseq
      %v829 = vshrl.u32 %v828, 7
      %v830 = vsub.s32 0, %v829
      %v831 = vrot.slane %v790, %v830
      %v833 = vadd.f32 %v825, %v831
      %v834 = vadd.f32 %v826, %v831
      %v835 = vld [vmem:[%s699] sm:$0xff]
      %v836 = vld [vmem:[%s699 + $0x8] sm:$0xff]
      %v837 = vld [vmem:[%s699 + $0x10] sm:$0xff]
      %v838 = vld [vmem:[%s699 + $0x18] sm:$0xff]
      %v839 = vld [vmem:[%s702] sm:$0x1]
      %v841 = vlaneseq
      %v842 = vshrl.u32 %v841, 7
      %v843 = vsub.s32 0, %v842
      %v844 = vrot.slane %v839, %v843
      %v847 = vsel %vm791, %v833, 0
      %v850 = vsel %vm791, %v834, 0
      %852 = vmatprep.subr.mxu0 0.0
      %853 = vmatpush1.msra.mxu0 0.0
      %854 = vmatprep.subr.mxu0 0.0
      %855 = vmatpush1.msra.mxu0 0.0
      %856 = vmatprep.subr.mxu0 0.0
      %857 = vmatpush1.msra.mxu0 0.0
      %858 = vmatprep.subr.mxu0 0.0
      %859 = vmatpush1.msra.mxu0 0.0
      %860 = vmatprep.subr.mxu0 0.0
      %861 = vmatpush1.msra.mxu0 0.0
      %862 = vmatprep.subr.mxu0 0.0
      %863 = vmatpush1.msra.mxu0 0.0
      %864 = vmatprep.subr.mxu0 0.0
      %865 = vmatpush1.msra.mxu0 0.0
      %866 = vmatprep.subr.mxu0 0.0
      %867 = vmatpush1.msra.mxu0 0.0
      %868 = vmatprep.subr.mxu0 0.0
      %869 = vmatpush1.msra.mxu0 0.0
      %870 = vmatprep.subr.mxu0 0.0
      %871 = vmatpush1.msra.mxu0 0.0
      %872 = vmatprep.subr.mxu0 0.0
      %873 = vmatpush1.msra.mxu0 0.0
      %874 = vmatprep.subr.mxu0 0.0
      %875 = vmatpush1.msra.mxu0 0.0
      %876 = vmatprep.subr.mxu0 0.0
      %877 = vmatpush1.msra.mxu0 %v838
      %878 = vmatprep.subr.mxu0 0.0
      %879 = vmatpush1.msra.mxu0 %v837
      %880 = vmatprep.subr.mxu0 0.0
      %881 = vmatpush1.msra.mxu0 %v836
      %882 = vmatprep.subr.mxu0 0.0
      %883 = vmatpush1.msra.mxu0 %v835
      %884 = vmatprep.subr.mxu0 0.0
      %885 = vmatpush2.msra.mxu0 0.0
      %886 = vmatprep.subr.mxu0 0.0
      %887 = vmatpush2.msra.mxu0 0.0
      %888 = vmatprep.subr.mxu0 0.0
      %889 = vmatpush2.msra.mxu0 0.0
      %890 = vmatprep.subr.mxu0 0.0
      %891 = vmatpush2.msra.mxu0 0.0
      %892 = vmatprep.subr.mxu0 0.0
      %893 = vmatpush2.msra.mxu0 0.0
      %894 = vmatprep.subr.mxu0 0.0
      %895 = vmatpush2.msra.mxu0 0.0
      %896 = vmatprep.subr.mxu0 0.0
      %897 = vmatpush2.msra.mxu0 0.0
      %898 = vmatprep.subr.mxu0 0.0
      %899 = vmatpush2.msra.mxu0 0.0
      %900 = vmatprep.subr.mxu0 0.0
      %901 = vmatpush2.msra.mxu0 0.0
      %902 = vmatprep.subr.mxu0 0.0
      %903 = vmatpush2.msra.mxu0 0.0
      %904 = vmatprep.subr.mxu0 0.0
      %905 = vmatpush2.msra.mxu0 0.0
      %906 = vmatprep.subr.mxu0 0.0
      %907 = vmatpush2.msra.mxu0 0.0
      %908 = vmatprep.subr.mxu0 0.0
      %909 = vmatpush2.msra.mxu0 0.0
      %910 = vmatprep.subr.mxu0 0.0
      %911 = vmatpush2.msra.mxu0 0.0
      %912 = vmatprep.subr.mxu0 0.0
      %913 = vmatpush2.msra.mxu0 0.0
      %914 = vmatprep.subr.mxu0 0.0
      %915 = vmatpush2.msra.mxu0 0.0
      %916 = vmatprep.mubr.f32.mxu0 0.0
      %917 = vmatmul.mubr.f32.gmra.mxu0 %v847
      %v918 = vpop.f32.mrf.mxu0
      %v919 = vadd.f32 %v844, %v918
      %v920 = vpop.f32.mrf.mxu0
      %921 = vmatprep.mubr.f32.mxu0 0.0
      %922 = vmatmul.mubr.f32.gmra.mxu0 %v850
      %v923 = vpop.f32.mrf.mxu0
      %v924 = vadd.f32 %v844, %v923
      %v925 = vpop.f32.mrf.mxu0
      %926 = vdwg.mxu0
      %v927 = vmul.f32 %v919, 0.35355338
      %v928 = vmul.f32 %v924, 0.35355338
      %v929 = vld [vmem:[%s1] sm:$0x3]
      %v930 = vld [vmem:[%s707] sm:$0xff]
      %v931 = vld [vmem:[%s707 + $0x8] sm:$0xff]
      %v932 = vld [vmem:[%s707 + $0x10] sm:$0xff]
      %v933 = vld [vmem:[%s707 + $0x18] sm:$0xff]
      %v934 = vlaneseq
      %v935 = vshrl.u32 %v934, 7
      %v936 = vsub.s32 0, %v935
      %v937 = vrot.slane %v929, %v936
      %v938 = vadd.f32 %v937, 0.0
      %940 = vrot.lane.b32.xlu0 %v919, 96
      %v941 = vpop.permute.xlu0 %940
      %vm942 = vcmask 64512
      %v944 = vsel %vm942, %v927, 0
      %v946 = vsel %vm942, %v941, 0
      %948 = vmatprep.subr.mxu0 0.0
      %949 = vmatpush1.xpose.msra.mxu0 0.0
      %950 = vmatprep.subr.mxu0 0.0
      %951 = vmatpush1.xpose.msra.mxu0 0.0
      %952 = vmatprep.subr.mxu0 0.0
      %953 = vmatpush1.xpose.msra.mxu0 0.0
      %954 = vmatprep.subr.mxu0 0.0
      %955 = vmatpush1.xpose.msra.mxu0 0.0
      %956 = vmatprep.subr.mxu0 0.0
      %957 = vmatpush1.xpose.msra.mxu0 0.0
      %958 = vmatprep.subr.mxu0 0.0
      %959 = vmatpush1.xpose.msra.mxu0 0.0
      %960 = vmatprep.subr.mxu0 0.0
      %961 = vmatpush1.xpose.msra.mxu0 0.0
      %962 = vmatprep.subr.mxu0 0.0
      %963 = vmatpush1.xpose.msra.mxu0 0.0
      %964 = vmatprep.subr.mxu0 0.0
      %965 = vmatpush1.xpose.msra.mxu0 0.0
      %966 = vmatprep.subr.mxu0 0.0
      %967 = vmatpush1.xpose.msra.mxu0 0.0
      %968 = vmatprep.subr.mxu0 0.0
      %969 = vmatpush1.xpose.msra.mxu0 0.0
      %970 = vmatprep.subr.mxu0 0.0
      %971 = vmatpush1.xpose.msra.mxu0 0.0
      %972 = vmatprep.subr.mxu0 0.0
      %973 = vmatpush1.xpose.msra.mxu0 0.0
      %974 = vmatprep.subr.mxu0 0.0
      %975 = vmatpush1.xpose.msra.mxu0 0.0
      %976 = vmatprep.subr.mxu0 0.0
      %977 = vmatpush1.xpose.msra.mxu0 0.0
      %978 = vmatprep.subr.mxu0 0.0
      %979 = vmatpush1.xpose.msra.mxu0 %v946
      %980 = vmatprep.subr.mxu0 0.0
      %981 = vmatpush2.xpose.msra.mxu0 0.0
      %982 = vmatprep.subr.mxu0 0.0
      %983 = vmatpush2.xpose.msra.mxu0 0.0
      %984 = vmatprep.subr.mxu0 0.0
      %985 = vmatpush2.xpose.msra.mxu0 0.0
      %986 = vmatprep.subr.mxu0 0.0
      %987 = vmatpush2.xpose.msra.mxu0 0.0
      %988 = vmatprep.subr.mxu0 0.0
      %989 = vmatpush2.xpose.msra.mxu0 0.0
      %990 = vmatprep.subr.mxu0 0.0
      %991 = vmatpush2.xpose.msra.mxu0 0.0
      %992 = vmatprep.subr.mxu0 0.0
      %993 = vmatpush2.xpose.msra.mxu0 0.0
      %994 = vmatprep.subr.mxu0 0.0
      %995 = vmatpush2.xpose.msra.mxu0 0.0
      %996 = vmatprep.subr.mxu0 0.0
      %997 = vmatpush2.xpose.msra.mxu0 0.0
      %998 = vmatprep.subr.mxu0 0.0
      %999 = vmatpush2.xpose.msra.mxu0 0.0
      %1000 = vmatprep.subr.mxu0 0.0
      %1001 = vmatpush2.xpose.msra.mxu0 0.0
      %1002 = vmatprep.subr.mxu0 0.0
      %1003 = vmatpush2.xpose.msra.mxu0 0.0
      %1004 = vmatprep.subr.mxu0 0.0
      %1005 = vmatpush2.xpose.msra.mxu0 0.0
      %1006 = vmatprep.subr.mxu0 0.0
      %1007 = vmatpush2.xpose.msra.mxu0 0.0
      %1008 = vmatprep.subr.mxu0 0.0
      %1009 = vmatpush2.xpose.msra.mxu0 0.0
      %1010 = vmatprep.subr.mxu0 0.0
      %1011 = vmatpush2.xpose.msra.mxu0 0.0
      %1012 = vmatprep.mubr.f32.mxu0 0.0
      %1013 = vmatmul.mubr.f32.gmra.mxu0 %v944
      %v1014 = vpop.f32.mrf.mxu0
      %v1015 = vadd.f32 %v938, %v1014
      %v1016 = vpop.f32.mrf.mxu0
      %1017 = vdwg.mxu0
      %v1018 = vsel %vm942, %v1015, -inf
      %1019 = vmax.xlane.f32.xlu0 %v1018
      %v1020 = vpop.xlane.xlu0 %1019
      %v1021 = vsub.f32 %v1015, %v1020
      %v1022 = vmul.f32 %v1021, 1.442695
      %v1023 = vpow.pop %v1022
      %v1024 = vsel %vm942, %v1023, 0.0
      %1025 = vadd.xlane.f32.xlu0 %v1024
      %v1026 = vpop.xlane.xlu0 %1025
      %v1027 = vrcp.pop %v1026
      %v1028 = vmul.f32 %v1023, %v1027
      %1029 = vrot.lane.b32.xlu0 %v919, 64
      %v1030 = vpop.permute.xlu0 %1029
      %v1033 = vsel %vm942, %v1028, 0
      %1035 = vmatprep.subr.mxu0 0.0
      %1036 = vmatpush1.msra.mxu0 0.0
      %1037 = vmatprep.subr.mxu0 0.0
      %1038 = vmatpush1.msra.mxu0 0.0
      %1039 = vmatprep.subr.mxu0 0.0
      %1040 = vmatpush1.msra.mxu0 0.0
      %1041 = vmatprep.subr.mxu0 0.0
      %1042 = vmatpush1.msra.mxu0 0.0
      %1043 = vmatprep.subr.mxu0 0.0
      %1044 = vmatpush1.msra.mxu0 0.0
      %1045 = vmatprep.subr.mxu0 0.0
      %1046 = vmatpush1.msra.mxu0 0.0
      %1047 = vmatprep.subr.mxu0 0.0
      %1048 = vmatpush1.msra.mxu0 0.0
      %1049 = vmatprep.subr.mxu0 0.0
      %1050 = vmatpush1.msra.mxu0 0.0
      %1051 = vmatprep.subr.mxu0 0.0
      %1052 = vmatpush1.msra.mxu0 0.0
      %1053 = vmatprep.subr.mxu0 0.0
      %1054 = vmatpush1.msra.mxu0 0.0
      %1055 = vmatprep.subr.mxu0 0.0
      %1056 = vmatpush1.msra.mxu0 0.0
      %1057 = vmatprep.subr.mxu0 0.0
      %1058 = vmatpush1.msra.mxu0 0.0
      %1059 = vmatprep.subr.mxu0 0.0
      %1060 = vmatpush1.msra.mxu0 0.0
      %1061 = vmatprep.subr.mxu0 0.0
      %1062 = vmatpush1.msra.mxu0 0.0
      %1063 = vmatprep.subr.mxu0 0.0
      %1064 = vmatpush1.msra.mxu0 0.0
      %1065 = vmatprep.subr.mxu0 0.0
      %1066 = vmatpush1.msra.mxu0 %v1030
      %1067 = vmatprep.subr.mxu0 0.0
      %1068 = vmatpush2.msra.mxu0 0.0
      %1069 = vmatprep.subr.mxu0 0.0
      %1070 = vmatpush2.msra.mxu0 0.0
      %1071 = vmatprep.subr.mxu0 0.0
      %1072 = vmatpush2.msra.mxu0 0.0
      %1073 = vmatprep.subr.mxu0 0.0
      %1074 = vmatpush2.msra.mxu0 0.0
      %1075 = vmatprep.subr.mxu0 0.0
      %1076 = vmatpush2.msra.mxu0 0.0
      %1077 = vmatprep.subr.mxu0 0.0
      %1078 = vmatpush2.msra.mxu0 0.0
      %1079 = vmatprep.subr.mxu0 0.0
      %1080 = vmatpush2.msra.mxu0 0.0
      %1081 = vmatprep.subr.mxu0 0.0
      %1082 = vmatpush2.msra.mxu0 0.0
      %1083 = vmatprep.subr.mxu0 0.0
      %1084 = vmatpush2.msra.mxu0 0.0
      %1085 = vmatprep.subr.mxu0 0.0
      %1086 = vmatpush2.msra.mxu0 0.0
      %1087 = vmatprep.subr.mxu0 0.0
      %1088 = vmatpush2.msra.mxu0 0.0
      %1089 = vmatprep.subr.mxu0 0.0
      %1090 = vmatpush2.msra.mxu0 0.0
      %1091 = vmatprep.subr.mxu0 0.0
      %1092 = vmatpush2.msra.mxu0 0.0
      %1093 = vmatprep.subr.mxu0 0.0
      %1094 = vmatpush2.msra.mxu0 0.0
      %1095 = vmatprep.subr.mxu0 0.0
      %1096 = vmatpush2.msra.mxu0 0.0
      %1097 = vmatprep.subr.mxu0 0.0
      %1098 = vmatpush2.msra.mxu0 0.0
      %1099 = vmatprep.mubr.f32.mxu0 0.0
      %1100 = vmatmul.mubr.f32.gmra.mxu0 %v1033
      %v1101 = vpop.f32.mrf.mxu0
      %v1102 = vadd.f32 0.0, %v1101
      %v1103 = vpop.f32.mrf.mxu0
      %1104 = vdwg.mxu0
      %1105 = vrot.lane.b32.xlu0 %v927, 120
      %v1106 = vpop.permute.xlu0 %1105
      %1107 = vrot.lane.b32.xlu0 %v919, 88
      %v1108 = vpop.permute.xlu0 %1107
      %v1109 = vsel %vm942, %v1106, 0
      %v1111 = vsel %vm942, %v1108, 0
      %1113 = vmatprep.subr.mxu0 0.0
      %1114 = vmatpush1.xpose.msra.mxu0 0.0
      %1115 = vmatprep.subr.mxu0 0.0
      %1116 = vmatpush1.xpose.msra.mxu0 0.0
      %1117 = vmatprep.subr.mxu0 0.0
      %1118 = vmatpush1.xpose.msra.mxu0 0.0
      %1119 = vmatprep.subr.mxu0 0.0
      %1120 = vmatpush1.xpose.msra.mxu0 0.0
      %1121 = vmatprep.subr.mxu0 0.0
      %1122 = vmatpush1.xpose.msra.mxu0 0.0
      %1123 = vmatprep.subr.mxu0 0.0
      %1124 = vmatpush1.xpose.msra.mxu0 0.0
      %1125 = vmatprep.subr.mxu0 0.0
      %1126 = vmatpush1.xpose.msra.mxu0 0.0
      %1127 = vmatprep.subr.mxu0 0.0
      %1128 = vmatpush1.xpose.msra.mxu0 0.0
      %1129 = vmatprep.subr.mxu0 0.0
      %1130 = vmatpush1.xpose.msra.mxu0 0.0
      %1131 = vmatprep.subr.mxu0 0.0
      %1132 = vmatpush1.xpose.msra.mxu0 0.0
      %1133 = vmatprep.subr.mxu0 0.0
      %1134 = vmatpush1.xpose.msra.mxu0 0.0
      %1135 = vmatprep.subr.mxu0 0.0
      %1136 = vmatpush1.xpose.msra.mxu0 0.0
      %1137 = vmatprep.subr.mxu0 0.0
      %1138 = vmatpush1.xpose.msra.mxu0 0.0
      %1139 = vmatprep.subr.mxu0 0.0
      %1140 = vmatpush1.xpose.msra.mxu0 0.0
      %1141 = vmatprep.subr.mxu0 0.0
      %1142 = vmatpush1.xpose.msra.mxu0 0.0
      %1143 = vmatprep.subr.mxu0 0.0
      %1144 = vmatpush1.xpose.msra.mxu0 %v1111
      %1145 = vmatprep.subr.mxu0 0.0
      %1146 = vmatpush2.xpose.msra.mxu0 0.0
      %1147 = vmatprep.subr.mxu0 0.0
      %1148 = vmatpush2.xpose.msra.mxu0 0.0
      %1149 = vmatprep.subr.mxu0 0.0
      %1150 = vmatpush2.xpose.msra.mxu0 0.0
      %1151 = vmatprep.subr.mxu0 0.0
      %1152 = vmatpush2.xpose.msra.mxu0 0.0
      %1153 = vmatprep.subr.mxu0 0.0
      %1154 = vmatpush2.xpose.msra.mxu0 0.0
      %1155 = vmatprep.subr.mxu0 0.0
      %1156 = vmatpush2.xpose.msra.mxu0 0.0
      %1157 = vmatprep.subr.mxu0 0.0
      %1158 = vmatpush2.xpose.msra.mxu0 0.0
      %1159 = vmatprep.subr.mxu0 0.0
      %1160 = vmatpush2.xpose.msra.mxu0 0.0
      %1161 = vmatprep.subr.mxu0 0.0
      %1162 = vmatpush2.xpose.msra.mxu0 0.0
      %1163 = vmatprep.subr.mxu0 0.0
      %1164 = vmatpush2.xpose.msra.mxu0 0.0
      %1165 = vmatprep.subr.mxu0 0.0
      %1166 = vmatpush2.xpose.msra.mxu0 0.0
      %1167 = vmatprep.subr.mxu0 0.0
      %1168 = vmatpush2.xpose.msra.mxu0 0.0
      %1169 = vmatprep.subr.mxu0 0.0
      %1170 = vmatpush2.xpose.msra.mxu0 0.0
      %1171 = vmatprep.subr.mxu0 0.0
      %1172 = vmatpush2.xpose.msra.mxu0 0.0
      %1173 = vmatprep.subr.mxu0 0.0
      %1174 = vmatpush2.xpose.msra.mxu0 0.0
      %1175 = vmatprep.subr.mxu0 0.0
      %1176 = vmatpush2.xpose.msra.mxu0 0.0
      %1177 = vmatprep.mubr.f32.mxu0 0.0
      %1178 = vmatmul.mubr.f32.gmra.mxu0 %v1109
      %v1179 = vpop.f32.mrf.mxu0
      %v1180 = vadd.f32 %v938, %v1179
      %v1181 = vpop.f32.mrf.mxu0
      %1182 = vdwg.mxu0
      %v1183 = vsel %vm942, %v1180, -inf
      %1184 = vmax.xlane.f32.xlu0 %v1183
      %v1185 = vpop.xlane.xlu0 %1184
      %v1186 = vsub.f32 %v1180, %v1185
      %v1187 = vmul.f32 %v1186, 1.442695
      %v1188 = vpow.pop %v1187
      %v1189 = vsel %vm942, %v1188, 0.0
      %1190 = vadd.xlane.f32.xlu0 %v1189
      %v1191 = vpop.xlane.xlu0 %1190
      %v1192 = vrcp.pop %v1191
      %v1193 = vmul.f32 %v1188, %v1192
      %1194 = vrot.lane.b32.xlu0 %v919, 56
      %v1195 = vpop.permute.xlu0 %1194
      %v1198 = vsel %vm942, %v1193, 0
      %1200 = vmatprep.subr.mxu0 0.0
      %1201 = vmatpush1.msra.mxu0 0.0
      %1202 = vmatprep.subr.mxu0 0.0
      %1203 = vmatpush1.msra.mxu0 0.0
      %1204 = vmatprep.subr.mxu0 0.0
      %1205 = vmatpush1.msra.mxu0 0.0
      %1206 = vmatprep.subr.mxu0 0.0
      %1207 = vmatpush1.msra.mxu0 0.0
      %1208 = vmatprep.subr.mxu0 0.0
      %1209 = vmatpush1.msra.mxu0 0.0
      %1210 = vmatprep.subr.mxu0 0.0
      %1211 = vmatpush1.msra.mxu0 0.0
      %1212 = vmatprep.subr.mxu0 0.0
      %1213 = vmatpush1.msra.mxu0 0.0
      %1214 = vmatprep.subr.mxu0 0.0
      %1215 = vmatpush1.msra.mxu0 0.0
      %1216 = vmatprep.subr.mxu0 0.0
      %1217 = vmatpush1.msra.mxu0 0.0
      %1218 = vmatprep.subr.mxu0 0.0
      %1219 = vmatpush1.msra.mxu0 0.0
      %1220 = vmatprep.subr.mxu0 0.0
      %1221 = vmatpush1.msra.mxu0 0.0
      %1222 = vmatprep.subr.mxu0 0.0
      %1223 = vmatpush1.msra.mxu0 0.0
      %1224 = vmatprep.subr.mxu0 0.0
      %1225 = vmatpush1.msra.mxu0 0.0
      %1226 = vmatprep.subr.mxu0 0.0
      %1227 = vmatpush1.msra.mxu0 0.0
      %1228 = vmatprep.subr.mxu0 0.0
      %1229 = vmatpush1.msra.mxu0 0.0
      %1230 = vmatprep.subr.mxu0 0.0
      %1231 = vmatpush1.msra.mxu0 %v1195
      %1232 = vmatprep.subr.mxu0 0.0
      %1233 = vmatpush2.msra.mxu0 0.0
      %1234 = vmatprep.subr.mxu0 0.0
      %1235 = vmatpush2.msra.mxu0 0.0
      %1236 = vmatprep.subr.mxu0 0.0
      %1237 = vmatpush2.msra.mxu0 0.0
      %1238 = vmatprep.subr.mxu0 0.0
      %1239 = vmatpush2.msra.mxu0 0.0
      %1240 = vmatprep.subr.mxu0 0.0
      %1241 = vmatpush2.msra.mxu0 0.0
      %1242 = vmatprep.subr.mxu0 0.0
      %1243 = vmatpush2.msra.mxu0 0.0
      %1244 = vmatprep.subr.mxu0 0.0
      %1245 = vmatpush2.msra.mxu0 0.0
      %1246 = vmatprep.subr.mxu0 0.0
      %1247 = vmatpush2.msra.mxu0 0.0
      %1248 = vmatprep.subr.mxu0 0.0
      %1249 = vmatpush2.msra.mxu0 0.0
      %1250 = vmatprep.subr.mxu0 0.0
      %1251 = vmatpush2.msra.mxu0 0.0
      %1252 = vmatprep.subr.mxu0 0.0
      %1253 = vmatpush2.msra.mxu0 0.0
      %1254 = vmatprep.subr.mxu0 0.0
      %1255 = vmatpush2.msra.mxu0 0.0
      %1256 = vmatprep.subr.mxu0 0.0
      %1257 = vmatpush2.msra.mxu0 0.0
      %1258 = vmatprep.subr.mxu0 0.0
      %1259 = vmatpush2.msra.mxu0 0.0
      %1260 = vmatprep.subr.mxu0 0.0
      %1261 = vmatpush2.msra.mxu0 0.0
      %1262 = vmatprep.subr.mxu0 0.0
      %1263 = vmatpush2.msra.mxu0 0.0
      %1264 = vmatprep.mubr.f32.mxu0 0.0
      %1265 = vmatmul.mubr.f32.gmra.mxu0 %v1198
      %v1266 = vpop.f32.mrf.mxu0
      %v1267 = vadd.f32 0.0, %v1266
      %v1268 = vpop.f32.mrf.mxu0
      %1269 = vdwg.mxu0
      %v1271 = vsel %vm942, %v1267, 0
      %1273 = vmatprep.subr.mxu0 0.0
      %1274 = vmatpush1.msra.mxu0 0.0
      %1275 = vmatprep.subr.mxu0 0.0
      %1276 = vmatpush1.msra.mxu0 0.0
      %1277 = vmatprep.subr.mxu0 0.0
      %1278 = vmatpush1.msra.mxu0 0.0
      %1279 = vmatprep.subr.mxu0 0.0
      %1280 = vmatpush1.msra.mxu0 0.0
      %1281 = vmatprep.subr.mxu0 0.0
      %1282 = vmatpush1.msra.mxu0 0.0
      %1283 = vmatprep.subr.mxu0 0.0
      %1284 = vmatpush1.msra.mxu0 0.0
      %1285 = vmatprep.subr.mxu0 0.0
      %1286 = vmatpush1.msra.mxu0 0.0
      %1287 = vmatprep.subr.mxu0 0.0
      %1288 = vmatpush1.msra.mxu0 0.0
      %1289 = vmatprep.subr.mxu0 0.0
      %1290 = vmatpush1.msra.mxu0 0.0
      %1291 = vmatprep.subr.mxu0 0.0
      %1292 = vmatpush1.msra.mxu0 0.0
      %1293 = vmatprep.subr.mxu0 0.0
      %1294 = vmatpush1.msra.mxu0 0.0
      %1295 = vmatprep.subr.mxu0 0.0
      %1296 = vmatpush1.msra.mxu0 0.0
      %1297 = vmatprep.subr.mxu0 0.0
      %1298 = vmatpush1.msra.mxu0 0.0
      %1299 = vmatprep.subr.mxu0 0.0
      %1300 = vmatpush1.msra.mxu0 0.0
      %1301 = vmatprep.subr.mxu0 0.0
      %1302 = vmatpush1.msra.mxu0 0.0
      %1303 = vmatprep.subr.mxu0 0.0
      %1304 = vmatpush1.msra.mxu0 %v931
      %1305 = vmatprep.subr.mxu0 0.0
      %1306 = vmatpush2.msra.mxu0 0.0
      %1307 = vmatprep.subr.mxu0 0.0
      %1308 = vmatpush2.msra.mxu0 0.0
      %1309 = vmatprep.subr.mxu0 0.0
      %1310 = vmatpush2.msra.mxu0 0.0
      %1311 = vmatprep.subr.mxu0 0.0
      %1312 = vmatpush2.msra.mxu0 0.0
      %1313 = vmatprep.subr.mxu0 0.0
      %1314 = vmatpush2.msra.mxu0 0.0
      %1315 = vmatprep.subr.mxu0 0.0
      %1316 = vmatpush2.msra.mxu0 0.0
      %1317 = vmatprep.subr.mxu0 0.0
      %1318 = vmatpush2.msra.mxu0 0.0
      %1319 = vmatprep.subr.mxu0 0.0
      %1320 = vmatpush2.msra.mxu0 0.0
      %1321 = vmatprep.subr.mxu0 0.0
      %1322 = vmatpush2.msra.mxu0 0.0
      %1323 = vmatprep.subr.mxu0 0.0
      %1324 = vmatpush2.msra.mxu0 0.0
      %1325 = vmatprep.subr.mxu0 0.0
      %1326 = vmatpush2.msra.mxu0 0.0
      %1327 = vmatprep.subr.mxu0 0.0
      %1328 = vmatpush2.msra.mxu0 0.0
      %1329 = vmatprep.subr.mxu0 0.0
      %1330 = vmatpush2.msra.mxu0 0.0
      %1331 = vmatprep.subr.mxu0 0.0
      %1332 = vmatpush2.msra.mxu0 0.0
      %1333 = vmatprep.subr.mxu0 0.0
      %1334 = vmatpush2.msra.mxu0 0.0
      %1335 = vmatprep.subr.mxu0 0.0
      %1336 = vmatpush2.msra.mxu0 0.0
      %1337 = vmatprep.mubr.f32.mxu0 0.0
      %1338 = vmatmul.mubr.f32.gmra.mxu0 %v1271
      %v1339 = vpop.f32.mrf.mxu0
      %v1340 = vadd.f32 0.0, %v1339
      %v1341 = vpop.f32.mrf.mxu0
      %1342 = vdwg.mxu0
      %v1344 = vsel %vm942, %v1102, 0
      %1346 = vmatprep.subr.mxu0 0.0
      %1347 = vmatpush1.msra.mxu0 0.0
      %1348 = vmatprep.subr.mxu0 0.0
      %1349 = vmatpush1.msra.mxu0 0.0
      %1350 = vmatprep.subr.mxu0 0.0
      %1351 = vmatpush1.msra.mxu0 0.0
      %1352 = vmatprep.subr.mxu0 0.0
      %1353 = vmatpush1.msra.mxu0 0.0
      %1354 = vmatprep.subr.mxu0 0.0
      %1355 = vmatpush1.msra.mxu0 0.0
      %1356 = vmatprep.subr.mxu0 0.0
      %1357 = vmatpush1.msra.mxu0 0.0
      %1358 = vmatprep.subr.mxu0 0.0
      %1359 = vmatpush1.msra.mxu0 0.0
      %1360 = vmatprep.subr.mxu0 0.0
      %1361 = vmatpush1.msra.mxu0 0.0
      %1362 = vmatprep.subr.mxu0 0.0
      %1363 = vmatpush1.msra.mxu0 0.0
      %1364 = vmatprep.subr.mxu0 0.0
      %1365 = vmatpush1.msra.mxu0 0.0
      %1366 = vmatprep.subr.mxu0 0.0
      %1367 = vmatpush1.msra.mxu0 0.0
      %1368 = vmatprep.subr.mxu0 0.0
      %1369 = vmatpush1.msra.mxu0 0.0
      %1370 = vmatprep.subr.mxu0 0.0
      %1371 = vmatpush1.msra.mxu0 0.0
      %1372 = vmatprep.subr.mxu0 0.0
      %1373 = vmatpush1.msra.mxu0 0.0
      %1374 = vmatprep.subr.mxu0 0.0
      %1375 = vmatpush1.msra.mxu0 0.0
      %1376 = vmatprep.subr.mxu0 0.0
      %1377 = vmatpush1.msra.mxu0 %v930
      %1378 = vmatprep.subr.mxu0 0.0
      %1379 = vmatpush2.msra.mxu0 0.0
      %1380 = vmatprep.subr.mxu0 0.0
      %1381 = vmatpush2.msra.mxu0 0.0
      %1382 = vmatprep.subr.mxu0 0.0
      %1383 = vmatpush2.msra.mxu0 0.0
      %1384 = vmatprep.subr.mxu0 0.0
      %1385 = vmatpush2.msra.mxu0 0.0
      %1386 = vmatprep.subr.mxu0 0.0
      %1387 = vmatpush2.msra.mxu0 0.0
      %1388 = vmatprep.subr.mxu0 0.0
      %1389 = vmatpush2.msra.mxu0 0.0
      %1390 = vmatprep.subr.mxu0 0.0
      %1391 = vmatpush2.msra.mxu0 0.0
      %1392 = vmatprep.subr.mxu0 0.0
      %1393 = vmatpush2.msra.mxu0 0.0
      %1394 = vmatprep.subr.mxu0 0.0
      %1395 = vmatpush2.msra.mxu0 0.0
      %1396 = vmatprep.subr.mxu0 0.0
      %1397 = vmatpush2.msra.mxu0 0.0
      %1398 = vmatprep.subr.mxu0 0.0
      %1399 = vmatpush2.msra.mxu0 0.0
      %1400 = vmatprep.subr.mxu0 0.0
      %1401 = vmatpush2.msra.mxu0 0.0
      %1402 = vmatprep.subr.mxu0 0.0
      %1403 = vmatpush2.msra.mxu0 0.0
      %1404 = vmatprep.subr.mxu0 0.0
      %1405 = vmatpush2.msra.mxu0 0.0
      %1406 = vmatprep.subr.mxu0 0.0
      %1407 = vmatpush2.msra.mxu0 0.0
      %1408 = vmatprep.subr.mxu0 0.0
      %1409 = vmatpush2.msra.mxu0 0.0
      %1410 = vmatprep.mubr.f32.mxu0 0.0
      %1411 = vmatmul.mubr.f32.gmra.mxu0 %v1344
      %v1412 = vpop.f32.mrf.mxu0
      %v1413 = vadd.f32 %v1340, %v1412
      %v1414 = vpop.f32.mrf.mxu0
      %1415 = vdwg.mxu0
      %1416 = vrot.lane.b32.xlu0 %v927, 112
      %v1417 = vpop.permute.xlu0 %1416
      %1418 = vrot.lane.b32.xlu0 %v919, 80
      %v1419 = vpop.permute.xlu0 %1418
      %v1420 = vsel %vm942, %v1417, 0
      %v1422 = vsel %vm942, %v1419, 0
      %1424 = vmatprep.subr.mxu0 0.0
      %1425 = vmatpush1.xpose.msra.mxu0 0.0
      %1426 = vmatprep.subr.mxu0 0.0
      %1427 = vmatpush1.xpose.msra.mxu0 0.0
      %1428 = vmatprep.subr.mxu0 0.0
      %1429 = vmatpush1.xpose.msra.mxu0 0.0
      %1430 = vmatprep.subr.mxu0 0.0
      %1431 = vmatpush1.xpose.msra.mxu0 0.0
      %1432 = vmatprep.subr.mxu0 0.0
      %1433 = vmatpush1.xpose.msra.mxu0 0.0
      %1434 = vmatprep.subr.mxu0 0.0
      %1435 = vmatpush1.xpose.msra.mxu0 0.0
      %1436 = vmatprep.subr.mxu0 0.0
      %1437 = vmatpush1.xpose.msra.mxu0 0.0
      %1438 = vmatprep.subr.mxu0 0.0
      %1439 = vmatpush1.xpose.msra.mxu0 0.0
      %1440 = vmatprep.subr.mxu0 0.0
      %1441 = vmatpush1.xpose.msra.mxu0 0.0
      %1442 = vmatprep.subr.mxu0 0.0
      %1443 = vmatpush1.xpose.msra.mxu0 0.0
      %1444 = vmatprep.subr.mxu0 0.0
      %1445 = vmatpush1.xpose.msra.mxu0 0.0
      %1446 = vmatprep.subr.mxu0 0.0
      %1447 = vmatpush1.xpose.msra.mxu0 0.0
      %1448 = vmatprep.subr.mxu0 0.0
      %1449 = vmatpush1.xpose.msra.mxu0 0.0
      %1450 = vmatprep.subr.mxu0 0.0
      %1451 = vmatpush1.xpose.msra.mxu0 0.0
      %1452 = vmatprep.subr.mxu0 0.0
      %1453 = vmatpush1.xpose.msra.mxu0 0.0
      %1454 = vmatprep.subr.mxu0 0.0
      %1455 = vmatpush1.xpose.msra.mxu0 %v1422
      %1456 = vmatprep.subr.mxu0 0.0
      %1457 = vmatpush2.xpose.msra.mxu0 0.0
      %1458 = vmatprep.subr.mxu0 0.0
      %1459 = vmatpush2.xpose.msra.mxu0 0.0
      %1460 = vmatprep.subr.mxu0 0.0
      %1461 = vmatpush2.xpose.msra.mxu0 0.0
      %1462 = vmatprep.subr.mxu0 0.0
      %1463 = vmatpush2.xpose.msra.mxu0 0.0
      %1464 = vmatprep.subr.mxu0 0.0
      %1465 = vmatpush2.xpose.msra.mxu0 0.0
      %1466 = vmatprep.subr.mxu0 0.0
      %1467 = vmatpush2.xpose.msra.mxu0 0.0
      %1468 = vmatprep.subr.mxu0 0.0
      %1469 = vmatpush2.xpose.msra.mxu0 0.0
      %1470 = vmatprep.subr.mxu0 0.0
      %1471 = vmatpush2.xpose.msra.mxu0 0.0
      %1472 = vmatprep.subr.mxu0 0.0
      %1473 = vmatpush2.xpose.msra.mxu0 0.0
      %1474 = vmatprep.subr.mxu0 0.0
      %1475 = vmatpush2.xpose.msra.mxu0 0.0
      %1476 = vmatprep.subr.mxu0 0.0
      %1477 = vmatpush2.xpose.msra.mxu0 0.0
      %1478 = vmatprep.subr.mxu0 0.0
      %1479 = vmatpush2.xpose.msra.mxu0 0.0
      %1480 = vmatprep.subr.mxu0 0.0
      %1481 = vmatpush2.xpose.msra.mxu0 0.0
      %1482 = vmatprep.subr.mxu0 0.0
      %1483 = vmatpush2.xpose.msra.mxu0 0.0
      %1484 = vmatprep.subr.mxu0 0.0
      %1485 = vmatpush2.xpose.msra.mxu0 0.0
      %1486 = vmatprep.subr.mxu0 0.0
      %1487 = vmatpush2.xpose.msra.mxu0 0.0
      %1488 = vmatprep.mubr.f32.mxu0 0.0
      %1489 = vmatmul.mubr.f32.gmra.mxu0 %v1420
      %v1490 = vpop.f32.mrf.mxu0
      %v1491 = vadd.f32 %v938, %v1490
      %v1492 = vpop.f32.mrf.mxu0
      %1493 = vdwg.mxu0
      %v1494 = vsel %vm942, %v1491, -inf
      %1495 = vmax.xlane.f32.xlu0 %v1494
      %v1496 = vpop.xlane.xlu0 %1495
      %v1497 = vsub.f32 %v1491, %v1496
      %v1498 = vmul.f32 %v1497, 1.442695
      %v1499 = vpow.pop %v1498
      %v1500 = vsel %vm942, %v1499, 0.0
      %1501 = vadd.xlane.f32.xlu0 %v1500
      %v1502 = vpop.xlane.xlu0 %1501
      %v1503 = vrcp.pop %v1502
      %v1504 = vmul.f32 %v1499, %v1503
      %1505 = vrot.lane.b32.xlu0 %v919, 48
      %v1506 = vpop.permute.xlu0 %1505
      %v1509 = vsel %vm942, %v1504, 0
      %1511 = vmatprep.subr.mxu0 0.0
      %1512 = vmatpush1.msra.mxu0 0.0
      %1513 = vmatprep.subr.mxu0 0.0
      %1514 = vmatpush1.msra.mxu0 0.0
      %1515 = vmatprep.subr.mxu0 0.0
      %1516 = vmatpush1.msra.mxu0 0.0
      %1517 = vmatprep.subr.mxu0 0.0
      %1518 = vmatpush1.msra.mxu0 0.0
      %1519 = vmatprep.subr.mxu0 0.0
      %1520 = vmatpush1.msra.mxu0 0.0
      %1521 = vmatprep.subr.mxu0 0.0
      %1522 = vmatpush1.msra.mxu0 0.0
      %1523 = vmatprep.subr.mxu0 0.0
      %1524 = vmatpush1.msra.mxu0 0.0
      %1525 = vmatprep.subr.mxu0 0.0
      %1526 = vmatpush1.msra.mxu0 0.0
      %1527 = vmatprep.subr.mxu0 0.0
      %1528 = vmatpush1.msra.mxu0 0.0
      %1529 = vmatprep.subr.mxu0 0.0
      %1530 = vmatpush1.msra.mxu0 0.0
      %1531 = vmatprep.subr.mxu0 0.0
      %1532 = vmatpush1.msra.mxu0 0.0
      %1533 = vmatprep.subr.mxu0 0.0
      %1534 = vmatpush1.msra.mxu0 0.0
      %1535 = vmatprep.subr.mxu0 0.0
      %1536 = vmatpush1.msra.mxu0 0.0
      %1537 = vmatprep.subr.mxu0 0.0
      %1538 = vmatpush1.msra.mxu0 0.0
      %1539 = vmatprep.subr.mxu0 0.0
      %1540 = vmatpush1.msra.mxu0 0.0
      %1541 = vmatprep.subr.mxu0 0.0
      %1542 = vmatpush1.msra.mxu0 %v1506
      %1543 = vmatprep.subr.mxu0 0.0
      %1544 = vmatpush2.msra.mxu0 0.0
      %1545 = vmatprep.subr.mxu0 0.0
      %1546 = vmatpush2.msra.mxu0 0.0
      %1547 = vmatprep.subr.mxu0 0.0
      %1548 = vmatpush2.msra.mxu0 0.0
      %1549 = vmatprep.subr.mxu0 0.0
      %1550 = vmatpush2.msra.mxu0 0.0
      %1551 = vmatprep.subr.mxu0 0.0
      %1552 = vmatpush2.msra.mxu0 0.0
      %1553 = vmatprep.subr.mxu0 0.0
      %1554 = vmatpush2.msra.mxu0 0.0
      %1555 = vmatprep.subr.mxu0 0.0
      %1556 = vmatpush2.msra.mxu0 0.0
      %1557 = vmatprep.subr.mxu0 0.0
      %1558 = vmatpush2.msra.mxu0 0.0
      %1559 = vmatprep.subr.mxu0 0.0
      %1560 = vmatpush2.msra.mxu0 0.0
      %1561 = vmatprep.subr.mxu0 0.0
      %1562 = vmatpush2.msra.mxu0 0.0
      %1563 = vmatprep.subr.mxu0 0.0
      %1564 = vmatpush2.msra.mxu0 0.0
      %1565 = vmatprep.subr.mxu0 0.0
      %1566 = vmatpush2.msra.mxu0 0.0
      %1567 = vmatprep.subr.mxu0 0.0
      %1568 = vmatpush2.msra.mxu0 0.0
      %1569 = vmatprep.subr.mxu0 0.0
      %1570 = vmatpush2.msra.mxu0 0.0
      %1571 = vmatprep.subr.mxu0 0.0
      %1572 = vmatpush2.msra.mxu0 0.0
      %1573 = vmatprep.subr.mxu0 0.0
      %1574 = vmatpush2.msra.mxu0 0.0
      %1575 = vmatprep.mubr.f32.mxu0 0.0
      %1576 = vmatmul.mubr.f32.gmra.mxu0 %v1509
      %v1577 = vpop.f32.mrf.mxu0
      %v1578 = vadd.f32 0.0, %v1577
      %v1579 = vpop.f32.mrf.mxu0
      %1580 = vdwg.mxu0
      %v1582 = vsel %vm942, %v1578, 0
      %1584 = vmatprep.subr.mxu0 0.0
      %1585 = vmatpush1.msra.mxu0 0.0
      %1586 = vmatprep.subr.mxu0 0.0
      %1587 = vmatpush1.msra.mxu0 0.0
      %1588 = vmatprep.subr.mxu0 0.0
      %1589 = vmatpush1.msra.mxu0 0.0
      %1590 = vmatprep.subr.mxu0 0.0
      %1591 = vmatpush1.msra.mxu0 0.0
      %1592 = vmatprep.subr.mxu0 0.0
      %1593 = vmatpush1.msra.mxu0 0.0
      %1594 = vmatprep.subr.mxu0 0.0
      %1595 = vmatpush1.msra.mxu0 0.0
      %1596 = vmatprep.subr.mxu0 0.0
      %1597 = vmatpush1.msra.mxu0 0.0
      %1598 = vmatprep.subr.mxu0 0.0
      %1599 = vmatpush1.msra.mxu0 0.0
      %1600 = vmatprep.subr.mxu0 0.0
      %1601 = vmatpush1.msra.mxu0 0.0
      %1602 = vmatprep.subr.mxu0 0.0
      %1603 = vmatpush1.msra.mxu0 0.0
      %1604 = vmatprep.subr.mxu0 0.0
      %1605 = vmatpush1.msra.mxu0 0.0
      %1606 = vmatprep.subr.mxu0 0.0
      %1607 = vmatpush1.msra.mxu0 0.0
      %1608 = vmatprep.subr.mxu0 0.0
      %1609 = vmatpush1.msra.mxu0 0.0
      %1610 = vmatprep.subr.mxu0 0.0
      %1611 = vmatpush1.msra.mxu0 0.0
      %1612 = vmatprep.subr.mxu0 0.0
      %1613 = vmatpush1.msra.mxu0 0.0
      %1614 = vmatprep.subr.mxu0 0.0
      %1615 = vmatpush1.msra.mxu0 %v932
      %1616 = vmatprep.subr.mxu0 0.0
      %1617 = vmatpush2.msra.mxu0 0.0
      %1618 = vmatprep.subr.mxu0 0.0
      %1619 = vmatpush2.msra.mxu0 0.0
      %1620 = vmatprep.subr.mxu0 0.0
      %1621 = vmatpush2.msra.mxu0 0.0
      %1622 = vmatprep.subr.mxu0 0.0
      %1623 = vmatpush2.msra.mxu0 0.0
      %1624 = vmatprep.subr.mxu0 0.0
      %1625 = vmatpush2.msra.mxu0 0.0
      %1626 = vmatprep.subr.mxu0 0.0
      %1627 = vmatpush2.msra.mxu0 0.0
      %1628 = vmatprep.subr.mxu0 0.0
      %1629 = vmatpush2.msra.mxu0 0.0
      %1630 = vmatprep.subr.mxu0 0.0
      %1631 = vmatpush2.msra.mxu0 0.0
      %1632 = vmatprep.subr.mxu0 0.0
      %1633 = vmatpush2.msra.mxu0 0.0
      %1634 = vmatprep.subr.mxu0 0.0
      %1635 = vmatpush2.msra.mxu0 0.0
      %1636 = vmatprep.subr.mxu0 0.0
      %1637 = vmatpush2.msra.mxu0 0.0
      %1638 = vmatprep.subr.mxu0 0.0
      %1639 = vmatpush2.msra.mxu0 0.0
      %1640 = vmatprep.subr.mxu0 0.0
      %1641 = vmatpush2.msra.mxu0 0.0
      %1642 = vmatprep.subr.mxu0 0.0
      %1643 = vmatpush2.msra.mxu0 0.0
      %1644 = vmatprep.subr.mxu0 0.0
      %1645 = vmatpush2.msra.mxu0 0.0
      %1646 = vmatprep.subr.mxu0 0.0
      %1647 = vmatpush2.msra.mxu0 0.0
      %1648 = vmatprep.mubr.f32.mxu0 0.0
      %1649 = vmatmul.mubr.f32.gmra.mxu0 %v1582
      %v1650 = vpop.f32.mrf.mxu0
      %v1651 = vadd.f32 0.0, %v1650
      %v1652 = vpop.f32.mrf.mxu0
      %1653 = vdwg.mxu0
      %v1654 = vadd.f32 %v1413, %v1651
      %1655 = vrot.lane.b32.xlu0 %v927, 104
      %v1656 = vpop.permute.xlu0 %1655
      %1657 = vrot.lane.b32.xlu0 %v919, 72
      %v1658 = vpop.permute.xlu0 %1657
      %v1659 = vsel %vm942, %v1656, 0
      %v1661 = vsel %vm942, %v1658, 0
      %1663 = vmatprep.subr.mxu0 0.0
      %1664 = vmatpush1.xpose.msra.mxu0 0.0
      %1665 = vmatprep.subr.mxu0 0.0
      %1666 = vmatpush1.xpose.msra.mxu0 0.0
      %1667 = vmatprep.subr.mxu0 0.0
      %1668 = vmatpush1.xpose.msra.mxu0 0.0
      %1669 = vmatprep.subr.mxu0 0.0
      %1670 = vmatpush1.xpose.msra.mxu0 0.0
      %1671 = vmatprep.subr.mxu0 0.0
      %1672 = vmatpush1.xpose.msra.mxu0 0.0
      %1673 = vmatprep.subr.mxu0 0.0
      %1674 = vmatpush1.xpose.msra.mxu0 0.0
      %1675 = vmatprep.subr.mxu0 0.0
      %1676 = vmatpush1.xpose.msra.mxu0 0.0
      %1677 = vmatprep.subr.mxu0 0.0
      %1678 = vmatpush1.xpose.msra.mxu0 0.0
      %1679 = vmatprep.subr.mxu0 0.0
      %1680 = vmatpush1.xpose.msra.mxu0 0.0
      %1681 = vmatprep.subr.mxu0 0.0
      %1682 = vmatpush1.xpose.msra.mxu0 0.0
      %1683 = vmatprep.subr.mxu0 0.0
      %1684 = vmatpush1.xpose.msra.mxu0 0.0
      %1685 = vmatprep.subr.mxu0 0.0
      %1686 = vmatpush1.xpose.msra.mxu0 0.0
      %1687 = vmatprep.subr.mxu0 0.0
      %1688 = vmatpush1.xpose.msra.mxu0 0.0
      %1689 = vmatprep.subr.mxu0 0.0
      %1690 = vmatpush1.xpose.msra.mxu0 0.0
      %1691 = vmatprep.subr.mxu0 0.0
      %1692 = vmatpush1.xpose.msra.mxu0 0.0
      %1693 = vmatprep.subr.mxu0 0.0
      %1694 = vmatpush1.xpose.msra.mxu0 %v1661
      %1695 = vmatprep.subr.mxu0 0.0
      %1696 = vmatpush2.xpose.msra.mxu0 0.0
      %1697 = vmatprep.subr.mxu0 0.0
      %1698 = vmatpush2.xpose.msra.mxu0 0.0
      %1699 = vmatprep.subr.mxu0 0.0
      %1700 = vmatpush2.xpose.msra.mxu0 0.0
      %1701 = vmatprep.subr.mxu0 0.0
      %1702 = vmatpush2.xpose.msra.mxu0 0.0
      %1703 = vmatprep.subr.mxu0 0.0
      %1704 = vmatpush2.xpose.msra.mxu0 0.0
      %1705 = vmatprep.subr.mxu0 0.0
      %1706 = vmatpush2.xpose.msra.mxu0 0.0
      %1707 = vmatprep.subr.mxu0 0.0
      %1708 = vmatpush2.xpose.msra.mxu0 0.0
      %1709 = vmatprep.subr.mxu0 0.0
      %1710 = vmatpush2.xpose.msra.mxu0 0.0
      %1711 = vmatprep.subr.mxu0 0.0
      %1712 = vmatpush2.xpose.msra.mxu0 0.0
      %1713 = vmatprep.subr.mxu0 0.0
      %1714 = vmatpush2.xpose.msra.mxu0 0.0
      %1715 = vmatprep.subr.mxu0 0.0
      %1716 = vmatpush2.xpose.msra.mxu0 0.0
      %1717 = vmatprep.subr.mxu0 0.0
      %1718 = vmatpush2.xpose.msra.mxu0 0.0
      %1719 = vmatprep.subr.mxu0 0.0
      %1720 = vmatpush2.xpose.msra.mxu0 0.0
      %1721 = vmatprep.subr.mxu0 0.0
      %1722 = vmatpush2.xpose.msra.mxu0 0.0
      %1723 = vmatprep.subr.mxu0 0.0
      %1724 = vmatpush2.xpose.msra.mxu0 0.0
      %1725 = vmatprep.subr.mxu0 0.0
      %1726 = vmatpush2.xpose.msra.mxu0 0.0
      %1727 = vmatprep.mubr.f32.mxu0 0.0
      %1728 = vmatmul.mubr.f32.gmra.mxu0 %v1659
      %v1729 = vpop.f32.mrf.mxu0
      %v1730 = vadd.f32 %v938, %v1729
      %v1731 = vpop.f32.mrf.mxu0
      %1732 = vdwg.mxu0
      %v1733 = vsel %vm942, %v1730, -inf
      %1734 = vmax.xlane.f32.xlu0 %v1733
      %v1735 = vpop.xlane.xlu0 %1734
      %v1736 = vsub.f32 %v1730, %v1735
      %v1737 = vmul.f32 %v1736, 1.442695
      %v1738 = vpow.pop %v1737
      %v1739 = vsel %vm942, %v1738, 0.0
      %1740 = vadd.xlane.f32.xlu0 %v1739
      %v1741 = vpop.xlane.xlu0 %1740
      %v1742 = vrcp.pop %v1741
      %v1743 = vmul.f32 %v1738, %v1742
      %1744 = vrot.lane.b32.xlu0 %v919, 40
      %v1745 = vpop.permute.xlu0 %1744
      %v1748 = vsel %vm942, %v1743, 0
      %1750 = vmatprep.subr.mxu0 0.0
      %1751 = vmatpush1.msra.mxu0 0.0
      %1752 = vmatprep.subr.mxu0 0.0
      %1753 = vmatpush1.msra.mxu0 0.0
      %1754 = vmatprep.subr.mxu0 0.0
      %1755 = vmatpush1.msra.mxu0 0.0
      %1756 = vmatprep.subr.mxu0 0.0
      %1757 = vmatpush1.msra.mxu0 0.0
      %1758 = vmatprep.subr.mxu0 0.0
      %1759 = vmatpush1.msra.mxu0 0.0
      %1760 = vmatprep.subr.mxu0 0.0
      %1761 = vmatpush1.msra.mxu0 0.0
      %1762 = vmatprep.subr.mxu0 0.0
      %1763 = vmatpush1.msra.mxu0 0.0
      %1764 = vmatprep.subr.mxu0 0.0
      %1765 = vmatpush1.msra.mxu0 0.0
      %1766 = vmatprep.subr.mxu0 0.0
      %1767 = vmatpush1.msra.mxu0 0.0
      %1768 = vmatprep.subr.mxu0 0.0
      %1769 = vmatpush1.msra.mxu0 0.0
      %1770 = vmatprep.subr.mxu0 0.0
      %1771 = vmatpush1.msra.mxu0 0.0
      %1772 = vmatprep.subr.mxu0 0.0
      %1773 = vmatpush1.msra.mxu0 0.0
      %1774 = vmatprep.subr.mxu0 0.0
      %1775 = vmatpush1.msra.mxu0 0.0
      %1776 = vmatprep.subr.mxu0 0.0
      %1777 = vmatpush1.msra.mxu0 0.0
      %1778 = vmatprep.subr.mxu0 0.0
      %1779 = vmatpush1.msra.mxu0 0.0
      %1780 = vmatprep.subr.mxu0 0.0
      %1781 = vmatpush1.msra.mxu0 %v1745
      %1782 = vmatprep.subr.mxu0 0.0
      %1783 = vmatpush2.msra.mxu0 0.0
      %1784 = vmatprep.subr.mxu0 0.0
      %1785 = vmatpush2.msra.mxu0 0.0
      %1786 = vmatprep.subr.mxu0 0.0
      %1787 = vmatpush2.msra.mxu0 0.0
      %1788 = vmatprep.subr.mxu0 0.0
      %1789 = vmatpush2.msra.mxu0 0.0
      %1790 = vmatprep.subr.mxu0 0.0
      %1791 = vmatpush2.msra.mxu0 0.0
      %1792 = vmatprep.subr.mxu0 0.0
      %1793 = vmatpush2.msra.mxu0 0.0
      %1794 = vmatprep.subr.mxu0 0.0
      %1795 = vmatpush2.msra.mxu0 0.0
      %1796 = vmatprep.subr.mxu0 0.0
      %1797 = vmatpush2.msra.mxu0 0.0
      %1798 = vmatprep.subr.mxu0 0.0
      %1799 = vmatpush2.msra.mxu0 0.0
      %1800 = vmatprep.subr.mxu0 0.0
      %1801 = vmatpush2.msra.mxu0 0.0
      %1802 = vmatprep.subr.mxu0 0.0
      %1803 = vmatpush2.msra.mxu0 0.0
      %1804 = vmatprep.subr.mxu0 0.0
      %1805 = vmatpush2.msra.mxu0 0.0
      %1806 = vmatprep.subr.mxu0 0.0
      %1807 = vmatpush2.msra.mxu0 0.0
      %1808 = vmatprep.subr.mxu0 0.0
      %1809 = vmatpush2.msra.mxu0 0.0
      %1810 = vmatprep.subr.mxu0 0.0
      %1811 = vmatpush2.msra.mxu0 0.0
      %1812 = vmatprep.subr.mxu0 0.0
      %1813 = vmatpush2.msra.mxu0 0.0
      %1814 = vmatprep.mubr.f32.mxu0 0.0
      %1815 = vmatmul.mubr.f32.gmra.mxu0 %v1748
      %v1816 = vpop.f32.mrf.mxu0
      %v1817 = vadd.f32 0.0, %v1816
      %v1818 = vpop.f32.mrf.mxu0
      %1819 = vdwg.mxu0
      %v1821 = vsel %vm942, %v1817, 0
      %1823 = vmatprep.subr.mxu0 0.0
      %1824 = vmatpush1.msra.mxu0 0.0
      %1825 = vmatprep.subr.mxu0 0.0
      %1826 = vmatpush1.msra.mxu0 0.0
      %1827 = vmatprep.subr.mxu0 0.0
      %1828 = vmatpush1.msra.mxu0 0.0
      %1829 = vmatprep.subr.mxu0 0.0
      %1830 = vmatpush1.msra.mxu0 0.0
      %1831 = vmatprep.subr.mxu0 0.0
      %1832 = vmatpush1.msra.mxu0 0.0
      %1833 = vmatprep.subr.mxu0 0.0
      %1834 = vmatpush1.msra.mxu0 0.0
      %1835 = vmatprep.subr.mxu0 0.0
      %1836 = vmatpush1.msra.mxu0 0.0
      %1837 = vmatprep.subr.mxu0 0.0
      %1838 = vmatpush1.msra.mxu0 0.0
      %1839 = vmatprep.subr.mxu0 0.0
      %1840 = vmatpush1.msra.mxu0 0.0
      %1841 = vmatprep.subr.mxu0 0.0
      %1842 = vmatpush1.msra.mxu0 0.0
      %1843 = vmatprep.subr.mxu0 0.0
      %1844 = vmatpush1.msra.mxu0 0.0
      %1845 = vmatprep.subr.mxu0 0.0
      %1846 = vmatpush1.msra.mxu0 0.0
      %1847 = vmatprep.subr.mxu0 0.0
      %1848 = vmatpush1.msra.mxu0 0.0
      %1849 = vmatprep.subr.mxu0 0.0
      %1850 = vmatpush1.msra.mxu0 0.0
      %1851 = vmatprep.subr.mxu0 0.0
      %1852 = vmatpush1.msra.mxu0 0.0
      %1853 = vmatprep.subr.mxu0 0.0
      %1854 = vmatpush1.msra.mxu0 %v933
      %1855 = vmatprep.subr.mxu0 0.0
      %1856 = vmatpush2.msra.mxu0 0.0
      %1857 = vmatprep.subr.mxu0 0.0
      %1858 = vmatpush2.msra.mxu0 0.0
      %1859 = vmatprep.subr.mxu0 0.0
      %1860 = vmatpush2.msra.mxu0 0.0
      %1861 = vmatprep.subr.mxu0 0.0
      %1862 = vmatpush2.msra.mxu0 0.0
      %1863 = vmatprep.subr.mxu0 0.0
      %1864 = vmatpush2.msra.mxu0 0.0
      %1865 = vmatprep.subr.mxu0 0.0
      %1866 = vmatpush2.msra.mxu0 0.0
      %1867 = vmatprep.subr.mxu0 0.0
      %1868 = vmatpush2.msra.mxu0 0.0
      %1869 = vmatprep.subr.mxu0 0.0
      %1870 = vmatpush2.msra.mxu0 0.0
      %1871 = vmatprep.subr.mxu0 0.0
      %1872 = vmatpush2.msra.mxu0 0.0
      %1873 = vmatprep.subr.mxu0 0.0
      %1874 = vmatpush2.msra.mxu0 0.0
      %1875 = vmatprep.subr.mxu0 0.0
      %1876 = vmatpush2.msra.mxu0 0.0
      %1877 = vmatprep.subr.mxu0 0.0
      %1878 = vmatpush2.msra.mxu0 0.0
      %1879 = vmatprep.subr.mxu0 0.0
      %1880 = vmatpush2.msra.mxu0 0.0
      %1881 = vmatprep.subr.mxu0 0.0
      %1882 = vmatpush2.msra.mxu0 0.0
      %1883 = vmatprep.subr.mxu0 0.0
      %1884 = vmatpush2.msra.mxu0 0.0
      %1885 = vmatprep.subr.mxu0 0.0
      %1886 = vmatpush2.msra.mxu0 0.0
      %1887 = vmatprep.mubr.f32.mxu0 0.0
      %1888 = vmatmul.mubr.f32.gmra.mxu0 %v1821
      %v1889 = vpop.f32.mrf.mxu0
      %v1890 = vadd.f32 0.0, %v1889
      %v1891 = vpop.f32.mrf.mxu0
      %1892 = vdwg.mxu0
      %v1893 = vadd.f32 %v1654, %v1890
      %v1894 = vlaneseq
      %v1895 = vshrl.u32 %v1894, 7
      %v1896 = vsub.s32 1, %v1895
      %v1897 = vrot.slane %v929, %v1896
      %v1898 = vadd.f32 %v1897, 0.0
      %1900 = vrot.lane.b32.xlu0 %v924, 96
      %v1901 = vpop.permute.xlu0 %1900
      %v1903 = vsel %vm942, %v928, 0
      %v1905 = vsel %vm942, %v1901, 0
      %1907 = vmatprep.subr.mxu0 0.0
      %1908 = vmatpush1.xpose.msra.mxu0 0.0
      %1909 = vmatprep.subr.mxu0 0.0
      %1910 = vmatpush1.xpose.msra.mxu0 0.0
      %1911 = vmatprep.subr.mxu0 0.0
      %1912 = vmatpush1.xpose.msra.mxu0 0.0
      %1913 = vmatprep.subr.mxu0 0.0
      %1914 = vmatpush1.xpose.msra.mxu0 0.0
      %1915 = vmatprep.subr.mxu0 0.0
      %1916 = vmatpush1.xpose.msra.mxu0 0.0
      %1917 = vmatprep.subr.mxu0 0.0
      %1918 = vmatpush1.xpose.msra.mxu0 0.0
      %1919 = vmatprep.subr.mxu0 0.0
      %1920 = vmatpush1.xpose.msra.mxu0 0.0
      %1921 = vmatprep.subr.mxu0 0.0
      %1922 = vmatpush1.xpose.msra.mxu0 0.0
      %1923 = vmatprep.subr.mxu0 0.0
      %1924 = vmatpush1.xpose.msra.mxu0 0.0
      %1925 = vmatprep.subr.mxu0 0.0
      %1926 = vmatpush1.xpose.msra.mxu0 0.0
      %1927 = vmatprep.subr.mxu0 0.0
      %1928 = vmatpush1.xpose.msra.mxu0 0.0
      %1929 = vmatprep.subr.mxu0 0.0
      %1930 = vmatpush1.xpose.msra.mxu0 0.0
      %1931 = vmatprep.subr.mxu0 0.0
      %1932 = vmatpush1.xpose.msra.mxu0 0.0
      %1933 = vmatprep.subr.mxu0 0.0
      %1934 = vmatpush1.xpose.msra.mxu0 0.0
      %1935 = vmatprep.subr.mxu0 0.0
      %1936 = vmatpush1.xpose.msra.mxu0 0.0
      %1937 = vmatprep.subr.mxu0 0.0
      %1938 = vmatpush1.xpose.msra.mxu0 %v1905
      %1939 = vmatprep.subr.mxu0 0.0
      %1940 = vmatpush2.xpose.msra.mxu0 0.0
      %1941 = vmatprep.subr.mxu0 0.0
      %1942 = vmatpush2.xpose.msra.mxu0 0.0
      %1943 = vmatprep.subr.mxu0 0.0
      %1944 = vmatpush2.xpose.msra.mxu0 0.0
      %1945 = vmatprep.subr.mxu0 0.0
      %1946 = vmatpush2.xpose.msra.mxu0 0.0
      %1947 = vmatprep.subr.mxu0 0.0
      %1948 = vmatpush2.xpose.msra.mxu0 0.0
      %1949 = vmatprep.subr.mxu0 0.0
      %1950 = vmatpush2.xpose.msra.mxu0 0.0
      %1951 = vmatprep.subr.mxu0 0.0
      %1952 = vmatpush2.xpose.msra.mxu0 0.0
      %1953 = vmatprep.subr.mxu0 0.0
      %1954 = vmatpush2.xpose.msra.mxu0 0.0
      %1955 = vmatprep.subr.mxu0 0.0
      %1956 = vmatpush2.xpose.msra.mxu0 0.0
      %1957 = vmatprep.subr.mxu0 0.0
      %1958 = vmatpush2.xpose.msra.mxu0 0.0
      %1959 = vmatprep.subr.mxu0 0.0
      %1960 = vmatpush2.xpose.msra.mxu0 0.0
      %1961 = vmatprep.subr.mxu0 0.0
      %1962 = vmatpush2.xpose.msra.mxu0 0.0
      %1963 = vmatprep.subr.mxu0 0.0
      %1964 = vmatpush2.xpose.msra.mxu0 0.0
      %1965 = vmatprep.subr.mxu0 0.0
      %1966 = vmatpush2.xpose.msra.mxu0 0.0
      %1967 = vmatprep.subr.mxu0 0.0
      %1968 = vmatpush2.xpose.msra.mxu0 0.0
      %1969 = vmatprep.subr.mxu0 0.0
      %1970 = vmatpush2.xpose.msra.mxu0 0.0
      %1971 = vmatprep.mubr.f32.mxu0 0.0
      %1972 = vmatmul.mubr.f32.gmra.mxu0 %v1903
      %v1973 = vpop.f32.mrf.mxu0
      %v1974 = vadd.f32 %v1898, %v1973
      %v1975 = vpop.f32.mrf.mxu0
      %1976 = vdwg.mxu0
      %v1977 = vsel %vm942, %v1974, -inf
      %1978 = vmax.xlane.f32.xlu0 %v1977
      %v1979 = vpop.xlane.xlu0 %1978
      %v1980 = vsub.f32 %v1974, %v1979
      %v1981 = vmul.f32 %v1980, 1.442695
      %v1982 = vpow.pop %v1981
      %v1983 = vsel %vm942, %v1982, 0.0
      %1984 = vadd.xlane.f32.xlu0 %v1983
      %v1985 = vpop.xlane.xlu0 %1984
      %v1986 = vrcp.pop %v1985
      %v1987 = vmul.f32 %v1982, %v1986
      %1988 = vrot.lane.b32.xlu0 %v924, 64
      %v1989 = vpop.permute.xlu0 %1988
      %v1992 = vsel %vm942, %v1987, 0
      %1994 = vmatprep.subr.mxu0 0.0
      %1995 = vmatpush1.msra.mxu0 0.0
      %1996 = vmatprep.subr.mxu0 0.0
      %1997 = vmatpush1.msra.mxu0 0.0
      %1998 = vmatprep.subr.mxu0 0.0
      %1999 = vmatpush1.msra.mxu0 0.0
      %2000 = vmatprep.subr.mxu0 0.0
      %2001 = vmatpush1.msra.mxu0 0.0
      %2002 = vmatprep.subr.mxu0 0.0
      %2003 = vmatpush1.msra.mxu0 0.0
      %2004 = vmatprep.subr.mxu0 0.0
      %2005 = vmatpush1.msra.mxu0 0.0
      %2006 = vmatprep.subr.mxu0 0.0
      %2007 = vmatpush1.msra.mxu0 0.0
      %2008 = vmatprep.subr.mxu0 0.0
      %2009 = vmatpush1.msra.mxu0 0.0
      %2010 = vmatprep.subr.mxu0 0.0
      %2011 = vmatpush1.msra.mxu0 0.0
      %2012 = vmatprep.subr.mxu0 0.0
      %2013 = vmatpush1.msra.mxu0 0.0
      %2014 = vmatprep.subr.mxu0 0.0
      %2015 = vmatpush1.msra.mxu0 0.0
      %2016 = vmatprep.subr.mxu0 0.0
      %2017 = vmatpush1.msra.mxu0 0.0
      %2018 = vmatprep.subr.mxu0 0.0
      %2019 = vmatpush1.msra.mxu0 0.0
      %2020 = vmatprep.subr.mxu0 0.0
      %2021 = vmatpush1.msra.mxu0 0.0
      %2022 = vmatprep.subr.mxu0 0.0
      %2023 = vmatpush1.msra.mxu0 0.0
      %2024 = vmatprep.subr.mxu0 0.0
      %2025 = vmatpush1.msra.mxu0 %v1989
      %2026 = vmatprep.subr.mxu0 0.0
      %2027 = vmatpush2.msra.mxu0 0.0
      %2028 = vmatprep.subr.mxu0 0.0
      %2029 = vmatpush2.msra.mxu0 0.0
      %2030 = vmatprep.subr.mxu0 0.0
      %2031 = vmatpush2.msra.mxu0 0.0
      %2032 = vmatprep.subr.mxu0 0.0
      %2033 = vmatpush2.msra.mxu0 0.0
      %2034 = vmatprep.subr.mxu0 0.0
      %2035 = vmatpush2.msra.mxu0 0.0
      %2036 = vmatprep.subr.mxu0 0.0
      %2037 = vmatpush2.msra.mxu0 0.0
      %2038 = vmatprep.subr.mxu0 0.0
      %2039 = vmatpush2.msra.mxu0 0.0
      %2040 = vmatprep.subr.mxu0 0.0
      %2041 = vmatpush2.msra.mxu0 0.0
      %2042 = vmatprep.subr.mxu0 0.0
      %2043 = vmatpush2.msra.mxu0 0.0
      %2044 = vmatprep.subr.mxu0 0.0
      %2045 = vmatpush2.msra.mxu0 0.0
      %2046 = vmatprep.subr.mxu0 0.0
      %2047 = vmatpush2.msra.mxu0 0.0
      %2048 = vmatprep.subr.mxu0 0.0
      %2049 = vmatpush2.msra.mxu0 0.0
      %2050 = vmatprep.subr.mxu0 0.0
      %2051 = vmatpush2.msra.mxu0 0.0
      %2052 = vmatprep.subr.mxu0 0.0
      %2053 = vmatpush2.msra.mxu0 0.0
      %2054 = vmatprep.subr.mxu0 0.0
      %2055 = vmatpush2.msra.mxu0 0.0
      %2056 = vmatprep.subr.mxu0 0.0
      %2057 = vmatpush2.msra.mxu0 0.0
      %2058 = vmatprep.mubr.f32.mxu0 0.0
      %2059 = vmatmul.mubr.f32.gmra.mxu0 %v1992
      %v2060 = vpop.f32.mrf.mxu0
      %v2061 = vadd.f32 0.0, %v2060
      %v2062 = vpop.f32.mrf.mxu0
      %2063 = vdwg.mxu0
      %2064 = vrot.lane.b32.xlu0 %v928, 120
      %v2065 = vpop.permute.xlu0 %2064
      %2066 = vrot.lane.b32.xlu0 %v924, 88
      %v2067 = vpop.permute.xlu0 %2066
      %v2068 = vsel %vm942, %v2065, 0
      %v2070 = vsel %vm942, %v2067, 0
      %2072 = vmatprep.subr.mxu0 0.0
      %2073 = vmatpush1.xpose.msra.mxu0 0.0
      %2074 = vmatprep.subr.mxu0 0.0
      %2075 = vmatpush1.xpose.msra.mxu0 0.0
      %2076 = vmatprep.subr.mxu0 0.0
      %2077 = vmatpush1.xpose.msra.mxu0 0.0
      %2078 = vmatprep.subr.mxu0 0.0
      %2079 = vmatpush1.xpose.msra.mxu0 0.0
      %2080 = vmatprep.subr.mxu0 0.0
      %2081 = vmatpush1.xpose.msra.mxu0 0.0
      %2082 = vmatprep.subr.mxu0 0.0
      %2083 = vmatpush1.xpose.msra.mxu0 0.0
      %2084 = vmatprep.subr.mxu0 0.0
      %2085 = vmatpush1.xpose.msra.mxu0 0.0
      %2086 = vmatprep.subr.mxu0 0.0
      %2087 = vmatpush1.xpose.msra.mxu0 0.0
      %2088 = vmatprep.subr.mxu0 0.0
      %2089 = vmatpush1.xpose.msra.mxu0 0.0
      %2090 = vmatprep.subr.mxu0 0.0
      %2091 = vmatpush1.xpose.msra.mxu0 0.0
      %2092 = vmatprep.subr.mxu0 0.0
      %2093 = vmatpush1.xpose.msra.mxu0 0.0
      %2094 = vmatprep.subr.mxu0 0.0
      %2095 = vmatpush1.xpose.msra.mxu0 0.0
      %2096 = vmatprep.subr.mxu0 0.0
      %2097 = vmatpush1.xpose.msra.mxu0 0.0
      %2098 = vmatprep.subr.mxu0 0.0
      %2099 = vmatpush1.xpose.msra.mxu0 0.0
      %2100 = vmatprep.subr.mxu0 0.0
      %2101 = vmatpush1.xpose.msra.mxu0 0.0
      %2102 = vmatprep.subr.mxu0 0.0
      %2103 = vmatpush1.xpose.msra.mxu0 %v2070
      %2104 = vmatprep.subr.mxu0 0.0
      %2105 = vmatpush2.xpose.msra.mxu0 0.0
      %2106 = vmatprep.subr.mxu0 0.0
      %2107 = vmatpush2.xpose.msra.mxu0 0.0
      %2108 = vmatprep.subr.mxu0 0.0
      %2109 = vmatpush2.xpose.msra.mxu0 0.0
      %2110 = vmatprep.subr.mxu0 0.0
      %2111 = vmatpush2.xpose.msra.mxu0 0.0
      %2112 = vmatprep.subr.mxu0 0.0
      %2113 = vmatpush2.xpose.msra.mxu0 0.0
      %2114 = vmatprep.subr.mxu0 0.0
      %2115 = vmatpush2.xpose.msra.mxu0 0.0
      %2116 = vmatprep.subr.mxu0 0.0
      %2117 = vmatpush2.xpose.msra.mxu0 0.0
      %2118 = vmatprep.subr.mxu0 0.0
      %2119 = vmatpush2.xpose.msra.mxu0 0.0
      %2120 = vmatprep.subr.mxu0 0.0
      %2121 = vmatpush2.xpose.msra.mxu0 0.0
      %2122 = vmatprep.subr.mxu0 0.0
      %2123 = vmatpush2.xpose.msra.mxu0 0.0
      %2124 = vmatprep.subr.mxu0 0.0
      %2125 = vmatpush2.xpose.msra.mxu0 0.0
      %2126 = vmatprep.subr.mxu0 0.0
      %2127 = vmatpush2.xpose.msra.mxu0 0.0
      %2128 = vmatprep.subr.mxu0 0.0
      %2129 = vmatpush2.xpose.msra.mxu0 0.0
      %2130 = vmatprep.subr.mxu0 0.0
      %2131 = vmatpush2.xpose.msra.mxu0 0.0
      %2132 = vmatprep.subr.mxu0 0.0
      %2133 = vmatpush2.xpose.msra.mxu0 0.0
      %2134 = vmatprep.subr.mxu0 0.0
      %2135 = vmatpush2.xpose.msra.mxu0 0.0
      %2136 = vmatprep.mubr.f32.mxu0 0.0
      %2137 = vmatmul.mubr.f32.gmra.mxu0 %v2068
      %v2138 = vpop.f32.mrf.mxu0
      %v2139 = vadd.f32 %v1898, %v2138
      %v2140 = vpop.f32.mrf.mxu0
      %2141 = vdwg.mxu0
      %v2142 = vsel %vm942, %v2139, -inf
      %2143 = vmax.xlane.f32.xlu0 %v2142
      %v2144 = vpop.xlane.xlu0 %2143
      %v2145 = vsub.f32 %v2139, %v2144
      %v2146 = vmul.f32 %v2145, 1.442695
      %v2147 = vpow.pop %v2146
      %v2148 = vsel %vm942, %v2147, 0.0
      %2149 = vadd.xlane.f32.xlu0 %v2148
      %v2150 = vpop.xlane.xlu0 %2149
      %v2151 = vrcp.pop %v2150
      %v2152 = vmul.f32 %v2147, %v2151
      %2153 = vrot.lane.b32.xlu0 %v924, 56
      %v2154 = vpop.permute.xlu0 %2153
      %v2157 = vsel %vm942, %v2152, 0
      %2159 = vmatprep.subr.mxu0 0.0
      %2160 = vmatpush1.msra.mxu0 0.0
      %2161 = vmatprep.subr.mxu0 0.0
      %2162 = vmatpush1.msra.mxu0 0.0
      %2163 = vmatprep.subr.mxu0 0.0
      %2164 = vmatpush1.msra.mxu0 0.0
      %2165 = vmatprep.subr.mxu0 0.0
      %2166 = vmatpush1.msra.mxu0 0.0
      %2167 = vmatprep.subr.mxu0 0.0
      %2168 = vmatpush1.msra.mxu0 0.0
      %2169 = vmatprep.subr.mxu0 0.0
      %2170 = vmatpush1.msra.mxu0 0.0
      %2171 = vmatprep.subr.mxu0 0.0
      %2172 = vmatpush1.msra.mxu0 0.0
      %2173 = vmatprep.subr.mxu0 0.0
      %2174 = vmatpush1.msra.mxu0 0.0
      %2175 = vmatprep.subr.mxu0 0.0
      %2176 = vmatpush1.msra.mxu0 0.0
      %2177 = vmatprep.subr.mxu0 0.0
      %2178 = vmatpush1.msra.mxu0 0.0
      %2179 = vmatprep.subr.mxu0 0.0
      %2180 = vmatpush1.msra.mxu0 0.0
      %2181 = vmatprep.subr.mxu0 0.0
      %2182 = vmatpush1.msra.mxu0 0.0
      %2183 = vmatprep.subr.mxu0 0.0
      %2184 = vmatpush1.msra.mxu0 0.0
      %2185 = vmatprep.subr.mxu0 0.0
      %2186 = vmatpush1.msra.mxu0 0.0
      %2187 = vmatprep.subr.mxu0 0.0
      %2188 = vmatpush1.msra.mxu0 0.0
      %2189 = vmatprep.subr.mxu0 0.0
      %2190 = vmatpush1.msra.mxu0 %v2154
      %2191 = vmatprep.subr.mxu0 0.0
      %2192 = vmatpush2.msra.mxu0 0.0
      %2193 = vmatprep.subr.mxu0 0.0
      %2194 = vmatpush2.msra.mxu0 0.0
      %2195 = vmatprep.subr.mxu0 0.0
      %2196 = vmatpush2.msra.mxu0 0.0
      %2197 = vmatprep.subr.mxu0 0.0
      %2198 = vmatpush2.msra.mxu0 0.0
      %2199 = vmatprep.subr.mxu0 0.0
      %2200 = vmatpush2.msra.mxu0 0.0
      %2201 = vmatprep.subr.mxu0 0.0
      %2202 = vmatpush2.msra.mxu0 0.0
      %2203 = vmatprep.subr.mxu0 0.0
      %2204 = vmatpush2.msra.mxu0 0.0
      %2205 = vmatprep.subr.mxu0 0.0
      %2206 = vmatpush2.msra.mxu0 0.0
      %2207 = vmatprep.subr.mxu0 0.0
      %2208 = vmatpush2.msra.mxu0 0.0
      %2209 = vmatprep.subr.mxu0 0.0
      %2210 = vmatpush2.msra.mxu0 0.0
      %2211 = vmatprep.subr.mxu0 0.0
      %2212 = vmatpush2.msra.mxu0 0.0
      %2213 = vmatprep.subr.mxu0 0.0
      %2214 = vmatpush2.msra.mxu0 0.0
      %2215 = vmatprep.subr.mxu0 0.0
      %2216 = vmatpush2.msra.mxu0 0.0
      %2217 = vmatprep.subr.mxu0 0.0
      %2218 = vmatpush2.msra.mxu0 0.0
      %2219 = vmatprep.subr.mxu0 0.0
      %2220 = vmatpush2.msra.mxu0 0.0
      %2221 = vmatprep.subr.mxu0 0.0
      %2222 = vmatpush2.msra.mxu0 0.0
      %2223 = vmatprep.mubr.f32.mxu0 0.0
      %2224 = vmatmul.mubr.f32.gmra.mxu0 %v2157
      %v2225 = vpop.f32.mrf.mxu0
      %v2226 = vadd.f32 0.0, %v2225
      %v2227 = vpop.f32.mrf.mxu0
      %2228 = vdwg.mxu0
      %v2230 = vsel %vm942, %v2226, 0
      %2232 = vmatprep.subr.mxu0 0.0
      %2233 = vmatpush1.msra.mxu0 0.0
      %2234 = vmatprep.subr.mxu0 0.0
      %2235 = vmatpush1.msra.mxu0 0.0
      %2236 = vmatprep.subr.mxu0 0.0
      %2237 = vmatpush1.msra.mxu0 0.0
      %2238 = vmatprep.subr.mxu0 0.0
      %2239 = vmatpush1.msra.mxu0 0.0
      %2240 = vmatprep.subr.mxu0 0.0
      %2241 = vmatpush1.msra.mxu0 0.0
      %2242 = vmatprep.subr.mxu0 0.0
      %2243 = vmatpush1.msra.mxu0 0.0
      %2244 = vmatprep.subr.mxu0 0.0
      %2245 = vmatpush1.msra.mxu0 0.0
      %2246 = vmatprep.subr.mxu0 0.0
      %2247 = vmatpush1.msra.mxu0 0.0
      %2248 = vmatprep.subr.mxu0 0.0
      %2249 = vmatpush1.msra.mxu0 0.0
      %2250 = vmatprep.subr.mxu0 0.0
      %2251 = vmatpush1.msra.mxu0 0.0
      %2252 = vmatprep.subr.mxu0 0.0
      %2253 = vmatpush1.msra.mxu0 0.0
      %2254 = vmatprep.subr.mxu0 0.0
      %2255 = vmatpush1.msra.mxu0 0.0
      %2256 = vmatprep.subr.mxu0 0.0
      %2257 = vmatpush1.msra.mxu0 0.0
      %2258 = vmatprep.subr.mxu0 0.0
      %2259 = vmatpush1.msra.mxu0 0.0
      %2260 = vmatprep.subr.mxu0 0.0
      %2261 = vmatpush1.msra.mxu0 0.0
      %2262 = vmatprep.subr.mxu0 0.0
      %2263 = vmatpush1.msra.mxu0 %v931
      %2264 = vmatprep.subr.mxu0 0.0
      %2265 = vmatpush2.msra.mxu0 0.0
      %2266 = vmatprep.subr.mxu0 0.0
      %2267 = vmatpush2.msra.mxu0 0.0
      %2268 = vmatprep.subr.mxu0 0.0
      %2269 = vmatpush2.msra.mxu0 0.0
      %2270 = vmatprep.subr.mxu0 0.0
      %2271 = vmatpush2.msra.mxu0 0.0
      %2272 = vmatprep.subr.mxu0 0.0
      %2273 = vmatpush2.msra.mxu0 0.0
      %2274 = vmatprep.subr.mxu0 0.0
      %2275 = vmatpush2.msra.mxu0 0.0
      %2276 = vmatprep.subr.mxu0 0.0
      %2277 = vmatpush2.msra.mxu0 0.0
      %2278 = vmatprep.subr.mxu0 0.0
      %2279 = vmatpush2.msra.mxu0 0.0
      %2280 = vmatprep.subr.mxu0 0.0
      %2281 = vmatpush2.msra.mxu0 0.0
      %2282 = vmatprep.subr.mxu0 0.0
      %2283 = vmatpush2.msra.mxu0 0.0
      %2284 = vmatprep.subr.mxu0 0.0
      %2285 = vmatpush2.msra.mxu0 0.0
      %2286 = vmatprep.subr.mxu0 0.0
      %2287 = vmatpush2.msra.mxu0 0.0
      %2288 = vmatprep.subr.mxu0 0.0
      %2289 = vmatpush2.msra.mxu0 0.0
      %2290 = vmatprep.subr.mxu0 0.0
      %2291 = vmatpush2.msra.mxu0 0.0
      %2292 = vmatprep.subr.mxu0 0.0
      %2293 = vmatpush2.msra.mxu0 0.0
      %2294 = vmatprep.subr.mxu0 0.0
      %2295 = vmatpush2.msra.mxu0 0.0
      %2296 = vmatprep.mubr.f32.mxu0 0.0
      %2297 = vmatmul.mubr.f32.gmra.mxu0 %v2230
      %v2298 = vpop.f32.mrf.mxu0
      %v2299 = vadd.f32 0.0, %v2298
      %v2300 = vpop.f32.mrf.mxu0
      %2301 = vdwg.mxu0
      %v2303 = vsel %vm942, %v2061, 0
      %2305 = vmatprep.subr.mxu0 0.0
      %2306 = vmatpush1.msra.mxu0 0.0
      %2307 = vmatprep.subr.mxu0 0.0
      %2308 = vmatpush1.msra.mxu0 0.0
      %2309 = vmatprep.subr.mxu0 0.0
      %2310 = vmatpush1.msra.mxu0 0.0
      %2311 = vmatprep.subr.mxu0 0.0
      %2312 = vmatpush1.msra.mxu0 0.0
      %2313 = vmatprep.subr.mxu0 0.0
      %2314 = vmatpush1.msra.mxu0 0.0
      %2315 = vmatprep.subr.mxu0 0.0
      %2316 = vmatpush1.msra.mxu0 0.0
      %2317 = vmatprep.subr.mxu0 0.0
      %2318 = vmatpush1.msra.mxu0 0.0
      %2319 = vmatprep.subr.mxu0 0.0
      %2320 = vmatpush1.msra.mxu0 0.0
      %2321 = vmatprep.subr.mxu0 0.0
      %2322 = vmatpush1.msra.mxu0 0.0
      %2323 = vmatprep.subr.mxu0 0.0
      %2324 = vmatpush1.msra.mxu0 0.0
      %2325 = vmatprep.subr.mxu0 0.0
      %2326 = vmatpush1.msra.mxu0 0.0
      %2327 = vmatprep.subr.mxu0 0.0
      %2328 = vmatpush1.msra.mxu0 0.0
      %2329 = vmatprep.subr.mxu0 0.0
      %2330 = vmatpush1.msra.mxu0 0.0
      %2331 = vmatprep.subr.mxu0 0.0
      %2332 = vmatpush1.msra.mxu0 0.0
      %2333 = vmatprep.subr.mxu0 0.0
      %2334 = vmatpush1.msra.mxu0 0.0
      %2335 = vmatprep.subr.mxu0 0.0
      %2336 = vmatpush1.msra.mxu0 %v930
      %2337 = vmatprep.subr.mxu0 0.0
      %2338 = vmatpush2.msra.mxu0 0.0
      %2339 = vmatprep.subr.mxu0 0.0
      %2340 = vmatpush2.msra.mxu0 0.0
      %2341 = vmatprep.subr.mxu0 0.0
      %2342 = vmatpush2.msra.mxu0 0.0
      %2343 = vmatprep.subr.mxu0 0.0
      %2344 = vmatpush2.msra.mxu0 0.0
      %2345 = vmatprep.subr.mxu0 0.0
      %2346 = vmatpush2.msra.mxu0 0.0
      %2347 = vmatprep.subr.mxu0 0.0
      %2348 = vmatpush2.msra.mxu0 0.0
      %2349 = vmatprep.subr.mxu0 0.0
      %2350 = vmatpush2.msra.mxu0 0.0
      %2351 = vmatprep.subr.mxu0 0.0
      %2352 = vmatpush2.msra.mxu0 0.0
      %2353 = vmatprep.subr.mxu0 0.0
      %2354 = vmatpush2.msra.mxu0 0.0
      %2355 = vmatprep.subr.mxu0 0.0
      %2356 = vmatpush2.msra.mxu0 0.0
      %2357 = vmatprep.subr.mxu0 0.0
      %2358 = vmatpush2.msra.mxu0 0.0
      %2359 = vmatprep.subr.mxu0 0.0
      %2360 = vmatpush2.msra.mxu0 0.0
      %2361 = vmatprep.subr.mxu0 0.0
      %2362 = vmatpush2.msra.mxu0 0.0
      %2363 = vmatprep.subr.mxu0 0.0
      %2364 = vmatpush2.msra.mxu0 0.0
      %2365 = vmatprep.subr.mxu0 0.0
      %2366 = vmatpush2.msra.mxu0 0.0
      %2367 = vmatprep.subr.mxu0 0.0
      %2368 = vmatpush2.msra.mxu0 0.0
      %2369 = vmatprep.mubr.f32.mxu0 0.0
      %2370 = vmatmul.mubr.f32.gmra.mxu0 %v2303
      %v2371 = vpop.f32.mrf.mxu0
      %v2372 = vadd.f32 %v2299, %v2371
      %v2373 = vpop.f32.mrf.mxu0
      %2374 = vdwg.mxu0
      %2375 = vrot.lane.b32.xlu0 %v928, 112
      %v2376 = vpop.permute.xlu0 %2375
      %2377 = vrot.lane.b32.xlu0 %v924, 80
      %v2378 = vpop.permute.xlu0 %2377
      %v2379 = vsel %vm942, %v2376, 0
      %v2381 = vsel %vm942, %v2378, 0
      %2383 = vmatprep.subr.mxu0 0.0
      %2384 = vmatpush1.xpose.msra.mxu0 0.0
      %2385 = vmatprep.subr.mxu0 0.0
      %2386 = vmatpush1.xpose.msra.mxu0 0.0
      %2387 = vmatprep.subr.mxu0 0.0
      %2388 = vmatpush1.xpose.msra.mxu0 0.0
      %2389 = vmatprep.subr.mxu0 0.0
      %2390 = vmatpush1.xpose.msra.mxu0 0.0
      %2391 = vmatprep.subr.mxu0 0.0
      %2392 = vmatpush1.xpose.msra.mxu0 0.0
      %2393 = vmatprep.subr.mxu0 0.0
      %2394 = vmatpush1.xpose.msra.mxu0 0.0
      %2395 = vmatprep.subr.mxu0 0.0
      %2396 = vmatpush1.xpose.msra.mxu0 0.0
      %2397 = vmatprep.subr.mxu0 0.0
      %2398 = vmatpush1.xpose.msra.mxu0 0.0
      %2399 = vmatprep.subr.mxu0 0.0
      %2400 = vmatpush1.xpose.msra.mxu0 0.0
      %2401 = vmatprep.subr.mxu0 0.0
      %2402 = vmatpush1.xpose.msra.mxu0 0.0
      %2403 = vmatprep.subr.mxu0 0.0
      %2404 = vmatpush1.xpose.msra.mxu0 0.0
      %2405 = vmatprep.subr.mxu0 0.0
      %2406 = vmatpush1.xpose.msra.mxu0 0.0
      %2407 = vmatprep.subr.mxu0 0.0
      %2408 = vmatpush1.xpose.msra.mxu0 0.0
      %2409 = vmatprep.subr.mxu0 0.0
      %2410 = vmatpush1.xpose.msra.mxu0 0.0
      %2411 = vmatprep.subr.mxu0 0.0
      %2412 = vmatpush1.xpose.msra.mxu0 0.0
      %2413 = vmatprep.subr.mxu0 0.0
      %2414 = vmatpush1.xpose.msra.mxu0 %v2381
      %2415 = vmatprep.subr.mxu0 0.0
      %2416 = vmatpush2.xpose.msra.mxu0 0.0
      %2417 = vmatprep.subr.mxu0 0.0
      %2418 = vmatpush2.xpose.msra.mxu0 0.0
      %2419 = vmatprep.subr.mxu0 0.0
      %2420 = vmatpush2.xpose.msra.mxu0 0.0
      %2421 = vmatprep.subr.mxu0 0.0
      %2422 = vmatpush2.xpose.msra.mxu0 0.0
      %2423 = vmatprep.subr.mxu0 0.0
      %2424 = vmatpush2.xpose.msra.mxu0 0.0
      %2425 = vmatprep.subr.mxu0 0.0
      %2426 = vmatpush2.xpose.msra.mxu0 0.0
      %2427 = vmatprep.subr.mxu0 0.0
      %2428 = vmatpush2.xpose.msra.mxu0 0.0
      %2429 = vmatprep.subr.mxu0 0.0
      %2430 = vmatpush2.xpose.msra.mxu0 0.0
      %2431 = vmatprep.subr.mxu0 0.0
      %2432 = vmatpush2.xpose.msra.mxu0 0.0
      %2433 = vmatprep.subr.mxu0 0.0
      %2434 = vmatpush2.xpose.msra.mxu0 0.0
      %2435 = vmatprep.subr.mxu0 0.0
      %2436 = vmatpush2.xpose.msra.mxu0 0.0
      %2437 = vmatprep.subr.mxu0 0.0
      %2438 = vmatpush2.xpose.msra.mxu0 0.0
      %2439 = vmatprep.subr.mxu0 0.0
      %2440 = vmatpush2.xpose.msra.mxu0 0.0
      %2441 = vmatprep.subr.mxu0 0.0
      %2442 = vmatpush2.xpose.msra.mxu0 0.0
      %2443 = vmatprep.subr.mxu0 0.0
      %2444 = vmatpush2.xpose.msra.mxu0 0.0
      %2445 = vmatprep.subr.mxu0 0.0
      %2446 = vmatpush2.xpose.msra.mxu0 0.0
      %2447 = vmatprep.mubr.f32.mxu0 0.0
      %2448 = vmatmul.mubr.f32.gmra.mxu0 %v2379
      %v2449 = vpop.f32.mrf.mxu0
      %v2450 = vadd.f32 %v1898, %v2449
      %v2451 = vpop.f32.mrf.mxu0
      %2452 = vdwg.mxu0
      %v2453 = vsel %vm942, %v2450, -inf
      %2454 = vmax.xlane.f32.xlu0 %v2453
      %v2455 = vpop.xlane.xlu0 %2454
      %v2456 = vsub.f32 %v2450, %v2455
      %v2457 = vmul.f32 %v2456, 1.442695
      %v2458 = vpow.pop %v2457
      %v2459 = vsel %vm942, %v2458, 0.0
      %2460 = vadd.xlane.f32.xlu0 %v2459
      %v2461 = vpop.xlane.xlu0 %2460
      %v2462 = vrcp.pop %v2461
      %v2463 = vmul.f32 %v2458, %v2462
      %2464 = vrot.lane.b32.xlu0 %v924, 48
      %v2465 = vpop.permute.xlu0 %2464
      %v2468 = vsel %vm942, %v2463, 0
      %2470 = vmatprep.subr.mxu0 0.0
      %2471 = vmatpush1.msra.mxu0 0.0
      %2472 = vmatprep.subr.mxu0 0.0
      %2473 = vmatpush1.msra.mxu0 0.0
      %2474 = vmatprep.subr.mxu0 0.0
      %2475 = vmatpush1.msra.mxu0 0.0
      %2476 = vmatprep.subr.mxu0 0.0
      %2477 = vmatpush1.msra.mxu0 0.0
      %2478 = vmatprep.subr.mxu0 0.0
      %2479 = vmatpush1.msra.mxu0 0.0
      %2480 = vmatprep.subr.mxu0 0.0
      %2481 = vmatpush1.msra.mxu0 0.0
      %2482 = vmatprep.subr.mxu0 0.0
      %2483 = vmatpush1.msra.mxu0 0.0
      %2484 = vmatprep.subr.mxu0 0.0
      %2485 = vmatpush1.msra.mxu0 0.0
      %2486 = vmatprep.subr.mxu0 0.0
      %2487 = vmatpush1.msra.mxu0 0.0
      %2488 = vmatprep.subr.mxu0 0.0
      %2489 = vmatpush1.msra.mxu0 0.0
      %2490 = vmatprep.subr.mxu0 0.0
      %2491 = vmatpush1.msra.mxu0 0.0
      %2492 = vmatprep.subr.mxu0 0.0
      %2493 = vmatpush1.msra.mxu0 0.0
      %2494 = vmatprep.subr.mxu0 0.0
      %2495 = vmatpush1.msra.mxu0 0.0
      %2496 = vmatprep.subr.mxu0 0.0
      %2497 = vmatpush1.msra.mxu0 0.0
      %2498 = vmatprep.subr.mxu0 0.0
      %2499 = vmatpush1.msra.mxu0 0.0
      %2500 = vmatprep.subr.mxu0 0.0
      %2501 = vmatpush1.msra.mxu0 %v2465
      %2502 = vmatprep.subr.mxu0 0.0
      %2503 = vmatpush2.msra.mxu0 0.0
      %2504 = vmatprep.subr.mxu0 0.0
      %2505 = vmatpush2.msra.mxu0 0.0
      %2506 = vmatprep.subr.mxu0 0.0
      %2507 = vmatpush2.msra.mxu0 0.0
      %2508 = vmatprep.subr.mxu0 0.0
      %2509 = vmatpush2.msra.mxu0 0.0
      %2510 = vmatprep.subr.mxu0 0.0
      %2511 = vmatpush2.msra.mxu0 0.0
      %2512 = vmatprep.subr.mxu0 0.0
      %2513 = vmatpush2.msra.mxu0 0.0
      %2514 = vmatprep.subr.mxu0 0.0
      %2515 = vmatpush2.msra.mxu0 0.0
      %2516 = vmatprep.subr.mxu0 0.0
      %2517 = vmatpush2.msra.mxu0 0.0
      %2518 = vmatprep.subr.mxu0 0.0
      %2519 = vmatpush2.msra.mxu0 0.0
      %2520 = vmatprep.subr.mxu0 0.0
      %2521 = vmatpush2.msra.mxu0 0.0
      %2522 = vmatprep.subr.mxu0 0.0
      %2523 = vmatpush2.msra.mxu0 0.0
      %2524 = vmatprep.subr.mxu0 0.0
      %2525 = vmatpush2.msra.mxu0 0.0
      %2526 = vmatprep.subr.mxu0 0.0
      %2527 = vmatpush2.msra.mxu0 0.0
      %2528 = vmatprep.subr.mxu0 0.0
      %2529 = vmatpush2.msra.mxu0 0.0
      %2530 = vmatprep.subr.mxu0 0.0
      %2531 = vmatpush2.msra.mxu0 0.0
      %2532 = vmatprep.subr.mxu0 0.0
      %2533 = vmatpush2.msra.mxu0 0.0
      %2534 = vmatprep.mubr.f32.mxu0 0.0
      %2535 = vmatmul.mubr.f32.gmra.mxu0 %v2468
      %v2536 = vpop.f32.mrf.mxu0
      %v2537 = vadd.f32 0.0, %v2536
      %v2538 = vpop.f32.mrf.mxu0
      %2539 = vdwg.mxu0
      %v2541 = vsel %vm942, %v2537, 0
      %2543 = vmatprep.subr.mxu0 0.0
      %2544 = vmatpush1.msra.mxu0 0.0
      %2545 = vmatprep.subr.mxu0 0.0
      %2546 = vmatpush1.msra.mxu0 0.0
      %2547 = vmatprep.subr.mxu0 0.0
      %2548 = vmatpush1.msra.mxu0 0.0
      %2549 = vmatprep.subr.mxu0 0.0
      %2550 = vmatpush1.msra.mxu0 0.0
      %2551 = vmatprep.subr.mxu0 0.0
      %2552 = vmatpush1.msra.mxu0 0.0
      %2553 = vmatprep.subr.mxu0 0.0
      %2554 = vmatpush1.msra.mxu0 0.0
      %2555 = vmatprep.subr.mxu0 0.0
      %2556 = vmatpush1.msra.mxu0 0.0
      %2557 = vmatprep.subr.mxu0 0.0
      %2558 = vmatpush1.msra.mxu0 0.0
      %2559 = vmatprep.subr.mxu0 0.0
      %2560 = vmatpush1.msra.mxu0 0.0
      %2561 = vmatprep.subr.mxu0 0.0
      %2562 = vmatpush1.msra.mxu0 0.0
      %2563 = vmatprep.subr.mxu0 0.0
      %2564 = vmatpush1.msra.mxu0 0.0
      %2565 = vmatprep.subr.mxu0 0.0
      %2566 = vmatpush1.msra.mxu0 0.0
      %2567 = vmatprep.subr.mxu0 0.0
      %2568 = vmatpush1.msra.mxu0 0.0
      %2569 = vmatprep.subr.mxu0 0.0
      %2570 = vmatpush1.msra.mxu0 0.0
      %2571 = vmatprep.subr.mxu0 0.0
      %2572 = vmatpush1.msra.mxu0 0.0
      %2573 = vmatprep.subr.mxu0 0.0
      %2574 = vmatpush1.msra.mxu0 %v932
      %2575 = vmatprep.subr.mxu0 0.0
      %2576 = vmatpush2.msra.mxu0 0.0
      %2577 = vmatprep.subr.mxu0 0.0
      %2578 = vmatpush2.msra.mxu0 0.0
      %2579 = vmatprep.subr.mxu0 0.0
      %2580 = vmatpush2.msra.mxu0 0.0
      %2581 = vmatprep.subr.mxu0 0.0
      %2582 = vmatpush2.msra.mxu0 0.0
      %2583 = vmatprep.subr.mxu0 0.0
      %2584 = vmatpush2.msra.mxu0 0.0
      %2585 = vmatprep.subr.mxu0 0.0
      %2586 = vmatpush2.msra.mxu0 0.0
      %2587 = vmatprep.subr.mxu0 0.0
      %2588 = vmatpush2.msra.mxu0 0.0
      %2589 = vmatprep.subr.mxu0 0.0
      %2590 = vmatpush2.msra.mxu0 0.0
      %2591 = vmatprep.subr.mxu0 0.0
      %2592 = vmatpush2.msra.mxu0 0.0
      %2593 = vmatprep.subr.mxu0 0.0
      %2594 = vmatpush2.msra.mxu0 0.0
      %2595 = vmatprep.subr.mxu0 0.0
      %2596 = vmatpush2.msra.mxu0 0.0
      %2597 = vmatprep.subr.mxu0 0.0
      %2598 = vmatpush2.msra.mxu0 0.0
      %2599 = vmatprep.subr.mxu0 0.0
      %2600 = vmatpush2.msra.mxu0 0.0
      %2601 = vmatprep.subr.mxu0 0.0
      %2602 = vmatpush2.msra.mxu0 0.0
      %2603 = vmatprep.subr.mxu0 0.0
      %2604 = vmatpush2.msra.mxu0 0.0
      %2605 = vmatprep.subr.mxu0 0.0
      %2606 = vmatpush2.msra.mxu0 0.0
      %2607 = vmatprep.mubr.f32.mxu0 0.0
      %2608 = vmatmul.mubr.f32.gmra.mxu0 %v2541
      %v2609 = vpop.f32.mrf.mxu0
      %v2610 = vadd.f32 0.0, %v2609
      %v2611 = vpop.f32.mrf.mxu0
      %2612 = vdwg.mxu0
      %v2613 = vadd.f32 %v2372, %v2610
      %2614 = vrot.lane.b32.xlu0 %v928, 104
      %v2615 = vpop.permute.xlu0 %2614
      %2616 = vrot.lane.b32.xlu0 %v924, 72
      %v2617 = vpop.permute.xlu0 %2616
      %v2618 = vsel %vm942, %v2615, 0
      %v2620 = vsel %vm942, %v2617, 0
      %2622 = vmatprep.subr.mxu0 0.0
      %2623 = vmatpush1.xpose.msra.mxu0 0.0
      %2624 = vmatprep.subr.mxu0 0.0
      %2625 = vmatpush1.xpose.msra.mxu0 0.0
      %2626 = vmatprep.subr.mxu0 0.0
      %2627 = vmatpush1.xpose.msra.mxu0 0.0
      %2628 = vmatprep.subr.mxu0 0.0
      %2629 = vmatpush1.xpose.msra.mxu0 0.0
      %2630 = vmatprep.subr.mxu0 0.0
      %2631 = vmatpush1.xpose.msra.mxu0 0.0
      %2632 = vmatprep.subr.mxu0 0.0
      %2633 = vmatpush1.xpose.msra.mxu0 0.0
      %2634 = vmatprep.subr.mxu0 0.0
      %2635 = vmatpush1.xpose.msra.mxu0 0.0
      %2636 = vmatprep.subr.mxu0 0.0
      %2637 = vmatpush1.xpose.msra.mxu0 0.0
      %2638 = vmatprep.subr.mxu0 0.0
      %2639 = vmatpush1.xpose.msra.mxu0 0.0
      %2640 = vmatprep.subr.mxu0 0.0
      %2641 = vmatpush1.xpose.msra.mxu0 0.0
      %2642 = vmatprep.subr.mxu0 0.0
      %2643 = vmatpush1.xpose.msra.mxu0 0.0
      %2644 = vmatprep.subr.mxu0 0.0
      %2645 = vmatpush1.xpose.msra.mxu0 0.0
      %2646 = vmatprep.subr.mxu0 0.0
      %2647 = vmatpush1.xpose.msra.mxu0 0.0
      %2648 = vmatprep.subr.mxu0 0.0
      %2649 = vmatpush1.xpose.msra.mxu0 0.0
      %2650 = vmatprep.subr.mxu0 0.0
      %2651 = vmatpush1.xpose.msra.mxu0 0.0
      %2652 = vmatprep.subr.mxu0 0.0
      %2653 = vmatpush1.xpose.msra.mxu0 %v2620
      %2654 = vmatprep.subr.mxu0 0.0
      %2655 = vmatpush2.xpose.msra.mxu0 0.0
      %2656 = vmatprep.subr.mxu0 0.0
      %2657 = vmatpush2.xpose.msra.mxu0 0.0
      %2658 = vmatprep.subr.mxu0 0.0
      %2659 = vmatpush2.xpose.msra.mxu0 0.0
      %2660 = vmatprep.subr.mxu0 0.0
      %2661 = vmatpush2.xpose.msra.mxu0 0.0
      %2662 = vmatprep.subr.mxu0 0.0
      %2663 = vmatpush2.xpose.msra.mxu0 0.0
      %2664 = vmatprep.subr.mxu0 0.0
      %2665 = vmatpush2.xpose.msra.mxu0 0.0
      %2666 = vmatprep.subr.mxu0 0.0
      %2667 = vmatpush2.xpose.msra.mxu0 0.0
      %2668 = vmatprep.subr.mxu0 0.0
      %2669 = vmatpush2.xpose.msra.mxu0 0.0
      %2670 = vmatprep.subr.mxu0 0.0
      %2671 = vmatpush2.xpose.msra.mxu0 0.0
      %2672 = vmatprep.subr.mxu0 0.0
      %2673 = vmatpush2.xpose.msra.mxu0 0.0
      %2674 = vmatprep.subr.mxu0 0.0
      %2675 = vmatpush2.xpose.msra.mxu0 0.0
      %2676 = vmatprep.subr.mxu0 0.0
      %2677 = vmatpush2.xpose.msra.mxu0 0.0
      %2678 = vmatprep.subr.mxu0 0.0
      %2679 = vmatpush2.xpose.msra.mxu0 0.0
      %2680 = vmatprep.subr.mxu0 0.0
      %2681 = vmatpush2.xpose.msra.mxu0 0.0
      %2682 = vmatprep.subr.mxu0 0.0
      %2683 = vmatpush2.xpose.msra.mxu0 0.0
      %2684 = vmatprep.subr.mxu0 0.0
      %2685 = vmatpush2.xpose.msra.mxu0 0.0
      %2686 = vmatprep.mubr.f32.mxu0 0.0
      %2687 = vmatmul.mubr.f32.gmra.mxu0 %v2618
      %v2688 = vpop.f32.mrf.mxu0
      %v2689 = vadd.f32 %v1898, %v2688
      %v2690 = vpop.f32.mrf.mxu0
      %2691 = vdwg.mxu0
      %v2692 = vsel %vm942, %v2689, -inf
      %2693 = vmax.xlane.f32.xlu0 %v2692
      %v2694 = vpop.xlane.xlu0 %2693
      %v2695 = vsub.f32 %v2689, %v2694
      %v2696 = vmul.f32 %v2695, 1.442695
      %v2697 = vpow.pop %v2696
      %v2698 = vsel %vm942, %v2697, 0.0
      %2699 = vadd.xlane.f32.xlu0 %v2698
      %v2700 = vpop.xlane.xlu0 %2699
      %v2701 = vrcp.pop %v2700
      %v2702 = vmul.f32 %v2697, %v2701
      %2703 = vrot.lane.b32.xlu0 %v924, 40
      %v2704 = vpop.permute.xlu0 %2703
      %v2707 = vsel %vm942, %v2702, 0
      %2709 = vmatprep.subr.mxu0 0.0
      %2710 = vmatpush1.msra.mxu0 0.0
      %2711 = vmatprep.subr.mxu0 0.0
      %2712 = vmatpush1.msra.mxu0 0.0
      %2713 = vmatprep.subr.mxu0 0.0
      %2714 = vmatpush1.msra.mxu0 0.0
      %2715 = vmatprep.subr.mxu0 0.0
      %2716 = vmatpush1.msra.mxu0 0.0
      %2717 = vmatprep.subr.mxu0 0.0
      %2718 = vmatpush1.msra.mxu0 0.0
      %2719 = vmatprep.subr.mxu0 0.0
      %2720 = vmatpush1.msra.mxu0 0.0
      %2721 = vmatprep.subr.mxu0 0.0
      %2722 = vmatpush1.msra.mxu0 0.0
      %2723 = vmatprep.subr.mxu0 0.0
      %2724 = vmatpush1.msra.mxu0 0.0
      %2725 = vmatprep.subr.mxu0 0.0
      %2726 = vmatpush1.msra.mxu0 0.0
      %2727 = vmatprep.subr.mxu0 0.0
      %2728 = vmatpush1.msra.mxu0 0.0
      %2729 = vmatprep.subr.mxu0 0.0
      %2730 = vmatpush1.msra.mxu0 0.0
      %2731 = vmatprep.subr.mxu0 0.0
      %2732 = vmatpush1.msra.mxu0 0.0
      %2733 = vmatprep.subr.mxu0 0.0
      %2734 = vmatpush1.msra.mxu0 0.0
      %2735 = vmatprep.subr.mxu0 0.0
      %2736 = vmatpush1.msra.mxu0 0.0
      %2737 = vmatprep.subr.mxu0 0.0
      %2738 = vmatpush1.msra.mxu0 0.0
      %2739 = vmatprep.subr.mxu0 0.0
      %2740 = vmatpush1.msra.mxu0 %v2704
      %2741 = vmatprep.subr.mxu0 0.0
      %2742 = vmatpush2.msra.mxu0 0.0
      %2743 = vmatprep.subr.mxu0 0.0
      %2744 = vmatpush2.msra.mxu0 0.0
      %2745 = vmatprep.subr.mxu0 0.0
      %2746 = vmatpush2.msra.mxu0 0.0
      %2747 = vmatprep.subr.mxu0 0.0
      %2748 = vmatpush2.msra.mxu0 0.0
      %2749 = vmatprep.subr.mxu0 0.0
      %2750 = vmatpush2.msra.mxu0 0.0
      %2751 = vmatprep.subr.mxu0 0.0
      %2752 = vmatpush2.msra.mxu0 0.0
      %2753 = vmatprep.subr.mxu0 0.0
      %2754 = vmatpush2.msra.mxu0 0.0
      %2755 = vmatprep.subr.mxu0 0.0
      %2756 = vmatpush2.msra.mxu0 0.0
      %2757 = vmatprep.subr.mxu0 0.0
      %2758 = vmatpush2.msra.mxu0 0.0
      %2759 = vmatprep.subr.mxu0 0.0
      %2760 = vmatpush2.msra.mxu0 0.0
      %2761 = vmatprep.subr.mxu0 0.0
      %2762 = vmatpush2.msra.mxu0 0.0
      %2763 = vmatprep.subr.mxu0 0.0
      %2764 = vmatpush2.msra.mxu0 0.0
      %2765 = vmatprep.subr.mxu0 0.0
      %2766 = vmatpush2.msra.mxu0 0.0
      %2767 = vmatprep.subr.mxu0 0.0
      %2768 = vmatpush2.msra.mxu0 0.0
      %2769 = vmatprep.subr.mxu0 0.0
      %2770 = vmatpush2.msra.mxu0 0.0
      %2771 = vmatprep.subr.mxu0 0.0
      %2772 = vmatpush2.msra.mxu0 0.0
      %2773 = vmatprep.mubr.f32.mxu0 0.0
      %2774 = vmatmul.mubr.f32.gmra.mxu0 %v2707
      %v2775 = vpop.f32.mrf.mxu0
      %v2776 = vadd.f32 0.0, %v2775
      %v2777 = vpop.f32.mrf.mxu0
      %2778 = vdwg.mxu0
      %v2780 = vsel %vm942, %v2776, 0
      %2782 = vmatprep.subr.mxu0 0.0
      %2783 = vmatpush1.msra.mxu0 0.0
      %2784 = vmatprep.subr.mxu0 0.0
      %2785 = vmatpush1.msra.mxu0 0.0
      %2786 = vmatprep.subr.mxu0 0.0
      %2787 = vmatpush1.msra.mxu0 0.0
      %2788 = vmatprep.subr.mxu0 0.0
      %2789 = vmatpush1.msra.mxu0 0.0
      %2790 = vmatprep.subr.mxu0 0.0
      %2791 = vmatpush1.msra.mxu0 0.0
      %2792 = vmatprep.subr.mxu0 0.0
      %2793 = vmatpush1.msra.mxu0 0.0
      %2794 = vmatprep.subr.mxu0 0.0
      %2795 = vmatpush1.msra.mxu0 0.0
      %2796 = vmatprep.subr.mxu0 0.0
      %2797 = vmatpush1.msra.mxu0 0.0
      %2798 = vmatprep.subr.mxu0 0.0
      %2799 = vmatpush1.msra.mxu0 0.0
      %2800 = vmatprep.subr.mxu0 0.0
      %2801 = vmatpush1.msra.mxu0 0.0
      %2802 = vmatprep.subr.mxu0 0.0
      %2803 = vmatpush1.msra.mxu0 0.0
      %2804 = vmatprep.subr.mxu0 0.0
      %2805 = vmatpush1.msra.mxu0 0.0
      %2806 = vmatprep.subr.mxu0 0.0
      %2807 = vmatpush1.msra.mxu0 0.0
      %2808 = vmatprep.subr.mxu0 0.0
      %2809 = vmatpush1.msra.mxu0 0.0
      %2810 = vmatprep.subr.mxu0 0.0
      %2811 = vmatpush1.msra.mxu0 0.0
      %2812 = vmatprep.subr.mxu0 0.0
      %2813 = vmatpush1.msra.mxu0 %v933
      %2814 = vmatprep.subr.mxu0 0.0
      %2815 = vmatpush2.msra.mxu0 0.0
      %2816 = vmatprep.subr.mxu0 0.0
      %2817 = vmatpush2.msra.mxu0 0.0
      %2818 = vmatprep.subr.mxu0 0.0
      %2819 = vmatpush2.msra.mxu0 0.0
      %2820 = vmatprep.subr.mxu0 0.0
      %2821 = vmatpush2.msra.mxu0 0.0
      %2822 = vmatprep.subr.mxu0 0.0
      %2823 = vmatpush2.msra.mxu0 0.0
      %2824 = vmatprep.subr.mxu0 0.0
      %2825 = vmatpush2.msra.mxu0 0.0
      %2826 = vmatprep.subr.mxu0 0.0
      %2827 = vmatpush2.msra.mxu0 0.0
      %2828 = vmatprep.subr.mxu0 0.0
      %2829 = vmatpush2.msra.mxu0 0.0
      %2830 = vmatprep.subr.mxu0 0.0
      %2831 = vmatpush2.msra.mxu0 0.0
      %2832 = vmatprep.subr.mxu0 0.0
      %2833 = vmatpush2.msra.mxu0 0.0
      %2834 = vmatprep.subr.mxu0 0.0
      %2835 = vmatpush2.msra.mxu0 0.0
      %2836 = vmatprep.subr.mxu0 0.0
      %2837 = vmatpush2.msra.mxu0 0.0
      %2838 = vmatprep.subr.mxu0 0.0
      %2839 = vmatpush2.msra.mxu0 0.0
      %2840 = vmatprep.subr.mxu0 0.0
      %2841 = vmatpush2.msra.mxu0 0.0
      %2842 = vmatprep.subr.mxu0 0.0
      %2843 = vmatpush2.msra.mxu0 0.0
      %2844 = vmatprep.subr.mxu0 0.0
      %2845 = vmatpush2.msra.mxu0 0.0
      %2846 = vmatprep.mubr.f32.mxu0 0.0
      %2847 = vmatmul.mubr.f32.gmra.mxu0 %v2780
      %v2848 = vpop.f32.mrf.mxu0
      %v2849 = vadd.f32 0.0, %v2848
      %v2850 = vpop.f32.mrf.mxu0
      %2851 = vdwg.mxu0
      %v2852 = vadd.f32 %v2613, %v2849
      %v2853 = vld [vmem:[%s710] sm:$0x1]
      %v2855 = vlaneseq
      %v2856 = vshrl.u32 %v2855, 7
      %v2857 = vsub.s32 0, %v2856
      %v2858 = vrot.slane %v2853, %v2857
      %v2860 = vadd.f32 %v1893, %v2858
      %v2861 = vadd.f32 %v2852, %v2858
      %v2862 = vadd.f32 %v787, %v2860
      %v2863 = vadd.f32 %v788, %v2861
      %v2864 = vld [vmem:[%s713] sm:$0x1]
      %v2865 = vld [vmem:[%s716] sm:$0x1]
      %v2866 = vsel %vm791, %v2862, 0.0
      %2867 = vadd.xlane.f32.xlu0 %v2866
      %v2868 = vpop.xlane.xlu0 %2867
      %v2869 = vsel %vm791, %v2863, 0.0
      %2870 = vadd.xlane.f32.xlu0 %v2869
      %v2871 = vpop.xlane.xlu0 %2870
      %v2872 = vmul.f32 %v2868, %v798
      %v2873 = vmul.f32 %v2871, %v798
      %v2874 = vsub.f32 %v2862, %v2872
      %v2875 = vsub.f32 %v2863, %v2873
      %v2876 = vmul.f32 %v2874, %v2874
      %v2877 = vmul.f32 %v2875, %v2875
      %v2878 = vsel %vm791, %v2876, 0.0
      %2879 = vadd.xlane.f32.xlu0 %v2878
      %v2880 = vpop.xlane.xlu0 %2879
      %v2881 = vsel %vm791, %v2877, 0.0
      %2882 = vadd.xlane.f32.xlu0 %v2881
      %v2883 = vpop.xlane.xlu0 %2882
      %v2884 = vmul.f32 %v2880, %v798
      %v2885 = vmul.f32 %v2883, %v798
      %v2886 = vadd.f32 %v2884, 1e-05
      %v2887 = vadd.f32 %v2885, 1e-05
      %v2888 = vrsqrt.pop %v2886
      %v2889 = vrsqrt.pop %v2887
      %v2890 = vmul.f32 %v2874, %v2888
      %v2891 = vmul.f32 %v2875, %v2889
      %v2893 = vlaneseq
      %v2894 = vshrl.u32 %v2893, 7
      %v2895 = vsub.s32 0, %v2894
      %v2896 = vrot.slane %v2864, %v2895
      %v2898 = vmul.f32 %v2890, %v2896
      %v2899 = vmul.f32 %v2891, %v2896
      %v2901 = vlaneseq
      %v2902 = vshrl.u32 %v2901, 7
      %v2903 = vsub.s32 0, %v2902
      %v2904 = vrot.slane %v2865, %v2903
      %v2906 = vadd.f32 %v2898, %v2904
      %v2907 = vadd.f32 %v2899, %v2904
      %v2908 = vld [vmem:[%s721] sm:$0xff]
      %v2909 = vld [vmem:[%s721 + $0x8] sm:$0xff]
      %v2910 = vld [vmem:[%s721 + $0x10] sm:$0xff]
      %v2911 = vld [vmem:[%s721 + $0x18] sm:$0xff]
      %v2912 = vld [vmem:[%s724] sm:$0x1]
      %v2914 = vlaneseq
      %v2915 = vshrl.u32 %v2914, 7
      %v2916 = vsub.s32 0, %v2915
      %v2917 = vrot.slane %v2912, %v2916
      %v2920 = vsel %vm791, %v2906, 0
      %v2923 = vsel %vm791, %v2907, 0
      %2925 = vmatprep.subr.mxu0 0.0
      %2926 = vmatpush1.msra.mxu0 0.0
      %2927 = vmatprep.subr.mxu0 0.0
      %2928 = vmatpush1.msra.mxu0 0.0
      %2929 = vmatprep.subr.mxu0 0.0
      %2930 = vmatpush1.msra.mxu0 0.0
      %2931 = vmatprep.subr.mxu0 0.0
      %2932 = vmatpush1.msra.mxu0 0.0
      %2933 = vmatprep.subr.mxu0 0.0
      %2934 = vmatpush1.msra.mxu0 0.0
      %2935 = vmatprep.subr.mxu0 0.0
      %2936 = vmatpush1.msra.mxu0 0.0
      %2937 = vmatprep.subr.mxu0 0.0
      %2938 = vmatpush1.msra.mxu0 0.0
      %2939 = vmatprep.subr.mxu0 0.0
      %2940 = vmatpush1.msra.mxu0 0.0
      %2941 = vmatprep.subr.mxu0 0.0
      %2942 = vmatpush1.msra.mxu0 0.0
      %2943 = vmatprep.subr.mxu0 0.0
      %2944 = vmatpush1.msra.mxu0 0.0
      %2945 = vmatprep.subr.mxu0 0.0
      %2946 = vmatpush1.msra.mxu0 0.0
      %2947 = vmatprep.subr.mxu0 0.0
      %2948 = vmatpush1.msra.mxu0 0.0
      %2949 = vmatprep.subr.mxu0 0.0
      %2950 = vmatpush1.msra.mxu0 %v2911
      %2951 = vmatprep.subr.mxu0 0.0
      %2952 = vmatpush1.msra.mxu0 %v2910
      %2953 = vmatprep.subr.mxu0 0.0
      %2954 = vmatpush1.msra.mxu0 %v2909
      %2955 = vmatprep.subr.mxu0 0.0
      %2956 = vmatpush1.msra.mxu0 %v2908
      %2957 = vmatprep.subr.mxu0 0.0
      %2958 = vmatpush2.msra.mxu0 0.0
      %2959 = vmatprep.subr.mxu0 0.0
      %2960 = vmatpush2.msra.mxu0 0.0
      %2961 = vmatprep.subr.mxu0 0.0
      %2962 = vmatpush2.msra.mxu0 0.0
      %2963 = vmatprep.subr.mxu0 0.0
      %2964 = vmatpush2.msra.mxu0 0.0
      %2965 = vmatprep.subr.mxu0 0.0
      %2966 = vmatpush2.msra.mxu0 0.0
      %2967 = vmatprep.subr.mxu0 0.0
      %2968 = vmatpush2.msra.mxu0 0.0
      %2969 = vmatprep.subr.mxu0 0.0
      %2970 = vmatpush2.msra.mxu0 0.0
      %2971 = vmatprep.subr.mxu0 0.0
      %2972 = vmatpush2.msra.mxu0 0.0
      %2973 = vmatprep.subr.mxu0 0.0
      %2974 = vmatpush2.msra.mxu0 0.0
      %2975 = vmatprep.subr.mxu0 0.0
      %2976 = vmatpush2.msra.mxu0 0.0
      %2977 = vmatprep.subr.mxu0 0.0
      %2978 = vmatpush2.msra.mxu0 0.0
      %2979 = vmatprep.subr.mxu0 0.0
      %2980 = vmatpush2.msra.mxu0 0.0
      %2981 = vmatprep.subr.mxu0 0.0
      %2982 = vmatpush2.msra.mxu0 0.0
      %2983 = vmatprep.subr.mxu0 0.0
      %2984 = vmatpush2.msra.mxu0 0.0
      %2985 = vmatprep.subr.mxu0 0.0
      %2986 = vmatpush2.msra.mxu0 0.0
      %2987 = vmatprep.subr.mxu0 0.0
      %2988 = vmatpush2.msra.mxu0 0.0
      %2989 = vmatprep.mubr.f32.mxu0 0.0
      %2990 = vmatmul.mubr.f32.gmra.mxu0 %v2920
      %v2991 = vpop.f32.mrf.mxu0
      %v2992 = vadd.f32 %v2917, %v2991
      %v2993 = vpop.f32.mrf.mxu0
      %2994 = vmatprep.mubr.f32.mxu0 0.0
      %2995 = vmatmul.mubr.f32.gmra.mxu0 %v2923
      %v2996 = vpop.f32.mrf.mxu0
      %v2997 = vadd.f32 %v2917, %v2996
      %v2998 = vpop.f32.mrf.mxu0
      %2999 = vdwg.mxu0
      %v3000 = vmul.f32 %v2992, 1.702
      %v3001 = vmul.f32 %v2997, 1.702
      %v3002 = vxor.u32 %v3000, 2147483648
      %v3003 = vxor.u32 %v3001, 2147483648
      %v3004 = vmul.f32 %v3002, 1.442695
      %v3005 = vpow.pop %v3004
      %v3006 = vmul.f32 %v3003, 1.442695
      %v3007 = vpow.pop %v3006
      %v3008 = vadd.f32 %v3005, 1.0
      %v3009 = vadd.f32 %v3007, 1.0
      %v3010 = vrcp.pop %v3008
      %v3011 = vmul.f32 1.0, %v3010
      %v3012 = vrcp.pop %v3009
      %v3013 = vmul.f32 1.0, %v3012
      %v3014 = vmul.f32 %v2992, %v3011
      %v3015 = vmul.f32 %v2997, %v3013
      %v3016 = vld [vmem:[%s729] sm:$0xff]
      %v3017 = vld [vmem:[%s729 + $0x8] sm:$0xff]
      %v3018 = vld [vmem:[%s729 + $0x10] sm:$0xff]
      %v3019 = vld [vmem:[%s729 + $0x18] sm:$0xff]
      %v3020 = vld [vmem:[%s729 + $0x20] sm:$0xff]
      %v3021 = vld [vmem:[%s729 + $0x28] sm:$0xff]
      %v3022 = vld [vmem:[%s729 + $0x30] sm:$0xff]
      %v3023 = vld [vmem:[%s729 + $0x38] sm:$0xff]
      %v3024 = vld [vmem:[%s729 + $0x40] sm:$0xff]
      %v3025 = vld [vmem:[%s729 + $0x48] sm:$0xff]
      %v3026 = vld [vmem:[%s729 + $0x50] sm:$0xff]
      %v3027 = vld [vmem:[%s729 + $0x58] sm:$0xff]
      %v3028 = vld [vmem:[%s729 + $0x60] sm:$0xff]
      %v3029 = vld [vmem:[%s729 + $0x68] sm:$0xff]
      %v3030 = vld [vmem:[%s729 + $0x70] sm:$0xff]
      %v3031 = vld [vmem:[%s729 + $0x78] sm:$0xff]
      %v3032 = vld [vmem:[%s732] sm:$0x1]
      %v3034 = vlaneseq
      %v3035 = vshrl.u32 %v3034, 7
      %v3036 = vsub.s32 0, %v3035
      %v3037 = vrot.slane %v3032, %v3036
      %3039 = vmatprep.subr.mxu0 0.0
      %3040 = vmatpush1.msra.mxu0 %v3031
      %3041 = vmatprep.subr.mxu0 0.0
      %3042 = vmatpush1.msra.mxu0 %v3030
      %3043 = vmatprep.subr.mxu0 0.0
      %3044 = vmatpush1.msra.mxu0 %v3029
      %3045 = vmatprep.subr.mxu0 0.0
      %3046 = vmatpush1.msra.mxu0 %v3028
      %3047 = vmatprep.subr.mxu0 0.0
      %3048 = vmatpush1.msra.mxu0 %v3027
      %3049 = vmatprep.subr.mxu0 0.0
      %3050 = vmatpush1.msra.mxu0 %v3026
      %3051 = vmatprep.subr.mxu0 0.0
      %3052 = vmatpush1.msra.mxu0 %v3025
      %3053 = vmatprep.subr.mxu0 0.0
      %3054 = vmatpush1.msra.mxu0 %v3024
      %3055 = vmatprep.subr.mxu0 0.0
      %3056 = vmatpush1.msra.mxu0 %v3023
      %3057 = vmatprep.subr.mxu0 0.0
      %3058 = vmatpush1.msra.mxu0 %v3022
      %3059 = vmatprep.subr.mxu0 0.0
      %3060 = vmatpush1.msra.mxu0 %v3021
      %3061 = vmatprep.subr.mxu0 0.0
      %3062 = vmatpush1.msra.mxu0 %v3020
      %3063 = vmatprep.subr.mxu0 0.0
      %3064 = vmatpush1.msra.mxu0 %v3019
      %3065 = vmatprep.subr.mxu0 0.0
      %3066 = vmatpush1.msra.mxu0 %v3018
      %3067 = vmatprep.subr.mxu0 0.0
      %3068 = vmatpush1.msra.mxu0 %v3017
      %3069 = vmatprep.subr.mxu0 0.0
      %3070 = vmatpush1.msra.mxu0 %v3016
      %3071 = vmatprep.subr.mxu0 0.0
      %3072 = vmatpush2.msra.mxu0 0.0
      %3073 = vmatprep.subr.mxu0 0.0
      %3074 = vmatpush2.msra.mxu0 0.0
      %3075 = vmatprep.subr.mxu0 0.0
      %3076 = vmatpush2.msra.mxu0 0.0
      %3077 = vmatprep.subr.mxu0 0.0
      %3078 = vmatpush2.msra.mxu0 0.0
      %3079 = vmatprep.subr.mxu0 0.0
      %3080 = vmatpush2.msra.mxu0 0.0
      %3081 = vmatprep.subr.mxu0 0.0
      %3082 = vmatpush2.msra.mxu0 0.0
      %3083 = vmatprep.subr.mxu0 0.0
      %3084 = vmatpush2.msra.mxu0 0.0
      %3085 = vmatprep.subr.mxu0 0.0
      %3086 = vmatpush2.msra.mxu0 0.0
      %3087 = vmatprep.subr.mxu0 0.0
      %3088 = vmatpush2.msra.mxu0 0.0
      %3089 = vmatprep.subr.mxu0 0.0
      %3090 = vmatpush2.msra.mxu0 0.0
      %3091 = vmatprep.subr.mxu0 0.0
      %3092 = vmatpush2.msra.mxu0 0.0
      %3093 = vmatprep.subr.mxu0 0.0
      %3094 = vmatpush2.msra.mxu0 0.0
      %3095 = vmatprep.subr.mxu0 0.0
      %3096 = vmatpush2.msra.mxu0 0.0
      %3097 = vmatprep.subr.mxu0 0.0
      %3098 = vmatpush2.msra.mxu0 0.0
      %3099 = vmatprep.subr.mxu0 0.0
      %3100 = vmatpush2.msra.mxu0 0.0
      %3101 = vmatprep.subr.mxu0 0.0
      %3102 = vmatpush2.msra.mxu0 0.0
      %3103 = vmatprep.mubr.f32.mxu0 0.0
      %3104 = vmatmul.mubr.f32.gmra.mxu0 %v3014
      %v3105 = vpop.f32.mrf.mxu0
      %v3106 = vadd.f32 %v3037, %v3105
      %v3107 = vpop.f32.mrf.mxu0
      %3108 = vmatprep.mubr.f32.mxu0 0.0
      %3109 = vmatmul.mubr.f32.gmra.mxu0 %v3015
      %v3110 = vpop.f32.mrf.mxu0
      %v3111 = vadd.f32 %v3037, %v3110
      %v3112 = vpop.f32.mrf.mxu0
      %3113 = vdwg.mxu0
      %v3114 = vadd.f32 %v2862, %v3106
      %v3115 = vadd.f32 %v2863, %v3111
      %3116 = vst.msk [vmem:[#allocation2] sm:$0xff] %vm791, %v3114
      %3117 = vst.msk [vmem:[#allocation2 + $0x8] sm:$0xff] %vm791, %v3115
      %p3118 = scmp.eq.s32.totalorder %s29, 1
      // Predicated region
      $region97: #{clip_forward.6} parent=91 // pred_check
        %p3119 = pneg %p3118
      $region98: #{clip_forward.6} parent=91 // pred_check_branch
        %3121 = sbr.rel (%p3119) target = $region100
      $region99: #{clip_forward.6} parent=91 // pred_region
        %3122 = vst.msk [vmem:[%s18] sm:$0xff] %vm791, %v3114
        %3123 = vst.msk [vmem:[%s18 + $0x8] sm:$0xff] %vm791, %v3115
      $region100: #{clip_forward.6} parent=91 // pred_fallthru
        _
      // Predicated region
      $region101: #{clip_forward.6} parent=91 // pred_check
        %p3124 = pneg %p480
      $region102: #{clip_forward.6} parent=91 // pred_check_branch
        %3126 = sbr.rel (%p3124) target = $region104
      $region103: #{clip_forward.6} parent=91 // pred_region
        _
      $region104: #{clip_forward.6} parent=91 // pred_fallthru
        _
      // Predicated region
      $region105: #{clip_forward.6} parent=91 // pred_check
        %p3127 = pneg %p480
      $region106: #{clip_forward.6} parent=91 // pred_check_branch
        %3129 = sbr.rel (%p3127) target = $region108
      $region107: #{clip_forward.6} parent=91 // pred_region
        _
      $region108: #{clip_forward.6} parent=91 // pred_fallthru
        _
    $region92: #{clip_forward.6} parent=5 // pred_fallthru
      _
    %p3130 = scmp.le.s32.totalorder 2, %s24
    // Predicated region
    $region109: #{clip_forward.6} parent=5 // pred_check
      %p3131 = pneg %p3130
    $region110: #{clip_forward.6} parent=5 // pred_check_branch
      %3133 = sbr.rel (%p3131) target = $region112
    $region111: #{clip_forward.6} parent=5 // pred_region
      %s3134 = ssub.s32 %s24, 2
    $region112: #{clip_forward.6} parent=5 // pred_fallthru
      _
  $region6: #{clip_forward.6} parent=0 // loop_footer
    %s28 = sadd.s32 1, %s24
  $region7: #{clip_forward.6} parent=0 // loop_footer_branch
    %23 = sbr.rel target = $region3
  $region8: #{clip_forward.6} parent=0 // loop_exit
    _

// kernel: clip_forward.4
$region0: #{clip_forward.4}
  #allocation0 [shape = 'u32[]', space=smem, size = 0x4, offset = 0x4, fixed_abs, tag = 'smem constant byte address 0x4 - core index']
  #allocation1 [shape = 'u32[144,128]{1,0:T(1,128)}', space=vmem, size = 0x12000, scoped, tag = 'internal scratch']
  #allocation2 [shape = 'f32[16,32]{1,0:T(8,128)}', space=vmem, size = 0x2000, scoped, tag = 'scratch operand']
  %s0 = inlined_call_operand.vmem [shape: f32[16,32], index: 0, kind: input, shape index: {}]
  %s1 = inlined_call_operand.vmem [shape: f32[2,8], index: 1, kind: input, shape index: {}]
  %s2 = inlined_call_operand.vmem [shape: f32[1,32], index: 2, kind: input, shape index: {}, may-alias: {2,3,5}]
  %s3 = inlined_call_operand.vmem [shape: f32[1,32], index: 3, kind: input, shape index: {}, may-alias: {2,3,5}]
  %s4 = inlined_call_operand.vmem [shape: f32[1,32], index: 4, kind: input, shape index: {}]
  %s5 = inlined_call_operand.vmem [shape: f32[1,32], index: 5, kind: input, shape index: {}, may-alias: {2,3,5}]
  %s6 = inlined_call_operand.vmem [shape: f32[2,1,32], index: 6, kind: input, shape index: {}, may-alias: {6,12}]
  %s7 = inlined_call_operand.vmem [shape: f32[2,1,32], index: 7, kind: input, shape index: {}, may-alias: {7,11,13,17}]
  %s8 = inlined_call_operand.vmem [shape: f32[2,32,96], index: 8, kind: input, shape index: {}]
  %s9 = inlined_call_operand.vmem [shape: f32[2,1,96], index: 9, kind: input, shape index: {}]
  %s10 = inlined_call_operand.vmem [shape: f32[2,32,32], index: 10, kind: input, shape index: {}]
  %s11 = inlined_call_operand.vmem [shape: f32[2,1,32], index: 11, kind: input, shape index: {}, may-alias: {7,11,13,17}]
  %s12 = inlined_call_operand.vmem [shape: f32[2,1,32], index: 12, kind: input, shape index: {}, may-alias: {6,12}]
  %s13 = inlined_call_operand.vmem [shape: f32[2,1,32], index: 13, kind: input, shape index: {}, may-alias: {7,11,13,17}]
  %s14 = inlined_call_operand.vmem [shape: f32[2,32,128], index: 14, kind: input, shape index: {}]
  %s15 = inlined_call_operand.vmem [shape: f32[2,1,128], index: 15, kind: input, shape index: {}]
  %s16 = inlined_call_operand.vmem [shape: f32[2,128,32], index: 16, kind: input, shape index: {}]
  %s17 = inlined_call_operand.vmem [shape: f32[2,1,32], index: 17, kind: input, shape index: {}, may-alias: {7,11,13,17}]
  %s18 = inlined_call_operand.vmem [shape: f32[16,32], index: 18, kind: output, shape index: {}]
  %s19 = sld [smem:[#allocation0]]
  $region113: #{clip_forward.4} parent=0
    _
  %s21 = ssub.s32 1, %s19
  %s22 = scalar_select 0, %s21, %s19
  loop: start=0, step=1, limit=4
  $region2: #{clip_forward.4} parent=0 // loop_pre_header
    _
  $region3: #{clip_forward.4} parent=0 // loop_header
    %s24 = sphi 0, %s28
    %p25 = scmp.ge.s32.totalorder %s24, 4
    %s32 = sphi 0, %s32
    %s34 = sphi 0, %s32
    %s35 = sphi 0, %s34
    %s49 = sphi 0, %s35
    %s53 = sphi 0, %s53
    %s55 = sphi 0, %s53
    %s56 = sphi 0, %s55
    %s70 = sphi 0, %s56
    %s74 = sphi 0, %s74
    %s76 = sphi 0, %s74
    %s77 = sphi 0, %s76
    %s91 = sphi 0, %s77
    %s95 = sphi 0, %s95
    %s97 = sphi 0, %s95
    %s98 = sphi 0, %s97
    %s112 = sphi 0, %s98
    %s116 = sphi 0, %s116
    %s118 = sphi 0, %s116
    %s119 = sphi 0, %s118
    %s133 = sphi 0, %s119
    %s137 = sphi 0, %s137
    %s139 = sphi 0, %s137
    %s140 = sphi 0, %s139
    %s154 = sphi 0, %s140
    %s160 = sphi 0, %s162
    %s163 = sphi 0, %s160
    %s164 = sphi 0, %s163
    %s180 = sphi 0, %s164
    %s186 = sphi 0, %s188
    %s189 = sphi 0, %s186
    %s190 = sphi 0, %s189
    %s206 = sphi 0, %s190
    %s212 = sphi 0, %s214
    %s215 = sphi 0, %s212
    %s216 = sphi 0, %s215
    %s232 = sphi 0, %s216
    %s238 = sphi 0, %s240
    %s241 = sphi 0, %s238
    %s242 = sphi 0, %s241
    %s258 = sphi 0, %s242
    %s264 = sphi 0, %s266
    %s267 = sphi 0, %s264
    %s268 = sphi 0, %s267
    %s284 = sphi 0, %s268
    %s290 = sphi 0, %s292
    %s293 = sphi 0, %s290
    %s294 = sphi 0, %s293
    %s310 = sphi 0, %s294
    %s316 = sphi 0, %s318
    %s319 = sphi 0, %s316
    %s320 = sphi 0, %s319
    %s336 = sphi 0, %s320
    %s342 = sphi 0, %s344
    %s345 = sphi 0, %s342
    %s346 = sphi 0, %s345
    %s362 = sphi 0, %s346
    %s368 = sphi 0, %s370
    %s371 = sphi 0, %s368
    %s372 = sphi 0, %s371
    %s388 = sphi 0, %s372
    %s394 = sphi 0, %s396
    %s397 = sphi 0, %s394
    %s398 = sphi 0, %s397
    %s414 = sphi 0, %s398
    %s420 = sphi 0, %s422
    %s423 = sphi 0, %s420
    %s424 = sphi 0, %s423
    %s440 = sphi 0, %s424
    %s446 = sphi 0, %s448
    %s449 = sphi 0, %s446
    %s450 = sphi 0, %s449
    %s466 = sphi 0, %s450
    %s470 = sphi 0, %s470
    %s472 = sphi 0, %s470
    %s473 = sphi 0, %s472
    %s487 = sphi 0, %s473
  $region4: #{clip_forward.4} parent=0 // loop_header_branch
    %27 = sbr.rel (%p25) target = $region8
  $region5: #{clip_forward.4} parent=0 // loop_body
    %s29 = ssub.s32 %s24, 1
    %s30 = ssub.s32 %s24, 2
    %s31 = sadd.s32 %s24, 1
    %s33 = sadd.s32 %s32, 1
    %p36 = scmp.eq.s32.totalorder %s24, 1
    %p37 = scmp.ne.s32.totalorder %s32, %s34
    %p38 = scmp.eq.s32.totalorder %s24, 0
    %p39 = por %p37, %p38
    %p40 = scmp.ne.s32.totalorder %s32, %s34
    %p41 = scmp.eq.s32.totalorder %s29, 1
    %p42 = por %p40, %p41
    %p43 = scmp.ne.s32.totalorder %s34, %s35
    %p44 = scmp.eq.s32.totalorder %s29, 0
    %p45 = por %p43, %p44
    %p46 = scmp.ne.s32.totalorder %s34, %s35
    %p47 = scmp.eq.s32.totalorder %s30, 1
    %p48 = por %p46, %p47
    %p50 = scmp.ne.s32.totalorder %s35, %s49
    %p51 = scmp.eq.s32.totalorder %s30, 0
    %p52 = por %p50, %p51
    %s54 = sadd.s32 %s53, 1
    %p57 = scmp.eq.s32.totalorder %s24, 1
    %p58 = scmp.ne.s32.totalorder %s53, %s55
    %p59 = scmp.eq.s32.totalorder %s24, 0
    %p60 = por %p58, %p59
    %p61 = scmp.ne.s32.totalorder %s53, %s55
    %p62 = scmp.eq.s32.totalorder %s29, 1
    %p63 = por %p61, %p62
    %p64 = scmp.ne.s32.totalorder %s55, %s56
    %p65 = scmp.eq.s32.totalorder %s29, 0
    %p66 = por %p64, %p65
    %p67 = scmp.ne.s32.totalorder %s55, %s56
    %p68 = scmp.eq.s32.totalorder %s30, 1
    %p69 = por %p67, %p68
    %p71 = scmp.ne.s32.totalorder %s56, %s70
    %p72 = scmp.eq.s32.totalorder %s30, 0
    %p73 = por %p71, %p72
    %s75 = sadd.s32 %s74, 1
    %p78 = scmp.eq.s32.totalorder %s24, 1
    %p79 = scmp.ne.s32.totalorder %s74, %s76
    %p80 = scmp.eq.s32.totalorder %s24, 0
    %p81 = por %p79, %p80
    %p82 = scmp.ne.s32.totalorder %s74, %s76
    %p83 = scmp.eq.s32.totalorder %s29, 1
    %p84 = por %p82, %p83
    %p85 = scmp.ne.s32.totalorder %s76, %s77
    %p86 = scmp.eq.s32.totalorder %s29, 0
    %p87 = por %p85, %p86
    %p88 = scmp.ne.s32.totalorder %s76, %s77
    %p89 = scmp.eq.s32.totalorder %s30, 1
    %p90 = por %p88, %p89
    %p92 = scmp.ne.s32.totalorder %s77, %s91
    %p93 = scmp.eq.s32.totalorder %s30, 0
    %p94 = por %p92, %p93
    %s96 = sadd.s32 %s95, 1
    %p99 = scmp.eq.s32.totalorder %s24, 1
    %p100 = scmp.ne.s32.totalorder %s95, %s97
    %p101 = scmp.eq.s32.totalorder %s24, 0
    %p102 = por %p100, %p101
    %p103 = scmp.ne.s32.totalorder %s95, %s97
    %p104 = scmp.eq.s32.totalorder %s29, 1
    %p105 = por %p103, %p104
    %p106 = scmp.ne.s32.totalorder %s97, %s98
    %p107 = scmp.eq.s32.totalorder %s29, 0
    %p108 = por %p106, %p107
    %p109 = scmp.ne.s32.totalorder %s97, %s98
    %p110 = scmp.eq.s32.totalorder %s30, 1
    %p111 = por %p109, %p110
    %p113 = scmp.ne.s32.totalorder %s98, %s112
    %p114 = scmp.eq.s32.totalorder %s30, 0
    %p115 = por %p113, %p114
    %s117 = sadd.s32 %s116, 1
    %p120 = scmp.eq.s32.totalorder %s24, 1
    %p121 = scmp.ne.s32.totalorder %s116, %s118
    %p122 = scmp.eq.s32.totalorder %s24, 0
    %p123 = por %p121, %p122
    %p124 = scmp.ne.s32.totalorder %s116, %s118
    %p125 = scmp.eq.s32.totalorder %s29, 1
    %p126 = por %p124, %p125
    %p127 = scmp.ne.s32.totalorder %s118, %s119
    %p128 = scmp.eq.s32.totalorder %s29, 0
    %p129 = por %p127, %p128
    %p130 = scmp.ne.s32.totalorder %s118, %s119
    %p131 = scmp.eq.s32.totalorder %s30, 1
    %p132 = por %p130, %p131
    %p134 = scmp.ne.s32.totalorder %s119, %s133
    %p135 = scmp.eq.s32.totalorder %s30, 0
    %p136 = por %p134, %p135
    %s138 = sadd.s32 %s137, 1
    %p141 = scmp.eq.s32.totalorder %s24, 1
    %p142 = scmp.ne.s32.totalorder %s137, %s139
    %p143 = scmp.eq.s32.totalorder %s24, 0
    %p144 = por %p142, %p143
    %p145 = scmp.ne.s32.totalorder %s137, %s139
    %p146 = scmp.eq.s32.totalorder %s29, 1
    %p147 = por %p145, %p146
    %p148 = scmp.ne.s32.totalorder %s139, %s140
    %p149 = scmp.eq.s32.totalorder %s29, 0
    %p150 = por %p148, %p149
    %p151 = scmp.ne.s32.totalorder %s139, %s140
    %p152 = scmp.eq.s32.totalorder %s30, 1
    %p153 = por %p151, %p152
    %p155 = scmp.ne.s32.totalorder %s140, %s154
    %p156 = scmp.eq.s32.totalorder %s30, 0
    %p157 = por %p155, %p156
    %s158 = ssub.s32 %s24, %s31
    %p159 = scmp.eq.s32.totalorder %s158, 0
    %s161 = sadd.s32 %s160, 1
    %s162 = scalar_select %p159, %s160, %s161
    %p165 = pneg %p159
    %p166 = scmp.eq.s32.totalorder %s24, 1
    %p167 = por %p165, %p166
    %p168 = scmp.ne.s32.totalorder %s160, %s163
    %p169 = scmp.eq.s32.totalorder %s24, 0
    %p170 = por %p168, %p169
    %p171 = scmp.ne.s32.totalorder %s160, %s163
    %p172 = scmp.eq.s32.totalorder %s29, 1
    %p173 = por %p171, %p172
    %p174 = scmp.ne.s32.totalorder %s163, %s164
    %p175 = scmp.eq.s32.totalorder %s29, 0
    %p176 = por %p174, %p175
    %p177 = scmp.ne.s32.totalorder %s163, %s164
    %p178 = scmp.eq.s32.totalorder %s30, 1
    %p179 = por %p177, %p178
    %p181 = scmp.ne.s32.totalorder %s164, %s180
    %p182 = scmp.eq.s32.totalorder %s30, 0
    %p183 = por %p181, %p182
    %s184 = ssub.s32 %s24, %s31
    %p185 = scmp.eq.s32.totalorder %s184, 0
    %s187 = sadd.s32 %s186, 1
    %s188 = scalar_select %p185, %s186, %s187
    %p191 = pneg %p185
    %p192 = scmp.eq.s32.totalorder %s24, 1
    %p193 = por %p191, %p192
    %p194 = scmp.ne.s32.totalorder %s186, %s189
    %p195 = scmp.eq.s32.totalorder %s24, 0
    %p196 = por %p194, %p195
    %p197 = scmp.ne.s32.totalorder %s186, %s189
    %p198 = scmp.eq.s32.totalorder %s29, 1
    %p199 = por %p197, %p198
    %p200 = scmp.ne.s32.totalorder %s189, %s190
    %p201 = scmp.eq.s32.totalorder %s29, 0
    %p202 = por %p200, %p201
    %p203 = scmp.ne.s32.totalorder %s189, %s190
    %p204 = scmp.eq.s32.totalorder %s30, 1
    %p205 = por %p203, %p204
    %p207 = scmp.ne.s32.totalorder %s190, %s206
    %p208 = scmp.eq.s32.totalorder %s30, 0
    %p209 = por %p207, %p208
    %s210 = ssub.s32 %s24, %s31
    %p211 = scmp.eq.s32.totalorder %s210, 0
    %s213 = sadd.s32 %s212, 1
    %s214 = scalar_select %p211, %s212, %s213
    %p217 = pneg %p211
    %p218 = scmp.eq.s32.totalorder %s24, 1
    %p219 = por %p217, %p218
    %p220 = scmp.ne.s32.totalorder %s212, %s215
    %p221 = scmp.eq.s32.totalorder %s24, 0
    %p222 = por %p220, %p221
    %p223 = scmp.ne.s32.totalorder %s212, %s215
    %p224 = scmp.eq.s32.totalorder %s29, 1
    %p225 = por %p223, %p224
    %p226 = scmp.ne.s32.totalorder %s215, %s216
    %p227 = scmp.eq.s32.totalorder %s29, 0
    %p228 = por %p226, %p227
    %p229 = scmp.ne.s32.totalorder %s215, %s216
    %p230 = scmp.eq.s32.totalorder %s30, 1
    %p231 = por %p229, %p230
    %p233 = scmp.ne.s32.totalorder %s216, %s232
    %p234 = scmp.eq.s32.totalorder %s30, 0
    %p235 = por %p233, %p234
    %s236 = ssub.s32 %s24, %s31
    %p237 = scmp.eq.s32.totalorder %s236, 0
    %s239 = sadd.s32 %s238, 1
    %s240 = scalar_select %p237, %s238, %s239
    %p243 = pneg %p237
    %p244 = scmp.eq.s32.totalorder %s24, 1
    %p245 = por %p243, %p244
    %p246 = scmp.ne.s32.totalorder %s238, %s241
    %p247 = scmp.eq.s32.totalorder %s24, 0
    %p248 = por %p246, %p247
    %p249 = scmp.ne.s32.totalorder %s238, %s241
    %p250 = scmp.eq.s32.totalorder %s29, 1
    %p251 = por %p249, %p250
    %p252 = scmp.ne.s32.totalorder %s241, %s242
    %p253 = scmp.eq.s32.totalorder %s29, 0
    %p254 = por %p252, %p253
    %p255 = scmp.ne.s32.totalorder %s241, %s242
    %p256 = scmp.eq.s32.totalorder %s30, 1
    %p257 = por %p255, %p256
    %p259 = scmp.ne.s32.totalorder %s242, %s258
    %p260 = scmp.eq.s32.totalorder %s30, 0
    %p261 = por %p259, %p260
    %s262 = ssub.s32 %s24, %s31
    %p263 = scmp.eq.s32.totalorder %s262, 0
    %s265 = sadd.s32 %s264, 1
    %s266 = scalar_select %p263, %s264, %s265
    %p269 = pneg %p263
    %p270 = scmp.eq.s32.totalorder %s24, 1
    %p271 = por %p269, %p270
    %p272 = scmp.ne.s32.totalorder %s264, %s267
    %p273 = scmp.eq.s32.totalorder %s24, 0
    %p274 = por %p272, %p273
    %p275 = scmp.ne.s32.totalorder %s264, %s267
    %p276 = scmp.eq.s32.totalorder %s29, 1
    %p277 = por %p275, %p276
    %p278 = scmp.ne.s32.totalorder %s267, %s268
    %p279 = scmp.eq.s32.totalorder %s29, 0
    %p280 = por %p278, %p279
    %p281 = scmp.ne.s32.totalorder %s267, %s268
    %p282 = scmp.eq.s32.totalorder %s30, 1
    %p283 = por %p281, %p282
    %p285 = scmp.ne.s32.totalorder %s268, %s284
    %p286 = scmp.eq.s32.totalorder %s30, 0
    %p287 = por %p285, %p286
    %s288 = ssub.s32 %s24, %s31
    %p289 = scmp.eq.s32.totalorder %s288, 0
    %s291 = sadd.s32 %s290, 1
    %s292 = scalar_select %p289, %s290, %s291
    %p295 = pneg %p289
    %p296 = scmp.eq.s32.totalorder %s24, 1
    %p297 = por %p295, %p296
    %p298 = scmp.ne.s32.totalorder %s290, %s293
    %p299 = scmp.eq.s32.totalorder %s24, 0
    %p300 = por %p298, %p299
    %p301 = scmp.ne.s32.totalorder %s290, %s293
    %p302 = scmp.eq.s32.totalorder %s29, 1
    %p303 = por %p301, %p302
    %p304 = scmp.ne.s32.totalorder %s293, %s294
    %p305 = scmp.eq.s32.totalorder %s29, 0
    %p306 = por %p304, %p305
    %p307 = scmp.ne.s32.totalorder %s293, %s294
    %p308 = scmp.eq.s32.totalorder %s30, 1
    %p309 = por %p307, %p308
    %p311 = scmp.ne.s32.totalorder %s294, %s310
    %p312 = scmp.eq.s32.totalorder %s30, 0
    %p313 = por %p311, %p312
    %s314 = ssub.s32 %s24, %s31
    %p315 = scmp.eq.s32.totalorder %s314, 0
    %s317 = sadd.s32 %s316, 1
    %s318 = scalar_select %p315, %s316, %s317
    %p321 = pneg %p315
    %p322 = scmp.eq.s32.totalorder %s24, 1
    %p323 = por %p321, %p322
    %p324 = scmp.ne.s32.totalorder %s316, %s319
    %p325 = scmp.eq.s32.totalorder %s24, 0
    %p326 = por %p324, %p325
    %p327 = scmp.ne.s32.totalorder %s316, %s319
    %p328 = scmp.eq.s32.totalorder %s29, 1
    %p329 = por %p327, %p328
    %p330 = scmp.ne.s32.totalorder %s319, %s320
    %p331 = scmp.eq.s32.totalorder %s29, 0
    %p332 = por %p330, %p331
    %p333 = scmp.ne.s32.totalorder %s319, %s320
    %p334 = scmp.eq.s32.totalorder %s30, 1
    %p335 = por %p333, %p334
    %p337 = scmp.ne.s32.totalorder %s320, %s336
    %p338 = scmp.eq.s32.totalorder %s30, 0
    %p339 = por %p337, %p338
    %s340 = ssub.s32 %s24, %s31
    %p341 = scmp.eq.s32.totalorder %s340, 0
    %s343 = sadd.s32 %s342, 1
    %s344 = scalar_select %p341, %s342, %s343
    %p347 = pneg %p341
    %p348 = scmp.eq.s32.totalorder %s24, 1
    %p349 = por %p347, %p348
    %p350 = scmp.ne.s32.totalorder %s342, %s345
    %p351 = scmp.eq.s32.totalorder %s24, 0
    %p352 = por %p350, %p351
    %p353 = scmp.ne.s32.totalorder %s342, %s345
    %p354 = scmp.eq.s32.totalorder %s29, 1
    %p355 = por %p353, %p354
    %p356 = scmp.ne.s32.totalorder %s345, %s346
    %p357 = scmp.eq.s32.totalorder %s29, 0
    %p358 = por %p356, %p357
    %p359 = scmp.ne.s32.totalorder %s345, %s346
    %p360 = scmp.eq.s32.totalorder %s30, 1
    %p361 = por %p359, %p360
    %p363 = scmp.ne.s32.totalorder %s346, %s362
    %p364 = scmp.eq.s32.totalorder %s30, 0
    %p365 = por %p363, %p364
    %s366 = ssub.s32 %s24, %s31
    %p367 = scmp.eq.s32.totalorder %s366, 0
    %s369 = sadd.s32 %s368, 1
    %s370 = scalar_select %p367, %s368, %s369
    %p373 = pneg %p367
    %p374 = scmp.eq.s32.totalorder %s24, 1
    %p375 = por %p373, %p374
    %p376 = scmp.ne.s32.totalorder %s368, %s371
    %p377 = scmp.eq.s32.totalorder %s24, 0
    %p378 = por %p376, %p377
    %p379 = scmp.ne.s32.totalorder %s368, %s371
    %p380 = scmp.eq.s32.totalorder %s29, 1
    %p381 = por %p379, %p380
    %p382 = scmp.ne.s32.totalorder %s371, %s372
    %p383 = scmp.eq.s32.totalorder %s29, 0
    %p384 = por %p382, %p383
    %p385 = scmp.ne.s32.totalorder %s371, %s372
    %p386 = scmp.eq.s32.totalorder %s30, 1
    %p387 = por %p385, %p386
    %p389 = scmp.ne.s32.totalorder %s372, %s388
    %p390 = scmp.eq.s32.totalorder %s30, 0
    %p391 = por %p389, %p390
    %s392 = ssub.s32 %s24, %s31
    %p393 = scmp.eq.s32.totalorder %s392, 0
    %s395 = sadd.s32 %s394, 1
    %s396 = scalar_select %p393, %s394, %s395
    %p399 = pneg %p393
    %p400 = scmp.eq.s32.totalorder %s24, 1
    %p401 = por %p399, %p400
    %p402 = scmp.ne.s32.totalorder %s394, %s397
    %p403 = scmp.eq.s32.totalorder %s24, 0
    %p404 = por %p402, %p403
    %p405 = scmp.ne.s32.totalorder %s394, %s397
    %p406 = scmp.eq.s32.totalorder %s29, 1
    %p407 = por %p405, %p406
    %p408 = scmp.ne.s32.totalorder %s397, %s398
    %p409 = scmp.eq.s32.totalorder %s29, 0
    %p410 = por %p408, %p409
    %p411 = scmp.ne.s32.totalorder %s397, %s398
    %p412 = scmp.eq.s32.totalorder %s30, 1
    %p413 = por %p411, %p412
    %p415 = scmp.ne.s32.totalorder %s398, %s414
    %p416 = scmp.eq.s32.totalorder %s30, 0
    %p417 = por %p415, %p416
    %s418 = ssub.s32 %s24, %s31
    %p419 = scmp.eq.s32.totalorder %s418, 0
    %s421 = sadd.s32 %s420, 1
    %s422 = scalar_select %p419, %s420, %s421
    %p425 = pneg %p419
    %p426 = scmp.eq.s32.totalorder %s24, 1
    %p427 = por %p425, %p426
    %p428 = scmp.ne.s32.totalorder %s420, %s423
    %p429 = scmp.eq.s32.totalorder %s24, 0
    %p430 = por %p428, %p429
    %p431 = scmp.ne.s32.totalorder %s420, %s423
    %p432 = scmp.eq.s32.totalorder %s29, 1
    %p433 = por %p431, %p432
    %p434 = scmp.ne.s32.totalorder %s423, %s424
    %p435 = scmp.eq.s32.totalorder %s29, 0
    %p436 = por %p434, %p435
    %p437 = scmp.ne.s32.totalorder %s423, %s424
    %p438 = scmp.eq.s32.totalorder %s30, 1
    %p439 = por %p437, %p438
    %p441 = scmp.ne.s32.totalorder %s424, %s440
    %p442 = scmp.eq.s32.totalorder %s30, 0
    %p443 = por %p441, %p442
    %s444 = ssub.s32 %s24, %s31
    %p445 = scmp.eq.s32.totalorder %s444, 0
    %s447 = sadd.s32 %s446, 1
    %s448 = scalar_select %p445, %s446, %s447
    %p451 = pneg %p445
    %p452 = scmp.eq.s32.totalorder %s24, 1
    %p453 = por %p451, %p452
    %p454 = scmp.ne.s32.totalorder %s446, %s449
    %p455 = scmp.eq.s32.totalorder %s24, 0
    %p456 = por %p454, %p455
    %p457 = scmp.ne.s32.totalorder %s446, %s449
    %p458 = scmp.eq.s32.totalorder %s29, 1
    %p459 = por %p457, %p458
    %p460 = scmp.ne.s32.totalorder %s449, %s450
    %p461 = scmp.eq.s32.totalorder %s29, 0
    %p462 = por %p460, %p461
    %p463 = scmp.ne.s32.totalorder %s449, %s450
    %p464 = scmp.eq.s32.totalorder %s30, 1
    %p465 = por %p463, %p464
    %p467 = scmp.ne.s32.totalorder %s450, %s466
    %p468 = scmp.eq.s32.totalorder %s30, 0
    %p469 = por %p467, %p468
    %s471 = sadd.s32 %s470, 1
    %p474 = scmp.eq.s32.totalorder %s24, 1
    %p475 = scmp.ne.s32.totalorder %s470, %s472
    %p476 = scmp.eq.s32.totalorder %s24, 0
    %p477 = por %p475, %p476
    %p478 = scmp.ne.s32.totalorder %s470, %s472
    %p479 = scmp.eq.s32.totalorder %s29, 1
    %p480 = por %p478, %p479
    %p481 = scmp.ne.s32.totalorder %s472, %s473
    %p482 = scmp.eq.s32.totalorder %s29, 0
    %p483 = por %p481, %p482
    %p484 = scmp.ne.s32.totalorder %s472, %s473
    %p485 = scmp.eq.s32.totalorder %s30, 1
    %p486 = por %p484, %p485
    %p488 = scmp.ne.s32.totalorder %s473, %s487
    %p489 = scmp.eq.s32.totalorder %s30, 0
    %p490 = por %p488, %p489
    %p491 = scmp.le.s32.totalorder 1, %s24
    %p492 = scmp.lt.s32.totalorder %s24, 3
    %p493 = pnand %p491, %p492
    %p494 = pneg %p493
    // Predicated region
    $region9: #{clip_forward.4} parent=5 // pred_check
      _
    $region10: #{clip_forward.4} parent=5 // pred_check_branch
      %496 = sbr.rel (%p493) target = $region12
    $region11: #{clip_forward.4} parent=5 // pred_region
      %s497 = ssub.s32 %s24, 1
      // Predicated region
      $region13: #{clip_forward.4} parent=11 // pred_check
        %p498 = pneg %p45
      $region14: #{clip_forward.4} parent=11 // pred_check_branch
        %500 = sbr.rel (%p498) target = $region16
      $region15: #{clip_forward.4} parent=11 // pred_region
        _
      $region16: #{clip_forward.4} parent=11 // pred_fallthru
        _
      // Predicated region
      $region17: #{clip_forward.4} parent=11 // pred_check
        %p501 = pneg %p66
      $region18: #{clip_forward.4} parent=11 // pred_check_branch
        %503 = sbr.rel (%p501) target = $region20
      $region19: #{clip_forward.4} parent=11 // pred_region
        _
      $region20: #{clip_forward.4} parent=11 // pred_fallthru
        _
      // Predicated region
      $region21: #{clip_forward.4} parent=11 // pred_check
        %p504 = pneg %p87
      $region22: #{clip_forward.4} parent=11 // pred_check_branch
        %506 = sbr.rel (%p504) target = $region24
      $region23: #{clip_forward.4} parent=11 // pred_region
        _
      $region24: #{clip_forward.4} parent=11 // pred_fallthru
        _
      // Predicated region
      $region25: #{clip_forward.4} parent=11 // pred_check
        %p507 = pneg %p108
      $region26: #{clip_forward.4} parent=11 // pred_check_branch
        %509 = sbr.rel (%p507) target = $region28
      $region27: #{clip_forward.4} parent=11 // pred_region
        _
      $region28: #{clip_forward.4} parent=11 // pred_fallthru
        _
      // Predicated region
      $region29: #{clip_forward.4} parent=11 // pred_check
        %p510 = pneg %p129
      $region30: #{clip_forward.4} parent=11 // pred_check_branch
        %512 = sbr.rel (%p510) target = $region32
      $region31: #{clip_forward.4} parent=11 // pred_region
        _
      $region32: #{clip_forward.4} parent=11 // pred_fallthru
        _
      // Predicated region
      $region33: #{clip_forward.4} parent=11 // pred_check
        %p513 = pneg %p150
      $region34: #{clip_forward.4} parent=11 // pred_check_branch
        %515 = sbr.rel (%p513) target = $region36
      $region35: #{clip_forward.4} parent=11 // pred_region
        _
      $region36: #{clip_forward.4} parent=11 // pred_fallthru
        _
    $region12: #{clip_forward.4} parent=5 // pred_fallthru
      _
    %p516 = scmp.lt.s32.totalorder %s24, 2
    // Predicated region
    $region37: #{clip_forward.4} parent=5 // pred_check
      %p517 = pneg %p516
    $region38: #{clip_forward.4} parent=5 // pred_check_branch
      %519 = sbr.rel (%p517) target = $region40
    $region39: #{clip_forward.4} parent=5 // pred_region
      // Predicated region
      $region41: #{clip_forward.4} parent=39 // pred_check
        %p520 = pneg %p170
      $region42: #{clip_forward.4} parent=39 // pred_check_branch
        %522 = sbr.rel (%p520) target = $region44
      $region43: #{clip_forward.4} parent=39 // pred_region
        %p523 = scmp.lt.s32.totalorder %s24, 1
        %s524 = scalar_select %p523, %s24, 1
        %s525 = scalar_lea.vmem %s6, %s524
      $region44: #{clip_forward.4} parent=39 // pred_fallthru
        _
      // Predicated region
      $region45: #{clip_forward.4} parent=39 // pred_check
        %p526 = pneg %p196
      $region46: #{clip_forward.4} parent=39 // pred_check_branch
        %528 = sbr.rel (%p526) target = $region48
      $region47: #{clip_forward.4} parent=39 // pred_region
        %p529 = scmp.lt.s32.totalorder %s24, 1
        %s530 = scalar_select %p529, %s24, 1
        %s531 = scalar_lea.vmem %s7, %s530
      $region48: #{clip_forward.4} parent=39 // pred_fallthru
        _
      // Predicated region
      $region49: #{clip_forward.4} parent=39 // pred_check
        %p532 = pneg %p222
      $region50: #{clip_forward.4} parent=39 // pred_check_branch
        %534 = sbr.rel (%p532) target = $region52
      $region51: #{clip_forward.4} parent=39 // pred_region
        %p535 = scmp.lt.s32.totalorder %s24, 1
        %s536 = scalar_select %p535, %s24, 1
        %s537 = smul.addr %s536, 4
        %s538 = smul.addr %s537, 8
        %s539 = scalar_lea.vmem %s8, %s538
      $region52: #{clip_forward.4} parent=39 // pred_fallthru
        _
      // Predicated region
      $region53: #{clip_forward.4} parent=39 // pred_check
        %p540 = pneg %p248
      $region54: #{clip_forward.4} parent=39 // pred_check_branch
        %542 = sbr.rel (%p540) target = $region56
      $region55: #{clip_forward.4} parent=39 // pred_region
        %p543 = scmp.lt.s32.totalorder %s24, 1
        %s544 = scalar_select %p543, %s24, 1
        %s545 = scalar_lea.vmem %s9, %s544
      $region56: #{clip_forward.4} parent=39 // pred_fallthru
        _
      // Predicated region
      $region57: #{clip_forward.4} parent=39 // pred_check
        %p546 = pneg %p274
      $region58: #{clip_forward.4} parent=39 // pred_check_branch
        %548 = sbr.rel (%p546) target = $region60
      $region59: #{clip_forward.4} parent=39 // pred_region
        %p549 = scmp.lt.s32.totalorder %s24, 1
        %s550 = scalar_select %p549, %s24, 1
        %s551 = smul.addr %s550, 4
        %s552 = smul.addr %s551, 8
        %s553 = scalar_lea.vmem %s10, %s552
      $region60: #{clip_forward.4} parent=39 // pred_fallthru
        _
      // Predicated region
      $region61: #{clip_forward.4} parent=39 // pred_check
        %p554 = pneg %p300
      $region62: #{clip_forward.4} parent=39 // pred_check_branch
        %556 = sbr.rel (%p554) target = $region64
      $region63: #{clip_forward.4} parent=39 // pred_region
        %p557 = scmp.lt.s32.totalorder %s24, 1
        %s558 = scalar_select %p557, %s24, 1
        %s559 = scalar_lea.vmem %s11, %s558
      $region64: #{clip_forward.4} parent=39 // pred_fallthru
        _
      // Predicated region
      $region65: #{clip_forward.4} parent=39 // pred_check
        %p560 = pneg %p326
      $region66: #{clip_forward.4} parent=39 // pred_check_branch
        %562 = sbr.rel (%p560) target = $region68
      $region67: #{clip_forward.4} parent=39 // pred_region
        %p563 = scmp.lt.s32.totalorder %s24, 1
        %s564 = scalar_select %p563, %s24, 1
        %s565 = scalar_lea.vmem %s12, %s564
      $region68: #{clip_forward.4} parent=39 // pred_fallthru
        _
      // Predicated region
      $region69: #{clip_forward.4} parent=39 // pred_check
        %p566 = pneg %p352
      $region70: #{clip_forward.4} parent=39 // pred_check_branch
        %568 = sbr.rel (%p566) target = $region72
      $region71: #{clip_forward.4} parent=39 // pred_region
        %p569 = scmp.lt.s32.totalorder %s24, 1
        %s570 = scalar_select %p569, %s24, 1
        %s571 = scalar_lea.vmem %s13, %s570
      $region72: #{clip_forward.4} parent=39 // pred_fallthru
        _
      // Predicated region
      $region73: #{clip_forward.4} parent=39 // pred_check
        %p572 = pneg %p378
      $region74: #{clip_forward.4} parent=39 // pred_check_branch
        %574 = sbr.rel (%p572) target = $region76
      $region75: #{clip_forward.4} parent=39 // pred_region
        %p575 = scmp.lt.s32.totalorder %s24, 1
        %s576 = scalar_select %p575, %s24, 1
        %s577 = smul.addr %s576, 4
        %s578 = smul.addr %s577, 8
        %s579 = scalar_lea.vmem %s14, %s578
      $region76: #{clip_forward.4} parent=39 // pred_fallthru
        _
      // Predicated region
      $region77: #{clip_forward.4} parent=39 // pred_check
        %p580 = pneg %p404
      $region78: #{clip_forward.4} parent=39 // pred_check_branch
        %582 = sbr.rel (%p580) target = $region80
      $region79: #{clip_forward.4} parent=39 // pred_region
        %p583 = scmp.lt.s32.totalorder %s24, 1
        %s584 = scalar_select %p583, %s24, 1
        %s585 = scalar_lea.vmem %s15, %s584
      $region80: #{clip_forward.4} parent=39 // pred_fallthru
        _
      // Predicated region
      $region81: #{clip_forward.4} parent=39 // pred_check
        %p586 = pneg %p430
      $region82: #{clip_forward.4} parent=39 // pred_check_branch
        %588 = sbr.rel (%p586) target = $region84
      $region83: #{clip_forward.4} parent=39 // pred_region
        %p589 = scmp.lt.s32.totalorder %s24, 1
        %s590 = scalar_select %p589, %s24, 1
        %s591 = smul.addr %s590, 16
        %s592 = smul.addr %s591, 8
        %s593 = scalar_lea.vmem %s16, %s592
      $region84: #{clip_forward.4} parent=39 // pred_fallthru
        _
      // Predicated region
      $region85: #{clip_forward.4} parent=39 // pred_check
        %p594 = pneg %p456
      $region86: #{clip_forward.4} parent=39 // pred_check_branch
        %596 = sbr.rel (%p594) target = $region88
      $region87: #{clip_forward.4} parent=39 // pred_region
        %p597 = scmp.lt.s32.totalorder %s24, 1
        %s598 = scalar_select %p597, %s24, 1
        %s599 = scalar_lea.vmem %s17, %s598
      $region88: #{clip_forward.4} parent=39 // pred_fallthru
        _
    $region40: #{clip_forward.4} parent=5 // pred_fallthru
      _
    %p600 = scmp.le.s32.totalorder 1, %s24
    %p601 = scmp.lt.s32.totalorder %s24, 3
    %p602 = pnand %p600, %p601
    %p603 = pneg %p602
    // Predicated region
    $region89: #{clip_forward.4} parent=5 // pred_check
      _
    $region90: #{clip_forward.4} parent=5 // pred_check_branch
      %605 = sbr.rel (%p602) target = $region92
    $region91: #{clip_forward.4} parent=5 // pred_region
      %s606 = ssub.s32 %s24, 1
      %p607 = pneg %p45
      %p608 = pneg %p42
      %p609 = pneg %p66
      %p610 = pneg %p63
      %p611 = pneg %p87
      %p612 = pneg %p84
      %p613 = pneg %p108
      %p614 = pneg %p105
      %p615 = pneg %p129
      %p616 = pneg %p126
      %p617 = pneg %p150
      %p618 = pneg %p147
      %p619 = scmp.lt.s32.totalorder %s29, 1
      %s620 = scalar_select %p619, %s29, 1
      %s621 = scalar_lea.vmem %s6, %s620
      %p622 = pneg %p176
      %p623 = pneg %p173
      %p624 = scmp.lt.s32.totalorder %s29, 1
      %s625 = scalar_select %p624, %s29, 1
      %s626 = scalar_lea.vmem %s7, %s625
      %p627 = pneg %p202
      %p628 = pneg %p199
      %p629 = scmp.lt.s32.totalorder %s29, 1
      %s630 = scalar_select %p629, %s29, 1
      %s631 = smul.addr %s630, 4
      %s632 = smul.addr %s631, 8
      %s633 = scalar_lea.vmem %s8, %s632
      %p634 = pneg %p228
      %p635 = pneg %p225
      %p636 = scmp.lt.s32.totalorder %s29, 1
      %s637 = scalar_select %p636, %s29, 1
      %s638 = scalar_lea.vmem %s9, %s637
      %p639 = pneg %p254
      %p640 = pneg %p251
      %p641 = scmp.lt.s32.totalorder %s29, 1
      %s642 = scalar_select %p641, %s29, 1
      %s643 = smul.addr %s642, 4
      %s644 = smul.addr %s643, 8
      %s645 = scalar_lea.vmem %s10, %s644
      %p646 = pneg %p280
      %p647 = pneg %p277
      %p648 = scmp.lt.s32.totalorder %s29, 1
      %s649 = scalar_select %p648, %s29, 1
      %s650 = scalar_lea.vmem %s11, %s649
      %p651 = pneg %p306
      %p652 = pneg %p303
      %p653 = scmp.lt.s32.totalorder %s29, 1
      %s654 = scalar_select %p653, %s29, 1
      %s655 = scalar_lea.vmem %s12, %s654
      %p656 = pneg %p332
      %p657 = pneg %p329
      %p658 = scmp.lt.s32.totalorder %s29, 1
      %s659 = scalar_select %p658, %s29, 1
      %s660 = scalar_lea.vmem %s13, %s659
      %p661 = pneg %p358
      %p662 = pneg %p355
      %p663 = scmp.lt.s32.totalorder %s29, 1
      %s664 = scalar_select %p663, %s29, 1
      %s665 = smul.addr %s664, 4
      %s666 = smul.addr %s665, 8
      %s667 = scalar_lea.vmem %s14, %s666
      %p668 = pneg %p384
      %p669 = pneg %p381
      %p670 = scmp.lt.s32.totalorder %s29, 1
      %s671 = scalar_select %p670, %s29, 1
      %s672 = scalar_lea.vmem %s15, %s671
      %p673 = pneg %p410
      %p674 = pneg %p407
      %p675 = scmp.lt.s32.totalorder %s29, 1
      %s676 = scalar_select %p675, %s29, 1
      %s677 = smul.addr %s676, 16
      %s678 = smul.addr %s677, 8
      %s679 = scalar_lea.vmem %s16, %s678
      %p680 = pneg %p436
      %p681 = pneg %p433
      %p682 = scmp.lt.s32.totalorder %s29, 1
      %s683 = scalar_select %p682, %s29, 1
      %s684 = scalar_lea.vmem %s17, %s683
      %p685 = pneg %p462
      %p686 = pneg %p459
      %p687 = pneg %p483
      %p688 = pneg %p480
      %p689 = scmp.lt.s32.totalorder %s29, 1
      %s690 = scalar_select %p689, %s29, 1
      %s691 = scalar_lea.vmem %s6, %s690
      %p692 = scmp.lt.s32.totalorder %s29, 1
      %s693 = scalar_select %p692, %s29, 1
      %s694 = scalar_lea.vmem %s7, %s693
      %p695 = scmp.lt.s32.totalorder %s29, 1
      %s696 = scalar_select %p695, %s29, 1
      %s697 = smul.addr %s696, 4
      %s698 = smul.addr %s697, 8
      %s699 = scalar_lea.vmem %s8, %s698
      %p700 = scmp.lt.s32.totalorder %s29, 1
      %s701 = scalar_select %p700, %s29, 1
      %s702 = scalar_lea.vmem %s9, %s701
      %p703 = scmp.lt.s32.totalorder %s29, 1
      %s704 = scalar_select %p703, %s29, 1
      %s705 = smul.addr %s704, 4
      %s706 = smul.addr %s705, 8
      %s707 = scalar_lea.vmem %s10, %s706
      %p708 = scmp.lt.s32.totalorder %s29, 1
      %s709 = scalar_select %p708, %s29, 1
      %s710 = scalar_lea.vmem %s11, %s709
      %p711 = scmp.lt.s32.totalorder %s29, 1
      %s712 = scalar_select %p711, %s29, 1
      %s713 = scalar_lea.vmem %s12, %s712
      %p714 = scmp.lt.s32.totalorder %s29, 1
      %s715 = scalar_select %p714, %s29, 1
      %s716 = scalar_lea.vmem %s13, %s715
      %p717 = scmp.lt.s32.totalorder %s29, 1
      %s718 = scalar_select %p717, %s29, 1
      %s719 = smul.addr %s718, 4
      %s720 = smul.addr %s719, 8
      %s721 = scalar_lea.vmem %s14, %s720
      %p722 = scmp.lt.s32.totalorder %s29, 1
      %s723 = scalar_select %p722, %s29, 1
      %s724 = scalar_lea.vmem %s15, %s723
      %p725 = scmp.lt.s32.totalorder %s29, 1
      %s726 = scalar_select %p725, %s29, 1
      %s727 = smul.addr %s726, 16
      %s728 = smul.addr %s727, 8
      %s729 = scalar_lea.vmem %s16, %s728
      %p730 = scmp.lt.s32.totalorder %s29, 1
      %s731 = scalar_select %p730, %s29, 1
      %s732 = scalar_lea.vmem %s17, %s731
      %p733 = scmp.eq.s32.totalorder %s29, 0
      // Predicated region
      $region93: #{clip_forward.4} parent=91 // pred_check
        %p734 = pneg %p733
      $region94: #{clip_forward.4} parent=91 // pred_check_branch
        %736 = sbr.rel (%p734) target = $region96
      $region95: #{clip_forward.4} parent=91 // pred_region
        %v737 = vld [vmem:[%s0] sm:$0xff]
        %v738 = vld [vmem:[%s0 + $0x8] sm:$0xff]
        %vm739 = vcmask 261120
        %740 = vst.msk [vmem:[#allocation2] sm:$0xff] %vm739, %v737
        %741 = vst.msk [vmem:[#allocation2 + $0x8] sm:$0xff] %vm739, %v738
      $region96: #{clip_forward.4} parent=91 // pred_fallthru
        _
      %v742 = vld [vmem:[#allocation2] sm:$0xff]
      %v743 = vld [vmem:[#allocation2 + $0x8] sm:$0xff]
      %v744 = vld [vmem:[%s691] sm:$0x1]
      %v745 = vld [vmem:[%s694] sm:$0x1]
      %vm746 = vcmask 261120
      %v747 = vsel %vm746, %v742, 0.0
      %748 = vadd.xlane.f32.xlu0 %v747
      %v749 = vpop.xlane.xlu0 %748
      %v750 = vsel %vm746, %v743, 0.0
      %751 = vadd.xlane.f32.xlu0 %v750
      %v752 = vpop.xlane.xlu0 %751
      %v753 = vrcp.pop 32.0
      %v754 = vmul.f32 %v749, %v753
      %v755 = vmul.f32 %v752, %v753
      %v756 = vsub.f32 %v742, %v754
      %v757 = vsub.f32 %v743, %v755
      %v758 = vmul.f32 %v756, %v756
      %v759 = vmul.f32 %v757, %v757
      %v760 = vsel %vm746, %v758, 0.0
      %761 = vadd.xlane.f32.xlu0 %v760
      %v762 = vpop.xlane.xlu0 %761
      %v763 = vsel %vm746, %v759, 0.0
      %764 = vadd.xlane.f32.xlu0 %v763
      %v765 = vpop.xlane.xlu0 %764
      %v766 = vmul.f32 %v762, %v753
      %v767 = vmul.f32 %v765, %v753
      %v768 = vadd.f32 %v766, 1e-05
      %v769 = vadd.f32 %v767, 1e-05
      %v770 = vrsqrt.pop %v768
      %v771 = vrsqrt.pop %v769
      %v772 = vmul.f32 %v756, %v770
      %v773 = vmul.f32 %v757, %v771
      %v775 = vlaneseq
      %v776 = vshrl.u32 %v775, 7
      %v777 = vsub.s32 0, %v776
      %v778 = vrot.slane %v744, %v777
      %v780 = vmul.f32 %v772, %v778
      %v781 = vmul.f32 %v773, %v778
      %v783 = vlaneseq
      %v784 = vshrl.u32 %v783, 7
      %v785 = vsub.s32 0, %v784
      %v786 = vrot.slane %v745, %v785
      %v788 = vadd.f32 %v780, %v786
      %v789 = vadd.f32 %v781, %v786
      %v790 = vld [vmem:[%s699] sm:$0xff]
      %v791 = vld [vmem:[%s699 + $0x8] sm:$0xff]
      %v792 = vld [vmem:[%s699 + $0x10] sm:$0xff]
      %v793 = vld [vmem:[%s699 + $0x18] sm:$0xff]
      %v794 = vld [vmem:[%s702] sm:$0x1]
      %v796 = vlaneseq
      %v797 = vshrl.u32 %v796, 7
      %v798 = vsub.s32 0, %v797
      %v799 = vrot.slane %v794, %v798
      %v802 = vsel %vm746, %v788, 0
      %v805 = vsel %vm746, %v789, 0
      %807 = vmatprep.subr.mxu0 0.0
      %808 = vmatpush1.msra.mxu0 0.0
      %809 = vmatprep.subr.mxu0 0.0
      %810 = vmatpush1.msra.mxu0 0.0
      %811 = vmatprep.subr.mxu0 0.0
      %812 = vmatpush1.msra.mxu0 0.0
      %813 = vmatprep.subr.mxu0 0.0
      %814 = vmatpush1.msra.mxu0 0.0
      %815 = vmatprep.subr.mxu0 0.0
      %816 = vmatpush1.msra.mxu0 0.0
      %817 = vmatprep.subr.mxu0 0.0
      %818 = vmatpush1.msra.mxu0 0.0
      %819 = vmatprep.subr.mxu0 0.0
      %820 = vmatpush1.msra.mxu0 0.0
      %821 = vmatprep.subr.mxu0 0.0
      %822 = vmatpush1.msra.mxu0 0.0
      %823 = vmatprep.subr.mxu0 0.0
      %824 = vmatpush1.msra.mxu0 0.0
      %825 = vmatprep.subr.mxu0 0.0
      %826 = vmatpush1.msra.mxu0 0.0
      %827 = vmatprep.subr.mxu0 0.0
      %828 = vmatpush1.msra.mxu0 0.0
      %829 = vmatprep.subr.mxu0 0.0
      %830 = vmatpush1.msra.mxu0 0.0
      %831 = vmatprep.subr.mxu0 0.0
      %832 = vmatpush1.msra.mxu0 %v793
      %833 = vmatprep.subr.mxu0 0.0
      %834 = vmatpush1.msra.mxu0 %v792
      %835 = vmatprep.subr.mxu0 0.0
      %836 = vmatpush1.msra.mxu0 %v791
      %837 = vmatprep.subr.mxu0 0.0
      %838 = vmatpush1.msra.mxu0 %v790
      %839 = vmatprep.subr.mxu0 0.0
      %840 = vmatpush2.msra.mxu0 0.0
      %841 = vmatprep.subr.mxu0 0.0
      %842 = vmatpush2.msra.mxu0 0.0
      %843 = vmatprep.subr.mxu0 0.0
      %844 = vmatpush2.msra.mxu0 0.0
      %845 = vmatprep.subr.mxu0 0.0
      %846 = vmatpush2.msra.mxu0 0.0
      %847 = vmatprep.subr.mxu0 0.0
      %848 = vmatpush2.msra.mxu0 0.0
      %849 = vmatprep.subr.mxu0 0.0
      %850 = vmatpush2.msra.mxu0 0.0
      %851 = vmatprep.subr.mxu0 0.0
      %852 = vmatpush2.msra.mxu0 0.0
      %853 = vmatprep.subr.mxu0 0.0
      %854 = vmatpush2.msra.mxu0 0.0
      %855 = vmatprep.subr.mxu0 0.0
      %856 = vmatpush2.msra.mxu0 0.0
      %857 = vmatprep.subr.mxu0 0.0
      %858 = vmatpush2.msra.mxu0 0.0
      %859 = vmatprep.subr.mxu0 0.0
      %860 = vmatpush2.msra.mxu0 0.0
      %861 = vmatprep.subr.mxu0 0.0
      %862 = vmatpush2.msra.mxu0 0.0
      %863 = vmatprep.subr.mxu0 0.0
      %864 = vmatpush2.msra.mxu0 0.0
      %865 = vmatprep.subr.mxu0 0.0
      %866 = vmatpush2.msra.mxu0 0.0
      %867 = vmatprep.subr.mxu0 0.0
      %868 = vmatpush2.msra.mxu0 0.0
      %869 = vmatprep.subr.mxu0 0.0
      %870 = vmatpush2.msra.mxu0 0.0
      %871 = vmatprep.mubr.f32.mxu0 0.0
      %872 = vmatmul.mubr.f32.gmra.mxu0 %v802
      %v873 = vpop.f32.mrf.mxu0
      %v874 = vadd.f32 %v799, %v873
      %v875 = vpop.f32.mrf.mxu0
      %876 = vmatprep.mubr.f32.mxu0 0.0
      %877 = vmatmul.mubr.f32.gmra.mxu0 %v805
      %v878 = vpop.f32.mrf.mxu0
      %v879 = vadd.f32 %v799, %v878
      %v880 = vpop.f32.mrf.mxu0
      %881 = vdwg.mxu0
      %v882 = vmul.f32 %v874, 0.35355338
      %v883 = vmul.f32 %v879, 0.35355338
      %v884 = vlaneseq
      %v885 = vshrl.u32 %v884, 7
      %v886 = vlaneseq
      %v887 = vand.u32 %v886, 127
      %vm888 = vcmp.gt.s32.totalorder %v887, %v885
      %v889 = vsel %vm888, -1e+09, 0.0
      %v890 = vld [vmem:[%s1] sm:$0x3]
      %v891 = vld [vmem:[%s707] sm:$0xff]
      %v892 = vld [vmem:[%s707 + $0x8] sm:$0xff]
      %v893 = vld [vmem:[%s707 + $0x10] sm:$0xff]
      %v894 = vld [vmem:[%s707 + $0x18] sm:$0xff]
      %v895 = vlaneseq
      %v896 = vshrl.u32 %v895, 7
      %v897 = vsub.s32 0, %v896
      %v898 = vrot.slane %v890, %v897
      %v899 = vadd.f32 %v889, %v898
      %901 = vrot.lane.b32.xlu0 %v874, 96
      %v902 = vpop.permute.xlu0 %901
      %vm903 = vcmask 64512
      %v905 = vsel %vm903, %v882, 0
      %v907 = vsel %vm903, %v902, 0
      %909 = vmatprep.subr.mxu0 0.0
      %910 = vmatpush1.xpose.msra.mxu0 0.0
      %911 = vmatprep.subr.mxu0 0.0
      %912 = vmatpush1.xpose.msra.mxu0 0.0
      %913 = vmatprep.subr.mxu0 0.0
      %914 = vmatpush1.xpose.msra.mxu0 0.0
      %915 = vmatprep.subr.mxu0 0.0
      %916 = vmatpush1.xpose.msra.mxu0 0.0
      %917 = vmatprep.subr.mxu0 0.0
      %918 = vmatpush1.xpose.msra.mxu0 0.0
      %919 = vmatprep.subr.mxu0 0.0
      %920 = vmatpush1.xpose.msra.mxu0 0.0
      %921 = vmatprep.subr.mxu0 0.0
      %922 = vmatpush1.xpose.msra.mxu0 0.0
      %923 = vmatprep.subr.mxu0 0.0
      %924 = vmatpush1.xpose.msra.mxu0 0.0
      %925 = vmatprep.subr.mxu0 0.0
      %926 = vmatpush1.xpose.msra.mxu0 0.0
      %927 = vmatprep.subr.mxu0 0.0
      %928 = vmatpush1.xpose.msra.mxu0 0.0
      %929 = vmatprep.subr.mxu0 0.0
      %930 = vmatpush1.xpose.msra.mxu0 0.0
      %931 = vmatprep.subr.mxu0 0.0
      %932 = vmatpush1.xpose.msra.mxu0 0.0
      %933 = vmatprep.subr.mxu0 0.0
      %934 = vmatpush1.xpose.msra.mxu0 0.0
      %935 = vmatprep.subr.mxu0 0.0
      %936 = vmatpush1.xpose.msra.mxu0 0.0
      %937 = vmatprep.subr.mxu0 0.0
      %938 = vmatpush1.xpose.msra.mxu0 0.0
      %939 = vmatprep.subr.mxu0 0.0
      %940 = vmatpush1.xpose.msra.mxu0 %v907
      %941 = vmatprep.subr.mxu0 0.0
      %942 = vmatpush2.xpose.msra.mxu0 0.0
      %943 = vmatprep.subr.mxu0 0.0
      %944 = vmatpush2.xpose.msra.mxu0 0.0
      %945 = vmatprep.subr.mxu0 0.0
      %946 = vmatpush2.xpose.msra.mxu0 0.0
      %947 = vmatprep.subr.mxu0 0.0
      %948 = vmatpush2.xpose.msra.mxu0 0.0
      %949 = vmatprep.subr.mxu0 0.0
      %950 = vmatpush2.xpose.msra.mxu0 0.0
      %951 = vmatprep.subr.mxu0 0.0
      %952 = vmatpush2.xpose.msra.mxu0 0.0
      %953 = vmatprep.subr.mxu0 0.0
      %954 = vmatpush2.xpose.msra.mxu0 0.0
      %955 = vmatprep.subr.mxu0 0.0
      %956 = vmatpush2.xpose.msra.mxu0 0.0
      %957 = vmatprep.subr.mxu0 0.0
      %958 = vmatpush2.xpose.msra.mxu0 0.0
      %959 = vmatprep.subr.mxu0 0.0
      %960 = vmatpush2.xpose.msra.mxu0 0.0
      %961 = vmatprep.subr.mxu0 0.0
      %962 = vmatpush2.xpose.msra.mxu0 0.0
      %963 = vmatprep.subr.mxu0 0.0
      %964 = vmatpush2.xpose.msra.mxu0 0.0
      %965 = vmatprep.subr.mxu0 0.0
      %966 = vmatpush2.xpose.msra.mxu0 0.0
      %967 = vmatprep.subr.mxu0 0.0
      %968 = vmatpush2.xpose.msra.mxu0 0.0
      %969 = vmatprep.subr.mxu0 0.0
      %970 = vmatpush2.xpose.msra.mxu0 0.0
      %971 = vmatprep.subr.mxu0 0.0
      %972 = vmatpush2.xpose.msra.mxu0 0.0
      %973 = vmatprep.mubr.f32.mxu0 0.0
      %974 = vmatmul.mubr.f32.gmra.mxu0 %v905
      %v975 = vpop.f32.mrf.mxu0
      %v976 = vadd.f32 %v899, %v975
      %v977 = vpop.f32.mrf.mxu0
      %978 = vdwg.mxu0
      %v979 = vsel %vm903, %v976, -inf
      %980 = vmax.xlane.f32.xlu0 %v979
      %v981 = vpop.xlane.xlu0 %980
      %v982 = vsub.f32 %v976, %v981
      %v983 = vmul.f32 %v982, 1.442695
      %v984 = vpow.pop %v983
      %v985 = vsel %vm903, %v984, 0.0
      %986 = vadd.xlane.f32.xlu0 %v985
      %v987 = vpop.xlane.xlu0 %986
      %v988 = vrcp.pop %v987
      %v989 = vmul.f32 %v984, %v988
      %990 = vrot.lane.b32.xlu0 %v874, 64
      %v991 = vpop.permute.xlu0 %990
      %v994 = vsel %vm903, %v989, 0
      %996 = vmatprep.subr.mxu0 0.0
      %997 = vmatpush1.msra.mxu0 0.0
      %998 = vmatprep.subr.mxu0 0.0
      %999 = vmatpush1.msra.mxu0 0.0
      %1000 = vmatprep.subr.mxu0 0.0
      %1001 = vmatpush1.msra.mxu0 0.0
      %1002 = vmatprep.subr.mxu0 0.0
      %1003 = vmatpush1.msra.mxu0 0.0
      %1004 = vmatprep.subr.mxu0 0.0
      %1005 = vmatpush1.msra.mxu0 0.0
      %1006 = vmatprep.subr.mxu0 0.0
      %1007 = vmatpush1.msra.mxu0 0.0
      %1008 = vmatprep.subr.mxu0 0.0
      %1009 = vmatpush1.msra.mxu0 0.0
      %1010 = vmatprep.subr.mxu0 0.0
      %1011 = vmatpush1.msra.mxu0 0.0
      %1012 = vmatprep.subr.mxu0 0.0
      %1013 = vmatpush1.msra.mxu0 0.0
      %1014 = vmatprep.subr.mxu0 0.0
      %1015 = vmatpush1.msra.mxu0 0.0
      %1016 = vmatprep.subr.mxu0 0.0
      %1017 = vmatpush1.msra.mxu0 0.0
      %1018 = vmatprep.subr.mxu0 0.0
      %1019 = vmatpush1.msra.mxu0 0.0
      %1020 = vmatprep.subr.mxu0 0.0
      %1021 = vmatpush1.msra.mxu0 0.0
      %1022 = vmatprep.subr.mxu0 0.0
      %1023 = vmatpush1.msra.mxu0 0.0
      %1024 = vmatprep.subr.mxu0 0.0
      %1025 = vmatpush1.msra.mxu0 0.0
      %1026 = vmatprep.subr.mxu0 0.0
      %1027 = vmatpush1.msra.mxu0 %v991
      %1028 = vmatprep.subr.mxu0 0.0
      %1029 = vmatpush2.msra.mxu0 0.0
      %1030 = vmatprep.subr.mxu0 0.0
      %1031 = vmatpush2.msra.mxu0 0.0
      %1032 = vmatprep.subr.mxu0 0.0
      %1033 = vmatpush2.msra.mxu0 0.0
      %1034 = vmatprep.subr.mxu0 0.0
      %1035 = vmatpush2.msra.mxu0 0.0
      %1036 = vmatprep.subr.mxu0 0.0
      %1037 = vmatpush2.msra.mxu0 0.0
      %1038 = vmatprep.subr.mxu0 0.0
      %1039 = vmatpush2.msra.mxu0 0.0
      %1040 = vmatprep.subr.mxu0 0.0
      %1041 = vmatpush2.msra.mxu0 0.0
      %1042 = vmatprep.subr.mxu0 0.0
      %1043 = vmatpush2.msra.mxu0 0.0
      %1044 = vmatprep.subr.mxu0 0.0
      %1045 = vmatpush2.msra.mxu0 0.0
      %1046 = vmatprep.subr.mxu0 0.0
      %1047 = vmatpush2.msra.mxu0 0.0
      %1048 = vmatprep.subr.mxu0 0.0
      %1049 = vmatpush2.msra.mxu0 0.0
      %1050 = vmatprep.subr.mxu0 0.0
      %1051 = vmatpush2.msra.mxu0 0.0
      %1052 = vmatprep.subr.mxu0 0.0
      %1053 = vmatpush2.msra.mxu0 0.0
      %1054 = vmatprep.subr.mxu0 0.0
      %1055 = vmatpush2.msra.mxu0 0.0
      %1056 = vmatprep.subr.mxu0 0.0
      %1057 = vmatpush2.msra.mxu0 0.0
      %1058 = vmatprep.subr.mxu0 0.0
      %1059 = vmatpush2.msra.mxu0 0.0
      %1060 = vmatprep.mubr.f32.mxu0 0.0
      %1061 = vmatmul.mubr.f32.gmra.mxu0 %v994
      %v1062 = vpop.f32.mrf.mxu0
      %v1063 = vadd.f32 0.0, %v1062
      %v1064 = vpop.f32.mrf.mxu0
      %1065 = vdwg.mxu0
      %1066 = vrot.lane.b32.xlu0 %v882, 120
      %v1067 = vpop.permute.xlu0 %1066
      %1068 = vrot.lane.b32.xlu0 %v874, 88
      %v1069 = vpop.permute.xlu0 %1068
      %v1070 = vsel %vm903, %v1067, 0
      %v1072 = vsel %vm903, %v1069, 0
      %1074 = vmatprep.subr.mxu0 0.0
      %1075 = vmatpush1.xpose.msra.mxu0 0.0
      %1076 = vmatprep.subr.mxu0 0.0
      %1077 = vmatpush1.xpose.msra.mxu0 0.0
      %1078 = vmatprep.subr.mxu0 0.0
      %1079 = vmatpush1.xpose.msra.mxu0 0.0
      %1080 = vmatprep.subr.mxu0 0.0
      %1081 = vmatpush1.xpose.msra.mxu0 0.0
      %1082 = vmatprep.subr.mxu0 0.0
      %1083 = vmatpush1.xpose.msra.mxu0 0.0
      %1084 = vmatprep.subr.mxu0 0.0
      %1085 = vmatpush1.xpose.msra.mxu0 0.0
      %1086 = vmatprep.subr.mxu0 0.0
      %1087 = vmatpush1.xpose.msra.mxu0 0.0
      %1088 = vmatprep.subr.mxu0 0.0
      %1089 = vmatpush1.xpose.msra.mxu0 0.0
      %1090 = vmatprep.subr.mxu0 0.0
      %1091 = vmatpush1.xpose.msra.mxu0 0.0
      %1092 = vmatprep.subr.mxu0 0.0
      %1093 = vmatpush1.xpose.msra.mxu0 0.0
      %1094 = vmatprep.subr.mxu0 0.0
      %1095 = vmatpush1.xpose.msra.mxu0 0.0
      %1096 = vmatprep.subr.mxu0 0.0
      %1097 = vmatpush1.xpose.msra.mxu0 0.0
      %1098 = vmatprep.subr.mxu0 0.0
      %1099 = vmatpush1.xpose.msra.mxu0 0.0
      %1100 = vmatprep.subr.mxu0 0.0
      %1101 = vmatpush1.xpose.msra.mxu0 0.0
      %1102 = vmatprep.subr.mxu0 0.0
      %1103 = vmatpush1.xpose.msra.mxu0 0.0
      %1104 = vmatprep.subr.mxu0 0.0
      %1105 = vmatpush1.xpose.msra.mxu0 %v1072
      %1106 = vmatprep.subr.mxu0 0.0
      %1107 = vmatpush2.xpose.msra.mxu0 0.0
      %1108 = vmatprep.subr.mxu0 0.0
      %1109 = vmatpush2.xpose.msra.mxu0 0.0
      %1110 = vmatprep.subr.mxu0 0.0
      %1111 = vmatpush2.xpose.msra.mxu0 0.0
      %1112 = vmatprep.subr.mxu0 0.0
      %1113 = vmatpush2.xpose.msra.mxu0 0.0
      %1114 = vmatprep.subr.mxu0 0.0
      %1115 = vmatpush2.xpose.msra.mxu0 0.0
      %1116 = vmatprep.subr.mxu0 0.0
      %1117 = vmatpush2.xpose.msra.mxu0 0.0
      %1118 = vmatprep.subr.mxu0 0.0
      %1119 = vmatpush2.xpose.msra.mxu0 0.0
      %1120 = vmatprep.subr.mxu0 0.0
      %1121 = vmatpush2.xpose.msra.mxu0 0.0
      %1122 = vmatprep.subr.mxu0 0.0
      %1123 = vmatpush2.xpose.msra.mxu0 0.0
      %1124 = vmatprep.subr.mxu0 0.0
      %1125 = vmatpush2.xpose.msra.mxu0 0.0
      %1126 = vmatprep.subr.mxu0 0.0
      %1127 = vmatpush2.xpose.msra.mxu0 0.0
      %1128 = vmatprep.subr.mxu0 0.0
      %1129 = vmatpush2.xpose.msra.mxu0 0.0
      %1130 = vmatprep.subr.mxu0 0.0
      %1131 = vmatpush2.xpose.msra.mxu0 0.0
      %1132 = vmatprep.subr.mxu0 0.0
      %1133 = vmatpush2.xpose.msra.mxu0 0.0
      %1134 = vmatprep.subr.mxu0 0.0
      %1135 = vmatpush2.xpose.msra.mxu0 0.0
      %1136 = vmatprep.subr.mxu0 0.0
      %1137 = vmatpush2.xpose.msra.mxu0 0.0
      %1138 = vmatprep.mubr.f32.mxu0 0.0
      %1139 = vmatmul.mubr.f32.gmra.mxu0 %v1070
      %v1140 = vpop.f32.mrf.mxu0
      %v1141 = vadd.f32 %v899, %v1140
      %v1142 = vpop.f32.mrf.mxu0
      %1143 = vdwg.mxu0
      %v1144 = vsel %vm903, %v1141, -inf
      %1145 = vmax.xlane.f32.xlu0 %v1144
      %v1146 = vpop.xlane.xlu0 %1145
      %v1147 = vsub.f32 %v1141, %v1146
      %v1148 = vmul.f32 %v1147, 1.442695
      %v1149 = vpow.pop %v1148
      %v1150 = vsel %vm903, %v1149, 0.0
      %1151 = vadd.xlane.f32.xlu0 %v1150
      %v1152 = vpop.xlane.xlu0 %1151
      %v1153 = vrcp.pop %v1152
      %v1154 = vmul.f32 %v1149, %v1153
      %1155 = vrot.lane.b32.xlu0 %v874, 56
      %v1156 = vpop.permute.xlu0 %1155
      %v1159 = vsel %vm903, %v1154, 0
      %1161 = vmatprep.subr.mxu0 0.0
      %1162 = vmatpush1.msra.mxu0 0.0
      %1163 = vmatprep.subr.mxu0 0.0
      %1164 = vmatpush1.msra.mxu0 0.0
      %1165 = vmatprep.subr.mxu0 0.0
      %1166 = vmatpush1.msra.mxu0 0.0
      %1167 = vmatprep.subr.mxu0 0.0
      %1168 = vmatpush1.msra.mxu0 0.0
      %1169 = vmatprep.subr.mxu0 0.0
      %1170 = vmatpush1.msra.mxu0 0.0
      %1171 = vmatprep.subr.mxu0 0.0
      %1172 = vmatpush1.msra.mxu0 0.0
      %1173 = vmatprep.subr.mxu0 0.0
      %1174 = vmatpush1.msra.mxu0 0.0
      %1175 = vmatprep.subr.mxu0 0.0
      %1176 = vmatpush1.msra.mxu0 0.0
      %1177 = vmatprep.subr.mxu0 0.0
      %1178 = vmatpush1.msra.mxu0 0.0
      %1179 = vmatprep.subr.mxu0 0.0
      %1180 = vmatpush1.msra.mxu0 0.0
      %1181 = vmatprep.subr.mxu0 0.0
      %1182 = vmatpush1.msra.mxu0 0.0
      %1183 = vmatprep.subr.mxu0 0.0
      %1184 = vmatpush1.msra.mxu0 0.0
      %1185 = vmatprep.subr.mxu0 0.0
      %1186 = vmatpush1.msra.mxu0 0.0
      %1187 = vmatprep.subr.mxu0 0.0
      %1188 = vmatpush1.msra.mxu0 0.0
      %1189 = vmatprep.subr.mxu0 0.0
      %1190 = vmatpush1.msra.mxu0 0.0
      %1191 = vmatprep.subr.mxu0 0.0
      %1192 = vmatpush1.msra.mxu0 %v1156
      %1193 = vmatprep.subr.mxu0 0.0
      %1194 = vmatpush2.msra.mxu0 0.0
      %1195 = vmatprep.subr.mxu0 0.0
      %1196 = vmatpush2.msra.mxu0 0.0
      %1197 = vmatprep.subr.mxu0 0.0
      %1198 = vmatpush2.msra.mxu0 0.0
      %1199 = vmatprep.subr.mxu0 0.0
      %1200 = vmatpush2.msra.mxu0 0.0
      %1201 = vmatprep.subr.mxu0 0.0
      %1202 = vmatpush2.msra.mxu0 0.0
      %1203 = vmatprep.subr.mxu0 0.0
      %1204 = vmatpush2.msra.mxu0 0.0
      %1205 = vmatprep.subr.mxu0 0.0
      %1206 = vmatpush2.msra.mxu0 0.0
      %1207 = vmatprep.subr.mxu0 0.0
      %1208 = vmatpush2.msra.mxu0 0.0
      %1209 = vmatprep.subr.mxu0 0.0
      %1210 = vmatpush2.msra.mxu0 0.0
      %1211 = vmatprep.subr.mxu0 0.0
      %1212 = vmatpush2.msra.mxu0 0.0
      %1213 = vmatprep.subr.mxu0 0.0
      %1214 = vmatpush2.msra.mxu0 0.0
      %1215 = vmatprep.subr.mxu0 0.0
      %1216 = vmatpush2.msra.mxu0 0.0
      %1217 = vmatprep.subr.mxu0 0.0
      %1218 = vmatpush2.msra.mxu0 0.0
      %1219 = vmatprep.subr.mxu0 0.0
      %1220 = vmatpush2.msra.mxu0 0.0
      %1221 = vmatprep.subr.mxu0 0.0
      %1222 = vmatpush2.msra.mxu0 0.0
      %1223 = vmatprep.subr.mxu0 0.0
      %1224 = vmatpush2.msra.mxu0 0.0
      %1225 = vmatprep.mubr.f32.mxu0 0.0
      %1226 = vmatmul.mubr.f32.gmra.mxu0 %v1159
      %v1227 = vpop.f32.mrf.mxu0
      %v1228 = vadd.f32 0.0, %v1227
      %v1229 = vpop.f32.mrf.mxu0
      %1230 = vdwg.mxu0
      %v1232 = vsel %vm903, %v1228, 0
      %1234 = vmatprep.subr.mxu0 0.0
      %1235 = vmatpush1.msra.mxu0 0.0
      %1236 = vmatprep.subr.mxu0 0.0
      %1237 = vmatpush1.msra.mxu0 0.0
      %1238 = vmatprep.subr.mxu0 0.0
      %1239 = vmatpush1.msra.mxu0 0.0
      %1240 = vmatprep.subr.mxu0 0.0
      %1241 = vmatpush1.msra.mxu0 0.0
      %1242 = vmatprep.subr.mxu0 0.0
      %1243 = vmatpush1.msra.mxu0 0.0
      %1244 = vmatprep.subr.mxu0 0.0
      %1245 = vmatpush1.msra.mxu0 0.0
      %1246 = vmatprep.subr.mxu0 0.0
      %1247 = vmatpush1.msra.mxu0 0.0
      %1248 = vmatprep.subr.mxu0 0.0
      %1249 = vmatpush1.msra.mxu0 0.0
      %1250 = vmatprep.subr.mxu0 0.0
      %1251 = vmatpush1.msra.mxu0 0.0
      %1252 = vmatprep.subr.mxu0 0.0
      %1253 = vmatpush1.msra.mxu0 0.0
      %1254 = vmatprep.subr.mxu0 0.0
      %1255 = vmatpush1.msra.mxu0 0.0
      %1256 = vmatprep.subr.mxu0 0.0
      %1257 = vmatpush1.msra.mxu0 0.0
      %1258 = vmatprep.subr.mxu0 0.0
      %1259 = vmatpush1.msra.mxu0 0.0
      %1260 = vmatprep.subr.mxu0 0.0
      %1261 = vmatpush1.msra.mxu0 0.0
      %1262 = vmatprep.subr.mxu0 0.0
      %1263 = vmatpush1.msra.mxu0 0.0
      %1264 = vmatprep.subr.mxu0 0.0
      %1265 = vmatpush1.msra.mxu0 %v892
      %1266 = vmatprep.subr.mxu0 0.0
      %1267 = vmatpush2.msra.mxu0 0.0
      %1268 = vmatprep.subr.mxu0 0.0
      %1269 = vmatpush2.msra.mxu0 0.0
      %1270 = vmatprep.subr.mxu0 0.0
      %1271 = vmatpush2.msra.mxu0 0.0
      %1272 = vmatprep.subr.mxu0 0.0
      %1273 = vmatpush2.msra.mxu0 0.0
      %1274 = vmatprep.subr.mxu0 0.0
      %1275 = vmatpush2.msra.mxu0 0.0
      %1276 = vmatprep.subr.mxu0 0.0
      %1277 = vmatpush2.msra.mxu0 0.0
      %1278 = vmatprep.subr.mxu0 0.0
      %1279 = vmatpush2.msra.mxu0 0.0
      %1280 = vmatprep.subr.mxu0 0.0
      %1281 = vmatpush2.msra.mxu0 0.0
      %1282 = vmatprep.subr.mxu0 0.0
      %1283 = vmatpush2.msra.mxu0 0.0
      %1284 = vmatprep.subr.mxu0 0.0
      %1285 = vmatpush2.msra.mxu0 0.0
      %1286 = vmatprep.subr.mxu0 0.0
      %1287 = vmatpush2.msra.mxu0 0.0
      %1288 = vmatprep.subr.mxu0 0.0
      %1289 = vmatpush2.msra.mxu0 0.0
      %1290 = vmatprep.subr.mxu0 0.0
      %1291 = vmatpush2.msra.mxu0 0.0
      %1292 = vmatprep.subr.mxu0 0.0
      %1293 = vmatpush2.msra.mxu0 0.0
      %1294 = vmatprep.subr.mxu0 0.0
      %1295 = vmatpush2.msra.mxu0 0.0
      %1296 = vmatprep.subr.mxu0 0.0
      %1297 = vmatpush2.msra.mxu0 0.0
      %1298 = vmatprep.mubr.f32.mxu0 0.0
      %1299 = vmatmul.mubr.f32.gmra.mxu0 %v1232
      %v1300 = vpop.f32.mrf.mxu0
      %v1301 = vadd.f32 0.0, %v1300
      %v1302 = vpop.f32.mrf.mxu0
      %1303 = vdwg.mxu0
      %v1305 = vsel %vm903, %v1063, 0
      %1307 = vmatprep.subr.mxu0 0.0
      %1308 = vmatpush1.msra.mxu0 0.0
      %1309 = vmatprep.subr.mxu0 0.0
      %1310 = vmatpush1.msra.mxu0 0.0
      %1311 = vmatprep.subr.mxu0 0.0
      %1312 = vmatpush1.msra.mxu0 0.0
      %1313 = vmatprep.subr.mxu0 0.0
      %1314 = vmatpush1.msra.mxu0 0.0
      %1315 = vmatprep.subr.mxu0 0.0
      %1316 = vmatpush1.msra.mxu0 0.0
      %1317 = vmatprep.subr.mxu0 0.0
      %1318 = vmatpush1.msra.mxu0 0.0
      %1319 = vmatprep.subr.mxu0 0.0
      %1320 = vmatpush1.msra.mxu0 0.0
      %1321 = vmatprep.subr.mxu0 0.0
      %1322 = vmatpush1.msra.mxu0 0.0
      %1323 = vmatprep.subr.mxu0 0.0
      %1324 = vmatpush1.msra.mxu0 0.0
      %1325 = vmatprep.subr.mxu0 0.0
      %1326 = vmatpush1.msra.mxu0 0.0
      %1327 = vmatprep.subr.mxu0 0.0
      %1328 = vmatpush1.msra.mxu0 0.0
      %1329 = vmatprep.subr.mxu0 0.0
      %1330 = vmatpush1.msra.mxu0 0.0
      %1331 = vmatprep.subr.mxu0 0.0
      %1332 = vmatpush1.msra.mxu0 0.0
      %1333 = vmatprep.subr.mxu0 0.0
      %1334 = vmatpush1.msra.mxu0 0.0
      %1335 = vmatprep.subr.mxu0 0.0
      %1336 = vmatpush1.msra.mxu0 0.0
      %1337 = vmatprep.subr.mxu0 0.0
      %1338 = vmatpush1.msra.mxu0 %v891
      %1339 = vmatprep.subr.mxu0 0.0
      %1340 = vmatpush2.msra.mxu0 0.0
      %1341 = vmatprep.subr.mxu0 0.0
      %1342 = vmatpush2.msra.mxu0 0.0
      %1343 = vmatprep.subr.mxu0 0.0
      %1344 = vmatpush2.msra.mxu0 0.0
      %1345 = vmatprep.subr.mxu0 0.0
      %1346 = vmatpush2.msra.mxu0 0.0
      %1347 = vmatprep.subr.mxu0 0.0
      %1348 = vmatpush2.msra.mxu0 0.0
      %1349 = vmatprep.subr.mxu0 0.0
      %1350 = vmatpush2.msra.mxu0 0.0
      %1351 = vmatprep.subr.mxu0 0.0
      %1352 = vmatpush2.msra.mxu0 0.0
      %1353 = vmatprep.subr.mxu0 0.0
      %1354 = vmatpush2.msra.mxu0 0.0
      %1355 = vmatprep.subr.mxu0 0.0
      %1356 = vmatpush2.msra.mxu0 0.0
      %1357 = vmatprep.subr.mxu0 0.0
      %1358 = vmatpush2.msra.mxu0 0.0
      %1359 = vmatprep.subr.mxu0 0.0
      %1360 = vmatpush2.msra.mxu0 0.0
      %1361 = vmatprep.subr.mxu0 0.0
      %1362 = vmatpush2.msra.mxu0 0.0
      %1363 = vmatprep.subr.mxu0 0.0
      %1364 = vmatpush2.msra.mxu0 0.0
      %1365 = vmatprep.subr.mxu0 0.0
      %1366 = vmatpush2.msra.mxu0 0.0
      %1367 = vmatprep.subr.mxu0 0.0
      %1368 = vmatpush2.msra.mxu0 0.0
      %1369 = vmatprep.subr.mxu0 0.0
      %1370 = vmatpush2.msra.mxu0 0.0
      %1371 = vmatprep.mubr.f32.mxu0 0.0
      %1372 = vmatmul.mubr.f32.gmra.mxu0 %v1305
      %v1373 = vpop.f32.mrf.mxu0
      %v1374 = vadd.f32 %v1301, %v1373
      %v1375 = vpop.f32.mrf.mxu0
      %1376 = vdwg.mxu0
      %1377 = vrot.lane.b32.xlu0 %v882, 112
      %v1378 = vpop.permute.xlu0 %1377
      %1379 = vrot.lane.b32.xlu0 %v874, 80
      %v1380 = vpop.permute.xlu0 %1379
      %v1381 = vsel %vm903, %v1378, 0
      %v1383 = vsel %vm903, %v1380, 0
      %1385 = vmatprep.subr.mxu0 0.0
      %1386 = vmatpush1.xpose.msra.mxu0 0.0
      %1387 = vmatprep.subr.mxu0 0.0
      %1388 = vmatpush1.xpose.msra.mxu0 0.0
      %1389 = vmatprep.subr.mxu0 0.0
      %1390 = vmatpush1.xpose.msra.mxu0 0.0
      %1391 = vmatprep.subr.mxu0 0.0
      %1392 = vmatpush1.xpose.msra.mxu0 0.0
      %1393 = vmatprep.subr.mxu0 0.0
      %1394 = vmatpush1.xpose.msra.mxu0 0.0
      %1395 = vmatprep.subr.mxu0 0.0
      %1396 = vmatpush1.xpose.msra.mxu0 0.0
      %1397 = vmatprep.subr.mxu0 0.0
      %1398 = vmatpush1.xpose.msra.mxu0 0.0
      %1399 = vmatprep.subr.mxu0 0.0
      %1400 = vmatpush1.xpose.msra.mxu0 0.0
      %1401 = vmatprep.subr.mxu0 0.0
      %1402 = vmatpush1.xpose.msra.mxu0 0.0
      %1403 = vmatprep.subr.mxu0 0.0
      %1404 = vmatpush1.xpose.msra.mxu0 0.0
      %1405 = vmatprep.subr.mxu0 0.0
      %1406 = vmatpush1.xpose.msra.mxu0 0.0
      %1407 = vmatprep.subr.mxu0 0.0
      %1408 = vmatpush1.xpose.msra.mxu0 0.0
      %1409 = vmatprep.subr.mxu0 0.0
      %1410 = vmatpush1.xpose.msra.mxu0 0.0
      %1411 = vmatprep.subr.mxu0 0.0
      %1412 = vmatpush1.xpose.msra.mxu0 0.0
      %1413 = vmatprep.subr.mxu0 0.0
      %1414 = vmatpush1.xpose.msra.mxu0 0.0
      %1415 = vmatprep.subr.mxu0 0.0
      %1416 = vmatpush1.xpose.msra.mxu0 %v1383
      %1417 = vmatprep.subr.mxu0 0.0
      %1418 = vmatpush2.xpose.msra.mxu0 0.0
      %1419 = vmatprep.subr.mxu0 0.0
      %1420 = vmatpush2.xpose.msra.mxu0 0.0
      %1421 = vmatprep.subr.mxu0 0.0
      %1422 = vmatpush2.xpose.msra.mxu0 0.0
      %1423 = vmatprep.subr.mxu0 0.0
      %1424 = vmatpush2.xpose.msra.mxu0 0.0
      %1425 = vmatprep.subr.mxu0 0.0
      %1426 = vmatpush2.xpose.msra.mxu0 0.0
      %1427 = vmatprep.subr.mxu0 0.0
      %1428 = vmatpush2.xpose.msra.mxu0 0.0
      %1429 = vmatprep.subr.mxu0 0.0
      %1430 = vmatpush2.xpose.msra.mxu0 0.0
      %1431 = vmatprep.subr.mxu0 0.0
      %1432 = vmatpush2.xpose.msra.mxu0 0.0
      %1433 = vmatprep.subr.mxu0 0.0
      %1434 = vmatpush2.xpose.msra.mxu0 0.0
      %1435 = vmatprep.subr.mxu0 0.0
      %1436 = vmatpush2.xpose.msra.mxu0 0.0
      %1437 = vmatprep.subr.mxu0 0.0
      %1438 = vmatpush2.xpose.msra.mxu0 0.0
      %1439 = vmatprep.subr.mxu0 0.0
      %1440 = vmatpush2.xpose.msra.mxu0 0.0
      %1441 = vmatprep.subr.mxu0 0.0
      %1442 = vmatpush2.xpose.msra.mxu0 0.0
      %1443 = vmatprep.subr.mxu0 0.0
      %1444 = vmatpush2.xpose.msra.mxu0 0.0
      %1445 = vmatprep.subr.mxu0 0.0
      %1446 = vmatpush2.xpose.msra.mxu0 0.0
      %1447 = vmatprep.subr.mxu0 0.0
      %1448 = vmatpush2.xpose.msra.mxu0 0.0
      %1449 = vmatprep.mubr.f32.mxu0 0.0
      %1450 = vmatmul.mubr.f32.gmra.mxu0 %v1381
      %v1451 = vpop.f32.mrf.mxu0
      %v1452 = vadd.f32 %v899, %v1451
      %v1453 = vpop.f32.mrf.mxu0
      %1454 = vdwg.mxu0
      %v1455 = vsel %vm903, %v1452, -inf
      %1456 = vmax.xlane.f32.xlu0 %v1455
      %v1457 = vpop.xlane.xlu0 %1456
      %v1458 = vsub.f32 %v1452, %v1457
      %v1459 = vmul.f32 %v1458, 1.442695
      %v1460 = vpow.pop %v1459
      %v1461 = vsel %vm903, %v1460, 0.0
      %1462 = vadd.xlane.f32.xlu0 %v1461
      %v1463 = vpop.xlane.xlu0 %1462
      %v1464 = vrcp.pop %v1463
      %v1465 = vmul.f32 %v1460, %v1464
      %1466 = vrot.lane.b32.xlu0 %v874, 48
      %v1467 = vpop.permute.xlu0 %1466
      %v1470 = vsel %vm903, %v1465, 0
      %1472 = vmatprep.subr.mxu0 0.0
      %1473 = vmatpush1.msra.mxu0 0.0
      %1474 = vmatprep.subr.mxu0 0.0
      %1475 = vmatpush1.msra.mxu0 0.0
      %1476 = vmatprep.subr.mxu0 0.0
      %1477 = vmatpush1.msra.mxu0 0.0
      %1478 = vmatprep.subr.mxu0 0.0
      %1479 = vmatpush1.msra.mxu0 0.0
      %1480 = vmatprep.subr.mxu0 0.0
      %1481 = vmatpush1.msra.mxu0 0.0
      %1482 = vmatprep.subr.mxu0 0.0
      %1483 = vmatpush1.msra.mxu0 0.0
      %1484 = vmatprep.subr.mxu0 0.0
      %1485 = vmatpush1.msra.mxu0 0.0
      %1486 = vmatprep.subr.mxu0 0.0
      %1487 = vmatpush1.msra.mxu0 0.0
      %1488 = vmatprep.subr.mxu0 0.0
      %1489 = vmatpush1.msra.mxu0 0.0
      %1490 = vmatprep.subr.mxu0 0.0
      %1491 = vmatpush1.msra.mxu0 0.0
      %1492 = vmatprep.subr.mxu0 0.0
      %1493 = vmatpush1.msra.mxu0 0.0
      %1494 = vmatprep.subr.mxu0 0.0
      %1495 = vmatpush1.msra.mxu0 0.0
      %1496 = vmatprep.subr.mxu0 0.0
      %1497 = vmatpush1.msra.mxu0 0.0
      %1498 = vmatprep.subr.mxu0 0.0
      %1499 = vmatpush1.msra.mxu0 0.0
      %1500 = vmatprep.subr.mxu0 0.0
      %1501 = vmatpush1.msra.mxu0 0.0
      %1502 = vmatprep.subr.mxu0 0.0
      %1503 = vmatpush1.msra.mxu0 %v1467
      %1504 = vmatprep.subr.mxu0 0.0
      %1505 = vmatpush2.msra.mxu0 0.0
      %1506 = vmatprep.subr.mxu0 0.0
      %1507 = vmatpush2.msra.mxu0 0.0
      %1508 = vmatprep.subr.mxu0 0.0
      %1509 = vmatpush2.msra.mxu0 0.0
      %1510 = vmatprep.subr.mxu0 0.0
      %1511 = vmatpush2.msra.mxu0 0.0
      %1512 = vmatprep.subr.mxu0 0.0
      %1513 = vmatpush2.msra.mxu0 0.0
      %1514 = vmatprep.subr.mxu0 0.0
      %1515 = vmatpush2.msra.mxu0 0.0
      %1516 = vmatprep.subr.mxu0 0.0
      %1517 = vmatpush2.msra.mxu0 0.0
      %1518 = vmatprep.subr.mxu0 0.0
      %1519 = vmatpush2.msra.mxu0 0.0
      %1520 = vmatprep.subr.mxu0 0.0
      %1521 = vmatpush2.msra.mxu0 0.0
      %1522 = vmatprep.subr.mxu0 0.0
      %1523 = vmatpush2.msra.mxu0 0.0
      %1524 = vmatprep.subr.mxu0 0.0
      %1525 = vmatpush2.msra.mxu0 0.0
      %1526 = vmatprep.subr.mxu0 0.0
      %1527 = vmatpush2.msra.mxu0 0.0
      %1528 = vmatprep.subr.mxu0 0.0
      %1529 = vmatpush2.msra.mxu0 0.0
      %1530 = vmatprep.subr.mxu0 0.0
      %1531 = vmatpush2.msra.mxu0 0.0
      %1532 = vmatprep.subr.mxu0 0.0
      %1533 = vmatpush2.msra.mxu0 0.0
      %1534 = vmatprep.subr.mxu0 0.0
      %1535 = vmatpush2.msra.mxu0 0.0
      %1536 = vmatprep.mubr.f32.mxu0 0.0
      %1537 = vmatmul.mubr.f32.gmra.mxu0 %v1470
      %v1538 = vpop.f32.mrf.mxu0
      %v1539 = vadd.f32 0.0, %v1538
      %v1540 = vpop.f32.mrf.mxu0
      %1541 = vdwg.mxu0
      %v1543 = vsel %vm903, %v1539, 0
      %1545 = vmatprep.subr.mxu0 0.0
      %1546 = vmatpush1.msra.mxu0 0.0
      %1547 = vmatprep.subr.mxu0 0.0
      %1548 = vmatpush1.msra.mxu0 0.0
      %1549 = vmatprep.subr.mxu0 0.0
      %1550 = vmatpush1.msra.mxu0 0.0
      %1551 = vmatprep.subr.mxu0 0.0
      %1552 = vmatpush1.msra.mxu0 0.0
      %1553 = vmatprep.subr.mxu0 0.0
      %1554 = vmatpush1.msra.mxu0 0.0
      %1555 = vmatprep.subr.mxu0 0.0
      %1556 = vmatpush1.msra.mxu0 0.0
      %1557 = vmatprep.subr.mxu0 0.0
      %1558 = vmatpush1.msra.mxu0 0.0
      %1559 = vmatprep.subr.mxu0 0.0
      %1560 = vmatpush1.msra.mxu0 0.0
      %1561 = vmatprep.subr.mxu0 0.0
      %1562 = vmatpush1.msra.mxu0 0.0
      %1563 = vmatprep.subr.mxu0 0.0
      %1564 = vmatpush1.msra.mxu0 0.0
      %1565 = vmatprep.subr.mxu0 0.0
      %1566 = vmatpush1.msra.mxu0 0.0
      %1567 = vmatprep.subr.mxu0 0.0
      %1568 = vmatpush1.msra.mxu0 0.0
      %1569 = vmatprep.subr.mxu0 0.0
      %1570 = vmatpush1.msra.mxu0 0.0
      %1571 = vmatprep.subr.mxu0 0.0
      %1572 = vmatpush1.msra.mxu0 0.0
      %1573 = vmatprep.subr.mxu0 0.0
      %1574 = vmatpush1.msra.mxu0 0.0
      %1575 = vmatprep.subr.mxu0 0.0
      %1576 = vmatpush1.msra.mxu0 %v893
      %1577 = vmatprep.subr.mxu0 0.0
      %1578 = vmatpush2.msra.mxu0 0.0
      %1579 = vmatprep.subr.mxu0 0.0
      %1580 = vmatpush2.msra.mxu0 0.0
      %1581 = vmatprep.subr.mxu0 0.0
      %1582 = vmatpush2.msra.mxu0 0.0
      %1583 = vmatprep.subr.mxu0 0.0
      %1584 = vmatpush2.msra.mxu0 0.0
      %1585 = vmatprep.subr.mxu0 0.0
      %1586 = vmatpush2.msra.mxu0 0.0
      %1587 = vmatprep.subr.mxu0 0.0
      %1588 = vmatpush2.msra.mxu0 0.0
      %1589 = vmatprep.subr.mxu0 0.0
      %1590 = vmatpush2.msra.mxu0 0.0
      %1591 = vmatprep.subr.mxu0 0.0
      %1592 = vmatpush2.msra.mxu0 0.0
      %1593 = vmatprep.subr.mxu0 0.0
      %1594 = vmatpush2.msra.mxu0 0.0
      %1595 = vmatprep.subr.mxu0 0.0
      %1596 = vmatpush2.msra.mxu0 0.0
      %1597 = vmatprep.subr.mxu0 0.0
      %1598 = vmatpush2.msra.mxu0 0.0
      %1599 = vmatprep.subr.mxu0 0.0
      %1600 = vmatpush2.msra.mxu0 0.0
      %1601 = vmatprep.subr.mxu0 0.0
      %1602 = vmatpush2.msra.mxu0 0.0
      %1603 = vmatprep.subr.mxu0 0.0
      %1604 = vmatpush2.msra.mxu0 0.0
      %1605 = vmatprep.subr.mxu0 0.0
      %1606 = vmatpush2.msra.mxu0 0.0
      %1607 = vmatprep.subr.mxu0 0.0
      %1608 = vmatpush2.msra.mxu0 0.0
      %1609 = vmatprep.mubr.f32.mxu0 0.0
      %1610 = vmatmul.mubr.f32.gmra.mxu0 %v1543
      %v1611 = vpop.f32.mrf.mxu0
      %v1612 = vadd.f32 0.0, %v1611
      %v1613 = vpop.f32.mrf.mxu0
      %1614 = vdwg.mxu0
      %v1615 = vadd.f32 %v1374, %v1612
      %1616 = vrot.lane.b32.xlu0 %v882, 104
      %v1617 = vpop.permute.xlu0 %1616
      %1618 = vrot.lane.b32.xlu0 %v874, 72
      %v1619 = vpop.permute.xlu0 %1618
      %v1620 = vsel %vm903, %v1617, 0
      %v1622 = vsel %vm903, %v1619, 0
      %1624 = vmatprep.subr.mxu0 0.0
      %1625 = vmatpush1.xpose.msra.mxu0 0.0
      %1626 = vmatprep.subr.mxu0 0.0
      %1627 = vmatpush1.xpose.msra.mxu0 0.0
      %1628 = vmatprep.subr.mxu0 0.0
      %1629 = vmatpush1.xpose.msra.mxu0 0.0
      %1630 = vmatprep.subr.mxu0 0.0
      %1631 = vmatpush1.xpose.msra.mxu0 0.0
      %1632 = vmatprep.subr.mxu0 0.0
      %1633 = vmatpush1.xpose.msra.mxu0 0.0
      %1634 = vmatprep.subr.mxu0 0.0
      %1635 = vmatpush1.xpose.msra.mxu0 0.0
      %1636 = vmatprep.subr.mxu0 0.0
      %1637 = vmatpush1.xpose.msra.mxu0 0.0
      %1638 = vmatprep.subr.mxu0 0.0
      %1639 = vmatpush1.xpose.msra.mxu0 0.0
      %1640 = vmatprep.subr.mxu0 0.0
      %1641 = vmatpush1.xpose.msra.mxu0 0.0
      %1642 = vmatprep.subr.mxu0 0.0
      %1643 = vmatpush1.xpose.msra.mxu0 0.0
      %1644 = vmatprep.subr.mxu0 0.0
      %1645 = vmatpush1.xpose.msra.mxu0 0.0
      %1646 = vmatprep.subr.mxu0 0.0
      %1647 = vmatpush1.xpose.msra.mxu0 0.0
      %1648 = vmatprep.subr.mxu0 0.0
      %1649 = vmatpush1.xpose.msra.mxu0 0.0
      %1650 = vmatprep.subr.mxu0 0.0
      %1651 = vmatpush1.xpose.msra.mxu0 0.0
      %1652 = vmatprep.subr.mxu0 0.0
      %1653 = vmatpush1.xpose.msra.mxu0 0.0
      %1654 = vmatprep.subr.mxu0 0.0
      %1655 = vmatpush1.xpose.msra.mxu0 %v1622
      %1656 = vmatprep.subr.mxu0 0.0
      %1657 = vmatpush2.xpose.msra.mxu0 0.0
      %1658 = vmatprep.subr.mxu0 0.0
      %1659 = vmatpush2.xpose.msra.mxu0 0.0
      %1660 = vmatprep.subr.mxu0 0.0
      %1661 = vmatpush2.xpose.msra.mxu0 0.0
      %1662 = vmatprep.subr.mxu0 0.0
      %1663 = vmatpush2.xpose.msra.mxu0 0.0
      %1664 = vmatprep.subr.mxu0 0.0
      %1665 = vmatpush2.xpose.msra.mxu0 0.0
      %1666 = vmatprep.subr.mxu0 0.0
      %1667 = vmatpush2.xpose.msra.mxu0 0.0
      %1668 = vmatprep.subr.mxu0 0.0
      %1669 = vmatpush2.xpose.msra.mxu0 0.0
      %1670 = vmatprep.subr.mxu0 0.0
      %1671 = vmatpush2.xpose.msra.mxu0 0.0
      %1672 = vmatprep.subr.mxu0 0.0
      %1673 = vmatpush2.xpose.msra.mxu0 0.0
      %1674 = vmatprep.subr.mxu0 0.0
      %1675 = vmatpush2.xpose.msra.mxu0 0.0
      %1676 = vmatprep.subr.mxu0 0.0
      %1677 = vmatpush2.xpose.msra.mxu0 0.0
      %1678 = vmatprep.subr.mxu0 0.0
      %1679 = vmatpush2.xpose.msra.mxu0 0.0
      %1680 = vmatprep.subr.mxu0 0.0
      %1681 = vmatpush2.xpose.msra.mxu0 0.0
      %1682 = vmatprep.subr.mxu0 0.0
      %1683 = vmatpush2.xpose.msra.mxu0 0.0
      %1684 = vmatprep.subr.mxu0 0.0
      %1685 = vmatpush2.xpose.msra.mxu0 0.0
      %1686 = vmatprep.subr.mxu0 0.0
      %1687 = vmatpush2.xpose.msra.mxu0 0.0
      %1688 = vmatprep.mubr.f32.mxu0 0.0
      %1689 = vmatmul.mubr.f32.gmra.mxu0 %v1620
      %v1690 = vpop.f32.mrf.mxu0
      %v1691 = vadd.f32 %v899, %v1690
      %v1692 = vpop.f32.mrf.mxu0
      %1693 = vdwg.mxu0
      %v1694 = vsel %vm903, %v1691, -inf
      %1695 = vmax.xlane.f32.xlu0 %v1694
      %v1696 = vpop.xlane.xlu0 %1695
      %v1697 = vsub.f32 %v1691, %v1696
      %v1698 = vmul.f32 %v1697, 1.442695
      %v1699 = vpow.pop %v1698
      %v1700 = vsel %vm903, %v1699, 0.0
      %1701 = vadd.xlane.f32.xlu0 %v1700
      %v1702 = vpop.xlane.xlu0 %1701
      %v1703 = vrcp.pop %v1702
      %v1704 = vmul.f32 %v1699, %v1703
      %1705 = vrot.lane.b32.xlu0 %v874, 40
      %v1706 = vpop.permute.xlu0 %1705
      %v1709 = vsel %vm903, %v1704, 0
      %1711 = vmatprep.subr.mxu0 0.0
      %1712 = vmatpush1.msra.mxu0 0.0
      %1713 = vmatprep.subr.mxu0 0.0
      %1714 = vmatpush1.msra.mxu0 0.0
      %1715 = vmatprep.subr.mxu0 0.0
      %1716 = vmatpush1.msra.mxu0 0.0
      %1717 = vmatprep.subr.mxu0 0.0
      %1718 = vmatpush1.msra.mxu0 0.0
      %1719 = vmatprep.subr.mxu0 0.0
      %1720 = vmatpush1.msra.mxu0 0.0
      %1721 = vmatprep.subr.mxu0 0.0
      %1722 = vmatpush1.msra.mxu0 0.0
      %1723 = vmatprep.subr.mxu0 0.0
      %1724 = vmatpush1.msra.mxu0 0.0
      %1725 = vmatprep.subr.mxu0 0.0
      %1726 = vmatpush1.msra.mxu0 0.0
      %1727 = vmatprep.subr.mxu0 0.0
      %1728 = vmatpush1.msra.mxu0 0.0
      %1729 = vmatprep.subr.mxu0 0.0
      %1730 = vmatpush1.msra.mxu0 0.0
      %1731 = vmatprep.subr.mxu0 0.0
      %1732 = vmatpush1.msra.mxu0 0.0
      %1733 = vmatprep.subr.mxu0 0.0
      %1734 = vmatpush1.msra.mxu0 0.0
      %1735 = vmatprep.subr.mxu0 0.0
      %1736 = vmatpush1.msra.mxu0 0.0
      %1737 = vmatprep.subr.mxu0 0.0
      %1738 = vmatpush1.msra.mxu0 0.0
      %1739 = vmatprep.subr.mxu0 0.0
      %1740 = vmatpush1.msra.mxu0 0.0
      %1741 = vmatprep.subr.mxu0 0.0
      %1742 = vmatpush1.msra.mxu0 %v1706
      %1743 = vmatprep.subr.mxu0 0.0
      %1744 = vmatpush2.msra.mxu0 0.0
      %1745 = vmatprep.subr.mxu0 0.0
      %1746 = vmatpush2.msra.mxu0 0.0
      %1747 = vmatprep.subr.mxu0 0.0
      %1748 = vmatpush2.msra.mxu0 0.0
      %1749 = vmatprep.subr.mxu0 0.0
      %1750 = vmatpush2.msra.mxu0 0.0
      %1751 = vmatprep.subr.mxu0 0.0
      %1752 = vmatpush2.msra.mxu0 0.0
      %1753 = vmatprep.subr.mxu0 0.0
      %1754 = vmatpush2.msra.mxu0 0.0
      %1755 = vmatprep.subr.mxu0 0.0
      %1756 = vmatpush2.msra.mxu0 0.0
      %1757 = vmatprep.subr.mxu0 0.0
      %1758 = vmatpush2.msra.mxu0 0.0
      %1759 = vmatprep.subr.mxu0 0.0
      %1760 = vmatpush2.msra.mxu0 0.0
      %1761 = vmatprep.subr.mxu0 0.0
      %1762 = vmatpush2.msra.mxu0 0.0
      %1763 = vmatprep.subr.mxu0 0.0
      %1764 = vmatpush2.msra.mxu0 0.0
      %1765 = vmatprep.subr.mxu0 0.0
      %1766 = vmatpush2.msra.mxu0 0.0
      %1767 = vmatprep.subr.mxu0 0.0
      %1768 = vmatpush2.msra.mxu0 0.0
      %1769 = vmatprep.subr.mxu0 0.0
      %1770 = vmatpush2.msra.mxu0 0.0
      %1771 = vmatprep.subr.mxu0 0.0
      %1772 = vmatpush2.msra.mxu0 0.0
      %1773 = vmatprep.subr.mxu0 0.0
      %1774 = vmatpush2.msra.mxu0 0.0
      %1775 = vmatprep.mubr.f32.mxu0 0.0
      %1776 = vmatmul.mubr.f32.gmra.mxu0 %v1709
      %v1777 = vpop.f32.mrf.mxu0
      %v1778 = vadd.f32 0.0, %v1777
      %v1779 = vpop.f32.mrf.mxu0
      %1780 = vdwg.mxu0
      %v1782 = vsel %vm903, %v1778, 0
      %1784 = vmatprep.subr.mxu0 0.0
      %1785 = vmatpush1.msra.mxu0 0.0
      %1786 = vmatprep.subr.mxu0 0.0
      %1787 = vmatpush1.msra.mxu0 0.0
      %1788 = vmatprep.subr.mxu0 0.0
      %1789 = vmatpush1.msra.mxu0 0.0
      %1790 = vmatprep.subr.mxu0 0.0
      %1791 = vmatpush1.msra.mxu0 0.0
      %1792 = vmatprep.subr.mxu0 0.0
      %1793 = vmatpush1.msra.mxu0 0.0
      %1794 = vmatprep.subr.mxu0 0.0
      %1795 = vmatpush1.msra.mxu0 0.0
      %1796 = vmatprep.subr.mxu0 0.0
      %1797 = vmatpush1.msra.mxu0 0.0
      %1798 = vmatprep.subr.mxu0 0.0
      %1799 = vmatpush1.msra.mxu0 0.0
      %1800 = vmatprep.subr.mxu0 0.0
      %1801 = vmatpush1.msra.mxu0 0.0
      %1802 = vmatprep.subr.mxu0 0.0
      %1803 = vmatpush1.msra.mxu0 0.0
      %1804 = vmatprep.subr.mxu0 0.0
      %1805 = vmatpush1.msra.mxu0 0.0
      %1806 = vmatprep.subr.mxu0 0.0
      %1807 = vmatpush1.msra.mxu0 0.0
      %1808 = vmatprep.subr.mxu0 0.0
      %1809 = vmatpush1.msra.mxu0 0.0
      %1810 = vmatprep.subr.mxu0 0.0
      %1811 = vmatpush1.msra.mxu0 0.0
      %1812 = vmatprep.subr.mxu0 0.0
      %1813 = vmatpush1.msra.mxu0 0.0
      %1814 = vmatprep.subr.mxu0 0.0
      %1815 = vmatpush1.msra.mxu0 %v894
      %1816 = vmatprep.subr.mxu0 0.0
      %1817 = vmatpush2.msra.mxu0 0.0
      %1818 = vmatprep.subr.mxu0 0.0
      %1819 = vmatpush2.msra.mxu0 0.0
      %1820 = vmatprep.subr.mxu0 0.0
      %1821 = vmatpush2.msra.mxu0 0.0
      %1822 = vmatprep.subr.mxu0 0.0
      %1823 = vmatpush2.msra.mxu0 0.0
      %1824 = vmatprep.subr.mxu0 0.0
      %1825 = vmatpush2.msra.mxu0 0.0
      %1826 = vmatprep.subr.mxu0 0.0
      %1827 = vmatpush2.msra.mxu0 0.0
      %1828 = vmatprep.subr.mxu0 0.0
      %1829 = vmatpush2.msra.mxu0 0.0
      %1830 = vmatprep.subr.mxu0 0.0
      %1831 = vmatpush2.msra.mxu0 0.0
      %1832 = vmatprep.subr.mxu0 0.0
      %1833 = vmatpush2.msra.mxu0 0.0
      %1834 = vmatprep.subr.mxu0 0.0
      %1835 = vmatpush2.msra.mxu0 0.0
      %1836 = vmatprep.subr.mxu0 0.0
      %1837 = vmatpush2.msra.mxu0 0.0
      %1838 = vmatprep.subr.mxu0 0.0
      %1839 = vmatpush2.msra.mxu0 0.0
      %1840 = vmatprep.subr.mxu0 0.0
      %1841 = vmatpush2.msra.mxu0 0.0
      %1842 = vmatprep.subr.mxu0 0.0
      %1843 = vmatpush2.msra.mxu0 0.0
      %1844 = vmatprep.subr.mxu0 0.0
      %1845 = vmatpush2.msra.mxu0 0.0
      %1846 = vmatprep.subr.mxu0 0.0
      %1847 = vmatpush2.msra.mxu0 0.0
      %1848 = vmatprep.mubr.f32.mxu0 0.0
      %1849 = vmatmul.mubr.f32.gmra.mxu0 %v1782
      %v1850 = vpop.f32.mrf.mxu0
      %v1851 = vadd.f32 0.0, %v1850
      %v1852 = vpop.f32.mrf.mxu0
      %1853 = vdwg.mxu0
      %v1854 = vadd.f32 %v1615, %v1851
      %v1855 = vlaneseq
      %v1856 = vshrl.u32 %v1855, 7
      %v1857 = vsub.s32 1, %v1856
      %v1858 = vrot.slane %v890, %v1857
      %v1859 = vadd.f32 %v889, %v1858
      %1861 = vrot.lane.b32.xlu0 %v879, 96
      %v1862 = vpop.permute.xlu0 %1861
      %v1864 = vsel %vm903, %v883, 0
      %v1866 = vsel %vm903, %v1862, 0
      %1868 = vmatprep.subr.mxu0 0.0
      %1869 = vmatpush1.xpose.msra.mxu0 0.0
      %1870 = vmatprep.subr.mxu0 0.0
      %1871 = vmatpush1.xpose.msra.mxu0 0.0
      %1872 = vmatprep.subr.mxu0 0.0
      %1873 = vmatpush1.xpose.msra.mxu0 0.0
      %1874 = vmatprep.subr.mxu0 0.0
      %1875 = vmatpush1.xpose.msra.mxu0 0.0
      %1876 = vmatprep.subr.mxu0 0.0
      %1877 = vmatpush1.xpose.msra.mxu0 0.0
      %1878 = vmatprep.subr.mxu0 0.0
      %1879 = vmatpush1.xpose.msra.mxu0 0.0
      %1880 = vmatprep.subr.mxu0 0.0
      %1881 = vmatpush1.xpose.msra.mxu0 0.0
      %1882 = vmatprep.subr.mxu0 0.0
      %1883 = vmatpush1.xpose.msra.mxu0 0.0
      %1884 = vmatprep.subr.mxu0 0.0
      %1885 = vmatpush1.xpose.msra.mxu0 0.0
      %1886 = vmatprep.subr.mxu0 0.0
      %1887 = vmatpush1.xpose.msra.mxu0 0.0
      %1888 = vmatprep.subr.mxu0 0.0
      %1889 = vmatpush1.xpose.msra.mxu0 0.0
      %1890 = vmatprep.subr.mxu0 0.0
      %1891 = vmatpush1.xpose.msra.mxu0 0.0
      %1892 = vmatprep.subr.mxu0 0.0
      %1893 = vmatpush1.xpose.msra.mxu0 0.0
      %1894 = vmatprep.subr.mxu0 0.0
      %1895 = vmatpush1.xpose.msra.mxu0 0.0
      %1896 = vmatprep.subr.mxu0 0.0
      %1897 = vmatpush1.xpose.msra.mxu0 0.0
      %1898 = vmatprep.subr.mxu0 0.0
      %1899 = vmatpush1.xpose.msra.mxu0 %v1866
      %1900 = vmatprep.subr.mxu0 0.0
      %1901 = vmatpush2.xpose.msra.mxu0 0.0
      %1902 = vmatprep.subr.mxu0 0.0
      %1903 = vmatpush2.xpose.msra.mxu0 0.0
      %1904 = vmatprep.subr.mxu0 0.0
      %1905 = vmatpush2.xpose.msra.mxu0 0.0
      %1906 = vmatprep.subr.mxu0 0.0
      %1907 = vmatpush2.xpose.msra.mxu0 0.0
      %1908 = vmatprep.subr.mxu0 0.0
      %1909 = vmatpush2.xpose.msra.mxu0 0.0
      %1910 = vmatprep.subr.mxu0 0.0
      %1911 = vmatpush2.xpose.msra.mxu0 0.0
      %1912 = vmatprep.subr.mxu0 0.0
      %1913 = vmatpush2.xpose.msra.mxu0 0.0
      %1914 = vmatprep.subr.mxu0 0.0
      %1915 = vmatpush2.xpose.msra.mxu0 0.0
      %1916 = vmatprep.subr.mxu0 0.0
      %1917 = vmatpush2.xpose.msra.mxu0 0.0
      %1918 = vmatprep.subr.mxu0 0.0
      %1919 = vmatpush2.xpose.msra.mxu0 0.0
      %1920 = vmatprep.subr.mxu0 0.0
      %1921 = vmatpush2.xpose.msra.mxu0 0.0
      %1922 = vmatprep.subr.mxu0 0.0
      %1923 = vmatpush2.xpose.msra.mxu0 0.0
      %1924 = vmatprep.subr.mxu0 0.0
      %1925 = vmatpush2.xpose.msra.mxu0 0.0
      %1926 = vmatprep.subr.mxu0 0.0
      %1927 = vmatpush2.xpose.msra.mxu0 0.0
      %1928 = vmatprep.subr.mxu0 0.0
      %1929 = vmatpush2.xpose.msra.mxu0 0.0
      %1930 = vmatprep.subr.mxu0 0.0
      %1931 = vmatpush2.xpose.msra.mxu0 0.0
      %1932 = vmatprep.mubr.f32.mxu0 0.0
      %1933 = vmatmul.mubr.f32.gmra.mxu0 %v1864
      %v1934 = vpop.f32.mrf.mxu0
      %v1935 = vadd.f32 %v1859, %v1934
      %v1936 = vpop.f32.mrf.mxu0
      %1937 = vdwg.mxu0
      %v1938 = vsel %vm903, %v1935, -inf
      %1939 = vmax.xlane.f32.xlu0 %v1938
      %v1940 = vpop.xlane.xlu0 %1939
      %v1941 = vsub.f32 %v1935, %v1940
      %v1942 = vmul.f32 %v1941, 1.442695
      %v1943 = vpow.pop %v1942
      %v1944 = vsel %vm903, %v1943, 0.0
      %1945 = vadd.xlane.f32.xlu0 %v1944
      %v1946 = vpop.xlane.xlu0 %1945
      %v1947 = vrcp.pop %v1946
      %v1948 = vmul.f32 %v1943, %v1947
      %1949 = vrot.lane.b32.xlu0 %v879, 64
      %v1950 = vpop.permute.xlu0 %1949
      %v1953 = vsel %vm903, %v1948, 0
      %1955 = vmatprep.subr.mxu0 0.0
      %1956 = vmatpush1.msra.mxu0 0.0
      %1957 = vmatprep.subr.mxu0 0.0
      %1958 = vmatpush1.msra.mxu0 0.0
      %1959 = vmatprep.subr.mxu0 0.0
      %1960 = vmatpush1.msra.mxu0 0.0
      %1961 = vmatprep.subr.mxu0 0.0
      %1962 = vmatpush1.msra.mxu0 0.0
      %1963 = vmatprep.subr.mxu0 0.0
      %1964 = vmatpush1.msra.mxu0 0.0
      %1965 = vmatprep.subr.mxu0 0.0
      %1966 = vmatpush1.msra.mxu0 0.0
      %1967 = vmatprep.subr.mxu0 0.0
      %1968 = vmatpush1.msra.mxu0 0.0
      %1969 = vmatprep.subr.mxu0 0.0
      %1970 = vmatpush1.msra.mxu0 0.0
      %1971 = vmatprep.subr.mxu0 0.0
      %1972 = vmatpush1.msra.mxu0 0.0
      %1973 = vmatprep.subr.mxu0 0.0
      %1974 = vmatpush1.msra.mxu0 0.0
      %1975 = vmatprep.subr.mxu0 0.0
      %1976 = vmatpush1.msra.mxu0 0.0
      %1977 = vmatprep.subr.mxu0 0.0
      %1978 = vmatpush1.msra.mxu0 0.0
      %1979 = vmatprep.subr.mxu0 0.0
      %1980 = vmatpush1.msra.mxu0 0.0
      %1981 = vmatprep.subr.mxu0 0.0
      %1982 = vmatpush1.msra.mxu0 0.0
      %1983 = vmatprep.subr.mxu0 0.0
      %1984 = vmatpush1.msra.mxu0 0.0
      %1985 = vmatprep.subr.mxu0 0.0
      %1986 = vmatpush1.msra.mxu0 %v1950
      %1987 = vmatprep.subr.mxu0 0.0
      %1988 = vmatpush2.msra.mxu0 0.0
      %1989 = vmatprep.subr.mxu0 0.0
      %1990 = vmatpush2.msra.mxu0 0.0
      %1991 = vmatprep.subr.mxu0 0.0
      %1992 = vmatpush2.msra.mxu0 0.0
      %1993 = vmatprep.subr.mxu0 0.0
      %1994 = vmatpush2.msra.mxu0 0.0
      %1995 = vmatprep.subr.mxu0 0.0
      %1996 = vmatpush2.msra.mxu0 0.0
      %1997 = vmatprep.subr.mxu0 0.0
      %1998 = vmatpush2.msra.mxu0 0.0
      %1999 = vmatprep.subr.mxu0 0.0
      %2000 = vmatpush2.msra.mxu0 0.0
      %2001 = vmatprep.subr.mxu0 0.0
      %2002 = vmatpush2.msra.mxu0 0.0
      %2003 = vmatprep.subr.mxu0 0.0
      %2004 = vmatpush2.msra.mxu0 0.0
      %2005 = vmatprep.subr.mxu0 0.0
      %2006 = vmatpush2.msra.mxu0 0.0
      %2007 = vmatprep.subr.mxu0 0.0
      %2008 = vmatpush2.msra.mxu0 0.0
      %2009 = vmatprep.subr.mxu0 0.0
      %2010 = vmatpush2.msra.mxu0 0.0
      %2011 = vmatprep.subr.mxu0 0.0
      %2012 = vmatpush2.msra.mxu0 0.0
      %2013 = vmatprep.subr.mxu0 0.0
      %2014 = vmatpush2.msra.mxu0 0.0
      %2015 = vmatprep.subr.mxu0 0.0
      %2016 = vmatpush2.msra.mxu0 0.0
      %2017 = vmatprep.subr.mxu0 0.0
      %2018 = vmatpush2.msra.mxu0 0.0
      %2019 = vmatprep.mubr.f32.mxu0 0.0
      %2020 = vmatmul.mubr.f32.gmra.mxu0 %v1953
      %v2021 = vpop.f32.mrf.mxu0
      %v2022 = vadd.f32 0.0, %v2021
      %v2023 = vpop.f32.mrf.mxu0
      %2024 = vdwg.mxu0
      %2025 = vrot.lane.b32.xlu0 %v883, 120
      %v2026 = vpop.permute.xlu0 %2025
      %2027 = vrot.lane.b32.xlu0 %v879, 88
      %v2028 = vpop.permute.xlu0 %2027
      %v2029 = vsel %vm903, %v2026, 0
      %v2031 = vsel %vm903, %v2028, 0
      %2033 = vmatprep.subr.mxu0 0.0
      %2034 = vmatpush1.xpose.msra.mxu0 0.0
      %2035 = vmatprep.subr.mxu0 0.0
      %2036 = vmatpush1.xpose.msra.mxu0 0.0
      %2037 = vmatprep.subr.mxu0 0.0
      %2038 = vmatpush1.xpose.msra.mxu0 0.0
      %2039 = vmatprep.subr.mxu0 0.0
      %2040 = vmatpush1.xpose.msra.mxu0 0.0
      %2041 = vmatprep.subr.mxu0 0.0
      %2042 = vmatpush1.xpose.msra.mxu0 0.0
      %2043 = vmatprep.subr.mxu0 0.0
      %2044 = vmatpush1.xpose.msra.mxu0 0.0
      %2045 = vmatprep.subr.mxu0 0.0
      %2046 = vmatpush1.xpose.msra.mxu0 0.0
      %2047 = vmatprep.subr.mxu0 0.0
      %2048 = vmatpush1.xpose.msra.mxu0 0.0
      %2049 = vmatprep.subr.mxu0 0.0
      %2050 = vmatpush1.xpose.msra.mxu0 0.0
      %2051 = vmatprep.subr.mxu0 0.0
      %2052 = vmatpush1.xpose.msra.mxu0 0.0
      %2053 = vmatprep.subr.mxu0 0.0
      %2054 = vmatpush1.xpose.msra.mxu0 0.0
      %2055 = vmatprep.subr.mxu0 0.0
      %2056 = vmatpush1.xpose.msra.mxu0 0.0
      %2057 = vmatprep.subr.mxu0 0.0
      %2058 = vmatpush1.xpose.msra.mxu0 0.0
      %2059 = vmatprep.subr.mxu0 0.0
      %2060 = vmatpush1.xpose.msra.mxu0 0.0
      %2061 = vmatprep.subr.mxu0 0.0
      %2062 = vmatpush1.xpose.msra.mxu0 0.0
      %2063 = vmatprep.subr.mxu0 0.0
      %2064 = vmatpush1.xpose.msra.mxu0 %v2031
      %2065 = vmatprep.subr.mxu0 0.0
      %2066 = vmatpush2.xpose.msra.mxu0 0.0
      %2067 = vmatprep.subr.mxu0 0.0
      %2068 = vmatpush2.xpose.msra.mxu0 0.0
      %2069 = vmatprep.subr.mxu0 0.0
      %2070 = vmatpush2.xpose.msra.mxu0 0.0
      %2071 = vmatprep.subr.mxu0 0.0
      %2072 = vmatpush2.xpose.msra.mxu0 0.0
      %2073 = vmatprep.subr.mxu0 0.0
      %2074 = vmatpush2.xpose.msra.mxu0 0.0
      %2075 = vmatprep.subr.mxu0 0.0
      %2076 = vmatpush2.xpose.msra.mxu0 0.0
      %2077 = vmatprep.subr.mxu0 0.0
      %2078 = vmatpush2.xpose.msra.mxu0 0.0
      %2079 = vmatprep.subr.mxu0 0.0
      %2080 = vmatpush2.xpose.msra.mxu0 0.0
      %2081 = vmatprep.subr.mxu0 0.0
      %2082 = vmatpush2.xpose.msra.mxu0 0.0
      %2083 = vmatprep.subr.mxu0 0.0
      %2084 = vmatpush2.xpose.msra.mxu0 0.0
      %2085 = vmatprep.subr.mxu0 0.0
      %2086 = vmatpush2.xpose.msra.mxu0 0.0
      %2087 = vmatprep.subr.mxu0 0.0
      %2088 = vmatpush2.xpose.msra.mxu0 0.0
      %2089 = vmatprep.subr.mxu0 0.0
      %2090 = vmatpush2.xpose.msra.mxu0 0.0
      %2091 = vmatprep.subr.mxu0 0.0
      %2092 = vmatpush2.xpose.msra.mxu0 0.0
      %2093 = vmatprep.subr.mxu0 0.0
      %2094 = vmatpush2.xpose.msra.mxu0 0.0
      %2095 = vmatprep.subr.mxu0 0.0
      %2096 = vmatpush2.xpose.msra.mxu0 0.0
      %2097 = vmatprep.mubr.f32.mxu0 0.0
      %2098 = vmatmul.mubr.f32.gmra.mxu0 %v2029
      %v2099 = vpop.f32.mrf.mxu0
      %v2100 = vadd.f32 %v1859, %v2099
      %v2101 = vpop.f32.mrf.mxu0
      %2102 = vdwg.mxu0
      %v2103 = vsel %vm903, %v2100, -inf
      %2104 = vmax.xlane.f32.xlu0 %v2103
      %v2105 = vpop.xlane.xlu0 %2104
      %v2106 = vsub.f32 %v2100, %v2105
      %v2107 = vmul.f32 %v2106, 1.442695
      %v2108 = vpow.pop %v2107
      %v2109 = vsel %vm903, %v2108, 0.0
      %2110 = vadd.xlane.f32.xlu0 %v2109
      %v2111 = vpop.xlane.xlu0 %2110
      %v2112 = vrcp.pop %v2111
      %v2113 = vmul.f32 %v2108, %v2112
      %2114 = vrot.lane.b32.xlu0 %v879, 56
      %v2115 = vpop.permute.xlu0 %2114
      %v2118 = vsel %vm903, %v2113, 0
      %2120 = vmatprep.subr.mxu0 0.0
      %2121 = vmatpush1.msra.mxu0 0.0
      %2122 = vmatprep.subr.mxu0 0.0
      %2123 = vmatpush1.msra.mxu0 0.0
      %2124 = vmatprep.subr.mxu0 0.0
      %2125 = vmatpush1.msra.mxu0 0.0
      %2126 = vmatprep.subr.mxu0 0.0
      %2127 = vmatpush1.msra.mxu0 0.0
      %2128 = vmatprep.subr.mxu0 0.0
      %2129 = vmatpush1.msra.mxu0 0.0
      %2130 = vmatprep.subr.mxu0 0.0
      %2131 = vmatpush1.msra.mxu0 0.0
      %2132 = vmatprep.subr.mxu0 0.0
      %2133 = vmatpush1.msra.mxu0 0.0
      %2134 = vmatprep.subr.mxu0 0.0
      %2135 = vmatpush1.msra.mxu0 0.0
      %2136 = vmatprep.subr.mxu0 0.0
      %2137 = vmatpush1.msra.mxu0 0.0
      %2138 = vmatprep.subr.mxu0 0.0
      %2139 = vmatpush1.msra.mxu0 0.0
      %2140 = vmatprep.subr.mxu0 0.0
      %2141 = vmatpush1.msra.mxu0 0.0
      %2142 = vmatprep.subr.mxu0 0.0
      %2143 = vmatpush1.msra.mxu0 0.0
      %2144 = vmatprep.subr.mxu0 0.0
      %2145 = vmatpush1.msra.mxu0 0.0
      %2146 = vmatprep.subr.mxu0 0.0
      %2147 = vmatpush1.msra.mxu0 0.0
      %2148 = vmatprep.subr.mxu0 0.0
      %2149 = vmatpush1.msra.mxu0 0.0
      %2150 = vmatprep.subr.mxu0 0.0
      %2151 = vmatpush1.msra.mxu0 %v2115
      %2152 = vmatprep.subr.mxu0 0.0
      %2153 = vmatpush2.msra.mxu0 0.0
      %2154 = vmatprep.subr.mxu0 0.0
      %2155 = vmatpush2.msra.mxu0 0.0
      %2156 = vmatprep.subr.mxu0 0.0
      %2157 = vmatpush2.msra.mxu0 0.0
      %2158 = vmatprep.subr.mxu0 0.0
      %2159 = vmatpush2.msra.mxu0 0.0
      %2160 = vmatprep.subr.mxu0 0.0
      %2161 = vmatpush2.msra.mxu0 0.0
      %2162 = vmatprep.subr.mxu0 0.0
      %2163 = vmatpush2.msra.mxu0 0.0
      %2164 = vmatprep.subr.mxu0 0.0
      %2165 = vmatpush2.msra.mxu0 0.0
      %2166 = vmatprep.subr.mxu0 0.0
      %2167 = vmatpush2.msra.mxu0 0.0
      %2168 = vmatprep.subr.mxu0 0.0
      %2169 = vmatpush2.msra.mxu0 0.0
      %2170 = vmatprep.subr.mxu0 0.0
      %2171 = vmatpush2.msra.mxu0 0.0
      %2172 = vmatprep.subr.mxu0 0.0
      %2173 = vmatpush2.msra.mxu0 0.0
      %2174 = vmatprep.subr.mxu0 0.0
      %2175 = vmatpush2.msra.mxu0 0.0
      %2176 = vmatprep.subr.mxu0 0.0
      %2177 = vmatpush2.msra.mxu0 0.0
      %2178 = vmatprep.subr.mxu0 0.0
      %2179 = vmatpush2.msra.mxu0 0.0
      %2180 = vmatprep.subr.mxu0 0.0
      %2181 = vmatpush2.msra.mxu0 0.0
      %2182 = vmatprep.subr.mxu0 0.0
      %2183 = vmatpush2.msra.mxu0 0.0
      %2184 = vmatprep.mubr.f32.mxu0 0.0
      %2185 = vmatmul.mubr.f32.gmra.mxu0 %v2118
      %v2186 = vpop.f32.mrf.mxu0
      %v2187 = vadd.f32 0.0, %v2186
      %v2188 = vpop.f32.mrf.mxu0
      %2189 = vdwg.mxu0
      %v2191 = vsel %vm903, %v2187, 0
      %2193 = vmatprep.subr.mxu0 0.0
      %2194 = vmatpush1.msra.mxu0 0.0
      %2195 = vmatprep.subr.mxu0 0.0
      %2196 = vmatpush1.msra.mxu0 0.0
      %2197 = vmatprep.subr.mxu0 0.0
      %2198 = vmatpush1.msra.mxu0 0.0
      %2199 = vmatprep.subr.mxu0 0.0
      %2200 = vmatpush1.msra.mxu0 0.0
      %2201 = vmatprep.subr.mxu0 0.0
      %2202 = vmatpush1.msra.mxu0 0.0
      %2203 = vmatprep.subr.mxu0 0.0
      %2204 = vmatpush1.msra.mxu0 0.0
      %2205 = vmatprep.subr.mxu0 0.0
      %2206 = vmatpush1.msra.mxu0 0.0
      %2207 = vmatprep.subr.mxu0 0.0
      %2208 = vmatpush1.msra.mxu0 0.0
      %2209 = vmatprep.subr.mxu0 0.0
      %2210 = vmatpush1.msra.mxu0 0.0
      %2211 = vmatprep.subr.mxu0 0.0
      %2212 = vmatpush1.msra.mxu0 0.0
      %2213 = vmatprep.subr.mxu0 0.0
      %2214 = vmatpush1.msra.mxu0 0.0
      %2215 = vmatprep.subr.mxu0 0.0
      %2216 = vmatpush1.msra.mxu0 0.0
      %2217 = vmatprep.subr.mxu0 0.0
      %2218 = vmatpush1.msra.mxu0 0.0
      %2219 = vmatprep.subr.mxu0 0.0
      %2220 = vmatpush1.msra.mxu0 0.0
      %2221 = vmatprep.subr.mxu0 0.0
      %2222 = vmatpush1.msra.mxu0 0.0
      %2223 = vmatprep.subr.mxu0 0.0
      %2224 = vmatpush1.msra.mxu0 %v892
      %2225 = vmatprep.subr.mxu0 0.0
      %2226 = vmatpush2.msra.mxu0 0.0
      %2227 = vmatprep.subr.mxu0 0.0
      %2228 = vmatpush2.msra.mxu0 0.0
      %2229 = vmatprep.subr.mxu0 0.0
      %2230 = vmatpush2.msra.mxu0 0.0
      %2231 = vmatprep.subr.mxu0 0.0
      %2232 = vmatpush2.msra.mxu0 0.0
      %2233 = vmatprep.subr.mxu0 0.0
      %2234 = vmatpush2.msra.mxu0 0.0
      %2235 = vmatprep.subr.mxu0 0.0
      %2236 = vmatpush2.msra.mxu0 0.0
      %2237 = vmatprep.subr.mxu0 0.0
      %2238 = vmatpush2.msra.mxu0 0.0
      %2239 = vmatprep.subr.mxu0 0.0
      %2240 = vmatpush2.msra.mxu0 0.0
      %2241 = vmatprep.subr.mxu0 0.0
      %2242 = vmatpush2.msra.mxu0 0.0
      %2243 = vmatprep.subr.mxu0 0.0
      %2244 = vmatpush2.msra.mxu0 0.0
      %2245 = vmatprep.subr.mxu0 0.0
      %2246 = vmatpush2.msra.mxu0 0.0
      %2247 = vmatprep.subr.mxu0 0.0
      %2248 = vmatpush2.msra.mxu0 0.0
      %2249 = vmatprep.subr.mxu0 0.0
      %2250 = vmatpush2.msra.mxu0 0.0
      %2251 = vmatprep.subr.mxu0 0.0
      %2252 = vmatpush2.msra.mxu0 0.0
      %2253 = vmatprep.subr.mxu0 0.0
      %2254 = vmatpush2.msra.mxu0 0.0
      %2255 = vmatprep.subr.mxu0 0.0
      %2256 = vmatpush2.msra.mxu0 0.0
      %2257 = vmatprep.mubr.f32.mxu0 0.0
      %2258 = vmatmul.mubr.f32.gmra.mxu0 %v2191
      %v2259 = vpop.f32.mrf.mxu0
      %v2260 = vadd.f32 0.0, %v2259
      %v2261 = vpop.f32.mrf.mxu0
      %2262 = vdwg.mxu0
      %v2264 = vsel %vm903, %v2022, 0
      %2266 = vmatprep.subr.mxu0 0.0
      %2267 = vmatpush1.msra.mxu0 0.0
      %2268 = vmatprep.subr.mxu0 0.0
      %2269 = vmatpush1.msra.mxu0 0.0
      %2270 = vmatprep.subr.mxu0 0.0
      %2271 = vmatpush1.msra.mxu0 0.0
      %2272 = vmatprep.subr.mxu0 0.0
      %2273 = vmatpush1.msra.mxu0 0.0
      %2274 = vmatprep.subr.mxu0 0.0
      %2275 = vmatpush1.msra.mxu0 0.0
      %2276 = vmatprep.subr.mxu0 0.0
      %2277 = vmatpush1.msra.mxu0 0.0
      %2278 = vmatprep.subr.mxu0 0.0
      %2279 = vmatpush1.msra.mxu0 0.0
      %2280 = vmatprep.subr.mxu0 0.0
      %2281 = vmatpush1.msra.mxu0 0.0
      %2282 = vmatprep.subr.mxu0 0.0
      %2283 = vmatpush1.msra.mxu0 0.0
      %2284 = vmatprep.subr.mxu0 0.0
      %2285 = vmatpush1.msra.mxu0 0.0
      %2286 = vmatprep.subr.mxu0 0.0
      %2287 = vmatpush1.msra.mxu0 0.0
      %2288 = vmatprep.subr.mxu0 0.0
      %2289 = vmatpush1.msra.mxu0 0.0
      %2290 = vmatprep.subr.mxu0 0.0
      %2291 = vmatpush1.msra.mxu0 0.0
      %2292 = vmatprep.subr.mxu0 0.0
      %2293 = vmatpush1.msra.mxu0 0.0
      %2294 = vmatprep.subr.mxu0 0.0
      %2295 = vmatpush1.msra.mxu0 0.0
      %2296 = vmatprep.subr.mxu0 0.0
      %2297 = vmatpush1.msra.mxu0 %v891
      %2298 = vmatprep.subr.mxu0 0.0
      %2299 = vmatpush2.msra.mxu0 0.0
      %2300 = vmatprep.subr.mxu0 0.0
      %2301 = vmatpush2.msra.mxu0 0.0
      %2302 = vmatprep.subr.mxu0 0.0
      %2303 = vmatpush2.msra.mxu0 0.0
      %2304 = vmatprep.subr.mxu0 0.0
      %2305 = vmatpush2.msra.mxu0 0.0
      %2306 = vmatprep.subr.mxu0 0.0
      %2307 = vmatpush2.msra.mxu0 0.0
      %2308 = vmatprep.subr.mxu0 0.0
      %2309 = vmatpush2.msra.mxu0 0.0
      %2310 = vmatprep.subr.mxu0 0.0
      %2311 = vmatpush2.msra.mxu0 0.0
      %2312 = vmatprep.subr.mxu0 0.0
      %2313 = vmatpush2.msra.mxu0 0.0
      %2314 = vmatprep.subr.mxu0 0.0
      %2315 = vmatpush2.msra.mxu0 0.0
      %2316 = vmatprep.subr.mxu0 0.0
      %2317 = vmatpush2.msra.mxu0 0.0
      %2318 = vmatprep.subr.mxu0 0.0
      %2319 = vmatpush2.msra.mxu0 0.0
      %2320 = vmatprep.subr.mxu0 0.0
      %2321 = vmatpush2.msra.mxu0 0.0
      %2322 = vmatprep.subr.mxu0 0.0
      %2323 = vmatpush2.msra.mxu0 0.0
      %2324 = vmatprep.subr.mxu0 0.0
      %2325 = vmatpush2.msra.mxu0 0.0
      %2326 = vmatprep.subr.mxu0 0.0
      %2327 = vmatpush2.msra.mxu0 0.0
      %2328 = vmatprep.subr.mxu0 0.0
      %2329 = vmatpush2.msra.mxu0 0.0
      %2330 = vmatprep.mubr.f32.mxu0 0.0
      %2331 = vmatmul.mubr.f32.gmra.mxu0 %v2264
      %v2332 = vpop.f32.mrf.mxu0
      %v2333 = vadd.f32 %v2260, %v2332
      %v2334 = vpop.f32.mrf.mxu0
      %2335 = vdwg.mxu0
      %2336 = vrot.lane.b32.xlu0 %v883, 112
      %v2337 = vpop.permute.xlu0 %2336
      %2338 = vrot.lane.b32.xlu0 %v879, 80
      %v2339 = vpop.permute.xlu0 %2338
      %v2340 = vsel %vm903, %v2337, 0
      %v2342 = vsel %vm903, %v2339, 0
      %2344 = vmatprep.subr.mxu0 0.0
      %2345 = vmatpush1.xpose.msra.mxu0 0.0
      %2346 = vmatprep.subr.mxu0 0.0
      %2347 = vmatpush1.xpose.msra.mxu0 0.0
      %2348 = vmatprep.subr.mxu0 0.0
      %2349 = vmatpush1.xpose.msra.mxu0 0.0
      %2350 = vmatprep.subr.mxu0 0.0
      %2351 = vmatpush1.xpose.msra.mxu0 0.0
      %2352 = vmatprep.subr.mxu0 0.0
      %2353 = vmatpush1.xpose.msra.mxu0 0.0
      %2354 = vmatprep.subr.mxu0 0.0
      %2355 = vmatpush1.xpose.msra.mxu0 0.0
      %2356 = vmatprep.subr.mxu0 0.0
      %2357 = vmatpush1.xpose.msra.mxu0 0.0
      %2358 = vmatprep.subr.mxu0 0.0
      %2359 = vmatpush1.xpose.msra.mxu0 0.0
      %2360 = vmatprep.subr.mxu0 0.0
      %2361 = vmatpush1.xpose.msra.mxu0 0.0
      %2362 = vmatprep.subr.mxu0 0.0
      %2363 = vmatpush1.xpose.msra.mxu0 0.0
      %2364 = vmatprep.subr.mxu0 0.0
      %2365 = vmatpush1.xpose.msra.mxu0 0.0
      %2366 = vmatprep.subr.mxu0 0.0
      %2367 = vmatpush1.xpose.msra.mxu0 0.0
      %2368 = vmatprep.subr.mxu0 0.0
      %2369 = vmatpush1.xpose.msra.mxu0 0.0
      %2370 = vmatprep.subr.mxu0 0.0
      %2371 = vmatpush1.xpose.msra.mxu0 0.0
      %2372 = vmatprep.subr.mxu0 0.0
      %2373 = vmatpush1.xpose.msra.mxu0 0.0
      %2374 = vmatprep.subr.mxu0 0.0
      %2375 = vmatpush1.xpose.msra.mxu0 %v2342
      %2376 = vmatprep.subr.mxu0 0.0
      %2377 = vmatpush2.xpose.msra.mxu0 0.0
      %2378 = vmatprep.subr.mxu0 0.0
      %2379 = vmatpush2.xpose.msra.mxu0 0.0
      %2380 = vmatprep.subr.mxu0 0.0
      %2381 = vmatpush2.xpose.msra.mxu0 0.0
      %2382 = vmatprep.subr.mxu0 0.0
      %2383 = vmatpush2.xpose.msra.mxu0 0.0
      %2384 = vmatprep.subr.mxu0 0.0
      %2385 = vmatpush2.xpose.msra.mxu0 0.0
      %2386 = vmatprep.subr.mxu0 0.0
      %2387 = vmatpush2.xpose.msra.mxu0 0.0
      %2388 = vmatprep.subr.mxu0 0.0
      %2389 = vmatpush2.xpose.msra.mxu0 0.0
      %2390 = vmatprep.subr.mxu0 0.0
      %2391 = vmatpush2.xpose.msra.mxu0 0.0
      %2392 = vmatprep.subr.mxu0 0.0
      %2393 = vmatpush2.xpose.msra.mxu0 0.0
      %2394 = vmatprep.subr.mxu0 0.0
      %2395 = vmatpush2.xpose.msra.mxu0 0.0
      %2396 = vmatprep.subr.mxu0 0.0
      %2397 = vmatpush2.xpose.msra.mxu0 0.0
      %2398 = vmatprep.subr.mxu0 0.0
      %2399 = vmatpush2.xpose.msra.mxu0 0.0
      %2400 = vmatprep.subr.mxu0 0.0
      %2401 = vmatpush2.xpose.msra.mxu0 0.0
      %2402 = vmatprep.subr.mxu0 0.0
      %2403 = vmatpush2.xpose.msra.mxu0 0.0
      %2404 = vmatprep.subr.mxu0 0.0
      %2405 = vmatpush2.xpose.msra.mxu0 0.0
      %2406 = vmatprep.subr.mxu0 0.0
      %2407 = vmatpush2.xpose.msra.mxu0 0.0
      %2408 = vmatprep.mubr.f32.mxu0 0.0
      %2409 = vmatmul.mubr.f32.gmra.mxu0 %v2340
      %v2410 = vpop.f32.mrf.mxu0
      %v2411 = vadd.f32 %v1859, %v2410
      %v2412 = vpop.f32.mrf.mxu0
      %2413 = vdwg.mxu0
      %v2414 = vsel %vm903, %v2411, -inf
      %2415 = vmax.xlane.f32.xlu0 %v2414
      %v2416 = vpop.xlane.xlu0 %2415
      %v2417 = vsub.f32 %v2411, %v2416
      %v2418 = vmul.f32 %v2417, 1.442695
      %v2419 = vpow.pop %v2418
      %v2420 = vsel %vm903, %v2419, 0.0
      %2421 = vadd.xlane.f32.xlu0 %v2420
      %v2422 = vpop.xlane.xlu0 %2421
      %v2423 = vrcp.pop %v2422
      %v2424 = vmul.f32 %v2419, %v2423
      %2425 = vrot.lane.b32.xlu0 %v879, 48
      %v2426 = vpop.permute.xlu0 %2425
      %v2429 = vsel %vm903, %v2424, 0
      %2431 = vmatprep.subr.mxu0 0.0
      %2432 = vmatpush1.msra.mxu0 0.0
      %2433 = vmatprep.subr.mxu0 0.0
      %2434 = vmatpush1.msra.mxu0 0.0
      %2435 = vmatprep.subr.mxu0 0.0
      %2436 = vmatpush1.msra.mxu0 0.0
      %2437 = vmatprep.subr.mxu0 0.0
      %2438 = vmatpush1.msra.mxu0 0.0
      %2439 = vmatprep.subr.mxu0 0.0
      %2440 = vmatpush1.msra.mxu0 0.0
      %2441 = vmatprep.subr.mxu0 0.0
      %2442 = vmatpush1.msra.mxu0 0.0
      %2443 = vmatprep.subr.mxu0 0.0
      %2444 = vmatpush1.msra.mxu0 0.0
      %2445 = vmatprep.subr.mxu0 0.0
      %2446 = vmatpush1.msra.mxu0 0.0
      %2447 = vmatprep.subr.mxu0 0.0
      %2448 = vmatpush1.msra.mxu0 0.0
      %2449 = vmatprep.subr.mxu0 0.0
      %2450 = vmatpush1.msra.mxu0 0.0
      %2451 = vmatprep.subr.mxu0 0.0
      %2452 = vmatpush1.msra.mxu0 0.0
      %2453 = vmatprep.subr.mxu0 0.0
      %2454 = vmatpush1.msra.mxu0 0.0
      %2455 = vmatprep.subr.mxu0 0.0
      %2456 = vmatpush1.msra.mxu0 0.0
      %2457 = vmatprep.subr.mxu0 0.0
      %2458 = vmatpush1.msra.mxu0 0.0
      %2459 = vmatprep.subr.mxu0 0.0
      %2460 = vmatpush1.msra.mxu0 0.0
      %2461 = vmatprep.subr.mxu0 0.0
      %2462 = vmatpush1.msra.mxu0 %v2426
      %2463 = vmatprep.subr.mxu0 0.0
      %2464 = vmatpush2.msra.mxu0 0.0
      %2465 = vmatprep.subr.mxu0 0.0
      %2466 = vmatpush2.msra.mxu0 0.0
      %2467 = vmatprep.subr.mxu0 0.0
      %2468 = vmatpush2.msra.mxu0 0.0
      %2469 = vmatprep.subr.mxu0 0.0
      %2470 = vmatpush2.msra.mxu0 0.0
      %2471 = vmatprep.subr.mxu0 0.0
      %2472 = vmatpush2.msra.mxu0 0.0
      %2473 = vmatprep.subr.mxu0 0.0
      %2474 = vmatpush2.msra.mxu0 0.0
      %2475 = vmatprep.subr.mxu0 0.0
      %2476 = vmatpush2.msra.mxu0 0.0
      %2477 = vmatprep.subr.mxu0 0.0
      %2478 = vmatpush2.msra.mxu0 0.0
      %2479 = vmatprep.subr.mxu0 0.0
      %2480 = vmatpush2.msra.mxu0 0.0
      %2481 = vmatprep.subr.mxu0 0.0
      %2482 = vmatpush2.msra.mxu0 0.0
      %2483 = vmatprep.subr.mxu0 0.0
      %2484 = vmatpush2.msra.mxu0 0.0
      %2485 = vmatprep.subr.mxu0 0.0
      %2486 = vmatpush2.msra.mxu0 0.0
      %2487 = vmatprep.subr.mxu0 0.0
      %2488 = vmatpush2.msra.mxu0 0.0
      %2489 = vmatprep.subr.mxu0 0.0
      %2490 = vmatpush2.msra.mxu0 0.0
      %2491 = vmatprep.subr.mxu0 0.0
      %2492 = vmatpush2.msra.mxu0 0.0
      %2493 = vmatprep.subr.mxu0 0.0
      %2494 = vmatpush2.msra.mxu0 0.0
      %2495 = vmatprep.mubr.f32.mxu0 0.0
      %2496 = vmatmul.mubr.f32.gmra.mxu0 %v2429
      %v2497 = vpop.f32.mrf.mxu0
      %v2498 = vadd.f32 0.0, %v2497
      %v2499 = vpop.f32.mrf.mxu0
      %2500 = vdwg.mxu0
      %v2502 = vsel %vm903, %v2498, 0
      %2504 = vmatprep.subr.mxu0 0.0
      %2505 = vmatpush1.msra.mxu0 0.0
      %2506 = vmatprep.subr.mxu0 0.0
      %2507 = vmatpush1.msra.mxu0 0.0
      %2508 = vmatprep.subr.mxu0 0.0
      %2509 = vmatpush1.msra.mxu0 0.0
      %2510 = vmatprep.subr.mxu0 0.0
      %2511 = vmatpush1.msra.mxu0 0.0
      %2512 = vmatprep.subr.mxu0 0.0
      %2513 = vmatpush1.msra.mxu0 0.0
      %2514 = vmatprep.subr.mxu0 0.0
      %2515 = vmatpush1.msra.mxu0 0.0
      %2516 = vmatprep.subr.mxu0 0.0
      %2517 = vmatpush1.msra.mxu0 0.0
      %2518 = vmatprep.subr.mxu0 0.0
      %2519 = vmatpush1.msra.mxu0 0.0
      %2520 = vmatprep.subr.mxu0 0.0
      %2521 = vmatpush1.msra.mxu0 0.0
      %2522 = vmatprep.subr.mxu0 0.0
      %2523 = vmatpush1.msra.mxu0 0.0
      %2524 = vmatprep.subr.mxu0 0.0
      %2525 = vmatpush1.msra.mxu0 0.0
      %2526 = vmatprep.subr.mxu0 0.0
      %2527 = vmatpush1.msra.mxu0 0.0
      %2528 = vmatprep.subr.mxu0 0.0
      %2529 = vmatpush1.msra.mxu0 0.0
      %2530 = vmatprep.subr.mxu0 0.0
      %2531 = vmatpush1.msra.mxu0 0.0
      %2532 = vmatprep.subr.mxu0 0.0
      %2533 = vmatpush1.msra.mxu0 0.0
      %2534 = vmatprep.subr.mxu0 0.0
      %2535 = vmatpush1.msra.mxu0 %v893
      %2536 = vmatprep.subr.mxu0 0.0
      %2537 = vmatpush2.msra.mxu0 0.0
      %2538 = vmatprep.subr.mxu0 0.0
      %2539 = vmatpush2.msra.mxu0 0.0
      %2540 = vmatprep.subr.mxu0 0.0
      %2541 = vmatpush2.msra.mxu0 0.0
      %2542 = vmatprep.subr.mxu0 0.0
      %2543 = vmatpush2.msra.mxu0 0.0
      %2544 = vmatprep.subr.mxu0 0.0
      %2545 = vmatpush2.msra.mxu0 0.0
      %2546 = vmatprep.subr.mxu0 0.0
      %2547 = vmatpush2.msra.mxu0 0.0
      %2548 = vmatprep.subr.mxu0 0.0
      %2549 = vmatpush2.msra.mxu0 0.0
      %2550 = vmatprep.subr.mxu0 0.0
      %2551 = vmatpush2.msra.mxu0 0.0
      %2552 = vmatprep.subr.mxu0 0.0
      %2553 = vmatpush2.msra.mxu0 0.0
      %2554 = vmatprep.subr.mxu0 0.0
      %2555 = vmatpush2.msra.mxu0 0.0
      %2556 = vmatprep.subr.mxu0 0.0
      %2557 = vmatpush2.msra.mxu0 0.0
      %2558 = vmatprep.subr.mxu0 0.0
      %2559 = vmatpush2.msra.mxu0 0.0
      %2560 = vmatprep.subr.mxu0 0.0
      %2561 = vmatpush2.msra.mxu0 0.0
      %2562 = vmatprep.subr.mxu0 0.0
      %2563 = vmatpush2.msra.mxu0 0.0
      %2564 = vmatprep.subr.mxu0 0.0
      %2565 = vmatpush2.msra.mxu0 0.0
      %2566 = vmatprep.subr.mxu0 0.0
      %2567 = vmatpush2.msra.mxu0 0.0
      %2568 = vmatprep.mubr.f32.mxu0 0.0
      %2569 = vmatmul.mubr.f32.gmra.mxu0 %v2502
      %v2570 = vpop.f32.mrf.mxu0
      %v2571 = vadd.f32 0.0, %v2570
      %v2572 = vpop.f32.mrf.mxu0
      %2573 = vdwg.mxu0
      %v2574 = vadd.f32 %v2333, %v2571
      %2575 = vrot.lane.b32.xlu0 %v883, 104
      %v2576 = vpop.permute.xlu0 %2575
      %2577 = vrot.lane.b32.xlu0 %v879, 72
      %v2578 = vpop.permute.xlu0 %2577
      %v2579 = vsel %vm903, %v2576, 0
      %v2581 = vsel %vm903, %v2578, 0
      %2583 = vmatprep.subr.mxu0 0.0
      %2584 = vmatpush1.xpose.msra.mxu0 0.0
      %2585 = vmatprep.subr.mxu0 0.0
      %2586 = vmatpush1.xpose.msra.mxu0 0.0
      %2587 = vmatprep.subr.mxu0 0.0
      %2588 = vmatpush1.xpose.msra.mxu0 0.0
      %2589 = vmatprep.subr.mxu0 0.0
      %2590 = vmatpush1.xpose.msra.mxu0 0.0
      %2591 = vmatprep.subr.mxu0 0.0
      %2592 = vmatpush1.xpose.msra.mxu0 0.0
      %2593 = vmatprep.subr.mxu0 0.0
      %2594 = vmatpush1.xpose.msra.mxu0 0.0
      %2595 = vmatprep.subr.mxu0 0.0
      %2596 = vmatpush1.xpose.msra.mxu0 0.0
      %2597 = vmatprep.subr.mxu0 0.0
      %2598 = vmatpush1.xpose.msra.mxu0 0.0
      %2599 = vmatprep.subr.mxu0 0.0
      %2600 = vmatpush1.xpose.msra.mxu0 0.0
      %2601 = vmatprep.subr.mxu0 0.0
      %2602 = vmatpush1.xpose.msra.mxu0 0.0
      %2603 = vmatprep.subr.mxu0 0.0
      %2604 = vmatpush1.xpose.msra.mxu0 0.0
      %2605 = vmatprep.subr.mxu0 0.0
      %2606 = vmatpush1.xpose.msra.mxu0 0.0
      %2607 = vmatprep.subr.mxu0 0.0
      %2608 = vmatpush1.xpose.msra.mxu0 0.0
      %2609 = vmatprep.subr.mxu0 0.0
      %2610 = vmatpush1.xpose.msra.mxu0 0.0
      %2611 = vmatprep.subr.mxu0 0.0
      %2612 = vmatpush1.xpose.msra.mxu0 0.0
      %2613 = vmatprep.subr.mxu0 0.0
      %2614 = vmatpush1.xpose.msra.mxu0 %v2581
      %2615 = vmatprep.subr.mxu0 0.0
      %2616 = vmatpush2.xpose.msra.mxu0 0.0
      %2617 = vmatprep.subr.mxu0 0.0
      %2618 = vmatpush2.xpose.msra.mxu0 0.0
      %2619 = vmatprep.subr.mxu0 0.0
      %2620 = vmatpush2.xpose.msra.mxu0 0.0
      %2621 = vmatprep.subr.mxu0 0.0
      %2622 = vmatpush2.xpose.msra.mxu0 0.0
      %2623 = vmatprep.subr.mxu0 0.0
      %2624 = vmatpush2.xpose.msra.mxu0 0.0
      %2625 = vmatprep.subr.mxu0 0.0
      %2626 = vmatpush2.xpose.msra.mxu0 0.0
      %2627 = vmatprep.subr.mxu0 0.0
      %2628 = vmatpush2.xpose.msra.mxu0 0.0
      %2629 = vmatprep.subr.mxu0 0.0
      %2630 = vmatpush2.xpose.msra.mxu0 0.0
      %2631 = vmatprep.subr.mxu0 0.0
      %2632 = vmatpush2.xpose.msra.mxu0 0.0
      %2633 = vmatprep.subr.mxu0 0.0
      %2634 = vmatpush2.xpose.msra.mxu0 0.0
      %2635 = vmatprep.subr.mxu0 0.0
      %2636 = vmatpush2.xpose.msra.mxu0 0.0
      %2637 = vmatprep.subr.mxu0 0.0
      %2638 = vmatpush2.xpose.msra.mxu0 0.0
      %2639 = vmatprep.subr.mxu0 0.0
      %2640 = vmatpush2.xpose.msra.mxu0 0.0
      %2641 = vmatprep.subr.mxu0 0.0
      %2642 = vmatpush2.xpose.msra.mxu0 0.0
      %2643 = vmatprep.subr.mxu0 0.0
      %2644 = vmatpush2.xpose.msra.mxu0 0.0
      %2645 = vmatprep.subr.mxu0 0.0
      %2646 = vmatpush2.xpose.msra.mxu0 0.0
      %2647 = vmatprep.mubr.f32.mxu0 0.0
      %2648 = vmatmul.mubr.f32.gmra.mxu0 %v2579
      %v2649 = vpop.f32.mrf.mxu0
      %v2650 = vadd.f32 %v1859, %v2649
      %v2651 = vpop.f32.mrf.mxu0
      %2652 = vdwg.mxu0
      %v2653 = vsel %vm903, %v2650, -inf
      %2654 = vmax.xlane.f32.xlu0 %v2653
      %v2655 = vpop.xlane.xlu0 %2654
      %v2656 = vsub.f32 %v2650, %v2655
      %v2657 = vmul.f32 %v2656, 1.442695
      %v2658 = vpow.pop %v2657
      %v2659 = vsel %vm903, %v2658, 0.0
      %2660 = vadd.xlane.f32.xlu0 %v2659
      %v2661 = vpop.xlane.xlu0 %2660
      %v2662 = vrcp.pop %v2661
      %v2663 = vmul.f32 %v2658, %v2662
      %2664 = vrot.lane.b32.xlu0 %v879, 40
      %v2665 = vpop.permute.xlu0 %2664
      %v2668 = vsel %vm903, %v2663, 0
      %2670 = vmatprep.subr.mxu0 0.0
      %2671 = vmatpush1.msra.mxu0 0.0
      %2672 = vmatprep.subr.mxu0 0.0
      %2673 = vmatpush1.msra.mxu0 0.0
      %2674 = vmatprep.subr.mxu0 0.0
      %2675 = vmatpush1.msra.mxu0 0.0
      %2676 = vmatprep.subr.mxu0 0.0
      %2677 = vmatpush1.msra.mxu0 0.0
      %2678 = vmatprep.subr.mxu0 0.0
      %2679 = vmatpush1.msra.mxu0 0.0
      %2680 = vmatprep.subr.mxu0 0.0
      %2681 = vmatpush1.msra.mxu0 0.0
      %2682 = vmatprep.subr.mxu0 0.0
      %2683 = vmatpush1.msra.mxu0 0.0
      %2684 = vmatprep.subr.mxu0 0.0
      %2685 = vmatpush1.msra.mxu0 0.0
      %2686 = vmatprep.subr.mxu0 0.0
      %2687 = vmatpush1.msra.mxu0 0.0
      %2688 = vmatprep.subr.mxu0 0.0
      %2689 = vmatpush1.msra.mxu0 0.0
      %2690 = vmatprep.subr.mxu0 0.0
      %2691 = vmatpush1.msra.mxu0 0.0
      %2692 = vmatprep.subr.mxu0 0.0
      %2693 = vmatpush1.msra.mxu0 0.0
      %2694 = vmatprep.subr.mxu0 0.0
      %2695 = vmatpush1.msra.mxu0 0.0
      %2696 = vmatprep.subr.mxu0 0.0
      %2697 = vmatpush1.msra.mxu0 0.0
      %2698 = vmatprep.subr.mxu0 0.0
      %2699 = vmatpush1.msra.mxu0 0.0
      %2700 = vmatprep.subr.mxu0 0.0
      %2701 = vmatpush1.msra.mxu0 %v2665
      %2702 = vmatprep.subr.mxu0 0.0
      %2703 = vmatpush2.msra.mxu0 0.0
      %2704 = vmatprep.subr.mxu0 0.0
      %2705 = vmatpush2.msra.mxu0 0.0
      %2706 = vmatprep.subr.mxu0 0.0
      %2707 = vmatpush2.msra.mxu0 0.0
      %2708 = vmatprep.subr.mxu0 0.0
      %2709 = vmatpush2.msra.mxu0 0.0
      %2710 = vmatprep.subr.mxu0 0.0
      %2711 = vmatpush2.msra.mxu0 0.0
      %2712 = vmatprep.subr.mxu0 0.0
      %2713 = vmatpush2.msra.mxu0 0.0
      %2714 = vmatprep.subr.mxu0 0.0
      %2715 = vmatpush2.msra.mxu0 0.0
      %2716 = vmatprep.subr.mxu0 0.0
      %2717 = vmatpush2.msra.mxu0 0.0
      %2718 = vmatprep.subr.mxu0 0.0
      %2719 = vmatpush2.msra.mxu0 0.0
      %2720 = vmatprep.subr.mxu0 0.0
      %2721 = vmatpush2.msra.mxu0 0.0
      %2722 = vmatprep.subr.mxu0 0.0
      %2723 = vmatpush2.msra.mxu0 0.0
      %2724 = vmatprep.subr.mxu0 0.0
      %2725 = vmatpush2.msra.mxu0 0.0
      %2726 = vmatprep.subr.mxu0 0.0
      %2727 = vmatpush2.msra.mxu0 0.0
      %2728 = vmatprep.subr.mxu0 0.0
      %2729 = vmatpush2.msra.mxu0 0.0
      %2730 = vmatprep.subr.mxu0 0.0
      %2731 = vmatpush2.msra.mxu0 0.0
      %2732 = vmatprep.subr.mxu0 0.0
      %2733 = vmatpush2.msra.mxu0 0.0
      %2734 = vmatprep.mubr.f32.mxu0 0.0
      %2735 = vmatmul.mubr.f32.gmra.mxu0 %v2668
      %v2736 = vpop.f32.mrf.mxu0
      %v2737 = vadd.f32 0.0, %v2736
      %v2738 = vpop.f32.mrf.mxu0
      %2739 = vdwg.mxu0
      %v2741 = vsel %vm903, %v2737, 0
      %2743 = vmatprep.subr.mxu0 0.0
      %2744 = vmatpush1.msra.mxu0 0.0
      %2745 = vmatprep.subr.mxu0 0.0
      %2746 = vmatpush1.msra.mxu0 0.0
      %2747 = vmatprep.subr.mxu0 0.0
      %2748 = vmatpush1.msra.mxu0 0.0
      %2749 = vmatprep.subr.mxu0 0.0
      %2750 = vmatpush1.msra.mxu0 0.0
      %2751 = vmatprep.subr.mxu0 0.0
      %2752 = vmatpush1.msra.mxu0 0.0
      %2753 = vmatprep.subr.mxu0 0.0
      %2754 = vmatpush1.msra.mxu0 0.0
      %2755 = vmatprep.subr.mxu0 0.0
      %2756 = vmatpush1.msra.mxu0 0.0
      %2757 = vmatprep.subr.mxu0 0.0
      %2758 = vmatpush1.msra.mxu0 0.0
      %2759 = vmatprep.subr.mxu0 0.0
      %2760 = vmatpush1.msra.mxu0 0.0
      %2761 = vmatprep.subr.mxu0 0.0
      %2762 = vmatpush1.msra.mxu0 0.0
      %2763 = vmatprep.subr.mxu0 0.0
      %2764 = vmatpush1.msra.mxu0 0.0
      %2765 = vmatprep.subr.mxu0 0.0
      %2766 = vmatpush1.msra.mxu0 0.0
      %2767 = vmatprep.subr.mxu0 0.0
      %2768 = vmatpush1.msra.mxu0 0.0
      %2769 = vmatprep.subr.mxu0 0.0
      %2770 = vmatpush1.msra.mxu0 0.0
      %2771 = vmatprep.subr.mxu0 0.0
      %2772 = vmatpush1.msra.mxu0 0.0
      %2773 = vmatprep.subr.mxu0 0.0
      %2774 = vmatpush1.msra.mxu0 %v894
      %2775 = vmatprep.subr.mxu0 0.0
      %2776 = vmatpush2.msra.mxu0 0.0
      %2777 = vmatprep.subr.mxu0 0.0
      %2778 = vmatpush2.msra.mxu0 0.0
      %2779 = vmatprep.subr.mxu0 0.0
      %2780 = vmatpush2.msra.mxu0 0.0
      %2781 = vmatprep.subr.mxu0 0.0
      %2782 = vmatpush2.msra.mxu0 0.0
      %2783 = vmatprep.subr.mxu0 0.0
      %2784 = vmatpush2.msra.mxu0 0.0
      %2785 = vmatprep.subr.mxu0 0.0
      %2786 = vmatpush2.msra.mxu0 0.0
      %2787 = vmatprep.subr.mxu0 0.0
      %2788 = vmatpush2.msra.mxu0 0.0
      %2789 = vmatprep.subr.mxu0 0.0
      %2790 = vmatpush2.msra.mxu0 0.0
      %2791 = vmatprep.subr.mxu0 0.0
      %2792 = vmatpush2.msra.mxu0 0.0
      %2793 = vmatprep.subr.mxu0 0.0
      %2794 = vmatpush2.msra.mxu0 0.0
      %2795 = vmatprep.subr.mxu0 0.0
      %2796 = vmatpush2.msra.mxu0 0.0
      %2797 = vmatprep.subr.mxu0 0.0
      %2798 = vmatpush2.msra.mxu0 0.0
      %2799 = vmatprep.subr.mxu0 0.0
      %2800 = vmatpush2.msra.mxu0 0.0
      %2801 = vmatprep.subr.mxu0 0.0
      %2802 = vmatpush2.msra.mxu0 0.0
      %2803 = vmatprep.subr.mxu0 0.0
      %2804 = vmatpush2.msra.mxu0 0.0
      %2805 = vmatprep.subr.mxu0 0.0
      %2806 = vmatpush2.msra.mxu0 0.0
      %2807 = vmatprep.mubr.f32.mxu0 0.0
      %2808 = vmatmul.mubr.f32.gmra.mxu0 %v2741
      %v2809 = vpop.f32.mrf.mxu0
      %v2810 = vadd.f32 0.0, %v2809
      %v2811 = vpop.f32.mrf.mxu0
      %2812 = vdwg.mxu0
      %v2813 = vadd.f32 %v2574, %v2810
      %v2814 = vld [vmem:[%s710] sm:$0x1]
      %v2816 = vlaneseq
      %v2817 = vshrl.u32 %v2816, 7
      %v2818 = vsub.s32 0, %v2817
      %v2819 = vrot.slane %v2814, %v2818
      %v2821 = vadd.f32 %v1854, %v2819
      %v2822 = vadd.f32 %v2813, %v2819
      %v2823 = vadd.f32 %v742, %v2821
      %v2824 = vadd.f32 %v743, %v2822
      %v2825 = vld [vmem:[%s713] sm:$0x1]
      %v2826 = vld [vmem:[%s716] sm:$0x1]
      %v2827 = vsel %vm746, %v2823, 0.0
      %2828 = vadd.xlane.f32.xlu0 %v2827
      %v2829 = vpop.xlane.xlu0 %2828
      %v2830 = vsel %vm746, %v2824, 0.0
      %2831 = vadd.xlane.f32.xlu0 %v2830
      %v2832 = vpop.xlane.xlu0 %2831
      %v2833 = vmul.f32 %v2829, %v753
      %v2834 = vmul.f32 %v2832, %v753
      %v2835 = vsub.f32 %v2823, %v2833
      %v2836 = vsub.f32 %v2824, %v2834
      %v2837 = vmul.f32 %v2835, %v2835
      %v2838 = vmul.f32 %v2836, %v2836
      %v2839 = vsel %vm746, %v2837, 0.0
      %2840 = vadd.xlane.f32.xlu0 %v2839
      %v2841 = vpop.xlane.xlu0 %2840
      %v2842 = vsel %vm746, %v2838, 0.0
      %2843 = vadd.xlane.f32.xlu0 %v2842
      %v2844 = vpop.xlane.xlu0 %2843
      %v2845 = vmul.f32 %v2841, %v753
      %v2846 = vmul.f32 %v2844, %v753
      %v2847 = vadd.f32 %v2845, 1e-05
      %v2848 = vadd.f32 %v2846, 1e-05
      %v2849 = vrsqrt.pop %v2847
      %v2850 = vrsqrt.pop %v2848
      %v2851 = vmul.f32 %v2835, %v2849
      %v2852 = vmul.f32 %v2836, %v2850
      %v2854 = vlaneseq
      %v2855 = vshrl.u32 %v2854, 7
      %v2856 = vsub.s32 0, %v2855
      %v2857 = vrot.slane %v2825, %v2856
      %v2859 = vmul.f32 %v2851, %v2857
      %v2860 = vmul.f32 %v2852, %v2857
      %v2862 = vlaneseq
      %v2863 = vshrl.u32 %v2862, 7
      %v2864 = vsub.s32 0, %v2863
      %v2865 = vrot.slane %v2826, %v2864
      %v2867 = vadd.f32 %v2859, %v2865
      %v2868 = vadd.f32 %v2860, %v2865
      %v2869 = vld [vmem:[%s721] sm:$0xff]
      %v2870 = vld [vmem:[%s721 + $0x8] sm:$0xff]
      %v2871 = vld [vmem:[%s721 + $0x10] sm:$0xff]
      %v2872 = vld [vmem:[%s721 + $0x18] sm:$0xff]
      %v2873 = vld [vmem:[%s724] sm:$0x1]
      %v2875 = vlaneseq
      %v2876 = vshrl.u32 %v2875, 7
      %v2877 = vsub.s32 0, %v2876
      %v2878 = vrot.slane %v2873, %v2877
      %v2881 = vsel %vm746, %v2867, 0
      %v2884 = vsel %vm746, %v2868, 0
      %2886 = vmatprep.subr.mxu0 0.0
      %2887 = vmatpush1.msra.mxu0 0.0
      %2888 = vmatprep.subr.mxu0 0.0
      %2889 = vmatpush1.msra.mxu0 0.0
      %2890 = vmatprep.subr.mxu0 0.0
      %2891 = vmatpush1.msra.mxu0 0.0
      %2892 = vmatprep.subr.mxu0 0.0
      %2893 = vmatpush1.msra.mxu0 0.0
      %2894 = vmatprep.subr.mxu0 0.0
      %2895 = vmatpush1.msra.mxu0 0.0
      %2896 = vmatprep.subr.mxu0 0.0
      %2897 = vmatpush1.msra.mxu0 0.0
      %2898 = vmatprep.subr.mxu0 0.0
      %2899 = vmatpush1.msra.mxu0 0.0
      %2900 = vmatprep.subr.mxu0 0.0
      %2901 = vmatpush1.msra.mxu0 0.0
      %2902 = vmatprep.subr.mxu0 0.0
      %2903 = vmatpush1.msra.mxu0 0.0
      %2904 = vmatprep.subr.mxu0 0.0
      %2905 = vmatpush1.msra.mxu0 0.0
      %2906 = vmatprep.subr.mxu0 0.0
      %2907 = vmatpush1.msra.mxu0 0.0
      %2908 = vmatprep.subr.mxu0 0.0
      %2909 = vmatpush1.msra.mxu0 0.0
      %2910 = vmatprep.subr.mxu0 0.0
      %2911 = vmatpush1.msra.mxu0 %v2872
      %2912 = vmatprep.subr.mxu0 0.0
      %2913 = vmatpush1.msra.mxu0 %v2871
      %2914 = vmatprep.subr.mxu0 0.0
      %2915 = vmatpush1.msra.mxu0 %v2870
      %2916 = vmatprep.subr.mxu0 0.0
      %2917 = vmatpush1.msra.mxu0 %v2869
      %2918 = vmatprep.subr.mxu0 0.0
      %2919 = vmatpush2.msra.mxu0 0.0
      %2920 = vmatprep.subr.mxu0 0.0
      %2921 = vmatpush2.msra.mxu0 0.0
      %2922 = vmatprep.subr.mxu0 0.0
      %2923 = vmatpush2.msra.mxu0 0.0
      %2924 = vmatprep.subr.mxu0 0.0
      %2925 = vmatpush2.msra.mxu0 0.0
      %2926 = vmatprep.subr.mxu0 0.0
      %2927 = vmatpush2.msra.mxu0 0.0
      %2928 = vmatprep.subr.mxu0 0.0
      %2929 = vmatpush2.msra.mxu0 0.0
      %2930 = vmatprep.subr.mxu0 0.0
      %2931 = vmatpush2.msra.mxu0 0.0
      %2932 = vmatprep.subr.mxu0 0.0
      %2933 = vmatpush2.msra.mxu0 0.0
      %2934 = vmatprep.subr.mxu0 0.0
      %2935 = vmatpush2.msra.mxu0 0.0
      %2936 = vmatprep.subr.mxu0 0.0
      %2937 = vmatpush2.msra.mxu0 0.0
      %2938 = vmatprep.subr.mxu0 0.0
      %2939 = vmatpush2.msra.mxu0 0.0
      %2940 = vmatprep.subr.mxu0 0.0
      %2941 = vmatpush2.msra.mxu0 0.0
      %2942 = vmatprep.subr.mxu0 0.0
      %2943 = vmatpush2.msra.mxu0 0.0
      %2944 = vmatprep.subr.mxu0 0.0
      %2945 = vmatpush2.msra.mxu0 0.0
      %2946 = vmatprep.subr.mxu0 0.0
      %2947 = vmatpush2.msra.mxu0 0.0
      %2948 = vmatprep.subr.mxu0 0.0
      %2949 = vmatpush2.msra.mxu0 0.0
      %2950 = vmatprep.mubr.f32.mxu0 0.0
      %2951 = vmatmul.mubr.f32.gmra.mxu0 %v2881
      %v2952 = vpop.f32.mrf.mxu0
      %v2953 = vadd.f32 %v2878, %v2952
      %v2954 = vpop.f32.mrf.mxu0
      %2955 = vmatprep.mubr.f32.mxu0 0.0
      %2956 = vmatmul.mubr.f32.gmra.mxu0 %v2884
      %v2957 = vpop.f32.mrf.mxu0
      %v2958 = vadd.f32 %v2878, %v2957
      %v2959 = vpop.f32.mrf.mxu0
      %2960 = vdwg.mxu0
      %v2961 = vmul.f32 %v2953, 1.702
      %v2962 = vmul.f32 %v2958, 1.702
      %v2963 = vxor.u32 %v2961, 2147483648
      %v2964 = vxor.u32 %v2962, 2147483648
      %v2965 = vmul.f32 %v2963, 1.442695
      %v2966 = vpow.pop %v2965
      %v2967 = vmul.f32 %v2964, 1.442695
      %v2968 = vpow.pop %v2967
      %v2969 = vadd.f32 %v2966, 1.0
      %v2970 = vadd.f32 %v2968, 1.0
      %v2971 = vrcp.pop %v2969
      %v2972 = vmul.f32 1.0, %v2971
      %v2973 = vrcp.pop %v2970
      %v2974 = vmul.f32 1.0, %v2973
      %v2975 = vmul.f32 %v2953, %v2972
      %v2976 = vmul.f32 %v2958, %v2974
      %v2977 = vld [vmem:[%s729] sm:$0xff]
      %v2978 = vld [vmem:[%s729 + $0x8] sm:$0xff]
      %v2979 = vld [vmem:[%s729 + $0x10] sm:$0xff]
      %v2980 = vld [vmem:[%s729 + $0x18] sm:$0xff]
      %v2981 = vld [vmem:[%s729 + $0x20] sm:$0xff]
      %v2982 = vld [vmem:[%s729 + $0x28] sm:$0xff]
      %v2983 = vld [vmem:[%s729 + $0x30] sm:$0xff]
      %v2984 = vld [vmem:[%s729 + $0x38] sm:$0xff]
      %v2985 = vld [vmem:[%s729 + $0x40] sm:$0xff]
      %v2986 = vld [vmem:[%s729 + $0x48] sm:$0xff]
      %v2987 = vld [vmem:[%s729 + $0x50] sm:$0xff]
      %v2988 = vld [vmem:[%s729 + $0x58] sm:$0xff]
      %v2989 = vld [vmem:[%s729 + $0x60] sm:$0xff]
      %v2990 = vld [vmem:[%s729 + $0x68] sm:$0xff]
      %v2991 = vld [vmem:[%s729 + $0x70] sm:$0xff]
      %v2992 = vld [vmem:[%s729 + $0x78] sm:$0xff]
      %v2993 = vld [vmem:[%s732] sm:$0x1]
      %v2995 = vlaneseq
      %v2996 = vshrl.u32 %v2995, 7
      %v2997 = vsub.s32 0, %v2996
      %v2998 = vrot.slane %v2993, %v2997
      %3000 = vmatprep.subr.mxu0 0.0
      %3001 = vmatpush1.msra.mxu0 %v2992
      %3002 = vmatprep.subr.mxu0 0.0
      %3003 = vmatpush1.msra.mxu0 %v2991
      %3004 = vmatprep.subr.mxu0 0.0
      %3005 = vmatpush1.msra.mxu0 %v2990
      %3006 = vmatprep.subr.mxu0 0.0
      %3007 = vmatpush1.msra.mxu0 %v2989
      %3008 = vmatprep.subr.mxu0 0.0
      %3009 = vmatpush1.msra.mxu0 %v2988
      %3010 = vmatprep.subr.mxu0 0.0
      %3011 = vmatpush1.msra.mxu0 %v2987
      %3012 = vmatprep.subr.mxu0 0.0
      %3013 = vmatpush1.msra.mxu0 %v2986
      %3014 = vmatprep.subr.mxu0 0.0
      %3015 = vmatpush1.msra.mxu0 %v2985
      %3016 = vmatprep.subr.mxu0 0.0
      %3017 = vmatpush1.msra.mxu0 %v2984
      %3018 = vmatprep.subr.mxu0 0.0
      %3019 = vmatpush1.msra.mxu0 %v2983
      %3020 = vmatprep.subr.mxu0 0.0
      %3021 = vmatpush1.msra.mxu0 %v2982
      %3022 = vmatprep.subr.mxu0 0.0
      %3023 = vmatpush1.msra.mxu0 %v2981
      %3024 = vmatprep.subr.mxu0 0.0
      %3025 = vmatpush1.msra.mxu0 %v2980
      %3026 = vmatprep.subr.mxu0 0.0
      %3027 = vmatpush1.msra.mxu0 %v2979
      %3028 = vmatprep.subr.mxu0 0.0
      %3029 = vmatpush1.msra.mxu0 %v2978
      %3030 = vmatprep.subr.mxu0 0.0
      %3031 = vmatpush1.msra.mxu0 %v2977
      %3032 = vmatprep.subr.mxu0 0.0
      %3033 = vmatpush2.msra.mxu0 0.0
      %3034 = vmatprep.subr.mxu0 0.0
      %3035 = vmatpush2.msra.mxu0 0.0
      %3036 = vmatprep.subr.mxu0 0.0
      %3037 = vmatpush2.msra.mxu0 0.0
      %3038 = vmatprep.subr.mxu0 0.0
      %3039 = vmatpush2.msra.mxu0 0.0
      %3040 = vmatprep.subr.mxu0 0.0
      %3041 = vmatpush2.msra.mxu0 0.0
      %3042 = vmatprep.subr.mxu0 0.0
      %3043 = vmatpush2.msra.mxu0 0.0
      %3044 = vmatprep.subr.mxu0 0.0
      %3045 = vmatpush2.msra.mxu0 0.0
      %3046 = vmatprep.subr.mxu0 0.0
      %3047 = vmatpush2.msra.mxu0 0.0
      %3048 = vmatprep.subr.mxu0 0.0
      %3049 = vmatpush2.msra.mxu0 0.0
      %3050 = vmatprep.subr.mxu0 0.0
      %3051 = vmatpush2.msra.mxu0 0.0
      %3052 = vmatprep.subr.mxu0 0.0
      %3053 = vmatpush2.msra.mxu0 0.0
      %3054 = vmatprep.subr.mxu0 0.0
      %3055 = vmatpush2.msra.mxu0 0.0
      %3056 = vmatprep.subr.mxu0 0.0
      %3057 = vmatpush2.msra.mxu0 0.0
      %3058 = vmatprep.subr.mxu0 0.0
      %3059 = vmatpush2.msra.mxu0 0.0
      %3060 = vmatprep.subr.mxu0 0.0
      %3061 = vmatpush2.msra.mxu0 0.0
      %3062 = vmatprep.subr.mxu0 0.0
      %3063 = vmatpush2.msra.mxu0 0.0
      %3064 = vmatprep.mubr.f32.mxu0 0.0
      %3065 = vmatmul.mubr.f32.gmra.mxu0 %v2975
      %v3066 = vpop.f32.mrf.mxu0
      %v3067 = vadd.f32 %v2998, %v3066
      %v3068 = vpop.f32.mrf.mxu0
      %3069 = vmatprep.mubr.f32.mxu0 0.0
      %3070 = vmatmul.mubr.f32.gmra.mxu0 %v2976
      %v3071 = vpop.f32.mrf.mxu0
      %v3072 = vadd.f32 %v2998, %v3071
      %v3073 = vpop.f32.mrf.mxu0
      %3074 = vdwg.mxu0
      %v3075 = vadd.f32 %v2823, %v3067
      %v3076 = vadd.f32 %v2824, %v3072
      %3077 = vst.msk [vmem:[#allocation2] sm:$0xff] %vm746, %v3075
      %3078 = vst.msk [vmem:[#allocation2 + $0x8] sm:$0xff] %vm746, %v3076
      %p3079 = scmp.eq.s32.totalorder %s29, 1
      // Predicated region
      $region97: #{clip_forward.4} parent=91 // pred_check
        %p3080 = pneg %p3079
      $region98: #{clip_forward.4} parent=91 // pred_check_branch
        %3082 = sbr.rel (%p3080) target = $region100
      $region99: #{clip_forward.4} parent=91 // pred_region
        %v3083 = vld [vmem:[%s4] sm:$0x1]
        %v3084 = vld [vmem:[%s5] sm:$0x1]
        %v3085 = vsel %vm746, %v3075, 0.0
        %3086 = vadd.xlane.f32.xlu0 %v3085
        %v3087 = vpop.xlane.xlu0 %3086
        %v3088 = vsel %vm746, %v3076, 0.0
        %3089 = vadd.xlane.f32.xlu0 %v3088
        %v3090 = vpop.xlane.xlu0 %3089
        %v3091 = vmul.f32 %v3087, %v753
        %v3092 = vmul.f32 %v3090, %v753
        %v3093 = vsub.f32 %v3075, %v3091
        %v3094 = vsub.f32 %v3076, %v3092
        %v3095 = vmul.f32 %v3093, %v3093
        %v3096 = vmul.f32 %v3094, %v3094
        %v3097 = vsel %vm746, %v3095, 0.0
        %3098 = vadd.xlane.f32.xlu0 %v3097
        %v3099 = vpop.xlane.xlu0 %3098
        %v3100 = vsel %vm746, %v3096, 0.0
        %3101 = vadd.xlane.f32.xlu0 %v3100
        %v3102 = vpop.xlane.xlu0 %3101
        %v3103 = vmul.f32 %v3099, %v753
        %v3104 = vmul.f32 %v3102, %v753
        %v3105 = vadd.f32 %v3103, 1e-05
        %v3106 = vadd.f32 %v3104, 1e-05
        %v3107 = vrsqrt.pop %v3105
        %v3108 = vrsqrt.pop %v3106
        %v3109 = vmul.f32 %v3093, %v3107
        %v3110 = vmul.f32 %v3094, %v3108
        %v3112 = vlaneseq
        %v3113 = vshrl.u32 %v3112, 7
        %v3114 = vsub.s32 0, %v3113
        %v3115 = vrot.slane %v3083, %v3114
        %v3117 = vmul.f32 %v3109, %v3115
        %v3118 = vmul.f32 %v3110, %v3115
        %v3120 = vlaneseq
        %v3121 = vshrl.u32 %v3120, 7
        %v3122 = vsub.s32 0, %v3121
        %v3123 = vrot.slane %v3084, %v3122
        %v3125 = vadd.f32 %v3117, %v3123
        %v3126 = vadd.f32 %v3118, %v3123
        %3127 = vst.msk [vmem:[%s18] sm:$0xff] %vm746, %v3125
        %3128 = vst.msk [vmem:[%s18 + $0x8] sm:$0xff] %vm746, %v3126
      $region100: #{clip_forward.4} parent=91 // pred_fallthru
        _
      // Predicated region
      $region101: #{clip_forward.4} parent=91 // pred_check
        %p3129 = pneg %p480
      $region102: #{clip_forward.4} parent=91 // pred_check_branch
        %3131 = sbr.rel (%p3129) target = $region104
      $region103: #{clip_forward.4} parent=91 // pred_region
        _
      $region104: #{clip_forward.4} parent=91 // pred_fallthru
        _
      // Predicated region
      $region105: #{clip_forward.4} parent=91 // pred_check
        %p3132 = pneg %p480
      $region106: #{clip_forward.4} parent=91 // pred_check_branch
        %3134 = sbr.rel (%p3132) target = $region108
      $region107: #{clip_forward.4} parent=91 // pred_region
        _
      $region108: #{clip_forward.4} parent=91 // pred_fallthru
        _
    $region92: #{clip_forward.4} parent=5 // pred_fallthru
      _
    %p3135 = scmp.le.s32.totalorder 2, %s24
    // Predicated region
    $region109: #{clip_forward.4} parent=5 // pred_check
      %p3136 = pneg %p3135
    $region110: #{clip_forward.4} parent=5 // pred_check_branch
      %3138 = sbr.rel (%p3136) target = $region112
    $region111: #{clip_forward.4} parent=5 // pred_region
      %s3139 = ssub.s32 %s24, 2
    $region112: #{clip_forward.4} parent=5 // pred_fallthru
      _
  $region6: #{clip_forward.4} parent=0 // loop_footer
    %s28 = sadd.s32 1, %s24
  $region7: #{clip_forward.4} parent=0 // loop_footer_branch
    %23 = sbr.rel target = $region3
  $region8: #{clip_forward.4} parent=0 // loop_exit
    _

</llo_original>
